<compile_context>
chip_gen: v6e
topology: v6e:2x2x1
jax: 0.10.0
libtpu: 0.0.40
codegen_flags: <defaults>
</compile_context>

<pallas_src>
import functools

import jax
import jax.numpy as jnp
import numpy as np
from jax import lax
from jax.experimental import pallas as pl
from jax.experimental.pallas import tpu as pltpu

LN_EPS = 1e-5


def _erf_approx(z):
    # Abramowitz & Stegun 7.1.26, |error| <= 1.5e-7 (only needs exp/abs/where,
    # all of which lower cleanly in Mosaic).
    a1, a2, a3, a4, a5 = (0.254829592, -0.284496736, 1.421413741,
                          -1.453152027, 1.061405429)
    p = 0.3275911
    sgn = jnp.where(z >= 0.0, 1.0, -1.0)
    az = jnp.abs(z)
    t = 1.0 / (1.0 + p * az)
    poly = ((((a5 * t + a4) * t + a3) * t + a2) * t + a1) * t
    return sgn * (1.0 - poly * jnp.exp(-az * az))


def _gelu_exact(z):
    # PyTorch nn.GELU() default: 0.5 * z * (1 + erf(z / sqrt(2)))
    return 0.5 * z * (1.0 + _erf_approx(z * 0.7071067811865476))


def decoder_kernel(x_ref, tok_ref,
                   ln1w_ref, ln1b_ref,
                   wq_ref, bq_ref, wk_ref, bk_ref, wv_ref, bv_ref,
                   ln2w_ref, ln2b_ref,
                   w1_ref, b1_ref, w2_ref, b2_ref,
                   o_ref, *, num_heads, depths):
    f32 = jnp.float32
    x = x_ref[0].astype(f32)       # (P, C)
    tok = tok_ref[0].astype(f32)   # (T, C)

    C = x.shape[-1]
    D = C // num_heads
    scale = float(D) ** -0.5

    def layernorm(z, g, b):
        mu = jnp.mean(z, axis=-1, keepdims=True)
        var = jnp.mean((z - mu) * (z - mu), axis=-1, keepdims=True)
        return (z - mu) * lax.rsqrt(var + LN_EPS) * g + b

    # K/V are depth-loop invariant (token + shared weights; dropout = identity),
    # so compute them once per batch element and keep them in VMEM/vregs.
    k = jnp.dot(tok, wk_ref[...], preferred_element_type=f32) + bk_ref[...]
    v = jnp.dot(tok, wv_ref[...], preferred_element_type=f32) + bv_ref[...]

    dn_nt = (((1,), (1,)), ((), ()))   # contract last dims: A @ B.T (no transpose op)

    for _ in range(depths):            # depths is small & static -> full unroll
        # ---- cross-attention block ----
        resid = x
        xn = layernorm(x, ln1w_ref[...], ln1b_ref[...])
        q = jnp.dot(xn, wq_ref[...], preferred_element_type=f32) + bq_ref[...]

        scores = []
        for h in range(num_heads):
            qh = q[:, h * D:(h + 1) * D]
            kh = k[:, h * D:(h + 1) * D]
            scores.append(
                lax.dot_general(qh, kh, dn_nt, preferred_element_type=f32) * scale
            )  # (P, T)

        # nn.Softmax(dim=1): normalize over the HEAD axis (PyTorch quirk).
        m = scores[0]
        for s in scores[1:]:
            m = jnp.maximum(m, s)
        exps = [jnp.exp(s - m) for s in scores]
        denom = exps[0]
        for e in exps[1:]:
            denom = denom + e
        inv = 1.0 / denom

        ctx = [
            jnp.dot(exps[h] * inv, v[:, h * D:(h + 1) * D],
                    preferred_element_type=f32)
            for h in range(num_heads)
        ]
        x = resid + jnp.concatenate(ctx, axis=-1)
        # TODO(synk): dropout (p=0.1) treated as identity (eval mode).

        # ---- MLP block ----
        resid = x
        xn = layernorm(x, ln2w_ref[...], ln2b_ref[...])
        h1 = jnp.dot(xn, w1_ref[...], preferred_element_type=f32) + b1_ref[...]
        h1 = _gelu_exact(h1)
        y = jnp.dot(h1, w2_ref[...], preferred_element_type=f32) + b2_ref[...]
        x = resid + y

    o_ref[0] = x.astype(o_ref.dtype)


@functools.partial(jax.jit, static_argnames=("num_heads", "depths"))
def decoder_forward(x_nchw, token, params, *, num_heads, depths):
    """x_nchw: (B, C, H, W); token: (B, T, C); params in PyTorch layouts."""
    B, C, Hs, Ws = x_nchw.shape
    P = Hs * Ws
    T = token.shape[1]
    Ch = params["w1"].shape[0]     # mlp hidden = 4*C  (PyTorch weight is (out, in))

    # rearrange 'b c h w -> b (h w) c'
    x3 = jnp.transpose(x_nchw, (0, 2, 3, 1)).reshape(B, P, C).astype(jnp.float32)
    tok = token.astype(jnp.float32)

    # PyTorch Linear weights are (out, in); pre-transpose so the kernel does x @ W.
    wq = jnp.transpose(params["wq"]).astype(jnp.float32)   # (C, C)
    wk = jnp.transpose(params["wk"]).astype(jnp.float32)
    wv = jnp.transpose(params["wv"]).astype(jnp.float32)
    w1 = jnp.transpose(params["w1"]).astype(jnp.float32)   # (C, Ch)
    w2 = jnp.transpose(params["w2"]).astype(jnp.float32)   # (Ch, C)
    bq = params["bq"].reshape(1, C).astype(jnp.float32)
    bk = params["bk"].reshape(1, C).astype(jnp.float32)
    bv = params["bv"].reshape(1, C).astype(jnp.float32)
    b1 = params["b1"].reshape(1, Ch).astype(jnp.float32)
    b2 = params["b2"].reshape(1, C).astype(jnp.float32)
    ln1w = params["ln1_w"].reshape(1, C).astype(jnp.float32)
    ln1b = params["ln1_b"].reshape(1, C).astype(jnp.float32)
    ln2w = params["ln2_w"].reshape(1, C).astype(jnp.float32)
    ln2b = params["ln2_b"].reshape(1, C).astype(jnp.float32)

    def resident(shape):
        return pl.BlockSpec(shape, lambda b: (0, 0))

    in_specs = [
        pl.BlockSpec((1, P, C), lambda b: (b, 0, 0)),   # x
        pl.BlockSpec((1, T, C), lambda b: (b, 0, 0)),   # token
        resident((1, C)), resident((1, C)),             # ln1 w,b
        resident((C, C)), resident((1, C)),             # wq, bq
        resident((C, C)), resident((1, C)),             # wk, bk
        resident((C, C)), resident((1, C)),             # wv, bv
        resident((1, C)), resident((1, C)),             # ln2 w,b
        resident((C, Ch)), resident((1, Ch)),           # w1, b1
        resident((Ch, C)), resident((1, C)),            # w2, b2
    ]

    weight_list = (ln1w, ln1b, wq, bq, wk, bk, wv, bv, ln2w, ln2b, w1, b1, w2, b2)

    # Advisory cost estimate for the XLA scheduler.
    per_depth = (2 * P * C * C            # q projection
                 + 2 * 2 * P * T * C      # scores + context matmuls
                 + 2 * 2 * P * C * Ch)    # fc1 + fc2
    flops = B * (2 * (2 * T * C * C) + depths * per_depth)
    transcendentals = B * depths * (num_heads * P * T + P * Ch)
    bytes_accessed = 4 * (2 * B * P * C + B * T * C
                          + sum(int(w.size) for w in weight_list))
    cost = pl.CostEstimate(flops=flops, transcendentals=transcendentals,
                           bytes_accessed=bytes_accessed)

    out3 = pl.pallas_call(
        functools.partial(decoder_kernel, num_heads=num_heads, depths=depths),
        out_shape=jax.ShapeDtypeStruct((B, P, C), jnp.float32),
        grid_spec=pltpu.PrefetchScalarGridSpec(
            num_scalar_prefetch=0,
            grid=(B,),
            in_specs=in_specs,
            out_specs=pl.BlockSpec((1, P, C), lambda b: (b, 0, 0)),
        ),
        compiler_params=pltpu.CompilerParams(
            dimension_semantics=("parallel",),
            vmem_limit_bytes=32 * 1024 * 1024,
        ),
        cost_estimate=cost,
    )(x3, tok, *weight_list)

    # rearrange 'b (h w) c -> b c h w'
    return jnp.transpose(out3.reshape(B, Hs, Ws, C), (0, 3, 1, 2))


def reference_decoder(x_nchw, token, p, *, num_heads, depths):
    """Pure-JAX replica of the PyTorch Decoder.forward (eval mode), f32 HIGHEST."""
    B, C, Hs, Ws = x_nchw.shape
    P = Hs * Ws
    T = token.shape[1]
    D = C // num_heads
    scale = float(D) ** -0.5
    hp = lax.Precision.HIGHEST

    def linear(z, w, b):
        return jnp.matmul(z, jnp.transpose(w), precision=hp) + b

    def layernorm(z, g, b):
        mu = jnp.mean(z, axis=-1, keepdims=True)
        var = jnp.mean((z - mu) ** 2, axis=-1, keepdims=True)
        return (z - mu) * lax.rsqrt(var + LN_EPS) * g + b

    x = jnp.transpose(x_nchw, (0, 2, 3, 1)).reshape(B, P, C).astype(jnp.float32)
    tok = token.astype(jnp.float32)

    for _ in range(depths):
        resid = x
        xn = layernorm(x, p["ln1_w"], p["ln1_b"])
        q = linear(xn, p["wq"], p["bq"])
        k = linear(tok, p["wk"], p["bk"])
        v = linear(tok, p["wv"], p["bv"])
        q = q.reshape(B, P, num_heads, D).transpose(0, 2, 1, 3)   # b h p d
        k = k.reshape(B, T, num_heads, D).transpose(0, 2, 3, 1)   # b h d t
        v = v.reshape(B, T, num_heads, D).transpose(0, 2, 1, 3)   # b h t d
        attn = jnp.einsum("bhpd,bhdt->bhpt", q, k, precision=hp) * scale
        attn = jax.nn.softmax(attn, axis=1)                       # nn.Softmax(dim=1)
        ctx = jnp.einsum("bhpt,bhtd->bhpd", attn, v, precision=hp)
        ctx = ctx.transpose(0, 2, 1, 3).reshape(B, P, C)
        x = resid + ctx

        resid = x
        xn = layernorm(x, p["ln2_w"], p["ln2_b"])
        h1 = jax.nn.gelu(linear(xn, p["w1"], p["b1"]), approximate=False)
        x = resid + linear(h1, p["w2"], p["b2"])

    return jnp.transpose(x.reshape(B, Hs, Ws, C), (0, 3, 1, 2))


if __name__ == "__main__":
    # Decoder(patch_dims=32, num_heads=2, depths=8): x (B, 32, 4, 4), token (B, 8, 32)
    B, C, Hs, Ws = 2, 32, 4, 4
    T = 8
    num_heads, depths = 2, 8
    Ch = 4 * C

    key = jax.random.PRNGKey(0)
    ks = jax.random.split(key, 16)
    x = jax.random.normal(ks[0], (B, C, Hs, Ws), dtype=jnp.float32)
    token = jax.random.normal(ks[1], (B, T, C), dtype=jnp.float32)

    def lin_init(kw, kb, out_f, in_f):
        w = jax.random.normal(kw, (out_f, in_f), dtype=jnp.float32) / np.sqrt(in_f)
        b = jax.random.normal(kb, (out_f,), dtype=jnp.float32) * 0.02
        return w, b

    wq, bq = lin_init(ks[2], ks[3], C, C)
    wk, bk = lin_init(ks[4], ks[5], C, C)
    wv, bv = lin_init(ks[6], ks[7], C, C)
    w1, b1 = lin_init(ks[8], ks[9], Ch, C)
    w2, b2 = lin_init(ks[10], ks[11], C, Ch)
    ln1_w = 1.0 + 0.1 * jax.random.normal(ks[12], (C,), dtype=jnp.float32)
    ln1_b = 0.1 * jax.random.normal(ks[13], (C,), dtype=jnp.float32)
    ln2_w = 1.0 + 0.1 * jax.random.normal(ks[14], (C,), dtype=jnp.float32)
    ln2_b = 0.1 * jax.random.normal(ks[15], (C,), dtype=jnp.float32)

    params = dict(ln1_w=ln1_w, ln1_b=ln1_b, wq=wq, bq=bq, wk=wk, bk=bk,
                  wv=wv, bv=bv, ln2_w=ln2_w, ln2_b=ln2_b,
                  w1=w1, b1=b1, w2=w2, b2=b2)

    out = decoder_forward(x, token, params, num_heads=num_heads, depths=depths)
    out = jax.block_until_ready(out)

    ref = reference_decoder(x, token, params, num_heads=num_heads, depths=depths)
    np.testing.assert_allclose(np.asarray(out), np.asarray(ref),
                               atol=2e-3, rtol=2e-3)

    print("KERNEL_OK")
</pallas_src>

<mosaic_0001>
module attributes {stable_mosaic.version = 11 : i64} {
  func.func @decoder_kernel(%arg0: i32, %arg1: memref<1x16x32xf32, #tpu.memory_space<vmem>>, %arg2: memref<1x8x32xf32, #tpu.memory_space<vmem>>, %arg3: memref<1x32xf32, #tpu.memory_space<vmem>>, %arg4: memref<1x32xf32, #tpu.memory_space<vmem>>, %arg5: memref<32x32xf32, #tpu.memory_space<vmem>>, %arg6: memref<1x32xf32, #tpu.memory_space<vmem>>, %arg7: memref<32x32xf32, #tpu.memory_space<vmem>>, %arg8: memref<1x32xf32, #tpu.memory_space<vmem>>, %arg9: memref<32x32xf32, #tpu.memory_space<vmem>>, %arg10: memref<1x32xf32, #tpu.memory_space<vmem>>, %arg11: memref<1x32xf32, #tpu.memory_space<vmem>>, %arg12: memref<1x32xf32, #tpu.memory_space<vmem>>, %arg13: memref<32x128xf32, #tpu.memory_space<vmem>>, %arg14: memref<1x128xf32, #tpu.memory_space<vmem>>, %arg15: memref<128x32xf32, #tpu.memory_space<vmem>>, %arg16: memref<1x32xf32, #tpu.memory_space<vmem>>, %arg17: memref<1x16x32xf32, #tpu.memory_space<vmem>>) attributes {dimension_semantics = [#tpu.dimension_semantics<parallel>], iteration_bounds = array<i64: 2>, scalar_prefetch = 0 : i64, scratch_operands = 0 : i64, tpu.core_type = #tpu.core_type<tc>, window_params = [{transform_indices = @transform_0, window_bounds = array<i64: 1, 16, 32>}, {transform_indices = @transform_1, window_bounds = array<i64: 1, 8, 32>}, {pipeline_mode = #tpu.pipeline_mode<synchronous>, transform_indices = @transform_2, window_bounds = array<i64: 1, 32>}, {pipeline_mode = #tpu.pipeline_mode<synchronous>, transform_indices = @transform_3, window_bounds = array<i64: 1, 32>}, {pipeline_mode = #tpu.pipeline_mode<synchronous>, transform_indices = @transform_4, window_bounds = array<i64: 32, 32>}, {pipeline_mode = #tpu.pipeline_mode<synchronous>, transform_indices = @transform_5, window_bounds = array<i64: 1, 32>}, {pipeline_mode = #tpu.pipeline_mode<synchronous>, transform_indices = @transform_6, window_bounds = array<i64: 32, 32>}, {pipeline_mode = #tpu.pipeline_mode<synchronous>, transform_indices = @transform_7, window_bounds = array<i64: 1, 32>}, {pipeline_mode = #tpu.pipeline_mode<synchronous>, transform_indices = @transform_8, window_bounds = array<i64: 32, 32>}, {pipeline_mode = #tpu.pipeline_mode<synchronous>, transform_indices = @transform_9, window_bounds = array<i64: 1, 32>}, {pipeline_mode = #tpu.pipeline_mode<synchronous>, transform_indices = @transform_10, window_bounds = array<i64: 1, 32>}, {pipeline_mode = #tpu.pipeline_mode<synchronous>, transform_indices = @transform_11, window_bounds = array<i64: 1, 32>}, {pipeline_mode = #tpu.pipeline_mode<synchronous>, transform_indices = @transform_12, window_bounds = array<i64: 32, 128>}, {pipeline_mode = #tpu.pipeline_mode<synchronous>, transform_indices = @transform_13, window_bounds = array<i64: 1, 128>}, {pipeline_mode = #tpu.pipeline_mode<synchronous>, transform_indices = @transform_14, window_bounds = array<i64: 128, 32>}, {pipeline_mode = #tpu.pipeline_mode<synchronous>, transform_indices = @transform_15, window_bounds = array<i64: 1, 32>}, {transform_indices = @transform_16, window_bounds = array<i64: 1, 16, 32>}]} {
    %c0 = arith.constant 0 : index
    %c0_0 = arith.constant 0 : index
    %c0_1 = arith.constant 0 : index
    %0 = vector.load %arg1[%c0, %c0_0, %c0_1] : memref<1x16x32xf32, #tpu.memory_space<vmem>>, vector<1x16x32xf32>
    %1 = vector.shape_cast %0 : vector<1x16x32xf32> to vector<16x32xf32>
    %c0_2 = arith.constant 0 : index
    %c0_3 = arith.constant 0 : index
    %c0_4 = arith.constant 0 : index
    %2 = vector.load %arg2[%c0_2, %c0_3, %c0_4] : memref<1x8x32xf32, #tpu.memory_space<vmem>>, vector<1x8x32xf32>
    %3 = vector.shape_cast %2 : vector<1x8x32xf32> to vector<8x32xf32>
    %c0_5 = arith.constant 0 : index
    %c0_6 = arith.constant 0 : index
    %4 = vector.load %arg7[%c0_5, %c0_6] : memref<32x32xf32, #tpu.memory_space<vmem>>, vector<32x32xf32>
    %cst = arith.constant dense<0.000000e+00> : vector<8x32xf32>
    %5 = tpu.matmul %3, %4, %cst {dimension_numbers = #tpu.dot_dimension_numbers<[1], [0], [0], [1], [0, 0, 1, 1], [], []>} : vector<8x32xf32>, vector<32x32xf32>, vector<8x32xf32> -> vector<8x32xf32>
    %c0_7 = arith.constant 0 : index
    %c0_8 = arith.constant 0 : index
    %6 = vector.load %arg8[%c0_7, %c0_8] : memref<1x32xf32, #tpu.memory_space<vmem>>, vector<1x32xf32>
    %7 = vector.broadcast %6 : vector<1x32xf32> to vector<8x32xf32>
    %8 = arith.addf %5, %7 : vector<8x32xf32>
    %c0_9 = arith.constant 0 : index
    %c0_10 = arith.constant 0 : index
    %9 = vector.load %arg9[%c0_9, %c0_10] : memref<32x32xf32, #tpu.memory_space<vmem>>, vector<32x32xf32>
    %cst_11 = arith.constant dense<0.000000e+00> : vector<8x32xf32>
    %10 = tpu.matmul %3, %9, %cst_11 {dimension_numbers = #tpu.dot_dimension_numbers<[1], [0], [0], [1], [0, 0, 1, 1], [], []>} : vector<8x32xf32>, vector<32x32xf32>, vector<8x32xf32> -> vector<8x32xf32>
    %c0_12 = arith.constant 0 : index
    %c0_13 = arith.constant 0 : index
    %11 = vector.load %arg10[%c0_12, %c0_13] : memref<1x32xf32, #tpu.memory_space<vmem>>, vector<1x32xf32>
    %12 = vector.broadcast %11 : vector<1x32xf32> to vector<8x32xf32>
    %13 = arith.addf %10, %12 : vector<8x32xf32>
    %c0_14 = arith.constant 0 : index
    %c0_15 = arith.constant 0 : index
    %14 = vector.load %arg3[%c0_14, %c0_15] : memref<1x32xf32, #tpu.memory_space<vmem>>, vector<1x32xf32>
    %c0_16 = arith.constant 0 : index
    %c0_17 = arith.constant 0 : index
    %15 = vector.load %arg4[%c0_16, %c0_17] : memref<1x32xf32, #tpu.memory_space<vmem>>, vector<1x32xf32>
    %cst_18 = arith.constant dense<0.000000e+00> : vector<16xf32>
    %16 = vector.multi_reduction <add>, %1, %cst_18 [1] : vector<16x32xf32> to vector<16xf32>
    %17 = vector.shape_cast %16 : vector<16xf32> to vector<16x1xf32>
    %cst_19 = arith.constant 3.200000e+01 : f32
    %18 = vector.broadcast %cst_19 : f32 to vector<16x1xf32>
    %19 = arith.divf %17, %18 : vector<16x1xf32>
    %20 = vector.broadcast %19 : vector<16x1xf32> to vector<16x32xf32>
    %21 = arith.subf %1, %20 : vector<16x32xf32>
    %22 = vector.broadcast %19 : vector<16x1xf32> to vector<16x32xf32>
    %23 = arith.subf %1, %22 : vector<16x32xf32>
    %24 = arith.mulf %21, %23 : vector<16x32xf32>
    %cst_20 = arith.constant dense<0.000000e+00> : vector<16xf32>
    %25 = vector.multi_reduction <add>, %24, %cst_20 [1] : vector<16x32xf32> to vector<16xf32>
    %26 = vector.shape_cast %25 : vector<16xf32> to vector<16x1xf32>
    %cst_21 = arith.constant 3.200000e+01 : f32
    %27 = vector.broadcast %cst_21 : f32 to vector<16x1xf32>
    %28 = arith.divf %26, %27 : vector<16x1xf32>
    %29 = vector.broadcast %19 : vector<16x1xf32> to vector<16x32xf32>
    %30 = arith.subf %1, %29 : vector<16x32xf32>
    %cst_22 = arith.constant 9.99999974E-6 : f32
    %31 = vector.broadcast %cst_22 : f32 to vector<16x1xf32>
    %32 = arith.addf %28, %31 : vector<16x1xf32>
    %33 = math.rsqrt %32 : vector<16x1xf32>
    %34 = vector.broadcast %33 : vector<16x1xf32> to vector<16x32xf32>
    %35 = arith.mulf %30, %34 : vector<16x32xf32>
    %36 = vector.broadcast %14 : vector<1x32xf32> to vector<16x32xf32>
    %37 = arith.mulf %35, %36 : vector<16x32xf32>
    %38 = vector.broadcast %15 : vector<1x32xf32> to vector<16x32xf32>
    %39 = arith.addf %37, %38 : vector<16x32xf32>
    %c0_23 = arith.constant 0 : index
    %c0_24 = arith.constant 0 : index
    %40 = vector.load %arg5[%c0_23, %c0_24] : memref<32x32xf32, #tpu.memory_space<vmem>>, vector<32x32xf32>
    %cst_25 = arith.constant dense<0.000000e+00> : vector<16x32xf32>
    %41 = tpu.matmul %39, %40, %cst_25 {dimension_numbers = #tpu.dot_dimension_numbers<[1], [0], [0], [1], [0, 0, 1, 1], [], []>} : vector<16x32xf32>, vector<32x32xf32>, vector<16x32xf32> -> vector<16x32xf32>
    %c0_26 = arith.constant 0 : index
    %c0_27 = arith.constant 0 : index
    %42 = vector.load %arg6[%c0_26, %c0_27] : memref<1x32xf32, #tpu.memory_space<vmem>>, vector<1x32xf32>
    %43 = vector.broadcast %42 : vector<1x32xf32> to vector<16x32xf32>
    %44 = arith.addf %41, %43 : vector<16x32xf32>
    %45 = vector.extract_strided_slice %44 {offsets = [0, 0], sizes = [16, 16], strides = [1, 1]} : vector<16x32xf32> to vector<16x16xf32>
    %46 = vector.extract_strided_slice %8 {offsets = [0, 0], sizes = [8, 16], strides = [1, 1]} : vector<8x32xf32> to vector<8x16xf32>
    %cst_28 = arith.constant dense<0.000000e+00> : vector<16x8xf32>
    %47 = tpu.matmul %45, %46, %cst_28 {dimension_numbers = #tpu.dot_dimension_numbers<[1], [1], [0], [0], [0, 0, 1, 0], [], []>} : vector<16x16xf32>, vector<8x16xf32>, vector<16x8xf32> -> vector<16x8xf32>
    %cst_29 = arith.constant 2.500000e-01 : f32
    %48 = vector.broadcast %cst_29 : f32 to vector<16x8xf32>
    %49 = arith.mulf %47, %48 : vector<16x8xf32>
    %50 = vector.extract_strided_slice %44 {offsets = [0, 16], sizes = [16, 16], strides = [1, 1]} : vector<16x32xf32> to vector<16x16xf32>
    %51 = vector.extract_strided_slice %8 {offsets = [0, 16], sizes = [8, 16], strides = [1, 1]} : vector<8x32xf32> to vector<8x16xf32>
    %cst_30 = arith.constant dense<0.000000e+00> : vector<16x8xf32>
    %52 = tpu.matmul %50, %51, %cst_30 {dimension_numbers = #tpu.dot_dimension_numbers<[1], [1], [0], [0], [0, 0, 1, 0], [], []>} : vector<16x16xf32>, vector<8x16xf32>, vector<16x8xf32> -> vector<16x8xf32>
    %cst_31 = arith.constant 2.500000e-01 : f32
    %53 = vector.broadcast %cst_31 : f32 to vector<16x8xf32>
    %54 = arith.mulf %52, %53 : vector<16x8xf32>
    %55 = arith.maximumf %49, %54 : vector<16x8xf32>
    %56 = arith.subf %49, %55 : vector<16x8xf32>
    %57 = math.exp %56 : vector<16x8xf32>
    %58 = arith.subf %54, %55 : vector<16x8xf32>
    %59 = math.exp %58 : vector<16x8xf32>
    %60 = arith.addf %57, %59 : vector<16x8xf32>
    %cst_32 = arith.constant 1.000000e+00 : f32
    %61 = vector.broadcast %cst_32 : f32 to vector<16x8xf32>
    %62 = arith.divf %61, %60 : vector<16x8xf32>
    %63 = arith.mulf %57, %62 : vector<16x8xf32>
    %64 = vector.extract_strided_slice %13 {offsets = [0, 0], sizes = [8, 16], strides = [1, 1]} : vector<8x32xf32> to vector<8x16xf32>
    %cst_33 = arith.constant dense<0.000000e+00> : vector<16x16xf32>
    %65 = tpu.matmul %63, %64, %cst_33 {dimension_numbers = #tpu.dot_dimension_numbers<[1], [0], [0], [1], [0, 0, 1, 1], [], []>} : vector<16x8xf32>, vector<8x16xf32>, vector<16x16xf32> -> vector<16x16xf32>
    %66 = arith.mulf %59, %62 : vector<16x8xf32>
    %67 = vector.extract_strided_slice %13 {offsets = [0, 16], sizes = [8, 16], strides = [1, 1]} : vector<8x32xf32> to vector<8x16xf32>
    %cst_34 = arith.constant dense<0.000000e+00> : vector<16x16xf32>
    %68 = tpu.matmul %66, %67, %cst_34 {dimension_numbers = #tpu.dot_dimension_numbers<[1], [0], [0], [1], [0, 0, 1, 1], [], []>} : vector<16x8xf32>, vector<8x16xf32>, vector<16x16xf32> -> vector<16x16xf32>
    %69 = tpu.concatenate %65, %68 in 1 : vector<16x16xf32>, vector<16x16xf32> -> vector<16x32xf32>
    %70 = arith.addf %1, %69 : vector<16x32xf32>
    %c0_35 = arith.constant 0 : index
    %c0_36 = arith.constant 0 : index
    %71 = vector.load %arg11[%c0_35, %c0_36] : memref<1x32xf32, #tpu.memory_space<vmem>>, vector<1x32xf32>
    %c0_37 = arith.constant 0 : index
    %c0_38 = arith.constant 0 : index
    %72 = vector.load %arg12[%c0_37, %c0_38] : memref<1x32xf32, #tpu.memory_space<vmem>>, vector<1x32xf32>
    %cst_39 = arith.constant dense<0.000000e+00> : vector<16xf32>
    %73 = vector.multi_reduction <add>, %70, %cst_39 [1] : vector<16x32xf32> to vector<16xf32>
    %74 = vector.shape_cast %73 : vector<16xf32> to vector<16x1xf32>
    %cst_40 = arith.constant 3.200000e+01 : f32
    %75 = vector.broadcast %cst_40 : f32 to vector<16x1xf32>
    %76 = arith.divf %74, %75 : vector<16x1xf32>
    %77 = vector.broadcast %76 : vector<16x1xf32> to vector<16x32xf32>
    %78 = arith.subf %70, %77 : vector<16x32xf32>
    %79 = vector.broadcast %76 : vector<16x1xf32> to vector<16x32xf32>
    %80 = arith.subf %70, %79 : vector<16x32xf32>
    %81 = arith.mulf %78, %80 : vector<16x32xf32>
    %cst_41 = arith.constant dense<0.000000e+00> : vector<16xf32>
    %82 = vector.multi_reduction <add>, %81, %cst_41 [1] : vector<16x32xf32> to vector<16xf32>
    %83 = vector.shape_cast %82 : vector<16xf32> to vector<16x1xf32>
    %cst_42 = arith.constant 3.200000e+01 : f32
    %84 = vector.broadcast %cst_42 : f32 to vector<16x1xf32>
    %85 = arith.divf %83, %84 : vector<16x1xf32>
    %86 = vector.broadcast %76 : vector<16x1xf32> to vector<16x32xf32>
    %87 = arith.subf %70, %86 : vector<16x32xf32>
    %cst_43 = arith.constant 9.99999974E-6 : f32
    %88 = vector.broadcast %cst_43 : f32 to vector<16x1xf32>
    %89 = arith.addf %85, %88 : vector<16x1xf32>
    %90 = math.rsqrt %89 : vector<16x1xf32>
    %91 = vector.broadcast %90 : vector<16x1xf32> to vector<16x32xf32>
    %92 = arith.mulf %87, %91 : vector<16x32xf32>
    %93 = vector.broadcast %71 : vector<1x32xf32> to vector<16x32xf32>
    %94 = arith.mulf %92, %93 : vector<16x32xf32>
    %95 = vector.broadcast %72 : vector<1x32xf32> to vector<16x32xf32>
    %96 = arith.addf %94, %95 : vector<16x32xf32>
    %c0_44 = arith.constant 0 : index
    %c0_45 = arith.constant 0 : index
    %97 = vector.load %arg13[%c0_44, %c0_45] : memref<32x128xf32, #tpu.memory_space<vmem>>, vector<32x128xf32>
    %cst_46 = arith.constant dense<0.000000e+00> : vector<16x128xf32>
    %98 = tpu.matmul %96, %97, %cst_46 {dimension_numbers = #tpu.dot_dimension_numbers<[1], [0], [0], [1], [0, 0, 1, 1], [], []>} : vector<16x32xf32>, vector<32x128xf32>, vector<16x128xf32> -> vector<16x128xf32>
    %c0_47 = arith.constant 0 : index
    %c0_48 = arith.constant 0 : index
    %99 = vector.load %arg14[%c0_47, %c0_48] : memref<1x128xf32, #tpu.memory_space<vmem>>, vector<1x128xf32>
    %100 = vector.broadcast %99 : vector<1x128xf32> to vector<16x128xf32>
    %101 = arith.addf %98, %100 : vector<16x128xf32>
    %cst_49 = arith.constant 5.000000e-01 : f32
    %102 = vector.broadcast %cst_49 : f32 to vector<16x128xf32>
    %103 = arith.mulf %102, %101 : vector<16x128xf32>
    %cst_50 = arith.constant 0.707106769 : f32
    %104 = vector.broadcast %cst_50 : f32 to vector<16x128xf32>
    %105 = arith.mulf %101, %104 : vector<16x128xf32>
    %cst_51 = arith.constant 0.000000e+00 : f32
    %106 = vector.broadcast %cst_51 : f32 to vector<16x128xf32>
    %107 = arith.cmpf oge, %105, %106 : vector<16x128xf32>
    %cst_52 = arith.constant 1.000000e+00 : f32
    %cst_53 = arith.constant -1.000000e+00 : f32
    %108 = vector.broadcast %cst_52 : f32 to vector<16x128xf32>
    %109 = vector.broadcast %cst_53 : f32 to vector<16x128xf32>
    %110 = arith.select %107, %108, %109 : vector<16x128xi1>, vector<16x128xf32>
    %111 = math.absf %105 : vector<16x128xf32>
    %cst_54 = arith.constant 0.327591091 : f32
    %112 = vector.broadcast %cst_54 : f32 to vector<16x128xf32>
    %113 = arith.mulf %112, %111 : vector<16x128xf32>
    %cst_55 = arith.constant 1.000000e+00 : f32
    %114 = vector.broadcast %cst_55 : f32 to vector<16x128xf32>
    %115 = arith.addf %114, %113 : vector<16x128xf32>
    %cst_56 = arith.constant 1.000000e+00 : f32
    %116 = vector.broadcast %cst_56 : f32 to vector<16x128xf32>
    %117 = arith.divf %116, %115 : vector<16x128xf32>
    %cst_57 = arith.constant 1.06140542 : f32
    %118 = vector.broadcast %cst_57 : f32 to vector<16x128xf32>
    %119 = arith.mulf %118, %117 : vector<16x128xf32>
    %cst_58 = arith.constant -1.45315206 : f32
    %120 = vector.broadcast %cst_58 : f32 to vector<16x128xf32>
    %121 = arith.addf %119, %120 : vector<16x128xf32>
    %122 = arith.mulf %121, %117 : vector<16x128xf32>
    %cst_59 = arith.constant 1.42141378 : f32
    %123 = vector.broadcast %cst_59 : f32 to vector<16x128xf32>
    %124 = arith.addf %122, %123 : vector<16x128xf32>
    %125 = arith.mulf %124, %117 : vector<16x128xf32>
    %cst_60 = arith.constant -0.284496725 : f32
    %126 = vector.broadcast %cst_60 : f32 to vector<16x128xf32>
    %127 = arith.addf %125, %126 : vector<16x128xf32>
    %128 = arith.mulf %127, %117 : vector<16x128xf32>
    %cst_61 = arith.constant 0.254829586 : f32
    %129 = vector.broadcast %cst_61 : f32 to vector<16x128xf32>
    %130 = arith.addf %128, %129 : vector<16x128xf32>
    %131 = arith.mulf %130, %117 : vector<16x128xf32>
    %cst_62 = arith.constant 0.000000e+00 : f32
    %132 = vector.broadcast %cst_62 : f32 to vector<16x128xf32>
    %133 = arith.subf %132, %111 : vector<16x128xf32>
    %134 = arith.mulf %133, %111 : vector<16x128xf32>
    %135 = math.exp %134 : vector<16x128xf32>
    %136 = arith.mulf %131, %135 : vector<16x128xf32>
    %cst_63 = arith.constant 1.000000e+00 : f32
    %137 = vector.broadcast %cst_63 : f32 to vector<16x128xf32>
    %138 = arith.subf %137, %136 : vector<16x128xf32>
    %139 = arith.mulf %110, %138 : vector<16x128xf32>
    %cst_64 = arith.constant 1.000000e+00 : f32
    %140 = vector.broadcast %cst_64 : f32 to vector<16x128xf32>
    %141 = arith.addf %140, %139 : vector<16x128xf32>
    %142 = arith.mulf %103, %141 : vector<16x128xf32>
    %c0_65 = arith.constant 0 : index
    %c0_66 = arith.constant 0 : index
    %143 = vector.load %arg15[%c0_65, %c0_66] : memref<128x32xf32, #tpu.memory_space<vmem>>, vector<128x32xf32>
    %cst_67 = arith.constant dense<0.000000e+00> : vector<16x32xf32>
    %144 = tpu.matmul %142, %143, %cst_67 {dimension_numbers = #tpu.dot_dimension_numbers<[1], [0], [0], [1], [0, 0, 1, 1], [], []>} : vector<16x128xf32>, vector<128x32xf32>, vector<16x32xf32> -> vector<16x32xf32>
    %c0_68 = arith.constant 0 : index
    %c0_69 = arith.constant 0 : index
    %145 = vector.load %arg16[%c0_68, %c0_69] : memref<1x32xf32, #tpu.memory_space<vmem>>, vector<1x32xf32>
    %146 = vector.broadcast %145 : vector<1x32xf32> to vector<16x32xf32>
    %147 = arith.addf %144, %146 : vector<16x32xf32>
    %148 = arith.addf %70, %147 : vector<16x32xf32>
    %c0_70 = arith.constant 0 : index
    %c0_71 = arith.constant 0 : index
    %149 = vector.load %arg3[%c0_70, %c0_71] : memref<1x32xf32, #tpu.memory_space<vmem>>, vector<1x32xf32>
    %c0_72 = arith.constant 0 : index
    %c0_73 = arith.constant 0 : index
    %150 = vector.load %arg4[%c0_72, %c0_73] : memref<1x32xf32, #tpu.memory_space<vmem>>, vector<1x32xf32>
    %cst_74 = arith.constant dense<0.000000e+00> : vector<16xf32>
    %151 = vector.multi_reduction <add>, %148, %cst_74 [1] : vector<16x32xf32> to vector<16xf32>
    %152 = vector.shape_cast %151 : vector<16xf32> to vector<16x1xf32>
    %cst_75 = arith.constant 3.200000e+01 : f32
    %153 = vector.broadcast %cst_75 : f32 to vector<16x1xf32>
    %154 = arith.divf %152, %153 : vector<16x1xf32>
    %155 = vector.broadcast %154 : vector<16x1xf32> to vector<16x32xf32>
    %156 = arith.subf %148, %155 : vector<16x32xf32>
    %157 = vector.broadcast %154 : vector<16x1xf32> to vector<16x32xf32>
    %158 = arith.subf %148, %157 : vector<16x32xf32>
    %159 = arith.mulf %156, %158 : vector<16x32xf32>
    %cst_76 = arith.constant dense<0.000000e+00> : vector<16xf32>
    %160 = vector.multi_reduction <add>, %159, %cst_76 [1] : vector<16x32xf32> to vector<16xf32>
    %161 = vector.shape_cast %160 : vector<16xf32> to vector<16x1xf32>
    %cst_77 = arith.constant 3.200000e+01 : f32
    %162 = vector.broadcast %cst_77 : f32 to vector<16x1xf32>
    %163 = arith.divf %161, %162 : vector<16x1xf32>
    %164 = vector.broadcast %154 : vector<16x1xf32> to vector<16x32xf32>
    %165 = arith.subf %148, %164 : vector<16x32xf32>
    %cst_78 = arith.constant 9.99999974E-6 : f32
    %166 = vector.broadcast %cst_78 : f32 to vector<16x1xf32>
    %167 = arith.addf %163, %166 : vector<16x1xf32>
    %168 = math.rsqrt %167 : vector<16x1xf32>
    %169 = vector.broadcast %168 : vector<16x1xf32> to vector<16x32xf32>
    %170 = arith.mulf %165, %169 : vector<16x32xf32>
    %171 = vector.broadcast %149 : vector<1x32xf32> to vector<16x32xf32>
    %172 = arith.mulf %170, %171 : vector<16x32xf32>
    %173 = vector.broadcast %150 : vector<1x32xf32> to vector<16x32xf32>
    %174 = arith.addf %172, %173 : vector<16x32xf32>
    %c0_79 = arith.constant 0 : index
    %c0_80 = arith.constant 0 : index
    %175 = vector.load %arg5[%c0_79, %c0_80] : memref<32x32xf32, #tpu.memory_space<vmem>>, vector<32x32xf32>
    %cst_81 = arith.constant dense<0.000000e+00> : vector<16x32xf32>
    %176 = tpu.matmul %174, %175, %cst_81 {dimension_numbers = #tpu.dot_dimension_numbers<[1], [0], [0], [1], [0, 0, 1, 1], [], []>} : vector<16x32xf32>, vector<32x32xf32>, vector<16x32xf32> -> vector<16x32xf32>
    %c0_82 = arith.constant 0 : index
    %c0_83 = arith.constant 0 : index
    %177 = vector.load %arg6[%c0_82, %c0_83] : memref<1x32xf32, #tpu.memory_space<vmem>>, vector<1x32xf32>
    %178 = vector.broadcast %177 : vector<1x32xf32> to vector<16x32xf32>
    %179 = arith.addf %176, %178 : vector<16x32xf32>
    %180 = vector.extract_strided_slice %179 {offsets = [0, 0], sizes = [16, 16], strides = [1, 1]} : vector<16x32xf32> to vector<16x16xf32>
    %181 = vector.extract_strided_slice %8 {offsets = [0, 0], sizes = [8, 16], strides = [1, 1]} : vector<8x32xf32> to vector<8x16xf32>
    %cst_84 = arith.constant dense<0.000000e+00> : vector<16x8xf32>
    %182 = tpu.matmul %180, %181, %cst_84 {dimension_numbers = #tpu.dot_dimension_numbers<[1], [1], [0], [0], [0, 0, 1, 0], [], []>} : vector<16x16xf32>, vector<8x16xf32>, vector<16x8xf32> -> vector<16x8xf32>
    %cst_85 = arith.constant 2.500000e-01 : f32
    %183 = vector.broadcast %cst_85 : f32 to vector<16x8xf32>
    %184 = arith.mulf %182, %183 : vector<16x8xf32>
    %185 = vector.extract_strided_slice %179 {offsets = [0, 16], sizes = [16, 16], strides = [1, 1]} : vector<16x32xf32> to vector<16x16xf32>
    %186 = vector.extract_strided_slice %8 {offsets = [0, 16], sizes = [8, 16], strides = [1, 1]} : vector<8x32xf32> to vector<8x16xf32>
    %cst_86 = arith.constant dense<0.000000e+00> : vector<16x8xf32>
    %187 = tpu.matmul %185, %186, %cst_86 {dimension_numbers = #tpu.dot_dimension_numbers<[1], [1], [0], [0], [0, 0, 1, 0], [], []>} : vector<16x16xf32>, vector<8x16xf32>, vector<16x8xf32> -> vector<16x8xf32>
    %cst_87 = arith.constant 2.500000e-01 : f32
    %188 = vector.broadcast %cst_87 : f32 to vector<16x8xf32>
    %189 = arith.mulf %187, %188 : vector<16x8xf32>
    %190 = arith.maximumf %184, %189 : vector<16x8xf32>
    %191 = arith.subf %184, %190 : vector<16x8xf32>
    %192 = math.exp %191 : vector<16x8xf32>
    %193 = arith.subf %189, %190 : vector<16x8xf32>
    %194 = math.exp %193 : vector<16x8xf32>
    %195 = arith.addf %192, %194 : vector<16x8xf32>
    %cst_88 = arith.constant 1.000000e+00 : f32
    %196 = vector.broadcast %cst_88 : f32 to vector<16x8xf32>
    %197 = arith.divf %196, %195 : vector<16x8xf32>
    %198 = arith.mulf %192, %197 : vector<16x8xf32>
    %199 = vector.extract_strided_slice %13 {offsets = [0, 0], sizes = [8, 16], strides = [1, 1]} : vector<8x32xf32> to vector<8x16xf32>
    %cst_89 = arith.constant dense<0.000000e+00> : vector<16x16xf32>
    %200 = tpu.matmul %198, %199, %cst_89 {dimension_numbers = #tpu.dot_dimension_numbers<[1], [0], [0], [1], [0, 0, 1, 1], [], []>} : vector<16x8xf32>, vector<8x16xf32>, vector<16x16xf32> -> vector<16x16xf32>
    %201 = arith.mulf %194, %197 : vector<16x8xf32>
    %202 = vector.extract_strided_slice %13 {offsets = [0, 16], sizes = [8, 16], strides = [1, 1]} : vector<8x32xf32> to vector<8x16xf32>
    %cst_90 = arith.constant dense<0.000000e+00> : vector<16x16xf32>
    %203 = tpu.matmul %201, %202, %cst_90 {dimension_numbers = #tpu.dot_dimension_numbers<[1], [0], [0], [1], [0, 0, 1, 1], [], []>} : vector<16x8xf32>, vector<8x16xf32>, vector<16x16xf32> -> vector<16x16xf32>
    %204 = tpu.concatenate %200, %203 in 1 : vector<16x16xf32>, vector<16x16xf32> -> vector<16x32xf32>
    %205 = arith.addf %148, %204 : vector<16x32xf32>
    %c0_91 = arith.constant 0 : index
    %c0_92 = arith.constant 0 : index
    %206 = vector.load %arg11[%c0_91, %c0_92] : memref<1x32xf32, #tpu.memory_space<vmem>>, vector<1x32xf32>
    %c0_93 = arith.constant 0 : index
    %c0_94 = arith.constant 0 : index
    %207 = vector.load %arg12[%c0_93, %c0_94] : memref<1x32xf32, #tpu.memory_space<vmem>>, vector<1x32xf32>
    %cst_95 = arith.constant dense<0.000000e+00> : vector<16xf32>
    %208 = vector.multi_reduction <add>, %205, %cst_95 [1] : vector<16x32xf32> to vector<16xf32>
    %209 = vector.shape_cast %208 : vector<16xf32> to vector<16x1xf32>
    %cst_96 = arith.constant 3.200000e+01 : f32
    %210 = vector.broadcast %cst_96 : f32 to vector<16x1xf32>
    %211 = arith.divf %209, %210 : vector<16x1xf32>
    %212 = vector.broadcast %211 : vector<16x1xf32> to vector<16x32xf32>
    %213 = arith.subf %205, %212 : vector<16x32xf32>
    %214 = vector.broadcast %211 : vector<16x1xf32> to vector<16x32xf32>
    %215 = arith.subf %205, %214 : vector<16x32xf32>
    %216 = arith.mulf %213, %215 : vector<16x32xf32>
    %cst_97 = arith.constant dense<0.000000e+00> : vector<16xf32>
    %217 = vector.multi_reduction <add>, %216, %cst_97 [1] : vector<16x32xf32> to vector<16xf32>
    %218 = vector.shape_cast %217 : vector<16xf32> to vector<16x1xf32>
    %cst_98 = arith.constant 3.200000e+01 : f32
    %219 = vector.broadcast %cst_98 : f32 to vector<16x1xf32>
    %220 = arith.divf %218, %219 : vector<16x1xf32>
    %221 = vector.broadcast %211 : vector<16x1xf32> to vector<16x32xf32>
    %222 = arith.subf %205, %221 : vector<16x32xf32>
    %cst_99 = arith.constant 9.99999974E-6 : f32
    %223 = vector.broadcast %cst_99 : f32 to vector<16x1xf32>
    %224 = arith.addf %220, %223 : vector<16x1xf32>
    %225 = math.rsqrt %224 : vector<16x1xf32>
    %226 = vector.broadcast %225 : vector<16x1xf32> to vector<16x32xf32>
    %227 = arith.mulf %222, %226 : vector<16x32xf32>
    %228 = vector.broadcast %206 : vector<1x32xf32> to vector<16x32xf32>
    %229 = arith.mulf %227, %228 : vector<16x32xf32>
    %230 = vector.broadcast %207 : vector<1x32xf32> to vector<16x32xf32>
    %231 = arith.addf %229, %230 : vector<16x32xf32>
    %c0_100 = arith.constant 0 : index
    %c0_101 = arith.constant 0 : index
    %232 = vector.load %arg13[%c0_100, %c0_101] : memref<32x128xf32, #tpu.memory_space<vmem>>, vector<32x128xf32>
    %cst_102 = arith.constant dense<0.000000e+00> : vector<16x128xf32>
    %233 = tpu.matmul %231, %232, %cst_102 {dimension_numbers = #tpu.dot_dimension_numbers<[1], [0], [0], [1], [0, 0, 1, 1], [], []>} : vector<16x32xf32>, vector<32x128xf32>, vector<16x128xf32> -> vector<16x128xf32>
    %c0_103 = arith.constant 0 : index
    %c0_104 = arith.constant 0 : index
    %234 = vector.load %arg14[%c0_103, %c0_104] : memref<1x128xf32, #tpu.memory_space<vmem>>, vector<1x128xf32>
    %235 = vector.broadcast %234 : vector<1x128xf32> to vector<16x128xf32>
    %236 = arith.addf %233, %235 : vector<16x128xf32>
    %cst_105 = arith.constant 5.000000e-01 : f32
    %237 = vector.broadcast %cst_105 : f32 to vector<16x128xf32>
    %238 = arith.mulf %237, %236 : vector<16x128xf32>
    %cst_106 = arith.constant 0.707106769 : f32
    %239 = vector.broadcast %cst_106 : f32 to vector<16x128xf32>
    %240 = arith.mulf %236, %239 : vector<16x128xf32>
    %cst_107 = arith.constant 0.000000e+00 : f32
    %241 = vector.broadcast %cst_107 : f32 to vector<16x128xf32>
    %242 = arith.cmpf oge, %240, %241 : vector<16x128xf32>
    %cst_108 = arith.constant 1.000000e+00 : f32
    %cst_109 = arith.constant -1.000000e+00 : f32
    %243 = vector.broadcast %cst_108 : f32 to vector<16x128xf32>
    %244 = vector.broadcast %cst_109 : f32 to vector<16x128xf32>
    %245 = arith.select %242, %243, %244 : vector<16x128xi1>, vector<16x128xf32>
    %246 = math.absf %240 : vector<16x128xf32>
    %cst_110 = arith.constant 0.327591091 : f32
    %247 = vector.broadcast %cst_110 : f32 to vector<16x128xf32>
    %248 = arith.mulf %247, %246 : vector<16x128xf32>
    %cst_111 = arith.constant 1.000000e+00 : f32
    %249 = vector.broadcast %cst_111 : f32 to vector<16x128xf32>
    %250 = arith.addf %249, %248 : vector<16x128xf32>
    %cst_112 = arith.constant 1.000000e+00 : f32
    %251 = vector.broadcast %cst_112 : f32 to vector<16x128xf32>
    %252 = arith.divf %251, %250 : vector<16x128xf32>
    %cst_113 = arith.constant 1.06140542 : f32
    %253 = vector.broadcast %cst_113 : f32 to vector<16x128xf32>
    %254 = arith.mulf %253, %252 : vector<16x128xf32>
    %cst_114 = arith.constant -1.45315206 : f32
    %255 = vector.broadcast %cst_114 : f32 to vector<16x128xf32>
    %256 = arith.addf %254, %255 : vector<16x128xf32>
    %257 = arith.mulf %256, %252 : vector<16x128xf32>
    %cst_115 = arith.constant 1.42141378 : f32
    %258 = vector.broadcast %cst_115 : f32 to vector<16x128xf32>
    %259 = arith.addf %257, %258 : vector<16x128xf32>
    %260 = arith.mulf %259, %252 : vector<16x128xf32>
    %cst_116 = arith.constant -0.284496725 : f32
    %261 = vector.broadcast %cst_116 : f32 to vector<16x128xf32>
    %262 = arith.addf %260, %261 : vector<16x128xf32>
    %263 = arith.mulf %262, %252 : vector<16x128xf32>
    %cst_117 = arith.constant 0.254829586 : f32
    %264 = vector.broadcast %cst_117 : f32 to vector<16x128xf32>
    %265 = arith.addf %263, %264 : vector<16x128xf32>
    %266 = arith.mulf %265, %252 : vector<16x128xf32>
    %cst_118 = arith.constant 0.000000e+00 : f32
    %267 = vector.broadcast %cst_118 : f32 to vector<16x128xf32>
    %268 = arith.subf %267, %246 : vector<16x128xf32>
    %269 = arith.mulf %268, %246 : vector<16x128xf32>
    %270 = math.exp %269 : vector<16x128xf32>
    %271 = arith.mulf %266, %270 : vector<16x128xf32>
    %cst_119 = arith.constant 1.000000e+00 : f32
    %272 = vector.broadcast %cst_119 : f32 to vector<16x128xf32>
    %273 = arith.subf %272, %271 : vector<16x128xf32>
    %274 = arith.mulf %245, %273 : vector<16x128xf32>
    %cst_120 = arith.constant 1.000000e+00 : f32
    %275 = vector.broadcast %cst_120 : f32 to vector<16x128xf32>
    %276 = arith.addf %275, %274 : vector<16x128xf32>
    %277 = arith.mulf %238, %276 : vector<16x128xf32>
    %c0_121 = arith.constant 0 : index
    %c0_122 = arith.constant 0 : index
    %278 = vector.load %arg15[%c0_121, %c0_122] : memref<128x32xf32, #tpu.memory_space<vmem>>, vector<128x32xf32>
    %cst_123 = arith.constant dense<0.000000e+00> : vector<16x32xf32>
    %279 = tpu.matmul %277, %278, %cst_123 {dimension_numbers = #tpu.dot_dimension_numbers<[1], [0], [0], [1], [0, 0, 1, 1], [], []>} : vector<16x128xf32>, vector<128x32xf32>, vector<16x32xf32> -> vector<16x32xf32>
    %c0_124 = arith.constant 0 : index
    %c0_125 = arith.constant 0 : index
    %280 = vector.load %arg16[%c0_124, %c0_125] : memref<1x32xf32, #tpu.memory_space<vmem>>, vector<1x32xf32>
    %281 = vector.broadcast %280 : vector<1x32xf32> to vector<16x32xf32>
    %282 = arith.addf %279, %281 : vector<16x32xf32>
    %283 = arith.addf %205, %282 : vector<16x32xf32>
    %c0_126 = arith.constant 0 : index
    %c0_127 = arith.constant 0 : index
    %284 = vector.load %arg3[%c0_126, %c0_127] : memref<1x32xf32, #tpu.memory_space<vmem>>, vector<1x32xf32>
    %c0_128 = arith.constant 0 : index
    %c0_129 = arith.constant 0 : index
    %285 = vector.load %arg4[%c0_128, %c0_129] : memref<1x32xf32, #tpu.memory_space<vmem>>, vector<1x32xf32>
    %cst_130 = arith.constant dense<0.000000e+00> : vector<16xf32>
    %286 = vector.multi_reduction <add>, %283, %cst_130 [1] : vector<16x32xf32> to vector<16xf32>
    %287 = vector.shape_cast %286 : vector<16xf32> to vector<16x1xf32>
    %cst_131 = arith.constant 3.200000e+01 : f32
    %288 = vector.broadcast %cst_131 : f32 to vector<16x1xf32>
    %289 = arith.divf %287, %288 : vector<16x1xf32>
    %290 = vector.broadcast %289 : vector<16x1xf32> to vector<16x32xf32>
    %291 = arith.subf %283, %290 : vector<16x32xf32>
    %292 = vector.broadcast %289 : vector<16x1xf32> to vector<16x32xf32>
    %293 = arith.subf %283, %292 : vector<16x32xf32>
    %294 = arith.mulf %291, %293 : vector<16x32xf32>
    %cst_132 = arith.constant dense<0.000000e+00> : vector<16xf32>
    %295 = vector.multi_reduction <add>, %294, %cst_132 [1] : vector<16x32xf32> to vector<16xf32>
    %296 = vector.shape_cast %295 : vector<16xf32> to vector<16x1xf32>
    %cst_133 = arith.constant 3.200000e+01 : f32
    %297 = vector.broadcast %cst_133 : f32 to vector<16x1xf32>
    %298 = arith.divf %296, %297 : vector<16x1xf32>
    %299 = vector.broadcast %289 : vector<16x1xf32> to vector<16x32xf32>
    %300 = arith.subf %283, %299 : vector<16x32xf32>
    %cst_134 = arith.constant 9.99999974E-6 : f32
    %301 = vector.broadcast %cst_134 : f32 to vector<16x1xf32>
    %302 = arith.addf %298, %301 : vector<16x1xf32>
    %303 = math.rsqrt %302 : vector<16x1xf32>
    %304 = vector.broadcast %303 : vector<16x1xf32> to vector<16x32xf32>
    %305 = arith.mulf %300, %304 : vector<16x32xf32>
    %306 = vector.broadcast %284 : vector<1x32xf32> to vector<16x32xf32>
    %307 = arith.mulf %305, %306 : vector<16x32xf32>
    %308 = vector.broadcast %285 : vector<1x32xf32> to vector<16x32xf32>
    %309 = arith.addf %307, %308 : vector<16x32xf32>
    %c0_135 = arith.constant 0 : index
    %c0_136 = arith.constant 0 : index
    %310 = vector.load %arg5[%c0_135, %c0_136] : memref<32x32xf32, #tpu.memory_space<vmem>>, vector<32x32xf32>
    %cst_137 = arith.constant dense<0.000000e+00> : vector<16x32xf32>
    %311 = tpu.matmul %309, %310, %cst_137 {dimension_numbers = #tpu.dot_dimension_numbers<[1], [0], [0], [1], [0, 0, 1, 1], [], []>} : vector<16x32xf32>, vector<32x32xf32>, vector<16x32xf32> -> vector<16x32xf32>
    %c0_138 = arith.constant 0 : index
    %c0_139 = arith.constant 0 : index
    %312 = vector.load %arg6[%c0_138, %c0_139] : memref<1x32xf32, #tpu.memory_space<vmem>>, vector<1x32xf32>
    %313 = vector.broadcast %312 : vector<1x32xf32> to vector<16x32xf32>
    %314 = arith.addf %311, %313 : vector<16x32xf32>
    %315 = vector.extract_strided_slice %314 {offsets = [0, 0], sizes = [16, 16], strides = [1, 1]} : vector<16x32xf32> to vector<16x16xf32>
    %316 = vector.extract_strided_slice %8 {offsets = [0, 0], sizes = [8, 16], strides = [1, 1]} : vector<8x32xf32> to vector<8x16xf32>
    %cst_140 = arith.constant dense<0.000000e+00> : vector<16x8xf32>
    %317 = tpu.matmul %315, %316, %cst_140 {dimension_numbers = #tpu.dot_dimension_numbers<[1], [1], [0], [0], [0, 0, 1, 0], [], []>} : vector<16x16xf32>, vector<8x16xf32>, vector<16x8xf32> -> vector<16x8xf32>
    %cst_141 = arith.constant 2.500000e-01 : f32
    %318 = vector.broadcast %cst_141 : f32 to vector<16x8xf32>
    %319 = arith.mulf %317, %318 : vector<16x8xf32>
    %320 = vector.extract_strided_slice %314 {offsets = [0, 16], sizes = [16, 16], strides = [1, 1]} : vector<16x32xf32> to vector<16x16xf32>
    %321 = vector.extract_strided_slice %8 {offsets = [0, 16], sizes = [8, 16], strides = [1, 1]} : vector<8x32xf32> to vector<8x16xf32>
    %cst_142 = arith.constant dense<0.000000e+00> : vector<16x8xf32>
    %322 = tpu.matmul %320, %321, %cst_142 {dimension_numbers = #tpu.dot_dimension_numbers<[1], [1], [0], [0], [0, 0, 1, 0], [], []>} : vector<16x16xf32>, vector<8x16xf32>, vector<16x8xf32> -> vector<16x8xf32>
    %cst_143 = arith.constant 2.500000e-01 : f32
    %323 = vector.broadcast %cst_143 : f32 to vector<16x8xf32>
    %324 = arith.mulf %322, %323 : vector<16x8xf32>
    %325 = arith.maximumf %319, %324 : vector<16x8xf32>
    %326 = arith.subf %319, %325 : vector<16x8xf32>
    %327 = math.exp %326 : vector<16x8xf32>
    %328 = arith.subf %324, %325 : vector<16x8xf32>
    %329 = math.exp %328 : vector<16x8xf32>
    %330 = arith.addf %327, %329 : vector<16x8xf32>
    %cst_144 = arith.constant 1.000000e+00 : f32
    %331 = vector.broadcast %cst_144 : f32 to vector<16x8xf32>
    %332 = arith.divf %331, %330 : vector<16x8xf32>
    %333 = arith.mulf %327, %332 : vector<16x8xf32>
    %334 = vector.extract_strided_slice %13 {offsets = [0, 0], sizes = [8, 16], strides = [1, 1]} : vector<8x32xf32> to vector<8x16xf32>
    %cst_145 = arith.constant dense<0.000000e+00> : vector<16x16xf32>
    %335 = tpu.matmul %333, %334, %cst_145 {dimension_numbers = #tpu.dot_dimension_numbers<[1], [0], [0], [1], [0, 0, 1, 1], [], []>} : vector<16x8xf32>, vector<8x16xf32>, vector<16x16xf32> -> vector<16x16xf32>
    %336 = arith.mulf %329, %332 : vector<16x8xf32>
    %337 = vector.extract_strided_slice %13 {offsets = [0, 16], sizes = [8, 16], strides = [1, 1]} : vector<8x32xf32> to vector<8x16xf32>
    %cst_146 = arith.constant dense<0.000000e+00> : vector<16x16xf32>
    %338 = tpu.matmul %336, %337, %cst_146 {dimension_numbers = #tpu.dot_dimension_numbers<[1], [0], [0], [1], [0, 0, 1, 1], [], []>} : vector<16x8xf32>, vector<8x16xf32>, vector<16x16xf32> -> vector<16x16xf32>
    %339 = tpu.concatenate %335, %338 in 1 : vector<16x16xf32>, vector<16x16xf32> -> vector<16x32xf32>
    %340 = arith.addf %283, %339 : vector<16x32xf32>
    %c0_147 = arith.constant 0 : index
    %c0_148 = arith.constant 0 : index
    %341 = vector.load %arg11[%c0_147, %c0_148] : memref<1x32xf32, #tpu.memory_space<vmem>>, vector<1x32xf32>
    %c0_149 = arith.constant 0 : index
    %c0_150 = arith.constant 0 : index
    %342 = vector.load %arg12[%c0_149, %c0_150] : memref<1x32xf32, #tpu.memory_space<vmem>>, vector<1x32xf32>
    %cst_151 = arith.constant dense<0.000000e+00> : vector<16xf32>
    %343 = vector.multi_reduction <add>, %340, %cst_151 [1] : vector<16x32xf32> to vector<16xf32>
    %344 = vector.shape_cast %343 : vector<16xf32> to vector<16x1xf32>
    %cst_152 = arith.constant 3.200000e+01 : f32
    %345 = vector.broadcast %cst_152 : f32 to vector<16x1xf32>
    %346 = arith.divf %344, %345 : vector<16x1xf32>
    %347 = vector.broadcast %346 : vector<16x1xf32> to vector<16x32xf32>
    %348 = arith.subf %340, %347 : vector<16x32xf32>
    %349 = vector.broadcast %346 : vector<16x1xf32> to vector<16x32xf32>
    %350 = arith.subf %340, %349 : vector<16x32xf32>
    %351 = arith.mulf %348, %350 : vector<16x32xf32>
    %cst_153 = arith.constant dense<0.000000e+00> : vector<16xf32>
    %352 = vector.multi_reduction <add>, %351, %cst_153 [1] : vector<16x32xf32> to vector<16xf32>
    %353 = vector.shape_cast %352 : vector<16xf32> to vector<16x1xf32>
    %cst_154 = arith.constant 3.200000e+01 : f32
    %354 = vector.broadcast %cst_154 : f32 to vector<16x1xf32>
    %355 = arith.divf %353, %354 : vector<16x1xf32>
    %356 = vector.broadcast %346 : vector<16x1xf32> to vector<16x32xf32>
    %357 = arith.subf %340, %356 : vector<16x32xf32>
    %cst_155 = arith.constant 9.99999974E-6 : f32
    %358 = vector.broadcast %cst_155 : f32 to vector<16x1xf32>
    %359 = arith.addf %355, %358 : vector<16x1xf32>
    %360 = math.rsqrt %359 : vector<16x1xf32>
    %361 = vector.broadcast %360 : vector<16x1xf32> to vector<16x32xf32>
    %362 = arith.mulf %357, %361 : vector<16x32xf32>
    %363 = vector.broadcast %341 : vector<1x32xf32> to vector<16x32xf32>
    %364 = arith.mulf %362, %363 : vector<16x32xf32>
    %365 = vector.broadcast %342 : vector<1x32xf32> to vector<16x32xf32>
    %366 = arith.addf %364, %365 : vector<16x32xf32>
    %c0_156 = arith.constant 0 : index
    %c0_157 = arith.constant 0 : index
    %367 = vector.load %arg13[%c0_156, %c0_157] : memref<32x128xf32, #tpu.memory_space<vmem>>, vector<32x128xf32>
    %cst_158 = arith.constant dense<0.000000e+00> : vector<16x128xf32>
    %368 = tpu.matmul %366, %367, %cst_158 {dimension_numbers = #tpu.dot_dimension_numbers<[1], [0], [0], [1], [0, 0, 1, 1], [], []>} : vector<16x32xf32>, vector<32x128xf32>, vector<16x128xf32> -> vector<16x128xf32>
    %c0_159 = arith.constant 0 : index
    %c0_160 = arith.constant 0 : index
    %369 = vector.load %arg14[%c0_159, %c0_160] : memref<1x128xf32, #tpu.memory_space<vmem>>, vector<1x128xf32>
    %370 = vector.broadcast %369 : vector<1x128xf32> to vector<16x128xf32>
    %371 = arith.addf %368, %370 : vector<16x128xf32>
    %cst_161 = arith.constant 5.000000e-01 : f32
    %372 = vector.broadcast %cst_161 : f32 to vector<16x128xf32>
    %373 = arith.mulf %372, %371 : vector<16x128xf32>
    %cst_162 = arith.constant 0.707106769 : f32
    %374 = vector.broadcast %cst_162 : f32 to vector<16x128xf32>
    %375 = arith.mulf %371, %374 : vector<16x128xf32>
    %cst_163 = arith.constant 0.000000e+00 : f32
    %376 = vector.broadcast %cst_163 : f32 to vector<16x128xf32>
    %377 = arith.cmpf oge, %375, %376 : vector<16x128xf32>
    %cst_164 = arith.constant 1.000000e+00 : f32
    %cst_165 = arith.constant -1.000000e+00 : f32
    %378 = vector.broadcast %cst_164 : f32 to vector<16x128xf32>
    %379 = vector.broadcast %cst_165 : f32 to vector<16x128xf32>
    %380 = arith.select %377, %378, %379 : vector<16x128xi1>, vector<16x128xf32>
    %381 = math.absf %375 : vector<16x128xf32>
    %cst_166 = arith.constant 0.327591091 : f32
    %382 = vector.broadcast %cst_166 : f32 to vector<16x128xf32>
    %383 = arith.mulf %382, %381 : vector<16x128xf32>
    %cst_167 = arith.constant 1.000000e+00 : f32
    %384 = vector.broadcast %cst_167 : f32 to vector<16x128xf32>
    %385 = arith.addf %384, %383 : vector<16x128xf32>
    %cst_168 = arith.constant 1.000000e+00 : f32
    %386 = vector.broadcast %cst_168 : f32 to vector<16x128xf32>
    %387 = arith.divf %386, %385 : vector<16x128xf32>
    %cst_169 = arith.constant 1.06140542 : f32
    %388 = vector.broadcast %cst_169 : f32 to vector<16x128xf32>
    %389 = arith.mulf %388, %387 : vector<16x128xf32>
    %cst_170 = arith.constant -1.45315206 : f32
    %390 = vector.broadcast %cst_170 : f32 to vector<16x128xf32>
    %391 = arith.addf %389, %390 : vector<16x128xf32>
    %392 = arith.mulf %391, %387 : vector<16x128xf32>
    %cst_171 = arith.constant 1.42141378 : f32
    %393 = vector.broadcast %cst_171 : f32 to vector<16x128xf32>
    %394 = arith.addf %392, %393 : vector<16x128xf32>
    %395 = arith.mulf %394, %387 : vector<16x128xf32>
    %cst_172 = arith.constant -0.284496725 : f32
    %396 = vector.broadcast %cst_172 : f32 to vector<16x128xf32>
    %397 = arith.addf %395, %396 : vector<16x128xf32>
    %398 = arith.mulf %397, %387 : vector<16x128xf32>
    %cst_173 = arith.constant 0.254829586 : f32
    %399 = vector.broadcast %cst_173 : f32 to vector<16x128xf32>
    %400 = arith.addf %398, %399 : vector<16x128xf32>
    %401 = arith.mulf %400, %387 : vector<16x128xf32>
    %cst_174 = arith.constant 0.000000e+00 : f32
    %402 = vector.broadcast %cst_174 : f32 to vector<16x128xf32>
    %403 = arith.subf %402, %381 : vector<16x128xf32>
    %404 = arith.mulf %403, %381 : vector<16x128xf32>
    %405 = math.exp %404 : vector<16x128xf32>
    %406 = arith.mulf %401, %405 : vector<16x128xf32>
    %cst_175 = arith.constant 1.000000e+00 : f32
    %407 = vector.broadcast %cst_175 : f32 to vector<16x128xf32>
    %408 = arith.subf %407, %406 : vector<16x128xf32>
    %409 = arith.mulf %380, %408 : vector<16x128xf32>
    %cst_176 = arith.constant 1.000000e+00 : f32
    %410 = vector.broadcast %cst_176 : f32 to vector<16x128xf32>
    %411 = arith.addf %410, %409 : vector<16x128xf32>
    %412 = arith.mulf %373, %411 : vector<16x128xf32>
    %c0_177 = arith.constant 0 : index
    %c0_178 = arith.constant 0 : index
    %413 = vector.load %arg15[%c0_177, %c0_178] : memref<128x32xf32, #tpu.memory_space<vmem>>, vector<128x32xf32>
    %cst_179 = arith.constant dense<0.000000e+00> : vector<16x32xf32>
    %414 = tpu.matmul %412, %413, %cst_179 {dimension_numbers = #tpu.dot_dimension_numbers<[1], [0], [0], [1], [0, 0, 1, 1], [], []>} : vector<16x128xf32>, vector<128x32xf32>, vector<16x32xf32> -> vector<16x32xf32>
    %c0_180 = arith.constant 0 : index
    %c0_181 = arith.constant 0 : index
    %415 = vector.load %arg16[%c0_180, %c0_181] : memref<1x32xf32, #tpu.memory_space<vmem>>, vector<1x32xf32>
    %416 = vector.broadcast %415 : vector<1x32xf32> to vector<16x32xf32>
    %417 = arith.addf %414, %416 : vector<16x32xf32>
    %418 = arith.addf %340, %417 : vector<16x32xf32>
    %c0_182 = arith.constant 0 : index
    %c0_183 = arith.constant 0 : index
    %419 = vector.load %arg3[%c0_182, %c0_183] : memref<1x32xf32, #tpu.memory_space<vmem>>, vector<1x32xf32>
    %c0_184 = arith.constant 0 : index
    %c0_185 = arith.constant 0 : index
    %420 = vector.load %arg4[%c0_184, %c0_185] : memref<1x32xf32, #tpu.memory_space<vmem>>, vector<1x32xf32>
    %cst_186 = arith.constant dense<0.000000e+00> : vector<16xf32>
    %421 = vector.multi_reduction <add>, %418, %cst_186 [1] : vector<16x32xf32> to vector<16xf32>
    %422 = vector.shape_cast %421 : vector<16xf32> to vector<16x1xf32>
    %cst_187 = arith.constant 3.200000e+01 : f32
    %423 = vector.broadcast %cst_187 : f32 to vector<16x1xf32>
    %424 = arith.divf %422, %423 : vector<16x1xf32>
    %425 = vector.broadcast %424 : vector<16x1xf32> to vector<16x32xf32>
    %426 = arith.subf %418, %425 : vector<16x32xf32>
    %427 = vector.broadcast %424 : vector<16x1xf32> to vector<16x32xf32>
    %428 = arith.subf %418, %427 : vector<16x32xf32>
    %429 = arith.mulf %426, %428 : vector<16x32xf32>
    %cst_188 = arith.constant dense<0.000000e+00> : vector<16xf32>
    %430 = vector.multi_reduction <add>, %429, %cst_188 [1] : vector<16x32xf32> to vector<16xf32>
    %431 = vector.shape_cast %430 : vector<16xf32> to vector<16x1xf32>
    %cst_189 = arith.constant 3.200000e+01 : f32
    %432 = vector.broadcast %cst_189 : f32 to vector<16x1xf32>
    %433 = arith.divf %431, %432 : vector<16x1xf32>
    %434 = vector.broadcast %424 : vector<16x1xf32> to vector<16x32xf32>
    %435 = arith.subf %418, %434 : vector<16x32xf32>
    %cst_190 = arith.constant 9.99999974E-6 : f32
    %436 = vector.broadcast %cst_190 : f32 to vector<16x1xf32>
    %437 = arith.addf %433, %436 : vector<16x1xf32>
    %438 = math.rsqrt %437 : vector<16x1xf32>
    %439 = vector.broadcast %438 : vector<16x1xf32> to vector<16x32xf32>
    %440 = arith.mulf %435, %439 : vector<16x32xf32>
    %441 = vector.broadcast %419 : vector<1x32xf32> to vector<16x32xf32>
    %442 = arith.mulf %440, %441 : vector<16x32xf32>
    %443 = vector.broadcast %420 : vector<1x32xf32> to vector<16x32xf32>
    %444 = arith.addf %442, %443 : vector<16x32xf32>
    %c0_191 = arith.constant 0 : index
    %c0_192 = arith.constant 0 : index
    %445 = vector.load %arg5[%c0_191, %c0_192] : memref<32x32xf32, #tpu.memory_space<vmem>>, vector<32x32xf32>
    %cst_193 = arith.constant dense<0.000000e+00> : vector<16x32xf32>
    %446 = tpu.matmul %444, %445, %cst_193 {dimension_numbers = #tpu.dot_dimension_numbers<[1], [0], [0], [1], [0, 0, 1, 1], [], []>} : vector<16x32xf32>, vector<32x32xf32>, vector<16x32xf32> -> vector<16x32xf32>
    %c0_194 = arith.constant 0 : index
    %c0_195 = arith.constant 0 : index
    %447 = vector.load %arg6[%c0_194, %c0_195] : memref<1x32xf32, #tpu.memory_space<vmem>>, vector<1x32xf32>
    %448 = vector.broadcast %447 : vector<1x32xf32> to vector<16x32xf32>
    %449 = arith.addf %446, %448 : vector<16x32xf32>
    %450 = vector.extract_strided_slice %449 {offsets = [0, 0], sizes = [16, 16], strides = [1, 1]} : vector<16x32xf32> to vector<16x16xf32>
    %451 = vector.extract_strided_slice %8 {offsets = [0, 0], sizes = [8, 16], strides = [1, 1]} : vector<8x32xf32> to vector<8x16xf32>
    %cst_196 = arith.constant dense<0.000000e+00> : vector<16x8xf32>
    %452 = tpu.matmul %450, %451, %cst_196 {dimension_numbers = #tpu.dot_dimension_numbers<[1], [1], [0], [0], [0, 0, 1, 0], [], []>} : vector<16x16xf32>, vector<8x16xf32>, vector<16x8xf32> -> vector<16x8xf32>
    %cst_197 = arith.constant 2.500000e-01 : f32
    %453 = vector.broadcast %cst_197 : f32 to vector<16x8xf32>
    %454 = arith.mulf %452, %453 : vector<16x8xf32>
    %455 = vector.extract_strided_slice %449 {offsets = [0, 16], sizes = [16, 16], strides = [1, 1]} : vector<16x32xf32> to vector<16x16xf32>
    %456 = vector.extract_strided_slice %8 {offsets = [0, 16], sizes = [8, 16], strides = [1, 1]} : vector<8x32xf32> to vector<8x16xf32>
    %cst_198 = arith.constant dense<0.000000e+00> : vector<16x8xf32>
    %457 = tpu.matmul %455, %456, %cst_198 {dimension_numbers = #tpu.dot_dimension_numbers<[1], [1], [0], [0], [0, 0, 1, 0], [], []>} : vector<16x16xf32>, vector<8x16xf32>, vector<16x8xf32> -> vector<16x8xf32>
    %cst_199 = arith.constant 2.500000e-01 : f32
    %458 = vector.broadcast %cst_199 : f32 to vector<16x8xf32>
    %459 = arith.mulf %457, %458 : vector<16x8xf32>
    %460 = arith.maximumf %454, %459 : vector<16x8xf32>
    %461 = arith.subf %454, %460 : vector<16x8xf32>
    %462 = math.exp %461 : vector<16x8xf32>
    %463 = arith.subf %459, %460 : vector<16x8xf32>
    %464 = math.exp %463 : vector<16x8xf32>
    %465 = arith.addf %462, %464 : vector<16x8xf32>
    %cst_200 = arith.constant 1.000000e+00 : f32
    %466 = vector.broadcast %cst_200 : f32 to vector<16x8xf32>
    %467 = arith.divf %466, %465 : vector<16x8xf32>
    %468 = arith.mulf %462, %467 : vector<16x8xf32>
    %469 = vector.extract_strided_slice %13 {offsets = [0, 0], sizes = [8, 16], strides = [1, 1]} : vector<8x32xf32> to vector<8x16xf32>
    %cst_201 = arith.constant dense<0.000000e+00> : vector<16x16xf32>
    %470 = tpu.matmul %468, %469, %cst_201 {dimension_numbers = #tpu.dot_dimension_numbers<[1], [0], [0], [1], [0, 0, 1, 1], [], []>} : vector<16x8xf32>, vector<8x16xf32>, vector<16x16xf32> -> vector<16x16xf32>
    %471 = arith.mulf %464, %467 : vector<16x8xf32>
    %472 = vector.extract_strided_slice %13 {offsets = [0, 16], sizes = [8, 16], strides = [1, 1]} : vector<8x32xf32> to vector<8x16xf32>
    %cst_202 = arith.constant dense<0.000000e+00> : vector<16x16xf32>
    %473 = tpu.matmul %471, %472, %cst_202 {dimension_numbers = #tpu.dot_dimension_numbers<[1], [0], [0], [1], [0, 0, 1, 1], [], []>} : vector<16x8xf32>, vector<8x16xf32>, vector<16x16xf32> -> vector<16x16xf32>
    %474 = tpu.concatenate %470, %473 in 1 : vector<16x16xf32>, vector<16x16xf32> -> vector<16x32xf32>
    %475 = arith.addf %418, %474 : vector<16x32xf32>
    %c0_203 = arith.constant 0 : index
    %c0_204 = arith.constant 0 : index
    %476 = vector.load %arg11[%c0_203, %c0_204] : memref<1x32xf32, #tpu.memory_space<vmem>>, vector<1x32xf32>
    %c0_205 = arith.constant 0 : index
    %c0_206 = arith.constant 0 : index
    %477 = vector.load %arg12[%c0_205, %c0_206] : memref<1x32xf32, #tpu.memory_space<vmem>>, vector<1x32xf32>
    %cst_207 = arith.constant dense<0.000000e+00> : vector<16xf32>
    %478 = vector.multi_reduction <add>, %475, %cst_207 [1] : vector<16x32xf32> to vector<16xf32>
    %479 = vector.shape_cast %478 : vector<16xf32> to vector<16x1xf32>
    %cst_208 = arith.constant 3.200000e+01 : f32
    %480 = vector.broadcast %cst_208 : f32 to vector<16x1xf32>
    %481 = arith.divf %479, %480 : vector<16x1xf32>
    %482 = vector.broadcast %481 : vector<16x1xf32> to vector<16x32xf32>
    %483 = arith.subf %475, %482 : vector<16x32xf32>
    %484 = vector.broadcast %481 : vector<16x1xf32> to vector<16x32xf32>
    %485 = arith.subf %475, %484 : vector<16x32xf32>
    %486 = arith.mulf %483, %485 : vector<16x32xf32>
    %cst_209 = arith.constant dense<0.000000e+00> : vector<16xf32>
    %487 = vector.multi_reduction <add>, %486, %cst_209 [1] : vector<16x32xf32> to vector<16xf32>
    %488 = vector.shape_cast %487 : vector<16xf32> to vector<16x1xf32>
    %cst_210 = arith.constant 3.200000e+01 : f32
    %489 = vector.broadcast %cst_210 : f32 to vector<16x1xf32>
    %490 = arith.divf %488, %489 : vector<16x1xf32>
    %491 = vector.broadcast %481 : vector<16x1xf32> to vector<16x32xf32>
    %492 = arith.subf %475, %491 : vector<16x32xf32>
    %cst_211 = arith.constant 9.99999974E-6 : f32
    %493 = vector.broadcast %cst_211 : f32 to vector<16x1xf32>
    %494 = arith.addf %490, %493 : vector<16x1xf32>
    %495 = math.rsqrt %494 : vector<16x1xf32>
    %496 = vector.broadcast %495 : vector<16x1xf32> to vector<16x32xf32>
    %497 = arith.mulf %492, %496 : vector<16x32xf32>
    %498 = vector.broadcast %476 : vector<1x32xf32> to vector<16x32xf32>
    %499 = arith.mulf %497, %498 : vector<16x32xf32>
    %500 = vector.broadcast %477 : vector<1x32xf32> to vector<16x32xf32>
    %501 = arith.addf %499, %500 : vector<16x32xf32>
    %c0_212 = arith.constant 0 : index
    %c0_213 = arith.constant 0 : index
    %502 = vector.load %arg13[%c0_212, %c0_213] : memref<32x128xf32, #tpu.memory_space<vmem>>, vector<32x128xf32>
    %cst_214 = arith.constant dense<0.000000e+00> : vector<16x128xf32>
    %503 = tpu.matmul %501, %502, %cst_214 {dimension_numbers = #tpu.dot_dimension_numbers<[1], [0], [0], [1], [0, 0, 1, 1], [], []>} : vector<16x32xf32>, vector<32x128xf32>, vector<16x128xf32> -> vector<16x128xf32>
    %c0_215 = arith.constant 0 : index
    %c0_216 = arith.constant 0 : index
    %504 = vector.load %arg14[%c0_215, %c0_216] : memref<1x128xf32, #tpu.memory_space<vmem>>, vector<1x128xf32>
    %505 = vector.broadcast %504 : vector<1x128xf32> to vector<16x128xf32>
    %506 = arith.addf %503, %505 : vector<16x128xf32>
    %cst_217 = arith.constant 5.000000e-01 : f32
    %507 = vector.broadcast %cst_217 : f32 to vector<16x128xf32>
    %508 = arith.mulf %507, %506 : vector<16x128xf32>
    %cst_218 = arith.constant 0.707106769 : f32
    %509 = vector.broadcast %cst_218 : f32 to vector<16x128xf32>
    %510 = arith.mulf %506, %509 : vector<16x128xf32>
    %cst_219 = arith.constant 0.000000e+00 : f32
    %511 = vector.broadcast %cst_219 : f32 to vector<16x128xf32>
    %512 = arith.cmpf oge, %510, %511 : vector<16x128xf32>
    %cst_220 = arith.constant 1.000000e+00 : f32
    %cst_221 = arith.constant -1.000000e+00 : f32
    %513 = vector.broadcast %cst_220 : f32 to vector<16x128xf32>
    %514 = vector.broadcast %cst_221 : f32 to vector<16x128xf32>
    %515 = arith.select %512, %513, %514 : vector<16x128xi1>, vector<16x128xf32>
    %516 = math.absf %510 : vector<16x128xf32>
    %cst_222 = arith.constant 0.327591091 : f32
    %517 = vector.broadcast %cst_222 : f32 to vector<16x128xf32>
    %518 = arith.mulf %517, %516 : vector<16x128xf32>
    %cst_223 = arith.constant 1.000000e+00 : f32
    %519 = vector.broadcast %cst_223 : f32 to vector<16x128xf32>
    %520 = arith.addf %519, %518 : vector<16x128xf32>
    %cst_224 = arith.constant 1.000000e+00 : f32
    %521 = vector.broadcast %cst_224 : f32 to vector<16x128xf32>
    %522 = arith.divf %521, %520 : vector<16x128xf32>
    %cst_225 = arith.constant 1.06140542 : f32
    %523 = vector.broadcast %cst_225 : f32 to vector<16x128xf32>
    %524 = arith.mulf %523, %522 : vector<16x128xf32>
    %cst_226 = arith.constant -1.45315206 : f32
    %525 = vector.broadcast %cst_226 : f32 to vector<16x128xf32>
    %526 = arith.addf %524, %525 : vector<16x128xf32>
    %527 = arith.mulf %526, %522 : vector<16x128xf32>
    %cst_227 = arith.constant 1.42141378 : f32
    %528 = vector.broadcast %cst_227 : f32 to vector<16x128xf32>
    %529 = arith.addf %527, %528 : vector<16x128xf32>
    %530 = arith.mulf %529, %522 : vector<16x128xf32>
    %cst_228 = arith.constant -0.284496725 : f32
    %531 = vector.broadcast %cst_228 : f32 to vector<16x128xf32>
    %532 = arith.addf %530, %531 : vector<16x128xf32>
    %533 = arith.mulf %532, %522 : vector<16x128xf32>
    %cst_229 = arith.constant 0.254829586 : f32
    %534 = vector.broadcast %cst_229 : f32 to vector<16x128xf32>
    %535 = arith.addf %533, %534 : vector<16x128xf32>
    %536 = arith.mulf %535, %522 : vector<16x128xf32>
    %cst_230 = arith.constant 0.000000e+00 : f32
    %537 = vector.broadcast %cst_230 : f32 to vector<16x128xf32>
    %538 = arith.subf %537, %516 : vector<16x128xf32>
    %539 = arith.mulf %538, %516 : vector<16x128xf32>
    %540 = math.exp %539 : vector<16x128xf32>
    %541 = arith.mulf %536, %540 : vector<16x128xf32>
    %cst_231 = arith.constant 1.000000e+00 : f32
    %542 = vector.broadcast %cst_231 : f32 to vector<16x128xf32>
    %543 = arith.subf %542, %541 : vector<16x128xf32>
    %544 = arith.mulf %515, %543 : vector<16x128xf32>
    %cst_232 = arith.constant 1.000000e+00 : f32
    %545 = vector.broadcast %cst_232 : f32 to vector<16x128xf32>
    %546 = arith.addf %545, %544 : vector<16x128xf32>
    %547 = arith.mulf %508, %546 : vector<16x128xf32>
    %c0_233 = arith.constant 0 : index
    %c0_234 = arith.constant 0 : index
    %548 = vector.load %arg15[%c0_233, %c0_234] : memref<128x32xf32, #tpu.memory_space<vmem>>, vector<128x32xf32>
    %cst_235 = arith.constant dense<0.000000e+00> : vector<16x32xf32>
    %549 = tpu.matmul %547, %548, %cst_235 {dimension_numbers = #tpu.dot_dimension_numbers<[1], [0], [0], [1], [0, 0, 1, 1], [], []>} : vector<16x128xf32>, vector<128x32xf32>, vector<16x32xf32> -> vector<16x32xf32>
    %c0_236 = arith.constant 0 : index
    %c0_237 = arith.constant 0 : index
    %550 = vector.load %arg16[%c0_236, %c0_237] : memref<1x32xf32, #tpu.memory_space<vmem>>, vector<1x32xf32>
    %551 = vector.broadcast %550 : vector<1x32xf32> to vector<16x32xf32>
    %552 = arith.addf %549, %551 : vector<16x32xf32>
    %553 = arith.addf %475, %552 : vector<16x32xf32>
    %c0_238 = arith.constant 0 : index
    %c0_239 = arith.constant 0 : index
    %554 = vector.load %arg3[%c0_238, %c0_239] : memref<1x32xf32, #tpu.memory_space<vmem>>, vector<1x32xf32>
    %c0_240 = arith.constant 0 : index
    %c0_241 = arith.constant 0 : index
    %555 = vector.load %arg4[%c0_240, %c0_241] : memref<1x32xf32, #tpu.memory_space<vmem>>, vector<1x32xf32>
    %cst_242 = arith.constant dense<0.000000e+00> : vector<16xf32>
    %556 = vector.multi_reduction <add>, %553, %cst_242 [1] : vector<16x32xf32> to vector<16xf32>
    %557 = vector.shape_cast %556 : vector<16xf32> to vector<16x1xf32>
    %cst_243 = arith.constant 3.200000e+01 : f32
    %558 = vector.broadcast %cst_243 : f32 to vector<16x1xf32>
    %559 = arith.divf %557, %558 : vector<16x1xf32>
    %560 = vector.broadcast %559 : vector<16x1xf32> to vector<16x32xf32>
    %561 = arith.subf %553, %560 : vector<16x32xf32>
    %562 = vector.broadcast %559 : vector<16x1xf32> to vector<16x32xf32>
    %563 = arith.subf %553, %562 : vector<16x32xf32>
    %564 = arith.mulf %561, %563 : vector<16x32xf32>
    %cst_244 = arith.constant dense<0.000000e+00> : vector<16xf32>
    %565 = vector.multi_reduction <add>, %564, %cst_244 [1] : vector<16x32xf32> to vector<16xf32>
    %566 = vector.shape_cast %565 : vector<16xf32> to vector<16x1xf32>
    %cst_245 = arith.constant 3.200000e+01 : f32
    %567 = vector.broadcast %cst_245 : f32 to vector<16x1xf32>
    %568 = arith.divf %566, %567 : vector<16x1xf32>
    %569 = vector.broadcast %559 : vector<16x1xf32> to vector<16x32xf32>
    %570 = arith.subf %553, %569 : vector<16x32xf32>
    %cst_246 = arith.constant 9.99999974E-6 : f32
    %571 = vector.broadcast %cst_246 : f32 to vector<16x1xf32>
    %572 = arith.addf %568, %571 : vector<16x1xf32>
    %573 = math.rsqrt %572 : vector<16x1xf32>
    %574 = vector.broadcast %573 : vector<16x1xf32> to vector<16x32xf32>
    %575 = arith.mulf %570, %574 : vector<16x32xf32>
    %576 = vector.broadcast %554 : vector<1x32xf32> to vector<16x32xf32>
    %577 = arith.mulf %575, %576 : vector<16x32xf32>
    %578 = vector.broadcast %555 : vector<1x32xf32> to vector<16x32xf32>
    %579 = arith.addf %577, %578 : vector<16x32xf32>
    %c0_247 = arith.constant 0 : index
    %c0_248 = arith.constant 0 : index
    %580 = vector.load %arg5[%c0_247, %c0_248] : memref<32x32xf32, #tpu.memory_space<vmem>>, vector<32x32xf32>
    %cst_249 = arith.constant dense<0.000000e+00> : vector<16x32xf32>
    %581 = tpu.matmul %579, %580, %cst_249 {dimension_numbers = #tpu.dot_dimension_numbers<[1], [0], [0], [1], [0, 0, 1, 1], [], []>} : vector<16x32xf32>, vector<32x32xf32>, vector<16x32xf32> -> vector<16x32xf32>
    %c0_250 = arith.constant 0 : index
    %c0_251 = arith.constant 0 : index
    %582 = vector.load %arg6[%c0_250, %c0_251] : memref<1x32xf32, #tpu.memory_space<vmem>>, vector<1x32xf32>
    %583 = vector.broadcast %582 : vector<1x32xf32> to vector<16x32xf32>
    %584 = arith.addf %581, %583 : vector<16x32xf32>
    %585 = vector.extract_strided_slice %584 {offsets = [0, 0], sizes = [16, 16], strides = [1, 1]} : vector<16x32xf32> to vector<16x16xf32>
    %586 = vector.extract_strided_slice %8 {offsets = [0, 0], sizes = [8, 16], strides = [1, 1]} : vector<8x32xf32> to vector<8x16xf32>
    %cst_252 = arith.constant dense<0.000000e+00> : vector<16x8xf32>
    %587 = tpu.matmul %585, %586, %cst_252 {dimension_numbers = #tpu.dot_dimension_numbers<[1], [1], [0], [0], [0, 0, 1, 0], [], []>} : vector<16x16xf32>, vector<8x16xf32>, vector<16x8xf32> -> vector<16x8xf32>
    %cst_253 = arith.constant 2.500000e-01 : f32
    %588 = vector.broadcast %cst_253 : f32 to vector<16x8xf32>
    %589 = arith.mulf %587, %588 : vector<16x8xf32>
    %590 = vector.extract_strided_slice %584 {offsets = [0, 16], sizes = [16, 16], strides = [1, 1]} : vector<16x32xf32> to vector<16x16xf32>
    %591 = vector.extract_strided_slice %8 {offsets = [0, 16], sizes = [8, 16], strides = [1, 1]} : vector<8x32xf32> to vector<8x16xf32>
    %cst_254 = arith.constant dense<0.000000e+00> : vector<16x8xf32>
    %592 = tpu.matmul %590, %591, %cst_254 {dimension_numbers = #tpu.dot_dimension_numbers<[1], [1], [0], [0], [0, 0, 1, 0], [], []>} : vector<16x16xf32>, vector<8x16xf32>, vector<16x8xf32> -> vector<16x8xf32>
    %cst_255 = arith.constant 2.500000e-01 : f32
    %593 = vector.broadcast %cst_255 : f32 to vector<16x8xf32>
    %594 = arith.mulf %592, %593 : vector<16x8xf32>
    %595 = arith.maximumf %589, %594 : vector<16x8xf32>
    %596 = arith.subf %589, %595 : vector<16x8xf32>
    %597 = math.exp %596 : vector<16x8xf32>
    %598 = arith.subf %594, %595 : vector<16x8xf32>
    %599 = math.exp %598 : vector<16x8xf32>
    %600 = arith.addf %597, %599 : vector<16x8xf32>
    %cst_256 = arith.constant 1.000000e+00 : f32
    %601 = vector.broadcast %cst_256 : f32 to vector<16x8xf32>
    %602 = arith.divf %601, %600 : vector<16x8xf32>
    %603 = arith.mulf %597, %602 : vector<16x8xf32>
    %604 = vector.extract_strided_slice %13 {offsets = [0, 0], sizes = [8, 16], strides = [1, 1]} : vector<8x32xf32> to vector<8x16xf32>
    %cst_257 = arith.constant dense<0.000000e+00> : vector<16x16xf32>
    %605 = tpu.matmul %603, %604, %cst_257 {dimension_numbers = #tpu.dot_dimension_numbers<[1], [0], [0], [1], [0, 0, 1, 1], [], []>} : vector<16x8xf32>, vector<8x16xf32>, vector<16x16xf32> -> vector<16x16xf32>
    %606 = arith.mulf %599, %602 : vector<16x8xf32>
    %607 = vector.extract_strided_slice %13 {offsets = [0, 16], sizes = [8, 16], strides = [1, 1]} : vector<8x32xf32> to vector<8x16xf32>
    %cst_258 = arith.constant dense<0.000000e+00> : vector<16x16xf32>
    %608 = tpu.matmul %606, %607, %cst_258 {dimension_numbers = #tpu.dot_dimension_numbers<[1], [0], [0], [1], [0, 0, 1, 1], [], []>} : vector<16x8xf32>, vector<8x16xf32>, vector<16x16xf32> -> vector<16x16xf32>
    %609 = tpu.concatenate %605, %608 in 1 : vector<16x16xf32>, vector<16x16xf32> -> vector<16x32xf32>
    %610 = arith.addf %553, %609 : vector<16x32xf32>
    %c0_259 = arith.constant 0 : index
    %c0_260 = arith.constant 0 : index
    %611 = vector.load %arg11[%c0_259, %c0_260] : memref<1x32xf32, #tpu.memory_space<vmem>>, vector<1x32xf32>
    %c0_261 = arith.constant 0 : index
    %c0_262 = arith.constant 0 : index
    %612 = vector.load %arg12[%c0_261, %c0_262] : memref<1x32xf32, #tpu.memory_space<vmem>>, vector<1x32xf32>
    %cst_263 = arith.constant dense<0.000000e+00> : vector<16xf32>
    %613 = vector.multi_reduction <add>, %610, %cst_263 [1] : vector<16x32xf32> to vector<16xf32>
    %614 = vector.shape_cast %613 : vector<16xf32> to vector<16x1xf32>
    %cst_264 = arith.constant 3.200000e+01 : f32
    %615 = vector.broadcast %cst_264 : f32 to vector<16x1xf32>
    %616 = arith.divf %614, %615 : vector<16x1xf32>
    %617 = vector.broadcast %616 : vector<16x1xf32> to vector<16x32xf32>
    %618 = arith.subf %610, %617 : vector<16x32xf32>
    %619 = vector.broadcast %616 : vector<16x1xf32> to vector<16x32xf32>
    %620 = arith.subf %610, %619 : vector<16x32xf32>
    %621 = arith.mulf %618, %620 : vector<16x32xf32>
    %cst_265 = arith.constant dense<0.000000e+00> : vector<16xf32>
    %622 = vector.multi_reduction <add>, %621, %cst_265 [1] : vector<16x32xf32> to vector<16xf32>
    %623 = vector.shape_cast %622 : vector<16xf32> to vector<16x1xf32>
    %cst_266 = arith.constant 3.200000e+01 : f32
    %624 = vector.broadcast %cst_266 : f32 to vector<16x1xf32>
    %625 = arith.divf %623, %624 : vector<16x1xf32>
    %626 = vector.broadcast %616 : vector<16x1xf32> to vector<16x32xf32>
    %627 = arith.subf %610, %626 : vector<16x32xf32>
    %cst_267 = arith.constant 9.99999974E-6 : f32
    %628 = vector.broadcast %cst_267 : f32 to vector<16x1xf32>
    %629 = arith.addf %625, %628 : vector<16x1xf32>
    %630 = math.rsqrt %629 : vector<16x1xf32>
    %631 = vector.broadcast %630 : vector<16x1xf32> to vector<16x32xf32>
    %632 = arith.mulf %627, %631 : vector<16x32xf32>
    %633 = vector.broadcast %611 : vector<1x32xf32> to vector<16x32xf32>
    %634 = arith.mulf %632, %633 : vector<16x32xf32>
    %635 = vector.broadcast %612 : vector<1x32xf32> to vector<16x32xf32>
    %636 = arith.addf %634, %635 : vector<16x32xf32>
    %c0_268 = arith.constant 0 : index
    %c0_269 = arith.constant 0 : index
    %637 = vector.load %arg13[%c0_268, %c0_269] : memref<32x128xf32, #tpu.memory_space<vmem>>, vector<32x128xf32>
    %cst_270 = arith.constant dense<0.000000e+00> : vector<16x128xf32>
    %638 = tpu.matmul %636, %637, %cst_270 {dimension_numbers = #tpu.dot_dimension_numbers<[1], [0], [0], [1], [0, 0, 1, 1], [], []>} : vector<16x32xf32>, vector<32x128xf32>, vector<16x128xf32> -> vector<16x128xf32>
    %c0_271 = arith.constant 0 : index
    %c0_272 = arith.constant 0 : index
    %639 = vector.load %arg14[%c0_271, %c0_272] : memref<1x128xf32, #tpu.memory_space<vmem>>, vector<1x128xf32>
    %640 = vector.broadcast %639 : vector<1x128xf32> to vector<16x128xf32>
    %641 = arith.addf %638, %640 : vector<16x128xf32>
    %cst_273 = arith.constant 5.000000e-01 : f32
    %642 = vector.broadcast %cst_273 : f32 to vector<16x128xf32>
    %643 = arith.mulf %642, %641 : vector<16x128xf32>
    %cst_274 = arith.constant 0.707106769 : f32
    %644 = vector.broadcast %cst_274 : f32 to vector<16x128xf32>
    %645 = arith.mulf %641, %644 : vector<16x128xf32>
    %cst_275 = arith.constant 0.000000e+00 : f32
    %646 = vector.broadcast %cst_275 : f32 to vector<16x128xf32>
    %647 = arith.cmpf oge, %645, %646 : vector<16x128xf32>
    %cst_276 = arith.constant 1.000000e+00 : f32
    %cst_277 = arith.constant -1.000000e+00 : f32
    %648 = vector.broadcast %cst_276 : f32 to vector<16x128xf32>
    %649 = vector.broadcast %cst_277 : f32 to vector<16x128xf32>
    %650 = arith.select %647, %648, %649 : vector<16x128xi1>, vector<16x128xf32>
    %651 = math.absf %645 : vector<16x128xf32>
    %cst_278 = arith.constant 0.327591091 : f32
    %652 = vector.broadcast %cst_278 : f32 to vector<16x128xf32>
    %653 = arith.mulf %652, %651 : vector<16x128xf32>
    %cst_279 = arith.constant 1.000000e+00 : f32
    %654 = vector.broadcast %cst_279 : f32 to vector<16x128xf32>
    %655 = arith.addf %654, %653 : vector<16x128xf32>
    %cst_280 = arith.constant 1.000000e+00 : f32
    %656 = vector.broadcast %cst_280 : f32 to vector<16x128xf32>
    %657 = arith.divf %656, %655 : vector<16x128xf32>
    %cst_281 = arith.constant 1.06140542 : f32
    %658 = vector.broadcast %cst_281 : f32 to vector<16x128xf32>
    %659 = arith.mulf %658, %657 : vector<16x128xf32>
    %cst_282 = arith.constant -1.45315206 : f32
    %660 = vector.broadcast %cst_282 : f32 to vector<16x128xf32>
    %661 = arith.addf %659, %660 : vector<16x128xf32>
    %662 = arith.mulf %661, %657 : vector<16x128xf32>
    %cst_283 = arith.constant 1.42141378 : f32
    %663 = vector.broadcast %cst_283 : f32 to vector<16x128xf32>
    %664 = arith.addf %662, %663 : vector<16x128xf32>
    %665 = arith.mulf %664, %657 : vector<16x128xf32>
    %cst_284 = arith.constant -0.284496725 : f32
    %666 = vector.broadcast %cst_284 : f32 to vector<16x128xf32>
    %667 = arith.addf %665, %666 : vector<16x128xf32>
    %668 = arith.mulf %667, %657 : vector<16x128xf32>
    %cst_285 = arith.constant 0.254829586 : f32
    %669 = vector.broadcast %cst_285 : f32 to vector<16x128xf32>
    %670 = arith.addf %668, %669 : vector<16x128xf32>
    %671 = arith.mulf %670, %657 : vector<16x128xf32>
    %cst_286 = arith.constant 0.000000e+00 : f32
    %672 = vector.broadcast %cst_286 : f32 to vector<16x128xf32>
    %673 = arith.subf %672, %651 : vector<16x128xf32>
    %674 = arith.mulf %673, %651 : vector<16x128xf32>
    %675 = math.exp %674 : vector<16x128xf32>
    %676 = arith.mulf %671, %675 : vector<16x128xf32>
    %cst_287 = arith.constant 1.000000e+00 : f32
    %677 = vector.broadcast %cst_287 : f32 to vector<16x128xf32>
    %678 = arith.subf %677, %676 : vector<16x128xf32>
    %679 = arith.mulf %650, %678 : vector<16x128xf32>
    %cst_288 = arith.constant 1.000000e+00 : f32
    %680 = vector.broadcast %cst_288 : f32 to vector<16x128xf32>
    %681 = arith.addf %680, %679 : vector<16x128xf32>
    %682 = arith.mulf %643, %681 : vector<16x128xf32>
    %c0_289 = arith.constant 0 : index
    %c0_290 = arith.constant 0 : index
    %683 = vector.load %arg15[%c0_289, %c0_290] : memref<128x32xf32, #tpu.memory_space<vmem>>, vector<128x32xf32>
    %cst_291 = arith.constant dense<0.000000e+00> : vector<16x32xf32>
    %684 = tpu.matmul %682, %683, %cst_291 {dimension_numbers = #tpu.dot_dimension_numbers<[1], [0], [0], [1], [0, 0, 1, 1], [], []>} : vector<16x128xf32>, vector<128x32xf32>, vector<16x32xf32> -> vector<16x32xf32>
    %c0_292 = arith.constant 0 : index
    %c0_293 = arith.constant 0 : index
    %685 = vector.load %arg16[%c0_292, %c0_293] : memref<1x32xf32, #tpu.memory_space<vmem>>, vector<1x32xf32>
    %686 = vector.broadcast %685 : vector<1x32xf32> to vector<16x32xf32>
    %687 = arith.addf %684, %686 : vector<16x32xf32>
    %688 = arith.addf %610, %687 : vector<16x32xf32>
    %c0_294 = arith.constant 0 : index
    %c0_295 = arith.constant 0 : index
    %689 = vector.load %arg3[%c0_294, %c0_295] : memref<1x32xf32, #tpu.memory_space<vmem>>, vector<1x32xf32>
    %c0_296 = arith.constant 0 : index
    %c0_297 = arith.constant 0 : index
    %690 = vector.load %arg4[%c0_296, %c0_297] : memref<1x32xf32, #tpu.memory_space<vmem>>, vector<1x32xf32>
    %cst_298 = arith.constant dense<0.000000e+00> : vector<16xf32>
    %691 = vector.multi_reduction <add>, %688, %cst_298 [1] : vector<16x32xf32> to vector<16xf32>
    %692 = vector.shape_cast %691 : vector<16xf32> to vector<16x1xf32>
    %cst_299 = arith.constant 3.200000e+01 : f32
    %693 = vector.broadcast %cst_299 : f32 to vector<16x1xf32>
    %694 = arith.divf %692, %693 : vector<16x1xf32>
    %695 = vector.broadcast %694 : vector<16x1xf32> to vector<16x32xf32>
    %696 = arith.subf %688, %695 : vector<16x32xf32>
    %697 = vector.broadcast %694 : vector<16x1xf32> to vector<16x32xf32>
    %698 = arith.subf %688, %697 : vector<16x32xf32>
    %699 = arith.mulf %696, %698 : vector<16x32xf32>
    %cst_300 = arith.constant dense<0.000000e+00> : vector<16xf32>
    %700 = vector.multi_reduction <add>, %699, %cst_300 [1] : vector<16x32xf32> to vector<16xf32>
    %701 = vector.shape_cast %700 : vector<16xf32> to vector<16x1xf32>
    %cst_301 = arith.constant 3.200000e+01 : f32
    %702 = vector.broadcast %cst_301 : f32 to vector<16x1xf32>
    %703 = arith.divf %701, %702 : vector<16x1xf32>
    %704 = vector.broadcast %694 : vector<16x1xf32> to vector<16x32xf32>
    %705 = arith.subf %688, %704 : vector<16x32xf32>
    %cst_302 = arith.constant 9.99999974E-6 : f32
    %706 = vector.broadcast %cst_302 : f32 to vector<16x1xf32>
    %707 = arith.addf %703, %706 : vector<16x1xf32>
    %708 = math.rsqrt %707 : vector<16x1xf32>
    %709 = vector.broadcast %708 : vector<16x1xf32> to vector<16x32xf32>
    %710 = arith.mulf %705, %709 : vector<16x32xf32>
    %711 = vector.broadcast %689 : vector<1x32xf32> to vector<16x32xf32>
    %712 = arith.mulf %710, %711 : vector<16x32xf32>
    %713 = vector.broadcast %690 : vector<1x32xf32> to vector<16x32xf32>
    %714 = arith.addf %712, %713 : vector<16x32xf32>
    %c0_303 = arith.constant 0 : index
    %c0_304 = arith.constant 0 : index
    %715 = vector.load %arg5[%c0_303, %c0_304] : memref<32x32xf32, #tpu.memory_space<vmem>>, vector<32x32xf32>
    %cst_305 = arith.constant dense<0.000000e+00> : vector<16x32xf32>
    %716 = tpu.matmul %714, %715, %cst_305 {dimension_numbers = #tpu.dot_dimension_numbers<[1], [0], [0], [1], [0, 0, 1, 1], [], []>} : vector<16x32xf32>, vector<32x32xf32>, vector<16x32xf32> -> vector<16x32xf32>
    %c0_306 = arith.constant 0 : index
    %c0_307 = arith.constant 0 : index
    %717 = vector.load %arg6[%c0_306, %c0_307] : memref<1x32xf32, #tpu.memory_space<vmem>>, vector<1x32xf32>
    %718 = vector.broadcast %717 : vector<1x32xf32> to vector<16x32xf32>
    %719 = arith.addf %716, %718 : vector<16x32xf32>
    %720 = vector.extract_strided_slice %719 {offsets = [0, 0], sizes = [16, 16], strides = [1, 1]} : vector<16x32xf32> to vector<16x16xf32>
    %721 = vector.extract_strided_slice %8 {offsets = [0, 0], sizes = [8, 16], strides = [1, 1]} : vector<8x32xf32> to vector<8x16xf32>
    %cst_308 = arith.constant dense<0.000000e+00> : vector<16x8xf32>
    %722 = tpu.matmul %720, %721, %cst_308 {dimension_numbers = #tpu.dot_dimension_numbers<[1], [1], [0], [0], [0, 0, 1, 0], [], []>} : vector<16x16xf32>, vector<8x16xf32>, vector<16x8xf32> -> vector<16x8xf32>
    %cst_309 = arith.constant 2.500000e-01 : f32
    %723 = vector.broadcast %cst_309 : f32 to vector<16x8xf32>
    %724 = arith.mulf %722, %723 : vector<16x8xf32>
    %725 = vector.extract_strided_slice %719 {offsets = [0, 16], sizes = [16, 16], strides = [1, 1]} : vector<16x32xf32> to vector<16x16xf32>
    %726 = vector.extract_strided_slice %8 {offsets = [0, 16], sizes = [8, 16], strides = [1, 1]} : vector<8x32xf32> to vector<8x16xf32>
    %cst_310 = arith.constant dense<0.000000e+00> : vector<16x8xf32>
    %727 = tpu.matmul %725, %726, %cst_310 {dimension_numbers = #tpu.dot_dimension_numbers<[1], [1], [0], [0], [0, 0, 1, 0], [], []>} : vector<16x16xf32>, vector<8x16xf32>, vector<16x8xf32> -> vector<16x8xf32>
    %cst_311 = arith.constant 2.500000e-01 : f32
    %728 = vector.broadcast %cst_311 : f32 to vector<16x8xf32>
    %729 = arith.mulf %727, %728 : vector<16x8xf32>
    %730 = arith.maximumf %724, %729 : vector<16x8xf32>
    %731 = arith.subf %724, %730 : vector<16x8xf32>
    %732 = math.exp %731 : vector<16x8xf32>
    %733 = arith.subf %729, %730 : vector<16x8xf32>
    %734 = math.exp %733 : vector<16x8xf32>
    %735 = arith.addf %732, %734 : vector<16x8xf32>
    %cst_312 = arith.constant 1.000000e+00 : f32
    %736 = vector.broadcast %cst_312 : f32 to vector<16x8xf32>
    %737 = arith.divf %736, %735 : vector<16x8xf32>
    %738 = arith.mulf %732, %737 : vector<16x8xf32>
    %739 = vector.extract_strided_slice %13 {offsets = [0, 0], sizes = [8, 16], strides = [1, 1]} : vector<8x32xf32> to vector<8x16xf32>
    %cst_313 = arith.constant dense<0.000000e+00> : vector<16x16xf32>
    %740 = tpu.matmul %738, %739, %cst_313 {dimension_numbers = #tpu.dot_dimension_numbers<[1], [0], [0], [1], [0, 0, 1, 1], [], []>} : vector<16x8xf32>, vector<8x16xf32>, vector<16x16xf32> -> vector<16x16xf32>
    %741 = arith.mulf %734, %737 : vector<16x8xf32>
    %742 = vector.extract_strided_slice %13 {offsets = [0, 16], sizes = [8, 16], strides = [1, 1]} : vector<8x32xf32> to vector<8x16xf32>
    %cst_314 = arith.constant dense<0.000000e+00> : vector<16x16xf32>
    %743 = tpu.matmul %741, %742, %cst_314 {dimension_numbers = #tpu.dot_dimension_numbers<[1], [0], [0], [1], [0, 0, 1, 1], [], []>} : vector<16x8xf32>, vector<8x16xf32>, vector<16x16xf32> -> vector<16x16xf32>
    %744 = tpu.concatenate %740, %743 in 1 : vector<16x16xf32>, vector<16x16xf32> -> vector<16x32xf32>
    %745 = arith.addf %688, %744 : vector<16x32xf32>
    %c0_315 = arith.constant 0 : index
    %c0_316 = arith.constant 0 : index
    %746 = vector.load %arg11[%c0_315, %c0_316] : memref<1x32xf32, #tpu.memory_space<vmem>>, vector<1x32xf32>
    %c0_317 = arith.constant 0 : index
    %c0_318 = arith.constant 0 : index
    %747 = vector.load %arg12[%c0_317, %c0_318] : memref<1x32xf32, #tpu.memory_space<vmem>>, vector<1x32xf32>
    %cst_319 = arith.constant dense<0.000000e+00> : vector<16xf32>
    %748 = vector.multi_reduction <add>, %745, %cst_319 [1] : vector<16x32xf32> to vector<16xf32>
    %749 = vector.shape_cast %748 : vector<16xf32> to vector<16x1xf32>
    %cst_320 = arith.constant 3.200000e+01 : f32
    %750 = vector.broadcast %cst_320 : f32 to vector<16x1xf32>
    %751 = arith.divf %749, %750 : vector<16x1xf32>
    %752 = vector.broadcast %751 : vector<16x1xf32> to vector<16x32xf32>
    %753 = arith.subf %745, %752 : vector<16x32xf32>
    %754 = vector.broadcast %751 : vector<16x1xf32> to vector<16x32xf32>
    %755 = arith.subf %745, %754 : vector<16x32xf32>
    %756 = arith.mulf %753, %755 : vector<16x32xf32>
    %cst_321 = arith.constant dense<0.000000e+00> : vector<16xf32>
    %757 = vector.multi_reduction <add>, %756, %cst_321 [1] : vector<16x32xf32> to vector<16xf32>
    %758 = vector.shape_cast %757 : vector<16xf32> to vector<16x1xf32>
    %cst_322 = arith.constant 3.200000e+01 : f32
    %759 = vector.broadcast %cst_322 : f32 to vector<16x1xf32>
    %760 = arith.divf %758, %759 : vector<16x1xf32>
    %761 = vector.broadcast %751 : vector<16x1xf32> to vector<16x32xf32>
    %762 = arith.subf %745, %761 : vector<16x32xf32>
    %cst_323 = arith.constant 9.99999974E-6 : f32
    %763 = vector.broadcast %cst_323 : f32 to vector<16x1xf32>
    %764 = arith.addf %760, %763 : vector<16x1xf32>
    %765 = math.rsqrt %764 : vector<16x1xf32>
    %766 = vector.broadcast %765 : vector<16x1xf32> to vector<16x32xf32>
    %767 = arith.mulf %762, %766 : vector<16x32xf32>
    %768 = vector.broadcast %746 : vector<1x32xf32> to vector<16x32xf32>
    %769 = arith.mulf %767, %768 : vector<16x32xf32>
    %770 = vector.broadcast %747 : vector<1x32xf32> to vector<16x32xf32>
    %771 = arith.addf %769, %770 : vector<16x32xf32>
    %c0_324 = arith.constant 0 : index
    %c0_325 = arith.constant 0 : index
    %772 = vector.load %arg13[%c0_324, %c0_325] : memref<32x128xf32, #tpu.memory_space<vmem>>, vector<32x128xf32>
    %cst_326 = arith.constant dense<0.000000e+00> : vector<16x128xf32>
    %773 = tpu.matmul %771, %772, %cst_326 {dimension_numbers = #tpu.dot_dimension_numbers<[1], [0], [0], [1], [0, 0, 1, 1], [], []>} : vector<16x32xf32>, vector<32x128xf32>, vector<16x128xf32> -> vector<16x128xf32>
    %c0_327 = arith.constant 0 : index
    %c0_328 = arith.constant 0 : index
    %774 = vector.load %arg14[%c0_327, %c0_328] : memref<1x128xf32, #tpu.memory_space<vmem>>, vector<1x128xf32>
    %775 = vector.broadcast %774 : vector<1x128xf32> to vector<16x128xf32>
    %776 = arith.addf %773, %775 : vector<16x128xf32>
    %cst_329 = arith.constant 5.000000e-01 : f32
    %777 = vector.broadcast %cst_329 : f32 to vector<16x128xf32>
    %778 = arith.mulf %777, %776 : vector<16x128xf32>
    %cst_330 = arith.constant 0.707106769 : f32
    %779 = vector.broadcast %cst_330 : f32 to vector<16x128xf32>
    %780 = arith.mulf %776, %779 : vector<16x128xf32>
    %cst_331 = arith.constant 0.000000e+00 : f32
    %781 = vector.broadcast %cst_331 : f32 to vector<16x128xf32>
    %782 = arith.cmpf oge, %780, %781 : vector<16x128xf32>
    %cst_332 = arith.constant 1.000000e+00 : f32
    %cst_333 = arith.constant -1.000000e+00 : f32
    %783 = vector.broadcast %cst_332 : f32 to vector<16x128xf32>
    %784 = vector.broadcast %cst_333 : f32 to vector<16x128xf32>
    %785 = arith.select %782, %783, %784 : vector<16x128xi1>, vector<16x128xf32>
    %786 = math.absf %780 : vector<16x128xf32>
    %cst_334 = arith.constant 0.327591091 : f32
    %787 = vector.broadcast %cst_334 : f32 to vector<16x128xf32>
    %788 = arith.mulf %787, %786 : vector<16x128xf32>
    %cst_335 = arith.constant 1.000000e+00 : f32
    %789 = vector.broadcast %cst_335 : f32 to vector<16x128xf32>
    %790 = arith.addf %789, %788 : vector<16x128xf32>
    %cst_336 = arith.constant 1.000000e+00 : f32
    %791 = vector.broadcast %cst_336 : f32 to vector<16x128xf32>
    %792 = arith.divf %791, %790 : vector<16x128xf32>
    %cst_337 = arith.constant 1.06140542 : f32
    %793 = vector.broadcast %cst_337 : f32 to vector<16x128xf32>
    %794 = arith.mulf %793, %792 : vector<16x128xf32>
    %cst_338 = arith.constant -1.45315206 : f32
    %795 = vector.broadcast %cst_338 : f32 to vector<16x128xf32>
    %796 = arith.addf %794, %795 : vector<16x128xf32>
    %797 = arith.mulf %796, %792 : vector<16x128xf32>
    %cst_339 = arith.constant 1.42141378 : f32
    %798 = vector.broadcast %cst_339 : f32 to vector<16x128xf32>
    %799 = arith.addf %797, %798 : vector<16x128xf32>
    %800 = arith.mulf %799, %792 : vector<16x128xf32>
    %cst_340 = arith.constant -0.284496725 : f32
    %801 = vector.broadcast %cst_340 : f32 to vector<16x128xf32>
    %802 = arith.addf %800, %801 : vector<16x128xf32>
    %803 = arith.mulf %802, %792 : vector<16x128xf32>
    %cst_341 = arith.constant 0.254829586 : f32
    %804 = vector.broadcast %cst_341 : f32 to vector<16x128xf32>
    %805 = arith.addf %803, %804 : vector<16x128xf32>
    %806 = arith.mulf %805, %792 : vector<16x128xf32>
    %cst_342 = arith.constant 0.000000e+00 : f32
    %807 = vector.broadcast %cst_342 : f32 to vector<16x128xf32>
    %808 = arith.subf %807, %786 : vector<16x128xf32>
    %809 = arith.mulf %808, %786 : vector<16x128xf32>
    %810 = math.exp %809 : vector<16x128xf32>
    %811 = arith.mulf %806, %810 : vector<16x128xf32>
    %cst_343 = arith.constant 1.000000e+00 : f32
    %812 = vector.broadcast %cst_343 : f32 to vector<16x128xf32>
    %813 = arith.subf %812, %811 : vector<16x128xf32>
    %814 = arith.mulf %785, %813 : vector<16x128xf32>
    %cst_344 = arith.constant 1.000000e+00 : f32
    %815 = vector.broadcast %cst_344 : f32 to vector<16x128xf32>
    %816 = arith.addf %815, %814 : vector<16x128xf32>
    %817 = arith.mulf %778, %816 : vector<16x128xf32>
    %c0_345 = arith.constant 0 : index
    %c0_346 = arith.constant 0 : index
    %818 = vector.load %arg15[%c0_345, %c0_346] : memref<128x32xf32, #tpu.memory_space<vmem>>, vector<128x32xf32>
    %cst_347 = arith.constant dense<0.000000e+00> : vector<16x32xf32>
    %819 = tpu.matmul %817, %818, %cst_347 {dimension_numbers = #tpu.dot_dimension_numbers<[1], [0], [0], [1], [0, 0, 1, 1], [], []>} : vector<16x128xf32>, vector<128x32xf32>, vector<16x32xf32> -> vector<16x32xf32>
    %c0_348 = arith.constant 0 : index
    %c0_349 = arith.constant 0 : index
    %820 = vector.load %arg16[%c0_348, %c0_349] : memref<1x32xf32, #tpu.memory_space<vmem>>, vector<1x32xf32>
    %821 = vector.broadcast %820 : vector<1x32xf32> to vector<16x32xf32>
    %822 = arith.addf %819, %821 : vector<16x32xf32>
    %823 = arith.addf %745, %822 : vector<16x32xf32>
    %c0_350 = arith.constant 0 : index
    %c0_351 = arith.constant 0 : index
    %824 = vector.load %arg3[%c0_350, %c0_351] : memref<1x32xf32, #tpu.memory_space<vmem>>, vector<1x32xf32>
    %c0_352 = arith.constant 0 : index
    %c0_353 = arith.constant 0 : index
    %825 = vector.load %arg4[%c0_352, %c0_353] : memref<1x32xf32, #tpu.memory_space<vmem>>, vector<1x32xf32>
    %cst_354 = arith.constant dense<0.000000e+00> : vector<16xf32>
    %826 = vector.multi_reduction <add>, %823, %cst_354 [1] : vector<16x32xf32> to vector<16xf32>
    %827 = vector.shape_cast %826 : vector<16xf32> to vector<16x1xf32>
    %cst_355 = arith.constant 3.200000e+01 : f32
    %828 = vector.broadcast %cst_355 : f32 to vector<16x1xf32>
    %829 = arith.divf %827, %828 : vector<16x1xf32>
    %830 = vector.broadcast %829 : vector<16x1xf32> to vector<16x32xf32>
    %831 = arith.subf %823, %830 : vector<16x32xf32>
    %832 = vector.broadcast %829 : vector<16x1xf32> to vector<16x32xf32>
    %833 = arith.subf %823, %832 : vector<16x32xf32>
    %834 = arith.mulf %831, %833 : vector<16x32xf32>
    %cst_356 = arith.constant dense<0.000000e+00> : vector<16xf32>
    %835 = vector.multi_reduction <add>, %834, %cst_356 [1] : vector<16x32xf32> to vector<16xf32>
    %836 = vector.shape_cast %835 : vector<16xf32> to vector<16x1xf32>
    %cst_357 = arith.constant 3.200000e+01 : f32
    %837 = vector.broadcast %cst_357 : f32 to vector<16x1xf32>
    %838 = arith.divf %836, %837 : vector<16x1xf32>
    %839 = vector.broadcast %829 : vector<16x1xf32> to vector<16x32xf32>
    %840 = arith.subf %823, %839 : vector<16x32xf32>
    %cst_358 = arith.constant 9.99999974E-6 : f32
    %841 = vector.broadcast %cst_358 : f32 to vector<16x1xf32>
    %842 = arith.addf %838, %841 : vector<16x1xf32>
    %843 = math.rsqrt %842 : vector<16x1xf32>
    %844 = vector.broadcast %843 : vector<16x1xf32> to vector<16x32xf32>
    %845 = arith.mulf %840, %844 : vector<16x32xf32>
    %846 = vector.broadcast %824 : vector<1x32xf32> to vector<16x32xf32>
    %847 = arith.mulf %845, %846 : vector<16x32xf32>
    %848 = vector.broadcast %825 : vector<1x32xf32> to vector<16x32xf32>
    %849 = arith.addf %847, %848 : vector<16x32xf32>
    %c0_359 = arith.constant 0 : index
    %c0_360 = arith.constant 0 : index
    %850 = vector.load %arg5[%c0_359, %c0_360] : memref<32x32xf32, #tpu.memory_space<vmem>>, vector<32x32xf32>
    %cst_361 = arith.constant dense<0.000000e+00> : vector<16x32xf32>
    %851 = tpu.matmul %849, %850, %cst_361 {dimension_numbers = #tpu.dot_dimension_numbers<[1], [0], [0], [1], [0, 0, 1, 1], [], []>} : vector<16x32xf32>, vector<32x32xf32>, vector<16x32xf32> -> vector<16x32xf32>
    %c0_362 = arith.constant 0 : index
    %c0_363 = arith.constant 0 : index
    %852 = vector.load %arg6[%c0_362, %c0_363] : memref<1x32xf32, #tpu.memory_space<vmem>>, vector<1x32xf32>
    %853 = vector.broadcast %852 : vector<1x32xf32> to vector<16x32xf32>
    %854 = arith.addf %851, %853 : vector<16x32xf32>
    %855 = vector.extract_strided_slice %854 {offsets = [0, 0], sizes = [16, 16], strides = [1, 1]} : vector<16x32xf32> to vector<16x16xf32>
    %856 = vector.extract_strided_slice %8 {offsets = [0, 0], sizes = [8, 16], strides = [1, 1]} : vector<8x32xf32> to vector<8x16xf32>
    %cst_364 = arith.constant dense<0.000000e+00> : vector<16x8xf32>
    %857 = tpu.matmul %855, %856, %cst_364 {dimension_numbers = #tpu.dot_dimension_numbers<[1], [1], [0], [0], [0, 0, 1, 0], [], []>} : vector<16x16xf32>, vector<8x16xf32>, vector<16x8xf32> -> vector<16x8xf32>
    %cst_365 = arith.constant 2.500000e-01 : f32
    %858 = vector.broadcast %cst_365 : f32 to vector<16x8xf32>
    %859 = arith.mulf %857, %858 : vector<16x8xf32>
    %860 = vector.extract_strided_slice %854 {offsets = [0, 16], sizes = [16, 16], strides = [1, 1]} : vector<16x32xf32> to vector<16x16xf32>
    %861 = vector.extract_strided_slice %8 {offsets = [0, 16], sizes = [8, 16], strides = [1, 1]} : vector<8x32xf32> to vector<8x16xf32>
    %cst_366 = arith.constant dense<0.000000e+00> : vector<16x8xf32>
    %862 = tpu.matmul %860, %861, %cst_366 {dimension_numbers = #tpu.dot_dimension_numbers<[1], [1], [0], [0], [0, 0, 1, 0], [], []>} : vector<16x16xf32>, vector<8x16xf32>, vector<16x8xf32> -> vector<16x8xf32>
    %cst_367 = arith.constant 2.500000e-01 : f32
    %863 = vector.broadcast %cst_367 : f32 to vector<16x8xf32>
    %864 = arith.mulf %862, %863 : vector<16x8xf32>
    %865 = arith.maximumf %859, %864 : vector<16x8xf32>
    %866 = arith.subf %859, %865 : vector<16x8xf32>
    %867 = math.exp %866 : vector<16x8xf32>
    %868 = arith.subf %864, %865 : vector<16x8xf32>
    %869 = math.exp %868 : vector<16x8xf32>
    %870 = arith.addf %867, %869 : vector<16x8xf32>
    %cst_368 = arith.constant 1.000000e+00 : f32
    %871 = vector.broadcast %cst_368 : f32 to vector<16x8xf32>
    %872 = arith.divf %871, %870 : vector<16x8xf32>
    %873 = arith.mulf %867, %872 : vector<16x8xf32>
    %874 = vector.extract_strided_slice %13 {offsets = [0, 0], sizes = [8, 16], strides = [1, 1]} : vector<8x32xf32> to vector<8x16xf32>
    %cst_369 = arith.constant dense<0.000000e+00> : vector<16x16xf32>
    %875 = tpu.matmul %873, %874, %cst_369 {dimension_numbers = #tpu.dot_dimension_numbers<[1], [0], [0], [1], [0, 0, 1, 1], [], []>} : vector<16x8xf32>, vector<8x16xf32>, vector<16x16xf32> -> vector<16x16xf32>
    %876 = arith.mulf %869, %872 : vector<16x8xf32>
    %877 = vector.extract_strided_slice %13 {offsets = [0, 16], sizes = [8, 16], strides = [1, 1]} : vector<8x32xf32> to vector<8x16xf32>
    %cst_370 = arith.constant dense<0.000000e+00> : vector<16x16xf32>
    %878 = tpu.matmul %876, %877, %cst_370 {dimension_numbers = #tpu.dot_dimension_numbers<[1], [0], [0], [1], [0, 0, 1, 1], [], []>} : vector<16x8xf32>, vector<8x16xf32>, vector<16x16xf32> -> vector<16x16xf32>
    %879 = tpu.concatenate %875, %878 in 1 : vector<16x16xf32>, vector<16x16xf32> -> vector<16x32xf32>
    %880 = arith.addf %823, %879 : vector<16x32xf32>
    %c0_371 = arith.constant 0 : index
    %c0_372 = arith.constant 0 : index
    %881 = vector.load %arg11[%c0_371, %c0_372] : memref<1x32xf32, #tpu.memory_space<vmem>>, vector<1x32xf32>
    %c0_373 = arith.constant 0 : index
    %c0_374 = arith.constant 0 : index
    %882 = vector.load %arg12[%c0_373, %c0_374] : memref<1x32xf32, #tpu.memory_space<vmem>>, vector<1x32xf32>
    %cst_375 = arith.constant dense<0.000000e+00> : vector<16xf32>
    %883 = vector.multi_reduction <add>, %880, %cst_375 [1] : vector<16x32xf32> to vector<16xf32>
    %884 = vector.shape_cast %883 : vector<16xf32> to vector<16x1xf32>
    %cst_376 = arith.constant 3.200000e+01 : f32
    %885 = vector.broadcast %cst_376 : f32 to vector<16x1xf32>
    %886 = arith.divf %884, %885 : vector<16x1xf32>
    %887 = vector.broadcast %886 : vector<16x1xf32> to vector<16x32xf32>
    %888 = arith.subf %880, %887 : vector<16x32xf32>
    %889 = vector.broadcast %886 : vector<16x1xf32> to vector<16x32xf32>
    %890 = arith.subf %880, %889 : vector<16x32xf32>
    %891 = arith.mulf %888, %890 : vector<16x32xf32>
    %cst_377 = arith.constant dense<0.000000e+00> : vector<16xf32>
    %892 = vector.multi_reduction <add>, %891, %cst_377 [1] : vector<16x32xf32> to vector<16xf32>
    %893 = vector.shape_cast %892 : vector<16xf32> to vector<16x1xf32>
    %cst_378 = arith.constant 3.200000e+01 : f32
    %894 = vector.broadcast %cst_378 : f32 to vector<16x1xf32>
    %895 = arith.divf %893, %894 : vector<16x1xf32>
    %896 = vector.broadcast %886 : vector<16x1xf32> to vector<16x32xf32>
    %897 = arith.subf %880, %896 : vector<16x32xf32>
    %cst_379 = arith.constant 9.99999974E-6 : f32
    %898 = vector.broadcast %cst_379 : f32 to vector<16x1xf32>
    %899 = arith.addf %895, %898 : vector<16x1xf32>
    %900 = math.rsqrt %899 : vector<16x1xf32>
    %901 = vector.broadcast %900 : vector<16x1xf32> to vector<16x32xf32>
    %902 = arith.mulf %897, %901 : vector<16x32xf32>
    %903 = vector.broadcast %881 : vector<1x32xf32> to vector<16x32xf32>
    %904 = arith.mulf %902, %903 : vector<16x32xf32>
    %905 = vector.broadcast %882 : vector<1x32xf32> to vector<16x32xf32>
    %906 = arith.addf %904, %905 : vector<16x32xf32>
    %c0_380 = arith.constant 0 : index
    %c0_381 = arith.constant 0 : index
    %907 = vector.load %arg13[%c0_380, %c0_381] : memref<32x128xf32, #tpu.memory_space<vmem>>, vector<32x128xf32>
    %cst_382 = arith.constant dense<0.000000e+00> : vector<16x128xf32>
    %908 = tpu.matmul %906, %907, %cst_382 {dimension_numbers = #tpu.dot_dimension_numbers<[1], [0], [0], [1], [0, 0, 1, 1], [], []>} : vector<16x32xf32>, vector<32x128xf32>, vector<16x128xf32> -> vector<16x128xf32>
    %c0_383 = arith.constant 0 : index
    %c0_384 = arith.constant 0 : index
    %909 = vector.load %arg14[%c0_383, %c0_384] : memref<1x128xf32, #tpu.memory_space<vmem>>, vector<1x128xf32>
    %910 = vector.broadcast %909 : vector<1x128xf32> to vector<16x128xf32>
    %911 = arith.addf %908, %910 : vector<16x128xf32>
    %cst_385 = arith.constant 5.000000e-01 : f32
    %912 = vector.broadcast %cst_385 : f32 to vector<16x128xf32>
    %913 = arith.mulf %912, %911 : vector<16x128xf32>
    %cst_386 = arith.constant 0.707106769 : f32
    %914 = vector.broadcast %cst_386 : f32 to vector<16x128xf32>
    %915 = arith.mulf %911, %914 : vector<16x128xf32>
    %cst_387 = arith.constant 0.000000e+00 : f32
    %916 = vector.broadcast %cst_387 : f32 to vector<16x128xf32>
    %917 = arith.cmpf oge, %915, %916 : vector<16x128xf32>
    %cst_388 = arith.constant 1.000000e+00 : f32
    %cst_389 = arith.constant -1.000000e+00 : f32
    %918 = vector.broadcast %cst_388 : f32 to vector<16x128xf32>
    %919 = vector.broadcast %cst_389 : f32 to vector<16x128xf32>
    %920 = arith.select %917, %918, %919 : vector<16x128xi1>, vector<16x128xf32>
    %921 = math.absf %915 : vector<16x128xf32>
    %cst_390 = arith.constant 0.327591091 : f32
    %922 = vector.broadcast %cst_390 : f32 to vector<16x128xf32>
    %923 = arith.mulf %922, %921 : vector<16x128xf32>
    %cst_391 = arith.constant 1.000000e+00 : f32
    %924 = vector.broadcast %cst_391 : f32 to vector<16x128xf32>
    %925 = arith.addf %924, %923 : vector<16x128xf32>
    %cst_392 = arith.constant 1.000000e+00 : f32
    %926 = vector.broadcast %cst_392 : f32 to vector<16x128xf32>
    %927 = arith.divf %926, %925 : vector<16x128xf32>
    %cst_393 = arith.constant 1.06140542 : f32
    %928 = vector.broadcast %cst_393 : f32 to vector<16x128xf32>
    %929 = arith.mulf %928, %927 : vector<16x128xf32>
    %cst_394 = arith.constant -1.45315206 : f32
    %930 = vector.broadcast %cst_394 : f32 to vector<16x128xf32>
    %931 = arith.addf %929, %930 : vector<16x128xf32>
    %932 = arith.mulf %931, %927 : vector<16x128xf32>
    %cst_395 = arith.constant 1.42141378 : f32
    %933 = vector.broadcast %cst_395 : f32 to vector<16x128xf32>
    %934 = arith.addf %932, %933 : vector<16x128xf32>
    %935 = arith.mulf %934, %927 : vector<16x128xf32>
    %cst_396 = arith.constant -0.284496725 : f32
    %936 = vector.broadcast %cst_396 : f32 to vector<16x128xf32>
    %937 = arith.addf %935, %936 : vector<16x128xf32>
    %938 = arith.mulf %937, %927 : vector<16x128xf32>
    %cst_397 = arith.constant 0.254829586 : f32
    %939 = vector.broadcast %cst_397 : f32 to vector<16x128xf32>
    %940 = arith.addf %938, %939 : vector<16x128xf32>
    %941 = arith.mulf %940, %927 : vector<16x128xf32>
    %cst_398 = arith.constant 0.000000e+00 : f32
    %942 = vector.broadcast %cst_398 : f32 to vector<16x128xf32>
    %943 = arith.subf %942, %921 : vector<16x128xf32>
    %944 = arith.mulf %943, %921 : vector<16x128xf32>
    %945 = math.exp %944 : vector<16x128xf32>
    %946 = arith.mulf %941, %945 : vector<16x128xf32>
    %cst_399 = arith.constant 1.000000e+00 : f32
    %947 = vector.broadcast %cst_399 : f32 to vector<16x128xf32>
    %948 = arith.subf %947, %946 : vector<16x128xf32>
    %949 = arith.mulf %920, %948 : vector<16x128xf32>
    %cst_400 = arith.constant 1.000000e+00 : f32
    %950 = vector.broadcast %cst_400 : f32 to vector<16x128xf32>
    %951 = arith.addf %950, %949 : vector<16x128xf32>
    %952 = arith.mulf %913, %951 : vector<16x128xf32>
    %c0_401 = arith.constant 0 : index
    %c0_402 = arith.constant 0 : index
    %953 = vector.load %arg15[%c0_401, %c0_402] : memref<128x32xf32, #tpu.memory_space<vmem>>, vector<128x32xf32>
    %cst_403 = arith.constant dense<0.000000e+00> : vector<16x32xf32>
    %954 = tpu.matmul %952, %953, %cst_403 {dimension_numbers = #tpu.dot_dimension_numbers<[1], [0], [0], [1], [0, 0, 1, 1], [], []>} : vector<16x128xf32>, vector<128x32xf32>, vector<16x32xf32> -> vector<16x32xf32>
    %c0_404 = arith.constant 0 : index
    %c0_405 = arith.constant 0 : index
    %955 = vector.load %arg16[%c0_404, %c0_405] : memref<1x32xf32, #tpu.memory_space<vmem>>, vector<1x32xf32>
    %956 = vector.broadcast %955 : vector<1x32xf32> to vector<16x32xf32>
    %957 = arith.addf %954, %956 : vector<16x32xf32>
    %958 = arith.addf %880, %957 : vector<16x32xf32>
    %c0_406 = arith.constant 0 : index
    %c0_407 = arith.constant 0 : index
    %959 = vector.load %arg3[%c0_406, %c0_407] : memref<1x32xf32, #tpu.memory_space<vmem>>, vector<1x32xf32>
    %c0_408 = arith.constant 0 : index
    %c0_409 = arith.constant 0 : index
    %960 = vector.load %arg4[%c0_408, %c0_409] : memref<1x32xf32, #tpu.memory_space<vmem>>, vector<1x32xf32>
    %cst_410 = arith.constant dense<0.000000e+00> : vector<16xf32>
    %961 = vector.multi_reduction <add>, %958, %cst_410 [1] : vector<16x32xf32> to vector<16xf32>
    %962 = vector.shape_cast %961 : vector<16xf32> to vector<16x1xf32>
    %cst_411 = arith.constant 3.200000e+01 : f32
    %963 = vector.broadcast %cst_411 : f32 to vector<16x1xf32>
    %964 = arith.divf %962, %963 : vector<16x1xf32>
    %965 = vector.broadcast %964 : vector<16x1xf32> to vector<16x32xf32>
    %966 = arith.subf %958, %965 : vector<16x32xf32>
    %967 = vector.broadcast %964 : vector<16x1xf32> to vector<16x32xf32>
    %968 = arith.subf %958, %967 : vector<16x32xf32>
    %969 = arith.mulf %966, %968 : vector<16x32xf32>
    %cst_412 = arith.constant dense<0.000000e+00> : vector<16xf32>
    %970 = vector.multi_reduction <add>, %969, %cst_412 [1] : vector<16x32xf32> to vector<16xf32>
    %971 = vector.shape_cast %970 : vector<16xf32> to vector<16x1xf32>
    %cst_413 = arith.constant 3.200000e+01 : f32
    %972 = vector.broadcast %cst_413 : f32 to vector<16x1xf32>
    %973 = arith.divf %971, %972 : vector<16x1xf32>
    %974 = vector.broadcast %964 : vector<16x1xf32> to vector<16x32xf32>
    %975 = arith.subf %958, %974 : vector<16x32xf32>
    %cst_414 = arith.constant 9.99999974E-6 : f32
    %976 = vector.broadcast %cst_414 : f32 to vector<16x1xf32>
    %977 = arith.addf %973, %976 : vector<16x1xf32>
    %978 = math.rsqrt %977 : vector<16x1xf32>
    %979 = vector.broadcast %978 : vector<16x1xf32> to vector<16x32xf32>
    %980 = arith.mulf %975, %979 : vector<16x32xf32>
    %981 = vector.broadcast %959 : vector<1x32xf32> to vector<16x32xf32>
    %982 = arith.mulf %980, %981 : vector<16x32xf32>
    %983 = vector.broadcast %960 : vector<1x32xf32> to vector<16x32xf32>
    %984 = arith.addf %982, %983 : vector<16x32xf32>
    %c0_415 = arith.constant 0 : index
    %c0_416 = arith.constant 0 : index
    %985 = vector.load %arg5[%c0_415, %c0_416] : memref<32x32xf32, #tpu.memory_space<vmem>>, vector<32x32xf32>
    %cst_417 = arith.constant dense<0.000000e+00> : vector<16x32xf32>
    %986 = tpu.matmul %984, %985, %cst_417 {dimension_numbers = #tpu.dot_dimension_numbers<[1], [0], [0], [1], [0, 0, 1, 1], [], []>} : vector<16x32xf32>, vector<32x32xf32>, vector<16x32xf32> -> vector<16x32xf32>
    %c0_418 = arith.constant 0 : index
    %c0_419 = arith.constant 0 : index
    %987 = vector.load %arg6[%c0_418, %c0_419] : memref<1x32xf32, #tpu.memory_space<vmem>>, vector<1x32xf32>
    %988 = vector.broadcast %987 : vector<1x32xf32> to vector<16x32xf32>
    %989 = arith.addf %986, %988 : vector<16x32xf32>
    %990 = vector.extract_strided_slice %989 {offsets = [0, 0], sizes = [16, 16], strides = [1, 1]} : vector<16x32xf32> to vector<16x16xf32>
    %991 = vector.extract_strided_slice %8 {offsets = [0, 0], sizes = [8, 16], strides = [1, 1]} : vector<8x32xf32> to vector<8x16xf32>
    %cst_420 = arith.constant dense<0.000000e+00> : vector<16x8xf32>
    %992 = tpu.matmul %990, %991, %cst_420 {dimension_numbers = #tpu.dot_dimension_numbers<[1], [1], [0], [0], [0, 0, 1, 0], [], []>} : vector<16x16xf32>, vector<8x16xf32>, vector<16x8xf32> -> vector<16x8xf32>
    %cst_421 = arith.constant 2.500000e-01 : f32
    %993 = vector.broadcast %cst_421 : f32 to vector<16x8xf32>
    %994 = arith.mulf %992, %993 : vector<16x8xf32>
    %995 = vector.extract_strided_slice %989 {offsets = [0, 16], sizes = [16, 16], strides = [1, 1]} : vector<16x32xf32> to vector<16x16xf32>
    %996 = vector.extract_strided_slice %8 {offsets = [0, 16], sizes = [8, 16], strides = [1, 1]} : vector<8x32xf32> to vector<8x16xf32>
    %cst_422 = arith.constant dense<0.000000e+00> : vector<16x8xf32>
    %997 = tpu.matmul %995, %996, %cst_422 {dimension_numbers = #tpu.dot_dimension_numbers<[1], [1], [0], [0], [0, 0, 1, 0], [], []>} : vector<16x16xf32>, vector<8x16xf32>, vector<16x8xf32> -> vector<16x8xf32>
    %cst_423 = arith.constant 2.500000e-01 : f32
    %998 = vector.broadcast %cst_423 : f32 to vector<16x8xf32>
    %999 = arith.mulf %997, %998 : vector<16x8xf32>
    %1000 = arith.maximumf %994, %999 : vector<16x8xf32>
    %1001 = arith.subf %994, %1000 : vector<16x8xf32>
    %1002 = math.exp %1001 : vector<16x8xf32>
    %1003 = arith.subf %999, %1000 : vector<16x8xf32>
    %1004 = math.exp %1003 : vector<16x8xf32>
    %1005 = arith.addf %1002, %1004 : vector<16x8xf32>
    %cst_424 = arith.constant 1.000000e+00 : f32
    %1006 = vector.broadcast %cst_424 : f32 to vector<16x8xf32>
    %1007 = arith.divf %1006, %1005 : vector<16x8xf32>
    %1008 = arith.mulf %1002, %1007 : vector<16x8xf32>
    %1009 = vector.extract_strided_slice %13 {offsets = [0, 0], sizes = [8, 16], strides = [1, 1]} : vector<8x32xf32> to vector<8x16xf32>
    %cst_425 = arith.constant dense<0.000000e+00> : vector<16x16xf32>
    %1010 = tpu.matmul %1008, %1009, %cst_425 {dimension_numbers = #tpu.dot_dimension_numbers<[1], [0], [0], [1], [0, 0, 1, 1], [], []>} : vector<16x8xf32>, vector<8x16xf32>, vector<16x16xf32> -> vector<16x16xf32>
    %1011 = arith.mulf %1004, %1007 : vector<16x8xf32>
    %1012 = vector.extract_strided_slice %13 {offsets = [0, 16], sizes = [8, 16], strides = [1, 1]} : vector<8x32xf32> to vector<8x16xf32>
    %cst_426 = arith.constant dense<0.000000e+00> : vector<16x16xf32>
    %1013 = tpu.matmul %1011, %1012, %cst_426 {dimension_numbers = #tpu.dot_dimension_numbers<[1], [0], [0], [1], [0, 0, 1, 1], [], []>} : vector<16x8xf32>, vector<8x16xf32>, vector<16x16xf32> -> vector<16x16xf32>
    %1014 = tpu.concatenate %1010, %1013 in 1 : vector<16x16xf32>, vector<16x16xf32> -> vector<16x32xf32>
    %1015 = arith.addf %958, %1014 : vector<16x32xf32>
    %c0_427 = arith.constant 0 : index
    %c0_428 = arith.constant 0 : index
    %1016 = vector.load %arg11[%c0_427, %c0_428] : memref<1x32xf32, #tpu.memory_space<vmem>>, vector<1x32xf32>
    %c0_429 = arith.constant 0 : index
    %c0_430 = arith.constant 0 : index
    %1017 = vector.load %arg12[%c0_429, %c0_430] : memref<1x32xf32, #tpu.memory_space<vmem>>, vector<1x32xf32>
    %cst_431 = arith.constant dense<0.000000e+00> : vector<16xf32>
    %1018 = vector.multi_reduction <add>, %1015, %cst_431 [1] : vector<16x32xf32> to vector<16xf32>
    %1019 = vector.shape_cast %1018 : vector<16xf32> to vector<16x1xf32>
    %cst_432 = arith.constant 3.200000e+01 : f32
    %1020 = vector.broadcast %cst_432 : f32 to vector<16x1xf32>
    %1021 = arith.divf %1019, %1020 : vector<16x1xf32>
    %1022 = vector.broadcast %1021 : vector<16x1xf32> to vector<16x32xf32>
    %1023 = arith.subf %1015, %1022 : vector<16x32xf32>
    %1024 = vector.broadcast %1021 : vector<16x1xf32> to vector<16x32xf32>
    %1025 = arith.subf %1015, %1024 : vector<16x32xf32>
    %1026 = arith.mulf %1023, %1025 : vector<16x32xf32>
    %cst_433 = arith.constant dense<0.000000e+00> : vector<16xf32>
    %1027 = vector.multi_reduction <add>, %1026, %cst_433 [1] : vector<16x32xf32> to vector<16xf32>
    %1028 = vector.shape_cast %1027 : vector<16xf32> to vector<16x1xf32>
    %cst_434 = arith.constant 3.200000e+01 : f32
    %1029 = vector.broadcast %cst_434 : f32 to vector<16x1xf32>
    %1030 = arith.divf %1028, %1029 : vector<16x1xf32>
    %1031 = vector.broadcast %1021 : vector<16x1xf32> to vector<16x32xf32>
    %1032 = arith.subf %1015, %1031 : vector<16x32xf32>
    %cst_435 = arith.constant 9.99999974E-6 : f32
    %1033 = vector.broadcast %cst_435 : f32 to vector<16x1xf32>
    %1034 = arith.addf %1030, %1033 : vector<16x1xf32>
    %1035 = math.rsqrt %1034 : vector<16x1xf32>
    %1036 = vector.broadcast %1035 : vector<16x1xf32> to vector<16x32xf32>
    %1037 = arith.mulf %1032, %1036 : vector<16x32xf32>
    %1038 = vector.broadcast %1016 : vector<1x32xf32> to vector<16x32xf32>
    %1039 = arith.mulf %1037, %1038 : vector<16x32xf32>
    %1040 = vector.broadcast %1017 : vector<1x32xf32> to vector<16x32xf32>
    %1041 = arith.addf %1039, %1040 : vector<16x32xf32>
    %c0_436 = arith.constant 0 : index
    %c0_437 = arith.constant 0 : index
    %1042 = vector.load %arg13[%c0_436, %c0_437] : memref<32x128xf32, #tpu.memory_space<vmem>>, vector<32x128xf32>
    %cst_438 = arith.constant dense<0.000000e+00> : vector<16x128xf32>
    %1043 = tpu.matmul %1041, %1042, %cst_438 {dimension_numbers = #tpu.dot_dimension_numbers<[1], [0], [0], [1], [0, 0, 1, 1], [], []>} : vector<16x32xf32>, vector<32x128xf32>, vector<16x128xf32> -> vector<16x128xf32>
    %c0_439 = arith.constant 0 : index
    %c0_440 = arith.constant 0 : index
    %1044 = vector.load %arg14[%c0_439, %c0_440] : memref<1x128xf32, #tpu.memory_space<vmem>>, vector<1x128xf32>
    %1045 = vector.broadcast %1044 : vector<1x128xf32> to vector<16x128xf32>
    %1046 = arith.addf %1043, %1045 : vector<16x128xf32>
    %cst_441 = arith.constant 5.000000e-01 : f32
    %1047 = vector.broadcast %cst_441 : f32 to vector<16x128xf32>
    %1048 = arith.mulf %1047, %1046 : vector<16x128xf32>
    %cst_442 = arith.constant 0.707106769 : f32
    %1049 = vector.broadcast %cst_442 : f32 to vector<16x128xf32>
    %1050 = arith.mulf %1046, %1049 : vector<16x128xf32>
    %cst_443 = arith.constant 0.000000e+00 : f32
    %1051 = vector.broadcast %cst_443 : f32 to vector<16x128xf32>
    %1052 = arith.cmpf oge, %1050, %1051 : vector<16x128xf32>
    %cst_444 = arith.constant 1.000000e+00 : f32
    %cst_445 = arith.constant -1.000000e+00 : f32
    %1053 = vector.broadcast %cst_444 : f32 to vector<16x128xf32>
    %1054 = vector.broadcast %cst_445 : f32 to vector<16x128xf32>
    %1055 = arith.select %1052, %1053, %1054 : vector<16x128xi1>, vector<16x128xf32>
    %1056 = math.absf %1050 : vector<16x128xf32>
    %cst_446 = arith.constant 0.327591091 : f32
    %1057 = vector.broadcast %cst_446 : f32 to vector<16x128xf32>
    %1058 = arith.mulf %1057, %1056 : vector<16x128xf32>
    %cst_447 = arith.constant 1.000000e+00 : f32
    %1059 = vector.broadcast %cst_447 : f32 to vector<16x128xf32>
    %1060 = arith.addf %1059, %1058 : vector<16x128xf32>
    %cst_448 = arith.constant 1.000000e+00 : f32
    %1061 = vector.broadcast %cst_448 : f32 to vector<16x128xf32>
    %1062 = arith.divf %1061, %1060 : vector<16x128xf32>
    %cst_449 = arith.constant 1.06140542 : f32
    %1063 = vector.broadcast %cst_449 : f32 to vector<16x128xf32>
    %1064 = arith.mulf %1063, %1062 : vector<16x128xf32>
    %cst_450 = arith.constant -1.45315206 : f32
    %1065 = vector.broadcast %cst_450 : f32 to vector<16x128xf32>
    %1066 = arith.addf %1064, %1065 : vector<16x128xf32>
    %1067 = arith.mulf %1066, %1062 : vector<16x128xf32>
    %cst_451 = arith.constant 1.42141378 : f32
    %1068 = vector.broadcast %cst_451 : f32 to vector<16x128xf32>
    %1069 = arith.addf %1067, %1068 : vector<16x128xf32>
    %1070 = arith.mulf %1069, %1062 : vector<16x128xf32>
    %cst_452 = arith.constant -0.284496725 : f32
    %1071 = vector.broadcast %cst_452 : f32 to vector<16x128xf32>
    %1072 = arith.addf %1070, %1071 : vector<16x128xf32>
    %1073 = arith.mulf %1072, %1062 : vector<16x128xf32>
    %cst_453 = arith.constant 0.254829586 : f32
    %1074 = vector.broadcast %cst_453 : f32 to vector<16x128xf32>
    %1075 = arith.addf %1073, %1074 : vector<16x128xf32>
    %1076 = arith.mulf %1075, %1062 : vector<16x128xf32>
    %cst_454 = arith.constant 0.000000e+00 : f32
    %1077 = vector.broadcast %cst_454 : f32 to vector<16x128xf32>
    %1078 = arith.subf %1077, %1056 : vector<16x128xf32>
    %1079 = arith.mulf %1078, %1056 : vector<16x128xf32>
    %1080 = math.exp %1079 : vector<16x128xf32>
    %1081 = arith.mulf %1076, %1080 : vector<16x128xf32>
    %cst_455 = arith.constant 1.000000e+00 : f32
    %1082 = vector.broadcast %cst_455 : f32 to vector<16x128xf32>
    %1083 = arith.subf %1082, %1081 : vector<16x128xf32>
    %1084 = arith.mulf %1055, %1083 : vector<16x128xf32>
    %cst_456 = arith.constant 1.000000e+00 : f32
    %1085 = vector.broadcast %cst_456 : f32 to vector<16x128xf32>
    %1086 = arith.addf %1085, %1084 : vector<16x128xf32>
    %1087 = arith.mulf %1048, %1086 : vector<16x128xf32>
    %c0_457 = arith.constant 0 : index
    %c0_458 = arith.constant 0 : index
    %1088 = vector.load %arg15[%c0_457, %c0_458] : memref<128x32xf32, #tpu.memory_space<vmem>>, vector<128x32xf32>
    %cst_459 = arith.constant dense<0.000000e+00> : vector<16x32xf32>
    %1089 = tpu.matmul %1087, %1088, %cst_459 {dimension_numbers = #tpu.dot_dimension_numbers<[1], [0], [0], [1], [0, 0, 1, 1], [], []>} : vector<16x128xf32>, vector<128x32xf32>, vector<16x32xf32> -> vector<16x32xf32>
    %c0_460 = arith.constant 0 : index
    %c0_461 = arith.constant 0 : index
    %1090 = vector.load %arg16[%c0_460, %c0_461] : memref<1x32xf32, #tpu.memory_space<vmem>>, vector<1x32xf32>
    %1091 = vector.broadcast %1090 : vector<1x32xf32> to vector<16x32xf32>
    %1092 = arith.addf %1089, %1091 : vector<16x32xf32>
    %1093 = arith.addf %1015, %1092 : vector<16x32xf32>
    %c0_462 = arith.constant 0 : index
    %c0_463 = arith.constant 0 : index
    %c0_464 = arith.constant 0 : index
    %1094 = vector.load %arg17[%c0_462, %c0_463, %c0_464] : memref<1x16x32xf32, #tpu.memory_space<vmem>>, vector<1x16x32xf32>
    %1095 = vector.shape_cast %1094 : vector<1x16x32xf32> to vector<16x32xf32>
    %1096 = vector.shape_cast %1093 : vector<16x32xf32> to vector<1x16x32xf32>
    tpu.vector_store %arg17[%c0_462, %c0_463, %c0_464], %1096 {strides = array<i32>} : memref<1x16x32xf32, #tpu.memory_space<vmem>>, vector<1x16x32xf32>,
    return
  }
  func.func @transform_0(%arg0: i32) -> (i32, i32, i32) {
    %c0_i32 = arith.constant 0 : i32
    %c0_i32_0 = arith.constant 0 : i32
    %c0_i32_1 = arith.constant 0 : i32
    return %arg0, %c0_i32, %c0_i32_0 : i32, i32, i32
  }
  func.func @transform_1(%arg0: i32) -> (i32, i32, i32) {
    %c0_i32 = arith.constant 0 : i32
    %c0_i32_0 = arith.constant 0 : i32
    %c0_i32_1 = arith.constant 0 : i32
    return %arg0, %c0_i32, %c0_i32_0 : i32, i32, i32
  }
  func.func @transform_2(%arg0: i32) -> (i32, i32) {
    %c0_i32 = arith.constant 0 : i32
    %c0_i32_0 = arith.constant 0 : i32
    %c0_i32_1 = arith.constant 0 : i32
    return %c0_i32, %c0_i32_0 : i32, i32
  }
  func.func @transform_3(%arg0: i32) -> (i32, i32) {
    %c0_i32 = arith.constant 0 : i32
    %c0_i32_0 = arith.constant 0 : i32
    %c0_i32_1 = arith.constant 0 : i32
    return %c0_i32, %c0_i32_0 : i32, i32
  }
  func.func @transform_4(%arg0: i32) -> (i32, i32) {
    %c0_i32 = arith.constant 0 : i32
    %c0_i32_0 = arith.constant 0 : i32
    %c0_i32_1 = arith.constant 0 : i32
    return %c0_i32, %c0_i32_0 : i32, i32
  }
  func.func @transform_5(%arg0: i32) -> (i32, i32) {
    %c0_i32 = arith.constant 0 : i32
    %c0_i32_0 = arith.constant 0 : i32
    %c0_i32_1 = arith.constant 0 : i32
    return %c0_i32, %c0_i32_0 : i32, i32
  }
  func.func @transform_6(%arg0: i32) -> (i32, i32) {
    %c0_i32 = arith.constant 0 : i32
    %c0_i32_0 = arith.constant 0 : i32
    %c0_i32_1 = arith.constant 0 : i32
    return %c0_i32, %c0_i32_0 : i32, i32
  }
  func.func @transform_7(%arg0: i32) -> (i32, i32) {
    %c0_i32 = arith.constant 0 : i32
    %c0_i32_0 = arith.constant 0 : i32
    %c0_i32_1 = arith.constant 0 : i32
    return %c0_i32, %c0_i32_0 : i32, i32
  }
  func.func @transform_8(%arg0: i32) -> (i32, i32) {
    %c0_i32 = arith.constant 0 : i32
    %c0_i32_0 = arith.constant 0 : i32
    %c0_i32_1 = arith.constant 0 : i32
    return %c0_i32, %c0_i32_0 : i32, i32
  }
  func.func @transform_9(%arg0: i32) -> (i32, i32) {
    %c0_i32 = arith.constant 0 : i32
    %c0_i32_0 = arith.constant 0 : i32
    %c0_i32_1 = arith.constant 0 : i32
    return %c0_i32, %c0_i32_0 : i32, i32
  }
  func.func @transform_10(%arg0: i32) -> (i32, i32) {
    %c0_i32 = arith.constant 0 : i32
    %c0_i32_0 = arith.constant 0 : i32
    %c0_i32_1 = arith.constant 0 : i32
    return %c0_i32, %c0_i32_0 : i32, i32
  }
  func.func @transform_11(%arg0: i32) -> (i32, i32) {
    %c0_i32 = arith.constant 0 : i32
    %c0_i32_0 = arith.constant 0 : i32
    %c0_i32_1 = arith.constant 0 : i32
    return %c0_i32, %c0_i32_0 : i32, i32
  }
  func.func @transform_12(%arg0: i32) -> (i32, i32) {
    %c0_i32 = arith.constant 0 : i32
    %c0_i32_0 = arith.constant 0 : i32
    %c0_i32_1 = arith.constant 0 : i32
    return %c0_i32, %c0_i32_0 : i32, i32
  }
  func.func @transform_13(%arg0: i32) -> (i32, i32) {
    %c0_i32 = arith.constant 0 : i32
    %c0_i32_0 = arith.constant 0 : i32
    %c0_i32_1 = arith.constant 0 : i32
    return %c0_i32, %c0_i32_0 : i32, i32
  }
  func.func @transform_14(%arg0: i32) -> (i32, i32) {
    %c0_i32 = arith.constant 0 : i32
    %c0_i32_0 = arith.constant 0 : i32
    %c0_i32_1 = arith.constant 0 : i32
    return %c0_i32, %c0_i32_0 : i32, i32
  }
  func.func @transform_15(%arg0: i32) -> (i32, i32) {
    %c0_i32 = arith.constant 0 : i32
    %c0_i32_0 = arith.constant 0 : i32
    %c0_i32_1 = arith.constant 0 : i32
    return %c0_i32, %c0_i32_0 : i32, i32
  }
  func.func @transform_16(%arg0: i32) -> (i32, i32, i32) {
    %c0_i32 = arith.constant 0 : i32
    %c0_i32_0 = arith.constant 0 : i32
    %c0_i32_1 = arith.constant 0 : i32
    return %arg0, %c0_i32, %c0_i32_0 : i32, i32, i32
  }
}

</mosaic_0001>

<llo_original>
// kernel: decoder_forward.1
$region0: #{decoder_forward.1}
  #allocation0 [shape = 'u32[]', space=smem, size = 0x4, offset = 0x4, fixed_abs, tag = 'smem constant byte address 0x4 - core index']
  #allocation1 [shape = 'u32[144,128]{1,0:T(1,128)}', space=vmem, size = 0x12000, scoped, tag = 'internal scratch']
  %s0 = inlined_call_operand.vmem [shape: f32[2,16,32], index: 0, kind: input, shape index: {}]
  %s1 = inlined_call_operand.vmem [shape: f32[2,8,32], index: 1, kind: input, shape index: {}]
  %s2 = inlined_call_operand.vmem [shape: f32[1,32], index: 2, kind: input, shape index: {}]
  %s3 = inlined_call_operand.vmem [shape: f32[1,32], index: 3, kind: input, shape index: {}]
  %s4 = inlined_call_operand.vmem [shape: f32[32,32], index: 4, kind: input, shape index: {}]
  %s5 = inlined_call_operand.vmem [shape: f32[1,32], index: 5, kind: input, shape index: {}]
  %s6 = inlined_call_operand.vmem [shape: f32[32,32], index: 6, kind: input, shape index: {}]
  %s7 = inlined_call_operand.vmem [shape: f32[1,32], index: 7, kind: input, shape index: {}]
  %s8 = inlined_call_operand.vmem [shape: f32[32,32], index: 8, kind: input, shape index: {}]
  %s9 = inlined_call_operand.vmem [shape: f32[1,32], index: 9, kind: input, shape index: {}]
  %s10 = inlined_call_operand.vmem [shape: f32[1,32], index: 10, kind: input, shape index: {}]
  %s11 = inlined_call_operand.vmem [shape: f32[1,32], index: 11, kind: input, shape index: {}]
  %s12 = inlined_call_operand.vmem [shape: f32[32,128], index: 12, kind: input, shape index: {}]
  %s13 = inlined_call_operand.vmem [shape: f32[1,128], index: 13, kind: input, shape index: {}]
  %s14 = inlined_call_operand.vmem [shape: f32[128,32], index: 14, kind: input, shape index: {}]
  %s15 = inlined_call_operand.vmem [shape: f32[1,32], index: 15, kind: input, shape index: {}]
  %s16 = inlined_call_operand.hbm [shape: f32[2,16,32], index: 16, kind: output, shape index: {}]
  %s17 = sld [smem:[#allocation0]]
  $region97: #{decoder_forward.1} parent=0
    _
  %s19 = ssub.s32 1, %s17
  %s20 = scalar_select 0, %s19, %s17
  $region1: #{decoder_forward.1} parent=0
    #allocation2 [shape = 'u8[16384]{0}', space=vmem, size = 0x4000, scoped, tag = 'output window, operand 0']
    #allocation3 [shape = 's32[2]{0}', space=sflag, size = 0x8, scoped, tag = 'scoped memory for decoder_forward.1']
    %21 = vsyncpa [#allocation3], 0
    %s22 = scalar_lea.sflag [#allocation3], 1
    %23 = vsyncpa %s22, 0
    loop: start=0, step=1, limit=4
    $region2: #{decoder_forward.1} parent=1 // loop_pre_header
      _
    $region3: #{decoder_forward.1} parent=1 // loop_header
      %s25 = sphi 0, %s29
      %p26 = scmp.ge.s32.totalorder %s25, 4
      %s35 = sphi 0, %s37
      %s38 = sphi 0, %s35
      %s39 = sphi 0, %s38
      %s55 = sphi 0, %s39
      %s61 = sphi 0, %s63
      %s64 = sphi 0, %s61
      %s65 = sphi 0, %s64
      %s81 = sphi 0, %s65
      %s85 = sphi 0, %s85
      %s87 = sphi 0, %s85
      %s88 = sphi 0, %s87
      %s102 = sphi 0, %s88
      %s106 = sphi 0, %s106
      %s108 = sphi 0, %s106
      %s109 = sphi 0, %s108
      %s123 = sphi 0, %s109
      %s127 = sphi 0, %s127
      %s129 = sphi 0, %s127
      %s130 = sphi 0, %s129
      %s144 = sphi 0, %s130
      %s148 = sphi 0, %s148
      %s150 = sphi 0, %s148
      %s151 = sphi 0, %s150
      %s165 = sphi 0, %s151
      %s169 = sphi 0, %s169
      %s171 = sphi 0, %s169
      %s172 = sphi 0, %s171
      %s186 = sphi 0, %s172
      %s190 = sphi 0, %s190
      %s192 = sphi 0, %s190
      %s193 = sphi 0, %s192
      %s207 = sphi 0, %s193
      %s211 = sphi 0, %s211
      %s213 = sphi 0, %s211
      %s214 = sphi 0, %s213
      %s228 = sphi 0, %s214
      %s232 = sphi 0, %s232
      %s234 = sphi 0, %s232
      %s235 = sphi 0, %s234
      %s249 = sphi 0, %s235
      %s253 = sphi 0, %s253
      %s255 = sphi 0, %s253
      %s256 = sphi 0, %s255
      %s270 = sphi 0, %s256
      %s274 = sphi 0, %s274
      %s276 = sphi 0, %s274
      %s277 = sphi 0, %s276
      %s291 = sphi 0, %s277
      %s295 = sphi 0, %s295
      %s297 = sphi 0, %s295
      %s298 = sphi 0, %s297
      %s312 = sphi 0, %s298
      %s316 = sphi 0, %s316
      %s318 = sphi 0, %s316
      %s319 = sphi 0, %s318
      %s333 = sphi 0, %s319
      %s337 = sphi 0, %s337
      %s339 = sphi 0, %s337
      %s340 = sphi 0, %s339
      %s354 = sphi 0, %s340
      %s358 = sphi 0, %s358
      %s360 = sphi 0, %s358
      %s361 = sphi 0, %s360
      %s375 = sphi 0, %s361
      %s381 = sphi 0, %s383
      %s384 = sphi 0, %s381
      %s385 = sphi 0, %s384
      %s401 = sphi 0, %s385
    $region4: #{decoder_forward.1} parent=1 // loop_header_branch
      %28 = sbr.rel (%p26) target = $region8
    $region5: #{decoder_forward.1} parent=1 // loop_body
      %s30 = ssub.s32 %s25, 1
      %s31 = ssub.s32 %s25, 2
      %s32 = sadd.s32 %s25, 1
      %s33 = ssub.s32 %s25, %s32
      %p34 = scmp.eq.s32.totalorder %s33, 0
      %s36 = sadd.s32 %s35, 1
      %s37 = scalar_select %p34, %s35, %s36
      %p40 = pneg %p34
      %p41 = scmp.eq.s32.totalorder %s25, 1
      %p42 = por %p40, %p41
      %p43 = scmp.ne.s32.totalorder %s35, %s38
      %p44 = scmp.eq.s32.totalorder %s25, 0
      %p45 = por %p43, %p44
      %p46 = scmp.ne.s32.totalorder %s35, %s38
      %p47 = scmp.eq.s32.totalorder %s30, 1
      %p48 = por %p46, %p47
      %p49 = scmp.ne.s32.totalorder %s38, %s39
      %p50 = scmp.eq.s32.totalorder %s30, 0
      %p51 = por %p49, %p50
      %p52 = scmp.ne.s32.totalorder %s38, %s39
      %p53 = scmp.eq.s32.totalorder %s31, 1
      %p54 = por %p52, %p53
      %p56 = scmp.ne.s32.totalorder %s39, %s55
      %p57 = scmp.eq.s32.totalorder %s31, 0
      %p58 = por %p56, %p57
      %s59 = ssub.s32 %s25, %s32
      %p60 = scmp.eq.s32.totalorder %s59, 0
      %s62 = sadd.s32 %s61, 1
      %s63 = scalar_select %p60, %s61, %s62
      %p66 = pneg %p60
      %p67 = scmp.eq.s32.totalorder %s25, 1
      %p68 = por %p66, %p67
      %p69 = scmp.ne.s32.totalorder %s61, %s64
      %p70 = scmp.eq.s32.totalorder %s25, 0
      %p71 = por %p69, %p70
      %p72 = scmp.ne.s32.totalorder %s61, %s64
      %p73 = scmp.eq.s32.totalorder %s30, 1
      %p74 = por %p72, %p73
      %p75 = scmp.ne.s32.totalorder %s64, %s65
      %p76 = scmp.eq.s32.totalorder %s30, 0
      %p77 = por %p75, %p76
      %p78 = scmp.ne.s32.totalorder %s64, %s65
      %p79 = scmp.eq.s32.totalorder %s31, 1
      %p80 = por %p78, %p79
      %p82 = scmp.ne.s32.totalorder %s65, %s81
      %p83 = scmp.eq.s32.totalorder %s31, 0
      %p84 = por %p82, %p83
      %s86 = sadd.s32 %s85, 1
      %p89 = scmp.eq.s32.totalorder %s25, 1
      %p90 = scmp.ne.s32.totalorder %s85, %s87
      %p91 = scmp.eq.s32.totalorder %s25, 0
      %p92 = por %p90, %p91
      %p93 = scmp.ne.s32.totalorder %s85, %s87
      %p94 = scmp.eq.s32.totalorder %s30, 1
      %p95 = por %p93, %p94
      %p96 = scmp.ne.s32.totalorder %s87, %s88
      %p97 = scmp.eq.s32.totalorder %s30, 0
      %p98 = por %p96, %p97
      %p99 = scmp.ne.s32.totalorder %s87, %s88
      %p100 = scmp.eq.s32.totalorder %s31, 1
      %p101 = por %p99, %p100
      %p103 = scmp.ne.s32.totalorder %s88, %s102
      %p104 = scmp.eq.s32.totalorder %s31, 0
      %p105 = por %p103, %p104
      %s107 = sadd.s32 %s106, 1
      %p110 = scmp.eq.s32.totalorder %s25, 1
      %p111 = scmp.ne.s32.totalorder %s106, %s108
      %p112 = scmp.eq.s32.totalorder %s25, 0
      %p113 = por %p111, %p112
      %p114 = scmp.ne.s32.totalorder %s106, %s108
      %p115 = scmp.eq.s32.totalorder %s30, 1
      %p116 = por %p114, %p115
      %p117 = scmp.ne.s32.totalorder %s108, %s109
      %p118 = scmp.eq.s32.totalorder %s30, 0
      %p119 = por %p117, %p118
      %p120 = scmp.ne.s32.totalorder %s108, %s109
      %p121 = scmp.eq.s32.totalorder %s31, 1
      %p122 = por %p120, %p121
      %p124 = scmp.ne.s32.totalorder %s109, %s123
      %p125 = scmp.eq.s32.totalorder %s31, 0
      %p126 = por %p124, %p125
      %s128 = sadd.s32 %s127, 1
      %p131 = scmp.eq.s32.totalorder %s25, 1
      %p132 = scmp.ne.s32.totalorder %s127, %s129
      %p133 = scmp.eq.s32.totalorder %s25, 0
      %p134 = por %p132, %p133
      %p135 = scmp.ne.s32.totalorder %s127, %s129
      %p136 = scmp.eq.s32.totalorder %s30, 1
      %p137 = por %p135, %p136
      %p138 = scmp.ne.s32.totalorder %s129, %s130
      %p139 = scmp.eq.s32.totalorder %s30, 0
      %p140 = por %p138, %p139
      %p141 = scmp.ne.s32.totalorder %s129, %s130
      %p142 = scmp.eq.s32.totalorder %s31, 1
      %p143 = por %p141, %p142
      %p145 = scmp.ne.s32.totalorder %s130, %s144
      %p146 = scmp.eq.s32.totalorder %s31, 0
      %p147 = por %p145, %p146
      %s149 = sadd.s32 %s148, 1
      %p152 = scmp.eq.s32.totalorder %s25, 1
      %p153 = scmp.ne.s32.totalorder %s148, %s150
      %p154 = scmp.eq.s32.totalorder %s25, 0
      %p155 = por %p153, %p154
      %p156 = scmp.ne.s32.totalorder %s148, %s150
      %p157 = scmp.eq.s32.totalorder %s30, 1
      %p158 = por %p156, %p157
      %p159 = scmp.ne.s32.totalorder %s150, %s151
      %p160 = scmp.eq.s32.totalorder %s30, 0
      %p161 = por %p159, %p160
      %p162 = scmp.ne.s32.totalorder %s150, %s151
      %p163 = scmp.eq.s32.totalorder %s31, 1
      %p164 = por %p162, %p163
      %p166 = scmp.ne.s32.totalorder %s151, %s165
      %p167 = scmp.eq.s32.totalorder %s31, 0
      %p168 = por %p166, %p167
      %s170 = sadd.s32 %s169, 1
      %p173 = scmp.eq.s32.totalorder %s25, 1
      %p174 = scmp.ne.s32.totalorder %s169, %s171
      %p175 = scmp.eq.s32.totalorder %s25, 0
      %p176 = por %p174, %p175
      %p177 = scmp.ne.s32.totalorder %s169, %s171
      %p178 = scmp.eq.s32.totalorder %s30, 1
      %p179 = por %p177, %p178
      %p180 = scmp.ne.s32.totalorder %s171, %s172
      %p181 = scmp.eq.s32.totalorder %s30, 0
      %p182 = por %p180, %p181
      %p183 = scmp.ne.s32.totalorder %s171, %s172
      %p184 = scmp.eq.s32.totalorder %s31, 1
      %p185 = por %p183, %p184
      %p187 = scmp.ne.s32.totalorder %s172, %s186
      %p188 = scmp.eq.s32.totalorder %s31, 0
      %p189 = por %p187, %p188
      %s191 = sadd.s32 %s190, 1
      %p194 = scmp.eq.s32.totalorder %s25, 1
      %p195 = scmp.ne.s32.totalorder %s190, %s192
      %p196 = scmp.eq.s32.totalorder %s25, 0
      %p197 = por %p195, %p196
      %p198 = scmp.ne.s32.totalorder %s190, %s192
      %p199 = scmp.eq.s32.totalorder %s30, 1
      %p200 = por %p198, %p199
      %p201 = scmp.ne.s32.totalorder %s192, %s193
      %p202 = scmp.eq.s32.totalorder %s30, 0
      %p203 = por %p201, %p202
      %p204 = scmp.ne.s32.totalorder %s192, %s193
      %p205 = scmp.eq.s32.totalorder %s31, 1
      %p206 = por %p204, %p205
      %p208 = scmp.ne.s32.totalorder %s193, %s207
      %p209 = scmp.eq.s32.totalorder %s31, 0
      %p210 = por %p208, %p209
      %s212 = sadd.s32 %s211, 1
      %p215 = scmp.eq.s32.totalorder %s25, 1
      %p216 = scmp.ne.s32.totalorder %s211, %s213
      %p217 = scmp.eq.s32.totalorder %s25, 0
      %p218 = por %p216, %p217
      %p219 = scmp.ne.s32.totalorder %s211, %s213
      %p220 = scmp.eq.s32.totalorder %s30, 1
      %p221 = por %p219, %p220
      %p222 = scmp.ne.s32.totalorder %s213, %s214
      %p223 = scmp.eq.s32.totalorder %s30, 0
      %p224 = por %p222, %p223
      %p225 = scmp.ne.s32.totalorder %s213, %s214
      %p226 = scmp.eq.s32.totalorder %s31, 1
      %p227 = por %p225, %p226
      %p229 = scmp.ne.s32.totalorder %s214, %s228
      %p230 = scmp.eq.s32.totalorder %s31, 0
      %p231 = por %p229, %p230
      %s233 = sadd.s32 %s232, 1
      %p236 = scmp.eq.s32.totalorder %s25, 1
      %p237 = scmp.ne.s32.totalorder %s232, %s234
      %p238 = scmp.eq.s32.totalorder %s25, 0
      %p239 = por %p237, %p238
      %p240 = scmp.ne.s32.totalorder %s232, %s234
      %p241 = scmp.eq.s32.totalorder %s30, 1
      %p242 = por %p240, %p241
      %p243 = scmp.ne.s32.totalorder %s234, %s235
      %p244 = scmp.eq.s32.totalorder %s30, 0
      %p245 = por %p243, %p244
      %p246 = scmp.ne.s32.totalorder %s234, %s235
      %p247 = scmp.eq.s32.totalorder %s31, 1
      %p248 = por %p246, %p247
      %p250 = scmp.ne.s32.totalorder %s235, %s249
      %p251 = scmp.eq.s32.totalorder %s31, 0
      %p252 = por %p250, %p251
      %s254 = sadd.s32 %s253, 1
      %p257 = scmp.eq.s32.totalorder %s25, 1
      %p258 = scmp.ne.s32.totalorder %s253, %s255
      %p259 = scmp.eq.s32.totalorder %s25, 0
      %p260 = por %p258, %p259
      %p261 = scmp.ne.s32.totalorder %s253, %s255
      %p262 = scmp.eq.s32.totalorder %s30, 1
      %p263 = por %p261, %p262
      %p264 = scmp.ne.s32.totalorder %s255, %s256
      %p265 = scmp.eq.s32.totalorder %s30, 0
      %p266 = por %p264, %p265
      %p267 = scmp.ne.s32.totalorder %s255, %s256
      %p268 = scmp.eq.s32.totalorder %s31, 1
      %p269 = por %p267, %p268
      %p271 = scmp.ne.s32.totalorder %s256, %s270
      %p272 = scmp.eq.s32.totalorder %s31, 0
      %p273 = por %p271, %p272
      %s275 = sadd.s32 %s274, 1
      %p278 = scmp.eq.s32.totalorder %s25, 1
      %p279 = scmp.ne.s32.totalorder %s274, %s276
      %p280 = scmp.eq.s32.totalorder %s25, 0
      %p281 = por %p279, %p280
      %p282 = scmp.ne.s32.totalorder %s274, %s276
      %p283 = scmp.eq.s32.totalorder %s30, 1
      %p284 = por %p282, %p283
      %p285 = scmp.ne.s32.totalorder %s276, %s277
      %p286 = scmp.eq.s32.totalorder %s30, 0
      %p287 = por %p285, %p286
      %p288 = scmp.ne.s32.totalorder %s276, %s277
      %p289 = scmp.eq.s32.totalorder %s31, 1
      %p290 = por %p288, %p289
      %p292 = scmp.ne.s32.totalorder %s277, %s291
      %p293 = scmp.eq.s32.totalorder %s31, 0
      %p294 = por %p292, %p293
      %s296 = sadd.s32 %s295, 1
      %p299 = scmp.eq.s32.totalorder %s25, 1
      %p300 = scmp.ne.s32.totalorder %s295, %s297
      %p301 = scmp.eq.s32.totalorder %s25, 0
      %p302 = por %p300, %p301
      %p303 = scmp.ne.s32.totalorder %s295, %s297
      %p304 = scmp.eq.s32.totalorder %s30, 1
      %p305 = por %p303, %p304
      %p306 = scmp.ne.s32.totalorder %s297, %s298
      %p307 = scmp.eq.s32.totalorder %s30, 0
      %p308 = por %p306, %p307
      %p309 = scmp.ne.s32.totalorder %s297, %s298
      %p310 = scmp.eq.s32.totalorder %s31, 1
      %p311 = por %p309, %p310
      %p313 = scmp.ne.s32.totalorder %s298, %s312
      %p314 = scmp.eq.s32.totalorder %s31, 0
      %p315 = por %p313, %p314
      %s317 = sadd.s32 %s316, 1
      %p320 = scmp.eq.s32.totalorder %s25, 1
      %p321 = scmp.ne.s32.totalorder %s316, %s318
      %p322 = scmp.eq.s32.totalorder %s25, 0
      %p323 = por %p321, %p322
      %p324 = scmp.ne.s32.totalorder %s316, %s318
      %p325 = scmp.eq.s32.totalorder %s30, 1
      %p326 = por %p324, %p325
      %p327 = scmp.ne.s32.totalorder %s318, %s319
      %p328 = scmp.eq.s32.totalorder %s30, 0
      %p329 = por %p327, %p328
      %p330 = scmp.ne.s32.totalorder %s318, %s319
      %p331 = scmp.eq.s32.totalorder %s31, 1
      %p332 = por %p330, %p331
      %p334 = scmp.ne.s32.totalorder %s319, %s333
      %p335 = scmp.eq.s32.totalorder %s31, 0
      %p336 = por %p334, %p335
      %s338 = sadd.s32 %s337, 1
      %p341 = scmp.eq.s32.totalorder %s25, 1
      %p342 = scmp.ne.s32.totalorder %s337, %s339
      %p343 = scmp.eq.s32.totalorder %s25, 0
      %p344 = por %p342, %p343
      %p345 = scmp.ne.s32.totalorder %s337, %s339
      %p346 = scmp.eq.s32.totalorder %s30, 1
      %p347 = por %p345, %p346
      %p348 = scmp.ne.s32.totalorder %s339, %s340
      %p349 = scmp.eq.s32.totalorder %s30, 0
      %p350 = por %p348, %p349
      %p351 = scmp.ne.s32.totalorder %s339, %s340
      %p352 = scmp.eq.s32.totalorder %s31, 1
      %p353 = por %p351, %p352
      %p355 = scmp.ne.s32.totalorder %s340, %s354
      %p356 = scmp.eq.s32.totalorder %s31, 0
      %p357 = por %p355, %p356
      %s359 = sadd.s32 %s358, 1
      %p362 = scmp.eq.s32.totalorder %s25, 1
      %p363 = scmp.ne.s32.totalorder %s358, %s360
      %p364 = scmp.eq.s32.totalorder %s25, 0
      %p365 = por %p363, %p364
      %p366 = scmp.ne.s32.totalorder %s358, %s360
      %p367 = scmp.eq.s32.totalorder %s30, 1
      %p368 = por %p366, %p367
      %p369 = scmp.ne.s32.totalorder %s360, %s361
      %p370 = scmp.eq.s32.totalorder %s30, 0
      %p371 = por %p369, %p370
      %p372 = scmp.ne.s32.totalorder %s360, %s361
      %p373 = scmp.eq.s32.totalorder %s31, 1
      %p374 = por %p372, %p373
      %p376 = scmp.ne.s32.totalorder %s361, %s375
      %p377 = scmp.eq.s32.totalorder %s31, 0
      %p378 = por %p376, %p377
      %s379 = ssub.s32 %s25, %s32
      %p380 = scmp.eq.s32.totalorder %s379, 0
      %s382 = sadd.s32 %s381, 1
      %s383 = scalar_select %p380, %s381, %s382
      %p386 = pneg %p380
      %p387 = scmp.eq.s32.totalorder %s25, 1
      %p388 = por %p386, %p387
      %p389 = scmp.ne.s32.totalorder %s381, %s384
      %p390 = scmp.eq.s32.totalorder %s25, 0
      %p391 = por %p389, %p390
      %p392 = scmp.ne.s32.totalorder %s381, %s384
      %p393 = scmp.eq.s32.totalorder %s30, 1
      %p394 = por %p392, %p393
      %p395 = scmp.ne.s32.totalorder %s384, %s385
      %p396 = scmp.eq.s32.totalorder %s30, 0
      %p397 = por %p395, %p396
      %p398 = scmp.ne.s32.totalorder %s384, %s385
      %p399 = scmp.eq.s32.totalorder %s31, 1
      %p400 = por %p398, %p399
      %p402 = scmp.ne.s32.totalorder %s385, %s401
      %p403 = scmp.eq.s32.totalorder %s31, 0
      %p404 = por %p402, %p403
      %p405 = scmp.le.s32.totalorder 1, %s25
      %p406 = scmp.lt.s32.totalorder %s25, 3
      %p407 = pnand %p405, %p406
      %p408 = pneg %p407
      // Predicated region
      $region9: #{decoder_forward.1} parent=5 // pred_check
        _
      $region10: #{decoder_forward.1} parent=5 // pred_check_branch
        %410 = sbr.rel (%p407) target = $region12
      $region11: #{decoder_forward.1} parent=5 // pred_region
        %s411 = ssub.s32 %s25, 1
        // Predicated region
        $region13: #{decoder_forward.1} parent=11 // pred_check
          %p412 = pneg %p98
        $region14: #{decoder_forward.1} parent=11 // pred_check_branch
          %414 = sbr.rel (%p412) target = $region16
        $region15: #{decoder_forward.1} parent=11 // pred_region
          _
        $region16: #{decoder_forward.1} parent=11 // pred_fallthru
          _
        // Predicated region
        $region17: #{decoder_forward.1} parent=11 // pred_check
          %p415 = pneg %p119
        $region18: #{decoder_forward.1} parent=11 // pred_check_branch
          %417 = sbr.rel (%p415) target = $region20
        $region19: #{decoder_forward.1} parent=11 // pred_region
          _
        $region20: #{decoder_forward.1} parent=11 // pred_fallthru
          _
        // Predicated region
        $region21: #{decoder_forward.1} parent=11 // pred_check
          %p418 = pneg %p140
        $region22: #{decoder_forward.1} parent=11 // pred_check_branch
          %420 = sbr.rel (%p418) target = $region24
        $region23: #{decoder_forward.1} parent=11 // pred_region
          _
        $region24: #{decoder_forward.1} parent=11 // pred_fallthru
          _
        // Predicated region
        $region25: #{decoder_forward.1} parent=11 // pred_check
          %p421 = pneg %p161
        $region26: #{decoder_forward.1} parent=11 // pred_check_branch
          %423 = sbr.rel (%p421) target = $region28
        $region27: #{decoder_forward.1} parent=11 // pred_region
          _
        $region28: #{decoder_forward.1} parent=11 // pred_fallthru
          _
        // Predicated region
        $region29: #{decoder_forward.1} parent=11 // pred_check
          %p424 = pneg %p182
        $region30: #{decoder_forward.1} parent=11 // pred_check_branch
          %426 = sbr.rel (%p424) target = $region32
        $region31: #{decoder_forward.1} parent=11 // pred_region
          _
        $region32: #{decoder_forward.1} parent=11 // pred_fallthru
          _
        // Predicated region
        $region33: #{decoder_forward.1} parent=11 // pred_check
          %p427 = pneg %p203
        $region34: #{decoder_forward.1} parent=11 // pred_check_branch
          %429 = sbr.rel (%p427) target = $region36
        $region35: #{decoder_forward.1} parent=11 // pred_region
          _
        $region36: #{decoder_forward.1} parent=11 // pred_fallthru
          _
        // Predicated region
        $region37: #{decoder_forward.1} parent=11 // pred_check
          %p430 = pneg %p224
        $region38: #{decoder_forward.1} parent=11 // pred_check_branch
          %432 = sbr.rel (%p430) target = $region40
        $region39: #{decoder_forward.1} parent=11 // pred_region
          _
        $region40: #{decoder_forward.1} parent=11 // pred_fallthru
          _
        // Predicated region
        $region41: #{decoder_forward.1} parent=11 // pred_check
          %p433 = pneg %p245
        $region42: #{decoder_forward.1} parent=11 // pred_check_branch
          %435 = sbr.rel (%p433) target = $region44
        $region43: #{decoder_forward.1} parent=11 // pred_region
          _
        $region44: #{decoder_forward.1} parent=11 // pred_fallthru
          _
        // Predicated region
        $region45: #{decoder_forward.1} parent=11 // pred_check
          %p436 = pneg %p266
        $region46: #{decoder_forward.1} parent=11 // pred_check_branch
          %438 = sbr.rel (%p436) target = $region48
        $region47: #{decoder_forward.1} parent=11 // pred_region
          _
        $region48: #{decoder_forward.1} parent=11 // pred_fallthru
          _
        // Predicated region
        $region49: #{decoder_forward.1} parent=11 // pred_check
          %p439 = pneg %p287
        $region50: #{decoder_forward.1} parent=11 // pred_check_branch
          %441 = sbr.rel (%p439) target = $region52
        $region51: #{decoder_forward.1} parent=11 // pred_region
          _
        $region52: #{decoder_forward.1} parent=11 // pred_fallthru
          _
        // Predicated region
        $region53: #{decoder_forward.1} parent=11 // pred_check
          %p442 = pneg %p308
        $region54: #{decoder_forward.1} parent=11 // pred_check_branch
          %444 = sbr.rel (%p442) target = $region56
        $region55: #{decoder_forward.1} parent=11 // pred_region
          _
        $region56: #{decoder_forward.1} parent=11 // pred_fallthru
          _
        // Predicated region
        $region57: #{decoder_forward.1} parent=11 // pred_check
          %p445 = pneg %p329
        $region58: #{decoder_forward.1} parent=11 // pred_check_branch
          %447 = sbr.rel (%p445) target = $region60
        $region59: #{decoder_forward.1} parent=11 // pred_region
          _
        $region60: #{decoder_forward.1} parent=11 // pred_fallthru
          _
        // Predicated region
        $region61: #{decoder_forward.1} parent=11 // pred_check
          %p448 = pneg %p350
        $region62: #{decoder_forward.1} parent=11 // pred_check_branch
          %450 = sbr.rel (%p448) target = $region64
        $region63: #{decoder_forward.1} parent=11 // pred_region
          _
        $region64: #{decoder_forward.1} parent=11 // pred_fallthru
          _
        // Predicated region
        $region65: #{decoder_forward.1} parent=11 // pred_check
          %p451 = pneg %p371
        $region66: #{decoder_forward.1} parent=11 // pred_check_branch
          %453 = sbr.rel (%p451) target = $region68
        $region67: #{decoder_forward.1} parent=11 // pred_region
          _
        $region68: #{decoder_forward.1} parent=11 // pred_fallthru
          _
      $region12: #{decoder_forward.1} parent=5 // pred_fallthru
        _
      %p454 = scmp.lt.s32.totalorder %s25, 2
      // Predicated region
      $region69: #{decoder_forward.1} parent=5 // pred_check
        %p455 = pneg %p454
      $region70: #{decoder_forward.1} parent=5 // pred_check_branch
        %457 = sbr.rel (%p455) target = $region72
      $region71: #{decoder_forward.1} parent=5 // pred_region
        // Predicated region
        $region73: #{decoder_forward.1} parent=71 // pred_check
          %p458 = pneg %p45
        $region74: #{decoder_forward.1} parent=71 // pred_check_branch
          %460 = sbr.rel (%p458) target = $region76
        $region75: #{decoder_forward.1} parent=71 // pred_region
          %p461 = scmp.lt.s32.totalorder %s25, 1
          %s462 = scalar_select %p461, %s25, 1
          %s463 = smul.addr %s462, 2
          %s464 = smul.addr %s463, 8
          %s465 = scalar_lea.vmem %s0, %s464
        $region76: #{decoder_forward.1} parent=71 // pred_fallthru
          _
        // Predicated region
        $region77: #{decoder_forward.1} parent=71 // pred_check
          %p466 = pneg %p71
        $region78: #{decoder_forward.1} parent=71 // pred_check_branch
          %468 = sbr.rel (%p466) target = $region80
        $region79: #{decoder_forward.1} parent=71 // pred_region
          %p469 = scmp.lt.s32.totalorder %s25, 1
          %s470 = scalar_select %p469, %s25, 1
          %s471 = smul.addr %s470, 8
          %s472 = scalar_lea.vmem %s1, %s471
        $region80: #{decoder_forward.1} parent=71 // pred_fallthru
          _
      $region72: #{decoder_forward.1} parent=5 // pred_fallthru
        _
      %p473 = scmp.le.s32.totalorder 1, %s25
      %p474 = scmp.lt.s32.totalorder %s25, 3
      %p475 = pnand %p473, %p474
      %p476 = pneg %p475
      // Predicated region
      $region81: #{decoder_forward.1} parent=5 // pred_check
        _
      $region82: #{decoder_forward.1} parent=5 // pred_check_branch
        %478 = sbr.rel (%p475) target = $region84
      $region83: #{decoder_forward.1} parent=5 // pred_region
        %s479 = ssub.s32 %s25, 1
        %p480 = scmp.lt.s32.totalorder %s30, 1
        %s481 = scalar_select %p480, %s30, 1
        %s482 = smul.addr %s481, 2
        %s483 = smul.addr %s482, 8
        %s484 = scalar_lea.vmem %s0, %s483
        %p485 = pneg %p51
        %p486 = pneg %p48
        %p487 = scmp.lt.s32.totalorder %s30, 1
        %s488 = scalar_select %p487, %s30, 1
        %s489 = smul.addr %s488, 8
        %s490 = scalar_lea.vmem %s1, %s489
        %p491 = pneg %p77
        %p492 = pneg %p74
        %p493 = pneg %p98
        %p494 = pneg %p95
        %p495 = pneg %p119
        %p496 = pneg %p116
        %p497 = pneg %p140
        %p498 = pneg %p137
        %p499 = pneg %p161
        %p500 = pneg %p158
        %p501 = pneg %p182
        %p502 = pneg %p179
        %p503 = pneg %p203
        %p504 = pneg %p200
        %p505 = pneg %p224
        %p506 = pneg %p221
        %p507 = pneg %p245
        %p508 = pneg %p242
        %p509 = pneg %p266
        %p510 = pneg %p263
        %p511 = pneg %p287
        %p512 = pneg %p284
        %p513 = pneg %p308
        %p514 = pneg %p305
        %p515 = pneg %p329
        %p516 = pneg %p326
        %p517 = pneg %p350
        %p518 = pneg %p347
        %p519 = pneg %p371
        %p520 = pneg %p368
        %p521 = pneg %p397
        %p522 = pneg %p394
        %s523 = sand.u32 %s384, 1
        %s524 = scalar_lea.sflag [#allocation3], %s523
        %s525 = sand.u32 %s384, 1
        %s526 = smul.addr %s525, 16
        %s527 = scalar_lea.vmem [#allocation2], %s526
        %p528 = scmp.lt.s32.totalorder %s30, 1
        %s529 = scalar_select %p528, %s30, 1
        %s530 = smul.addr %s529, 2
        %s531 = smul.addr %s530, 8
        %s532 = scalar_lea.vmem %s0, %s531
        %p533 = scmp.lt.s32.totalorder %s30, 1
        %s534 = scalar_select %p533, %s30, 1
        %s535 = smul.addr %s534, 8
        %s536 = scalar_lea.vmem %s1, %s535
        %v537 = vld [vmem:[%s532] sm:$0xff]
        %v538 = vld [vmem:[%s532 + $0x8] sm:$0xff]
        %v539 = vld [vmem:[%s536] sm:$0xff]
        %v540 = vld [vmem:[%s6] sm:$0xff]
        %v541 = vld [vmem:[%s6 + $0x8] sm:$0xff]
        %v542 = vld [vmem:[%s6 + $0x10] sm:$0xff]
        %v543 = vld [vmem:[%s6 + $0x18] sm:$0xff]
        %v544 = vld [vmem:[%s7] sm:$0x1]
        %v546 = vlaneseq
        %v547 = vshrl.u32 %v546, 7
        %v548 = vsub.s32 0, %v547
        %v549 = vrot.slane %v544, %v548
        %vm551 = vcmask 261120
        %v553 = vsel %vm551, %v539, 0
        %555 = vmatprep.subr.mxu0 0.0
        %556 = vmatpush1.msra.mxu0 0.0
        %557 = vmatprep.subr.mxu0 0.0
        %558 = vmatpush1.msra.mxu0 0.0
        %559 = vmatprep.subr.mxu0 0.0
        %560 = vmatpush1.msra.mxu0 0.0
        %561 = vmatprep.subr.mxu0 0.0
        %562 = vmatpush1.msra.mxu0 0.0
        %563 = vmatprep.subr.mxu0 0.0
        %564 = vmatpush1.msra.mxu0 0.0
        %565 = vmatprep.subr.mxu0 0.0
        %566 = vmatpush1.msra.mxu0 0.0
        %567 = vmatprep.subr.mxu0 0.0
        %568 = vmatpush1.msra.mxu0 0.0
        %569 = vmatprep.subr.mxu0 0.0
        %570 = vmatpush1.msra.mxu0 0.0
        %571 = vmatprep.subr.mxu0 0.0
        %572 = vmatpush1.msra.mxu0 0.0
        %573 = vmatprep.subr.mxu0 0.0
        %574 = vmatpush1.msra.mxu0 0.0
        %575 = vmatprep.subr.mxu0 0.0
        %576 = vmatpush1.msra.mxu0 0.0
        %577 = vmatprep.subr.mxu0 0.0
        %578 = vmatpush1.msra.mxu0 0.0
        %579 = vmatprep.subr.mxu0 0.0
        %580 = vmatpush1.msra.mxu0 %v543
        %581 = vmatprep.subr.mxu0 0.0
        %582 = vmatpush1.msra.mxu0 %v542
        %583 = vmatprep.subr.mxu0 0.0
        %584 = vmatpush1.msra.mxu0 %v541
        %585 = vmatprep.subr.mxu0 0.0
        %586 = vmatpush1.msra.mxu0 %v540
        %587 = vmatprep.subr.mxu0 0.0
        %588 = vmatpush2.msra.mxu0 0.0
        %589 = vmatprep.subr.mxu0 0.0
        %590 = vmatpush2.msra.mxu0 0.0
        %591 = vmatprep.subr.mxu0 0.0
        %592 = vmatpush2.msra.mxu0 0.0
        %593 = vmatprep.subr.mxu0 0.0
        %594 = vmatpush2.msra.mxu0 0.0
        %595 = vmatprep.subr.mxu0 0.0
        %596 = vmatpush2.msra.mxu0 0.0
        %597 = vmatprep.subr.mxu0 0.0
        %598 = vmatpush2.msra.mxu0 0.0
        %599 = vmatprep.subr.mxu0 0.0
        %600 = vmatpush2.msra.mxu0 0.0
        %601 = vmatprep.subr.mxu0 0.0
        %602 = vmatpush2.msra.mxu0 0.0
        %603 = vmatprep.subr.mxu0 0.0
        %604 = vmatpush2.msra.mxu0 0.0
        %605 = vmatprep.subr.mxu0 0.0
        %606 = vmatpush2.msra.mxu0 0.0
        %607 = vmatprep.subr.mxu0 0.0
        %608 = vmatpush2.msra.mxu0 0.0
        %609 = vmatprep.subr.mxu0 0.0
        %610 = vmatpush2.msra.mxu0 0.0
        %611 = vmatprep.subr.mxu0 0.0
        %612 = vmatpush2.msra.mxu0 0.0
        %613 = vmatprep.subr.mxu0 0.0
        %614 = vmatpush2.msra.mxu0 0.0
        %615 = vmatprep.subr.mxu0 0.0
        %616 = vmatpush2.msra.mxu0 0.0
        %617 = vmatprep.subr.mxu0 0.0
        %618 = vmatpush2.msra.mxu0 0.0
        %619 = vmatprep.mubr.f32.mxu0 0.0
        %620 = vmatmul.mubr.f32.gmra.mxu0 %v553
        %v621 = vpop.f32.mrf.mxu0
        %v622 = vadd.f32 %v549, %v621
        %v623 = vpop.f32.mrf.mxu0
        %624 = vdwg.mxu0
        %v625 = vld [vmem:[%s8] sm:$0xff]
        %v626 = vld [vmem:[%s8 + $0x8] sm:$0xff]
        %v627 = vld [vmem:[%s8 + $0x10] sm:$0xff]
        %v628 = vld [vmem:[%s8 + $0x18] sm:$0xff]
        %v629 = vld [vmem:[%s9] sm:$0x1]
        %v631 = vlaneseq
        %v632 = vshrl.u32 %v631, 7
        %v633 = vsub.s32 0, %v632
        %v634 = vrot.slane %v629, %v633
        %636 = vmatprep.subr.mxu0 0.0
        %637 = vmatpush1.msra.mxu0 0.0
        %638 = vmatprep.subr.mxu0 0.0
        %639 = vmatpush1.msra.mxu0 0.0
        %640 = vmatprep.subr.mxu0 0.0
        %641 = vmatpush1.msra.mxu0 0.0
        %642 = vmatprep.subr.mxu0 0.0
        %643 = vmatpush1.msra.mxu0 0.0
        %644 = vmatprep.subr.mxu0 0.0
        %645 = vmatpush1.msra.mxu0 0.0
        %646 = vmatprep.subr.mxu0 0.0
        %647 = vmatpush1.msra.mxu0 0.0
        %648 = vmatprep.subr.mxu0 0.0
        %649 = vmatpush1.msra.mxu0 0.0
        %650 = vmatprep.subr.mxu0 0.0
        %651 = vmatpush1.msra.mxu0 0.0
        %652 = vmatprep.subr.mxu0 0.0
        %653 = vmatpush1.msra.mxu0 0.0
        %654 = vmatprep.subr.mxu0 0.0
        %655 = vmatpush1.msra.mxu0 0.0
        %656 = vmatprep.subr.mxu0 0.0
        %657 = vmatpush1.msra.mxu0 0.0
        %658 = vmatprep.subr.mxu0 0.0
        %659 = vmatpush1.msra.mxu0 0.0
        %660 = vmatprep.subr.mxu0 0.0
        %661 = vmatpush1.msra.mxu0 %v628
        %662 = vmatprep.subr.mxu0 0.0
        %663 = vmatpush1.msra.mxu0 %v627
        %664 = vmatprep.subr.mxu0 0.0
        %665 = vmatpush1.msra.mxu0 %v626
        %666 = vmatprep.subr.mxu0 0.0
        %667 = vmatpush1.msra.mxu0 %v625
        %668 = vmatprep.subr.mxu0 0.0
        %669 = vmatpush2.msra.mxu0 0.0
        %670 = vmatprep.subr.mxu0 0.0
        %671 = vmatpush2.msra.mxu0 0.0
        %672 = vmatprep.subr.mxu0 0.0
        %673 = vmatpush2.msra.mxu0 0.0
        %674 = vmatprep.subr.mxu0 0.0
        %675 = vmatpush2.msra.mxu0 0.0
        %676 = vmatprep.subr.mxu0 0.0
        %677 = vmatpush2.msra.mxu0 0.0
        %678 = vmatprep.subr.mxu0 0.0
        %679 = vmatpush2.msra.mxu0 0.0
        %680 = vmatprep.subr.mxu0 0.0
        %681 = vmatpush2.msra.mxu0 0.0
        %682 = vmatprep.subr.mxu0 0.0
        %683 = vmatpush2.msra.mxu0 0.0
        %684 = vmatprep.subr.mxu0 0.0
        %685 = vmatpush2.msra.mxu0 0.0
        %686 = vmatprep.subr.mxu0 0.0
        %687 = vmatpush2.msra.mxu0 0.0
        %688 = vmatprep.subr.mxu0 0.0
        %689 = vmatpush2.msra.mxu0 0.0
        %690 = vmatprep.subr.mxu0 0.0
        %691 = vmatpush2.msra.mxu0 0.0
        %692 = vmatprep.subr.mxu0 0.0
        %693 = vmatpush2.msra.mxu0 0.0
        %694 = vmatprep.subr.mxu0 0.0
        %695 = vmatpush2.msra.mxu0 0.0
        %696 = vmatprep.subr.mxu0 0.0
        %697 = vmatpush2.msra.mxu0 0.0
        %698 = vmatprep.subr.mxu0 0.0
        %699 = vmatpush2.msra.mxu0 0.0
        %700 = vmatprep.mubr.f32.mxu0 0.0
        %701 = vmatmul.mubr.f32.gmra.mxu0 %v553
        %v702 = vpop.f32.mrf.mxu0
        %v703 = vadd.f32 %v634, %v702
        %v704 = vpop.f32.mrf.mxu0
        %705 = vdwg.mxu0
        %v706 = vld [vmem:[%s2] sm:$0x1]
        %v707 = vld [vmem:[%s3] sm:$0x1]
        %v708 = vsel %vm551, %v537, 0.0
        %709 = vadd.xlane.f32.xlu0 %v708
        %v710 = vpop.xlane.xlu0 %709
        %v711 = vsel %vm551, %v538, 0.0
        %712 = vadd.xlane.f32.xlu0 %v711
        %v713 = vpop.xlane.xlu0 %712
        %v714 = vrcp.pop 32.0
        %v715 = vmul.f32 %v710, %v714
        %v716 = vmul.f32 %v713, %v714
        %v717 = vsub.f32 %v537, %v715
        %v718 = vsub.f32 %v538, %v716
        %v719 = vmul.f32 %v717, %v717
        %v720 = vmul.f32 %v718, %v718
        %v721 = vsel %vm551, %v719, 0.0
        %722 = vadd.xlane.f32.xlu0 %v721
        %v723 = vpop.xlane.xlu0 %722
        %v724 = vsel %vm551, %v720, 0.0
        %725 = vadd.xlane.f32.xlu0 %v724
        %v726 = vpop.xlane.xlu0 %725
        %v727 = vmul.f32 %v723, %v714
        %v728 = vmul.f32 %v726, %v714
        %v729 = vadd.f32 %v727, 1e-05
        %v730 = vadd.f32 %v728, 1e-05
        %v731 = vrsqrt.pop %v729
        %v732 = vrsqrt.pop %v730
        %v733 = vmul.f32 %v717, %v731
        %v734 = vmul.f32 %v718, %v732
        %v736 = vlaneseq
        %v737 = vshrl.u32 %v736, 7
        %v738 = vsub.s32 0, %v737
        %v739 = vrot.slane %v706, %v738
        %v741 = vmul.f32 %v733, %v739
        %v742 = vmul.f32 %v734, %v739
        %v744 = vlaneseq
        %v745 = vshrl.u32 %v744, 7
        %v746 = vsub.s32 0, %v745
        %v747 = vrot.slane %v707, %v746
        %v749 = vadd.f32 %v741, %v747
        %v750 = vadd.f32 %v742, %v747
        %v751 = vld [vmem:[%s4] sm:$0xff]
        %v752 = vld [vmem:[%s4 + $0x8] sm:$0xff]
        %v753 = vld [vmem:[%s4 + $0x10] sm:$0xff]
        %v754 = vld [vmem:[%s4 + $0x18] sm:$0xff]
        %v755 = vld [vmem:[%s5] sm:$0x1]
        %v757 = vlaneseq
        %v758 = vshrl.u32 %v757, 7
        %v759 = vsub.s32 0, %v758
        %v760 = vrot.slane %v755, %v759
        %v763 = vsel %vm551, %v749, 0
        %v766 = vsel %vm551, %v750, 0
        %768 = vmatprep.subr.mxu0 0.0
        %769 = vmatpush1.msra.mxu0 0.0
        %770 = vmatprep.subr.mxu0 0.0
        %771 = vmatpush1.msra.mxu0 0.0
        %772 = vmatprep.subr.mxu0 0.0
        %773 = vmatpush1.msra.mxu0 0.0
        %774 = vmatprep.subr.mxu0 0.0
        %775 = vmatpush1.msra.mxu0 0.0
        %776 = vmatprep.subr.mxu0 0.0
        %777 = vmatpush1.msra.mxu0 0.0
        %778 = vmatprep.subr.mxu0 0.0
        %779 = vmatpush1.msra.mxu0 0.0
        %780 = vmatprep.subr.mxu0 0.0
        %781 = vmatpush1.msra.mxu0 0.0
        %782 = vmatprep.subr.mxu0 0.0
        %783 = vmatpush1.msra.mxu0 0.0
        %784 = vmatprep.subr.mxu0 0.0
        %785 = vmatpush1.msra.mxu0 0.0
        %786 = vmatprep.subr.mxu0 0.0
        %787 = vmatpush1.msra.mxu0 0.0
        %788 = vmatprep.subr.mxu0 0.0
        %789 = vmatpush1.msra.mxu0 0.0
        %790 = vmatprep.subr.mxu0 0.0
        %791 = vmatpush1.msra.mxu0 0.0
        %792 = vmatprep.subr.mxu0 0.0
        %793 = vmatpush1.msra.mxu0 %v754
        %794 = vmatprep.subr.mxu0 0.0
        %795 = vmatpush1.msra.mxu0 %v753
        %796 = vmatprep.subr.mxu0 0.0
        %797 = vmatpush1.msra.mxu0 %v752
        %798 = vmatprep.subr.mxu0 0.0
        %799 = vmatpush1.msra.mxu0 %v751
        %800 = vmatprep.subr.mxu0 0.0
        %801 = vmatpush2.msra.mxu0 0.0
        %802 = vmatprep.subr.mxu0 0.0
        %803 = vmatpush2.msra.mxu0 0.0
        %804 = vmatprep.subr.mxu0 0.0
        %805 = vmatpush2.msra.mxu0 0.0
        %806 = vmatprep.subr.mxu0 0.0
        %807 = vmatpush2.msra.mxu0 0.0
        %808 = vmatprep.subr.mxu0 0.0
        %809 = vmatpush2.msra.mxu0 0.0
        %810 = vmatprep.subr.mxu0 0.0
        %811 = vmatpush2.msra.mxu0 0.0
        %812 = vmatprep.subr.mxu0 0.0
        %813 = vmatpush2.msra.mxu0 0.0
        %814 = vmatprep.subr.mxu0 0.0
        %815 = vmatpush2.msra.mxu0 0.0
        %816 = vmatprep.subr.mxu0 0.0
        %817 = vmatpush2.msra.mxu0 0.0
        %818 = vmatprep.subr.mxu0 0.0
        %819 = vmatpush2.msra.mxu0 0.0
        %820 = vmatprep.subr.mxu0 0.0
        %821 = vmatpush2.msra.mxu0 0.0
        %822 = vmatprep.subr.mxu0 0.0
        %823 = vmatpush2.msra.mxu0 0.0
        %824 = vmatprep.subr.mxu0 0.0
        %825 = vmatpush2.msra.mxu0 0.0
        %826 = vmatprep.subr.mxu0 0.0
        %827 = vmatpush2.msra.mxu0 0.0
        %828 = vmatprep.subr.mxu0 0.0
        %829 = vmatpush2.msra.mxu0 0.0
        %830 = vmatprep.subr.mxu0 0.0
        %831 = vmatpush2.msra.mxu0 0.0
        %832 = vmatprep.mubr.f32.mxu0 0.0
        %833 = vmatmul.mubr.f32.gmra.mxu0 %v763
        %v834 = vpop.f32.mrf.mxu0
        %v835 = vadd.f32 %v760, %v834
        %v836 = vpop.f32.mrf.mxu0
        %837 = vmatprep.mubr.f32.mxu0 0.0
        %838 = vmatmul.mubr.f32.gmra.mxu0 %v766
        %v839 = vpop.f32.mrf.mxu0
        %v840 = vadd.f32 %v760, %v839
        %v841 = vpop.f32.mrf.mxu0
        %842 = vdwg.mxu0
        %vm843 = vcmask 130048
        %v845 = vsel %vm843, %v835, 0
        %v848 = vsel %vm843, %v840, 0
        %v851 = vsel %vm843, %v622, 0
        %853 = vmatprep.subr.mxu0 0.0
        %854 = vmatpush1.xpose.msra.mxu0 0.0
        %855 = vmatprep.subr.mxu0 0.0
        %856 = vmatpush1.xpose.msra.mxu0 0.0
        %857 = vmatprep.subr.mxu0 0.0
        %858 = vmatpush1.xpose.msra.mxu0 0.0
        %859 = vmatprep.subr.mxu0 0.0
        %860 = vmatpush1.xpose.msra.mxu0 0.0
        %861 = vmatprep.subr.mxu0 0.0
        %862 = vmatpush1.xpose.msra.mxu0 0.0
        %863 = vmatprep.subr.mxu0 0.0
        %864 = vmatpush1.xpose.msra.mxu0 0.0
        %865 = vmatprep.subr.mxu0 0.0
        %866 = vmatpush1.xpose.msra.mxu0 0.0
        %867 = vmatprep.subr.mxu0 0.0
        %868 = vmatpush1.xpose.msra.mxu0 0.0
        %869 = vmatprep.subr.mxu0 0.0
        %870 = vmatpush1.xpose.msra.mxu0 0.0
        %871 = vmatprep.subr.mxu0 0.0
        %872 = vmatpush1.xpose.msra.mxu0 0.0
        %873 = vmatprep.subr.mxu0 0.0
        %874 = vmatpush1.xpose.msra.mxu0 0.0
        %875 = vmatprep.subr.mxu0 0.0
        %876 = vmatpush1.xpose.msra.mxu0 0.0
        %877 = vmatprep.subr.mxu0 0.0
        %878 = vmatpush1.xpose.msra.mxu0 0.0
        %879 = vmatprep.subr.mxu0 0.0
        %880 = vmatpush1.xpose.msra.mxu0 0.0
        %881 = vmatprep.subr.mxu0 0.0
        %882 = vmatpush1.xpose.msra.mxu0 0.0
        %883 = vmatprep.subr.mxu0 0.0
        %884 = vmatpush1.xpose.msra.mxu0 %v851
        %885 = vmatprep.subr.mxu0 0.0
        %886 = vmatpush2.xpose.msra.mxu0 0.0
        %887 = vmatprep.subr.mxu0 0.0
        %888 = vmatpush2.xpose.msra.mxu0 0.0
        %889 = vmatprep.subr.mxu0 0.0
        %890 = vmatpush2.xpose.msra.mxu0 0.0
        %891 = vmatprep.subr.mxu0 0.0
        %892 = vmatpush2.xpose.msra.mxu0 0.0
        %893 = vmatprep.subr.mxu0 0.0
        %894 = vmatpush2.xpose.msra.mxu0 0.0
        %895 = vmatprep.subr.mxu0 0.0
        %896 = vmatpush2.xpose.msra.mxu0 0.0
        %897 = vmatprep.subr.mxu0 0.0
        %898 = vmatpush2.xpose.msra.mxu0 0.0
        %899 = vmatprep.subr.mxu0 0.0
        %900 = vmatpush2.xpose.msra.mxu0 0.0
        %901 = vmatprep.subr.mxu0 0.0
        %902 = vmatpush2.xpose.msra.mxu0 0.0
        %903 = vmatprep.subr.mxu0 0.0
        %904 = vmatpush2.xpose.msra.mxu0 0.0
        %905 = vmatprep.subr.mxu0 0.0
        %906 = vmatpush2.xpose.msra.mxu0 0.0
        %907 = vmatprep.subr.mxu0 0.0
        %908 = vmatpush2.xpose.msra.mxu0 0.0
        %909 = vmatprep.subr.mxu0 0.0
        %910 = vmatpush2.xpose.msra.mxu0 0.0
        %911 = vmatprep.subr.mxu0 0.0
        %912 = vmatpush2.xpose.msra.mxu0 0.0
        %913 = vmatprep.subr.mxu0 0.0
        %914 = vmatpush2.xpose.msra.mxu0 0.0
        %915 = vmatprep.subr.mxu0 0.0
        %916 = vmatpush2.xpose.msra.mxu0 0.0
        %917 = vmatprep.mubr.f32.mxu0 0.0
        %918 = vmatmul.mubr.f32.gmra.mxu0 %v845
        %v919 = vpop.f32.mrf.mxu0
        %v920 = vadd.f32 0.0, %v919
        %v921 = vpop.f32.mrf.mxu0
        %922 = vmatprep.mubr.f32.mxu0 0.0
        %923 = vmatmul.mubr.f32.gmra.mxu0 %v848
        %v924 = vpop.f32.mrf.mxu0
        %v925 = vadd.f32 0.0, %v924
        %v926 = vpop.f32.mrf.mxu0
        %927 = vdwg.mxu0
        %v928 = vmul.f32 %v920, 0.25
        %v929 = vmul.f32 %v925, 0.25
        %930 = vrot.lane.b32.xlu0 %v835, 112
        %v931 = vpop.permute.xlu0 %930
        %932 = vrot.lane.b32.xlu0 %v840, 112
        %v933 = vpop.permute.xlu0 %932
        %934 = vrot.lane.b32.xlu0 %v622, 112
        %v935 = vpop.permute.xlu0 %934
        %v936 = vsel %vm843, %v931, 0
        %v938 = vsel %vm843, %v933, 0
        %v940 = vsel %vm843, %v935, 0
        %942 = vmatprep.subr.mxu0 0.0
        %943 = vmatpush1.xpose.msra.mxu0 0.0
        %944 = vmatprep.subr.mxu0 0.0
        %945 = vmatpush1.xpose.msra.mxu0 0.0
        %946 = vmatprep.subr.mxu0 0.0
        %947 = vmatpush1.xpose.msra.mxu0 0.0
        %948 = vmatprep.subr.mxu0 0.0
        %949 = vmatpush1.xpose.msra.mxu0 0.0
        %950 = vmatprep.subr.mxu0 0.0
        %951 = vmatpush1.xpose.msra.mxu0 0.0
        %952 = vmatprep.subr.mxu0 0.0
        %953 = vmatpush1.xpose.msra.mxu0 0.0
        %954 = vmatprep.subr.mxu0 0.0
        %955 = vmatpush1.xpose.msra.mxu0 0.0
        %956 = vmatprep.subr.mxu0 0.0
        %957 = vmatpush1.xpose.msra.mxu0 0.0
        %958 = vmatprep.subr.mxu0 0.0
        %959 = vmatpush1.xpose.msra.mxu0 0.0
        %960 = vmatprep.subr.mxu0 0.0
        %961 = vmatpush1.xpose.msra.mxu0 0.0
        %962 = vmatprep.subr.mxu0 0.0
        %963 = vmatpush1.xpose.msra.mxu0 0.0
        %964 = vmatprep.subr.mxu0 0.0
        %965 = vmatpush1.xpose.msra.mxu0 0.0
        %966 = vmatprep.subr.mxu0 0.0
        %967 = vmatpush1.xpose.msra.mxu0 0.0
        %968 = vmatprep.subr.mxu0 0.0
        %969 = vmatpush1.xpose.msra.mxu0 0.0
        %970 = vmatprep.subr.mxu0 0.0
        %971 = vmatpush1.xpose.msra.mxu0 0.0
        %972 = vmatprep.subr.mxu0 0.0
        %973 = vmatpush1.xpose.msra.mxu0 %v940
        %974 = vmatprep.subr.mxu0 0.0
        %975 = vmatpush2.xpose.msra.mxu0 0.0
        %976 = vmatprep.subr.mxu0 0.0
        %977 = vmatpush2.xpose.msra.mxu0 0.0
        %978 = vmatprep.subr.mxu0 0.0
        %979 = vmatpush2.xpose.msra.mxu0 0.0
        %980 = vmatprep.subr.mxu0 0.0
        %981 = vmatpush2.xpose.msra.mxu0 0.0
        %982 = vmatprep.subr.mxu0 0.0
        %983 = vmatpush2.xpose.msra.mxu0 0.0
        %984 = vmatprep.subr.mxu0 0.0
        %985 = vmatpush2.xpose.msra.mxu0 0.0
        %986 = vmatprep.subr.mxu0 0.0
        %987 = vmatpush2.xpose.msra.mxu0 0.0
        %988 = vmatprep.subr.mxu0 0.0
        %989 = vmatpush2.xpose.msra.mxu0 0.0
        %990 = vmatprep.subr.mxu0 0.0
        %991 = vmatpush2.xpose.msra.mxu0 0.0
        %992 = vmatprep.subr.mxu0 0.0
        %993 = vmatpush2.xpose.msra.mxu0 0.0
        %994 = vmatprep.subr.mxu0 0.0
        %995 = vmatpush2.xpose.msra.mxu0 0.0
        %996 = vmatprep.subr.mxu0 0.0
        %997 = vmatpush2.xpose.msra.mxu0 0.0
        %998 = vmatprep.subr.mxu0 0.0
        %999 = vmatpush2.xpose.msra.mxu0 0.0
        %1000 = vmatprep.subr.mxu0 0.0
        %1001 = vmatpush2.xpose.msra.mxu0 0.0
        %1002 = vmatprep.subr.mxu0 0.0
        %1003 = vmatpush2.xpose.msra.mxu0 0.0
        %1004 = vmatprep.subr.mxu0 0.0
        %1005 = vmatpush2.xpose.msra.mxu0 0.0
        %1006 = vmatprep.mubr.f32.mxu0 0.0
        %1007 = vmatmul.mubr.f32.gmra.mxu0 %v936
        %v1008 = vpop.f32.mrf.mxu0
        %v1009 = vadd.f32 0.0, %v1008
        %v1010 = vpop.f32.mrf.mxu0
        %1011 = vmatprep.mubr.f32.mxu0 0.0
        %1012 = vmatmul.mubr.f32.gmra.mxu0 %v938
        %v1013 = vpop.f32.mrf.mxu0
        %v1014 = vadd.f32 0.0, %v1013
        %v1015 = vpop.f32.mrf.mxu0
        %1016 = vdwg.mxu0
        %v1017 = vmul.f32 %v1009, 0.25
        %v1018 = vmul.f32 %v1014, 0.25
        %v1019 = vmax.f32 %v928, %v1017
        %v1020 = vmax.f32 %v929, %v1018
        %v1021 = vsub.f32 %v928, %v1019
        %v1022 = vsub.f32 %v929, %v1020
        %v1023 = vmul.f32 %v1021, 1.442695
        %v1024 = vpow.pop %v1023
        %v1025 = vmul.f32 %v1022, 1.442695
        %v1026 = vpow.pop %v1025
        %v1027 = vsub.f32 %v1017, %v1019
        %v1028 = vsub.f32 %v1018, %v1020
        %v1029 = vmul.f32 %v1027, 1.442695
        %v1030 = vpow.pop %v1029
        %v1031 = vmul.f32 %v1028, 1.442695
        %v1032 = vpow.pop %v1031
        %v1033 = vadd.f32 %v1024, %v1030
        %v1034 = vadd.f32 %v1026, %v1032
        %v1035 = vrcp.pop %v1033
        %v1036 = vmul.f32 1.0, %v1035
        %v1037 = vrcp.pop %v1034
        %v1038 = vmul.f32 1.0, %v1037
        %v1039 = vmul.f32 %v1024, %v1036
        %v1040 = vmul.f32 %v1026, %v1038
        %vm1041 = vcmask 64512
        %v1043 = vsel %vm1041, %v1039, 0
        %v1046 = vsel %vm1041, %v1040, 0
        %1048 = vmatprep.subr.mxu0 0.0
        %1049 = vmatpush1.msra.mxu0 0.0
        %1050 = vmatprep.subr.mxu0 0.0
        %1051 = vmatpush1.msra.mxu0 0.0
        %1052 = vmatprep.subr.mxu0 0.0
        %1053 = vmatpush1.msra.mxu0 0.0
        %1054 = vmatprep.subr.mxu0 0.0
        %1055 = vmatpush1.msra.mxu0 0.0
        %1056 = vmatprep.subr.mxu0 0.0
        %1057 = vmatpush1.msra.mxu0 0.0
        %1058 = vmatprep.subr.mxu0 0.0
        %1059 = vmatpush1.msra.mxu0 0.0
        %1060 = vmatprep.subr.mxu0 0.0
        %1061 = vmatpush1.msra.mxu0 0.0
        %1062 = vmatprep.subr.mxu0 0.0
        %1063 = vmatpush1.msra.mxu0 0.0
        %1064 = vmatprep.subr.mxu0 0.0
        %1065 = vmatpush1.msra.mxu0 0.0
        %1066 = vmatprep.subr.mxu0 0.0
        %1067 = vmatpush1.msra.mxu0 0.0
        %1068 = vmatprep.subr.mxu0 0.0
        %1069 = vmatpush1.msra.mxu0 0.0
        %1070 = vmatprep.subr.mxu0 0.0
        %1071 = vmatpush1.msra.mxu0 0.0
        %1072 = vmatprep.subr.mxu0 0.0
        %1073 = vmatpush1.msra.mxu0 0.0
        %1074 = vmatprep.subr.mxu0 0.0
        %1075 = vmatpush1.msra.mxu0 0.0
        %1076 = vmatprep.subr.mxu0 0.0
        %1077 = vmatpush1.msra.mxu0 0.0
        %1078 = vmatprep.subr.mxu0 0.0
        %1079 = vmatpush1.msra.mxu0 %v703
        %1080 = vmatprep.subr.mxu0 0.0
        %1081 = vmatpush2.msra.mxu0 0.0
        %1082 = vmatprep.subr.mxu0 0.0
        %1083 = vmatpush2.msra.mxu0 0.0
        %1084 = vmatprep.subr.mxu0 0.0
        %1085 = vmatpush2.msra.mxu0 0.0
        %1086 = vmatprep.subr.mxu0 0.0
        %1087 = vmatpush2.msra.mxu0 0.0
        %1088 = vmatprep.subr.mxu0 0.0
        %1089 = vmatpush2.msra.mxu0 0.0
        %1090 = vmatprep.subr.mxu0 0.0
        %1091 = vmatpush2.msra.mxu0 0.0
        %1092 = vmatprep.subr.mxu0 0.0
        %1093 = vmatpush2.msra.mxu0 0.0
        %1094 = vmatprep.subr.mxu0 0.0
        %1095 = vmatpush2.msra.mxu0 0.0
        %1096 = vmatprep.subr.mxu0 0.0
        %1097 = vmatpush2.msra.mxu0 0.0
        %1098 = vmatprep.subr.mxu0 0.0
        %1099 = vmatpush2.msra.mxu0 0.0
        %1100 = vmatprep.subr.mxu0 0.0
        %1101 = vmatpush2.msra.mxu0 0.0
        %1102 = vmatprep.subr.mxu0 0.0
        %1103 = vmatpush2.msra.mxu0 0.0
        %1104 = vmatprep.subr.mxu0 0.0
        %1105 = vmatpush2.msra.mxu0 0.0
        %1106 = vmatprep.subr.mxu0 0.0
        %1107 = vmatpush2.msra.mxu0 0.0
        %1108 = vmatprep.subr.mxu0 0.0
        %1109 = vmatpush2.msra.mxu0 0.0
        %1110 = vmatprep.subr.mxu0 0.0
        %1111 = vmatpush2.msra.mxu0 0.0
        %1112 = vmatprep.mubr.f32.mxu0 0.0
        %1113 = vmatmul.mubr.f32.gmra.mxu0 %v1043
        %v1114 = vpop.f32.mrf.mxu0
        %v1115 = vadd.f32 0.0, %v1114
        %v1116 = vpop.f32.mrf.mxu0
        %1117 = vmatprep.mubr.f32.mxu0 0.0
        %1118 = vmatmul.mubr.f32.gmra.mxu0 %v1046
        %v1119 = vpop.f32.mrf.mxu0
        %v1120 = vadd.f32 0.0, %v1119
        %v1121 = vpop.f32.mrf.mxu0
        %1122 = vdwg.mxu0
        %v1123 = vmul.f32 %v1030, %v1036
        %v1124 = vmul.f32 %v1032, %v1038
        %1126 = vrot.lane.b32.xlu0 %v703, 112
        %v1127 = vpop.permute.xlu0 %1126
        %v1130 = vsel %vm1041, %v1123, 0
        %v1133 = vsel %vm1041, %v1124, 0
        %1135 = vmatprep.subr.mxu0 0.0
        %1136 = vmatpush1.msra.mxu0 0.0
        %1137 = vmatprep.subr.mxu0 0.0
        %1138 = vmatpush1.msra.mxu0 0.0
        %1139 = vmatprep.subr.mxu0 0.0
        %1140 = vmatpush1.msra.mxu0 0.0
        %1141 = vmatprep.subr.mxu0 0.0
        %1142 = vmatpush1.msra.mxu0 0.0
        %1143 = vmatprep.subr.mxu0 0.0
        %1144 = vmatpush1.msra.mxu0 0.0
        %1145 = vmatprep.subr.mxu0 0.0
        %1146 = vmatpush1.msra.mxu0 0.0
        %1147 = vmatprep.subr.mxu0 0.0
        %1148 = vmatpush1.msra.mxu0 0.0
        %1149 = vmatprep.subr.mxu0 0.0
        %1150 = vmatpush1.msra.mxu0 0.0
        %1151 = vmatprep.subr.mxu0 0.0
        %1152 = vmatpush1.msra.mxu0 0.0
        %1153 = vmatprep.subr.mxu0 0.0
        %1154 = vmatpush1.msra.mxu0 0.0
        %1155 = vmatprep.subr.mxu0 0.0
        %1156 = vmatpush1.msra.mxu0 0.0
        %1157 = vmatprep.subr.mxu0 0.0
        %1158 = vmatpush1.msra.mxu0 0.0
        %1159 = vmatprep.subr.mxu0 0.0
        %1160 = vmatpush1.msra.mxu0 0.0
        %1161 = vmatprep.subr.mxu0 0.0
        %1162 = vmatpush1.msra.mxu0 0.0
        %1163 = vmatprep.subr.mxu0 0.0
        %1164 = vmatpush1.msra.mxu0 0.0
        %1165 = vmatprep.subr.mxu0 0.0
        %1166 = vmatpush1.msra.mxu0 %v1127
        %1167 = vmatprep.subr.mxu0 0.0
        %1168 = vmatpush2.msra.mxu0 0.0
        %1169 = vmatprep.subr.mxu0 0.0
        %1170 = vmatpush2.msra.mxu0 0.0
        %1171 = vmatprep.subr.mxu0 0.0
        %1172 = vmatpush2.msra.mxu0 0.0
        %1173 = vmatprep.subr.mxu0 0.0
        %1174 = vmatpush2.msra.mxu0 0.0
        %1175 = vmatprep.subr.mxu0 0.0
        %1176 = vmatpush2.msra.mxu0 0.0
        %1177 = vmatprep.subr.mxu0 0.0
        %1178 = vmatpush2.msra.mxu0 0.0
        %1179 = vmatprep.subr.mxu0 0.0
        %1180 = vmatpush2.msra.mxu0 0.0
        %1181 = vmatprep.subr.mxu0 0.0
        %1182 = vmatpush2.msra.mxu0 0.0
        %1183 = vmatprep.subr.mxu0 0.0
        %1184 = vmatpush2.msra.mxu0 0.0
        %1185 = vmatprep.subr.mxu0 0.0
        %1186 = vmatpush2.msra.mxu0 0.0
        %1187 = vmatprep.subr.mxu0 0.0
        %1188 = vmatpush2.msra.mxu0 0.0
        %1189 = vmatprep.subr.mxu0 0.0
        %1190 = vmatpush2.msra.mxu0 0.0
        %1191 = vmatprep.subr.mxu0 0.0
        %1192 = vmatpush2.msra.mxu0 0.0
        %1193 = vmatprep.subr.mxu0 0.0
        %1194 = vmatpush2.msra.mxu0 0.0
        %1195 = vmatprep.subr.mxu0 0.0
        %1196 = vmatpush2.msra.mxu0 0.0
        %1197 = vmatprep.subr.mxu0 0.0
        %1198 = vmatpush2.msra.mxu0 0.0
        %1199 = vmatprep.mubr.f32.mxu0 0.0
        %1200 = vmatmul.mubr.f32.gmra.mxu0 %v1130
        %v1201 = vpop.f32.mrf.mxu0
        %v1202 = vadd.f32 0.0, %v1201
        %v1203 = vpop.f32.mrf.mxu0
        %1204 = vmatprep.mubr.f32.mxu0 0.0
        %1205 = vmatmul.mubr.f32.gmra.mxu0 %v1133
        %v1206 = vpop.f32.mrf.mxu0
        %v1207 = vadd.f32 0.0, %v1206
        %v1208 = vpop.f32.mrf.mxu0
        %1209 = vdwg.mxu0
        %1212 = vrot.lane.b32.xlu0 %v1202, 16
        %v1213 = vpop.permute.xlu0 %1212
        %1214 = vrot.lane.b32.xlu0 %v1207, 16
        %v1215 = vpop.permute.xlu0 %1214
        %v1218 = vsel %vm843, %v1115, %v1213
        %v1219 = vsel %vm843, %v1120, %v1215
        %v1220 = vadd.f32 %v537, %v1218
        %v1221 = vadd.f32 %v538, %v1219
        %v1222 = vld [vmem:[%s10] sm:$0x1]
        %v1223 = vld [vmem:[%s11] sm:$0x1]
        %v1224 = vsel %vm551, %v1220, 0.0
        %1225 = vadd.xlane.f32.xlu0 %v1224
        %v1226 = vpop.xlane.xlu0 %1225
        %v1227 = vsel %vm551, %v1221, 0.0
        %1228 = vadd.xlane.f32.xlu0 %v1227
        %v1229 = vpop.xlane.xlu0 %1228
        %v1230 = vmul.f32 %v1226, %v714
        %v1231 = vmul.f32 %v1229, %v714
        %v1232 = vsub.f32 %v1220, %v1230
        %v1233 = vsub.f32 %v1221, %v1231
        %v1234 = vmul.f32 %v1232, %v1232
        %v1235 = vmul.f32 %v1233, %v1233
        %v1236 = vsel %vm551, %v1234, 0.0
        %1237 = vadd.xlane.f32.xlu0 %v1236
        %v1238 = vpop.xlane.xlu0 %1237
        %v1239 = vsel %vm551, %v1235, 0.0
        %1240 = vadd.xlane.f32.xlu0 %v1239
        %v1241 = vpop.xlane.xlu0 %1240
        %v1242 = vmul.f32 %v1238, %v714
        %v1243 = vmul.f32 %v1241, %v714
        %v1244 = vadd.f32 %v1242, 1e-05
        %v1245 = vadd.f32 %v1243, 1e-05
        %v1246 = vrsqrt.pop %v1244
        %v1247 = vrsqrt.pop %v1245
        %v1248 = vmul.f32 %v1232, %v1246
        %v1249 = vmul.f32 %v1233, %v1247
        %v1251 = vlaneseq
        %v1252 = vshrl.u32 %v1251, 7
        %v1253 = vsub.s32 0, %v1252
        %v1254 = vrot.slane %v1222, %v1253
        %v1256 = vmul.f32 %v1248, %v1254
        %v1257 = vmul.f32 %v1249, %v1254
        %v1259 = vlaneseq
        %v1260 = vshrl.u32 %v1259, 7
        %v1261 = vsub.s32 0, %v1260
        %v1262 = vrot.slane %v1223, %v1261
        %v1264 = vadd.f32 %v1256, %v1262
        %v1265 = vadd.f32 %v1257, %v1262
        %v1266 = vld [vmem:[%s12] sm:$0xff]
        %v1267 = vld [vmem:[%s12 + $0x8] sm:$0xff]
        %v1268 = vld [vmem:[%s12 + $0x10] sm:$0xff]
        %v1269 = vld [vmem:[%s12 + $0x18] sm:$0xff]
        %v1270 = vld [vmem:[%s13] sm:$0x1]
        %v1272 = vlaneseq
        %v1273 = vshrl.u32 %v1272, 7
        %v1274 = vsub.s32 0, %v1273
        %v1275 = vrot.slane %v1270, %v1274
        %v1278 = vsel %vm551, %v1264, 0
        %v1281 = vsel %vm551, %v1265, 0
        %1283 = vmatprep.subr.mxu0 0.0
        %1284 = vmatpush1.msra.mxu0 0.0
        %1285 = vmatprep.subr.mxu0 0.0
        %1286 = vmatpush1.msra.mxu0 0.0
        %1287 = vmatprep.subr.mxu0 0.0
        %1288 = vmatpush1.msra.mxu0 0.0
        %1289 = vmatprep.subr.mxu0 0.0
        %1290 = vmatpush1.msra.mxu0 0.0
        %1291 = vmatprep.subr.mxu0 0.0
        %1292 = vmatpush1.msra.mxu0 0.0
        %1293 = vmatprep.subr.mxu0 0.0
        %1294 = vmatpush1.msra.mxu0 0.0
        %1295 = vmatprep.subr.mxu0 0.0
        %1296 = vmatpush1.msra.mxu0 0.0
        %1297 = vmatprep.subr.mxu0 0.0
        %1298 = vmatpush1.msra.mxu0 0.0
        %1299 = vmatprep.subr.mxu0 0.0
        %1300 = vmatpush1.msra.mxu0 0.0
        %1301 = vmatprep.subr.mxu0 0.0
        %1302 = vmatpush1.msra.mxu0 0.0
        %1303 = vmatprep.subr.mxu0 0.0
        %1304 = vmatpush1.msra.mxu0 0.0
        %1305 = vmatprep.subr.mxu0 0.0
        %1306 = vmatpush1.msra.mxu0 0.0
        %1307 = vmatprep.subr.mxu0 0.0
        %1308 = vmatpush1.msra.mxu0 %v1269
        %1309 = vmatprep.subr.mxu0 0.0
        %1310 = vmatpush1.msra.mxu0 %v1268
        %1311 = vmatprep.subr.mxu0 0.0
        %1312 = vmatpush1.msra.mxu0 %v1267
        %1313 = vmatprep.subr.mxu0 0.0
        %1314 = vmatpush1.msra.mxu0 %v1266
        %1315 = vmatprep.subr.mxu0 0.0
        %1316 = vmatpush2.msra.mxu0 0.0
        %1317 = vmatprep.subr.mxu0 0.0
        %1318 = vmatpush2.msra.mxu0 0.0
        %1319 = vmatprep.subr.mxu0 0.0
        %1320 = vmatpush2.msra.mxu0 0.0
        %1321 = vmatprep.subr.mxu0 0.0
        %1322 = vmatpush2.msra.mxu0 0.0
        %1323 = vmatprep.subr.mxu0 0.0
        %1324 = vmatpush2.msra.mxu0 0.0
        %1325 = vmatprep.subr.mxu0 0.0
        %1326 = vmatpush2.msra.mxu0 0.0
        %1327 = vmatprep.subr.mxu0 0.0
        %1328 = vmatpush2.msra.mxu0 0.0
        %1329 = vmatprep.subr.mxu0 0.0
        %1330 = vmatpush2.msra.mxu0 0.0
        %1331 = vmatprep.subr.mxu0 0.0
        %1332 = vmatpush2.msra.mxu0 0.0
        %1333 = vmatprep.subr.mxu0 0.0
        %1334 = vmatpush2.msra.mxu0 0.0
        %1335 = vmatprep.subr.mxu0 0.0
        %1336 = vmatpush2.msra.mxu0 0.0
        %1337 = vmatprep.subr.mxu0 0.0
        %1338 = vmatpush2.msra.mxu0 0.0
        %1339 = vmatprep.subr.mxu0 0.0
        %1340 = vmatpush2.msra.mxu0 0.0
        %1341 = vmatprep.subr.mxu0 0.0
        %1342 = vmatpush2.msra.mxu0 0.0
        %1343 = vmatprep.subr.mxu0 0.0
        %1344 = vmatpush2.msra.mxu0 0.0
        %1345 = vmatprep.subr.mxu0 0.0
        %1346 = vmatpush2.msra.mxu0 0.0
        %1347 = vmatprep.mubr.f32.mxu0 0.0
        %1348 = vmatmul.mubr.f32.gmra.mxu0 %v1278
        %v1349 = vpop.f32.mrf.mxu0
        %v1350 = vadd.f32 %v1275, %v1349
        %v1351 = vpop.f32.mrf.mxu0
        %1352 = vmatprep.mubr.f32.mxu0 0.0
        %1353 = vmatmul.mubr.f32.gmra.mxu0 %v1281
        %v1354 = vpop.f32.mrf.mxu0
        %v1355 = vadd.f32 %v1275, %v1354
        %v1356 = vpop.f32.mrf.mxu0
        %1357 = vdwg.mxu0
        %v1358 = vmul.f32 %v1350, 0.5
        %v1359 = vmul.f32 %v1355, 0.5
        %v1360 = vmul.f32 %v1350, 0.70710677
        %v1361 = vmul.f32 %v1355, 0.70710677
        %vm1362 = vcmp.ge.f32.partialorder %v1360, 0.0
        %vm1363 = vcmp.ge.f32.partialorder %v1361, 0.0
        %v1364 = vsel %vm1362, 1.0, -1.0
        %v1365 = vsel %vm1363, 1.0, -1.0
        %v1366 = vand.u32 2147483647, %v1360
        %v1367 = vand.u32 2147483647, %v1361
        %v1368 = vmul.f32 %v1366, 0.3275911
        %v1369 = vmul.f32 %v1367, 0.3275911
        %v1370 = vadd.f32 %v1368, 1.0
        %v1371 = vadd.f32 %v1369, 1.0
        %v1372 = vrcp.pop %v1370
        %v1373 = vmul.f32 1.0, %v1372
        %v1374 = vrcp.pop %v1371
        %v1375 = vmul.f32 1.0, %v1374
        %v1376 = vmul.f32 %v1373, 1.0614054
        %v1377 = vmul.f32 %v1375, 1.0614054
        %v1378 = vadd.f32 %v1376, -1.4531521
        %v1379 = vadd.f32 %v1377, -1.4531521
        %v1380 = vmul.f32 %v1378, %v1373
        %v1381 = vmul.f32 %v1379, %v1375
        %v1382 = vadd.f32 %v1380, 1.4214138
        %v1383 = vadd.f32 %v1381, 1.4214138
        %v1384 = vmul.f32 %v1382, %v1373
        %v1385 = vmul.f32 %v1383, %v1375
        %v1386 = vadd.f32 %v1384, -0.28449672
        %v1387 = vadd.f32 %v1385, -0.28449672
        %v1388 = vmul.f32 %v1386, %v1373
        %v1389 = vmul.f32 %v1387, %v1375
        %v1390 = vadd.f32 %v1388, 0.2548296
        %v1391 = vadd.f32 %v1389, 0.2548296
        %v1392 = vmul.f32 %v1390, %v1373
        %v1393 = vmul.f32 %v1391, %v1375
        %v1394 = vsub.f32 0.0, %v1366
        %v1395 = vsub.f32 0.0, %v1367
        %v1396 = vmul.f32 %v1394, %v1366
        %v1397 = vmul.f32 %v1395, %v1367
        %v1398 = vmul.f32 %v1396, 1.442695
        %v1399 = vpow.pop %v1398
        %v1400 = vmul.f32 %v1397, 1.442695
        %v1401 = vpow.pop %v1400
        %v1402 = vmul.f32 %v1392, %v1399
        %v1403 = vmul.f32 %v1393, %v1401
        %v1404 = vsub.f32 1.0, %v1402
        %v1405 = vsub.f32 1.0, %v1403
        %v1406 = vmul.f32 %v1364, %v1404
        %v1407 = vmul.f32 %v1365, %v1405
        %v1408 = vadd.f32 %v1406, 1.0
        %v1409 = vadd.f32 %v1407, 1.0
        %v1410 = vmul.f32 %v1358, %v1408
        %v1411 = vmul.f32 %v1359, %v1409
        %v1412 = vld [vmem:[%s14] sm:$0xff]
        %v1413 = vld [vmem:[%s14 + $0x8] sm:$0xff]
        %v1414 = vld [vmem:[%s14 + $0x10] sm:$0xff]
        %v1415 = vld [vmem:[%s14 + $0x18] sm:$0xff]
        %v1416 = vld [vmem:[%s14 + $0x20] sm:$0xff]
        %v1417 = vld [vmem:[%s14 + $0x28] sm:$0xff]
        %v1418 = vld [vmem:[%s14 + $0x30] sm:$0xff]
        %v1419 = vld [vmem:[%s14 + $0x38] sm:$0xff]
        %v1420 = vld [vmem:[%s14 + $0x40] sm:$0xff]
        %v1421 = vld [vmem:[%s14 + $0x48] sm:$0xff]
        %v1422 = vld [vmem:[%s14 + $0x50] sm:$0xff]
        %v1423 = vld [vmem:[%s14 + $0x58] sm:$0xff]
        %v1424 = vld [vmem:[%s14 + $0x60] sm:$0xff]
        %v1425 = vld [vmem:[%s14 + $0x68] sm:$0xff]
        %v1426 = vld [vmem:[%s14 + $0x70] sm:$0xff]
        %v1427 = vld [vmem:[%s14 + $0x78] sm:$0xff]
        %v1428 = vld [vmem:[%s15] sm:$0x1]
        %v1430 = vlaneseq
        %v1431 = vshrl.u32 %v1430, 7
        %v1432 = vsub.s32 0, %v1431
        %v1433 = vrot.slane %v1428, %v1432
        %1435 = vmatprep.subr.mxu0 0.0
        %1436 = vmatpush1.msra.mxu0 %v1427
        %1437 = vmatprep.subr.mxu0 0.0
        %1438 = vmatpush1.msra.mxu0 %v1426
        %1439 = vmatprep.subr.mxu0 0.0
        %1440 = vmatpush1.msra.mxu0 %v1425
        %1441 = vmatprep.subr.mxu0 0.0
        %1442 = vmatpush1.msra.mxu0 %v1424
        %1443 = vmatprep.subr.mxu0 0.0
        %1444 = vmatpush1.msra.mxu0 %v1423
        %1445 = vmatprep.subr.mxu0 0.0
        %1446 = vmatpush1.msra.mxu0 %v1422
        %1447 = vmatprep.subr.mxu0 0.0
        %1448 = vmatpush1.msra.mxu0 %v1421
        %1449 = vmatprep.subr.mxu0 0.0
        %1450 = vmatpush1.msra.mxu0 %v1420
        %1451 = vmatprep.subr.mxu0 0.0
        %1452 = vmatpush1.msra.mxu0 %v1419
        %1453 = vmatprep.subr.mxu0 0.0
        %1454 = vmatpush1.msra.mxu0 %v1418
        %1455 = vmatprep.subr.mxu0 0.0
        %1456 = vmatpush1.msra.mxu0 %v1417
        %1457 = vmatprep.subr.mxu0 0.0
        %1458 = vmatpush1.msra.mxu0 %v1416
        %1459 = vmatprep.subr.mxu0 0.0
        %1460 = vmatpush1.msra.mxu0 %v1415
        %1461 = vmatprep.subr.mxu0 0.0
        %1462 = vmatpush1.msra.mxu0 %v1414
        %1463 = vmatprep.subr.mxu0 0.0
        %1464 = vmatpush1.msra.mxu0 %v1413
        %1465 = vmatprep.subr.mxu0 0.0
        %1466 = vmatpush1.msra.mxu0 %v1412
        %1467 = vmatprep.subr.mxu0 0.0
        %1468 = vmatpush2.msra.mxu0 0.0
        %1469 = vmatprep.subr.mxu0 0.0
        %1470 = vmatpush2.msra.mxu0 0.0
        %1471 = vmatprep.subr.mxu0 0.0
        %1472 = vmatpush2.msra.mxu0 0.0
        %1473 = vmatprep.subr.mxu0 0.0
        %1474 = vmatpush2.msra.mxu0 0.0
        %1475 = vmatprep.subr.mxu0 0.0
        %1476 = vmatpush2.msra.mxu0 0.0
        %1477 = vmatprep.subr.mxu0 0.0
        %1478 = vmatpush2.msra.mxu0 0.0
        %1479 = vmatprep.subr.mxu0 0.0
        %1480 = vmatpush2.msra.mxu0 0.0
        %1481 = vmatprep.subr.mxu0 0.0
        %1482 = vmatpush2.msra.mxu0 0.0
        %1483 = vmatprep.subr.mxu0 0.0
        %1484 = vmatpush2.msra.mxu0 0.0
        %1485 = vmatprep.subr.mxu0 0.0
        %1486 = vmatpush2.msra.mxu0 0.0
        %1487 = vmatprep.subr.mxu0 0.0
        %1488 = vmatpush2.msra.mxu0 0.0
        %1489 = vmatprep.subr.mxu0 0.0
        %1490 = vmatpush2.msra.mxu0 0.0
        %1491 = vmatprep.subr.mxu0 0.0
        %1492 = vmatpush2.msra.mxu0 0.0
        %1493 = vmatprep.subr.mxu0 0.0
        %1494 = vmatpush2.msra.mxu0 0.0
        %1495 = vmatprep.subr.mxu0 0.0
        %1496 = vmatpush2.msra.mxu0 0.0
        %1497 = vmatprep.subr.mxu0 0.0
        %1498 = vmatpush2.msra.mxu0 0.0
        %1499 = vmatprep.mubr.f32.mxu0 0.0
        %1500 = vmatmul.mubr.f32.gmra.mxu0 %v1410
        %v1501 = vpop.f32.mrf.mxu0
        %v1502 = vadd.f32 %v1433, %v1501
        %v1503 = vpop.f32.mrf.mxu0
        %1504 = vmatprep.mubr.f32.mxu0 0.0
        %1505 = vmatmul.mubr.f32.gmra.mxu0 %v1411
        %v1506 = vpop.f32.mrf.mxu0
        %v1507 = vadd.f32 %v1433, %v1506
        %v1508 = vpop.f32.mrf.mxu0
        %1509 = vdwg.mxu0
        %v1510 = vadd.f32 %v1220, %v1502
        %v1511 = vadd.f32 %v1221, %v1507
        %v1512 = vsel %vm551, %v1510, 0.0
        %1513 = vadd.xlane.f32.xlu0 %v1512
        %v1514 = vpop.xlane.xlu0 %1513
        %v1515 = vsel %vm551, %v1511, 0.0
        %1516 = vadd.xlane.f32.xlu0 %v1515
        %v1517 = vpop.xlane.xlu0 %1516
        %v1518 = vmul.f32 %v1514, %v714
        %v1519 = vmul.f32 %v1517, %v714
        %v1520 = vsub.f32 %v1510, %v1518
        %v1521 = vsub.f32 %v1511, %v1519
        %v1522 = vmul.f32 %v1520, %v1520
        %v1523 = vmul.f32 %v1521, %v1521
        %v1524 = vsel %vm551, %v1522, 0.0
        %1525 = vadd.xlane.f32.xlu0 %v1524
        %v1526 = vpop.xlane.xlu0 %1525
        %v1527 = vsel %vm551, %v1523, 0.0
        %1528 = vadd.xlane.f32.xlu0 %v1527
        %v1529 = vpop.xlane.xlu0 %1528
        %v1530 = vmul.f32 %v1526, %v714
        %v1531 = vmul.f32 %v1529, %v714
        %v1532 = vadd.f32 %v1530, 1e-05
        %v1533 = vadd.f32 %v1531, 1e-05
        %v1534 = vrsqrt.pop %v1532
        %v1535 = vrsqrt.pop %v1533
        %v1536 = vmul.f32 %v1520, %v1534
        %v1537 = vmul.f32 %v1521, %v1535
        %v1538 = vmul.f32 %v1536, %v739
        %v1539 = vmul.f32 %v1537, %v739
        %v1540 = vadd.f32 %v1538, %v747
        %v1541 = vadd.f32 %v1539, %v747
        %v1543 = vsel %vm551, %v1540, 0
        %v1546 = vsel %vm551, %v1541, 0
        %1548 = vmatprep.subr.mxu0 0.0
        %1549 = vmatpush1.msra.mxu0 0.0
        %1550 = vmatprep.subr.mxu0 0.0
        %1551 = vmatpush1.msra.mxu0 0.0
        %1552 = vmatprep.subr.mxu0 0.0
        %1553 = vmatpush1.msra.mxu0 0.0
        %1554 = vmatprep.subr.mxu0 0.0
        %1555 = vmatpush1.msra.mxu0 0.0
        %1556 = vmatprep.subr.mxu0 0.0
        %1557 = vmatpush1.msra.mxu0 0.0
        %1558 = vmatprep.subr.mxu0 0.0
        %1559 = vmatpush1.msra.mxu0 0.0
        %1560 = vmatprep.subr.mxu0 0.0
        %1561 = vmatpush1.msra.mxu0 0.0
        %1562 = vmatprep.subr.mxu0 0.0
        %1563 = vmatpush1.msra.mxu0 0.0
        %1564 = vmatprep.subr.mxu0 0.0
        %1565 = vmatpush1.msra.mxu0 0.0
        %1566 = vmatprep.subr.mxu0 0.0
        %1567 = vmatpush1.msra.mxu0 0.0
        %1568 = vmatprep.subr.mxu0 0.0
        %1569 = vmatpush1.msra.mxu0 0.0
        %1570 = vmatprep.subr.mxu0 0.0
        %1571 = vmatpush1.msra.mxu0 0.0
        %1572 = vmatprep.subr.mxu0 0.0
        %1573 = vmatpush1.msra.mxu0 %v754
        %1574 = vmatprep.subr.mxu0 0.0
        %1575 = vmatpush1.msra.mxu0 %v753
        %1576 = vmatprep.subr.mxu0 0.0
        %1577 = vmatpush1.msra.mxu0 %v752
        %1578 = vmatprep.subr.mxu0 0.0
        %1579 = vmatpush1.msra.mxu0 %v751
        %1580 = vmatprep.subr.mxu0 0.0
        %1581 = vmatpush2.msra.mxu0 0.0
        %1582 = vmatprep.subr.mxu0 0.0
        %1583 = vmatpush2.msra.mxu0 0.0
        %1584 = vmatprep.subr.mxu0 0.0
        %1585 = vmatpush2.msra.mxu0 0.0
        %1586 = vmatprep.subr.mxu0 0.0
        %1587 = vmatpush2.msra.mxu0 0.0
        %1588 = vmatprep.subr.mxu0 0.0
        %1589 = vmatpush2.msra.mxu0 0.0
        %1590 = vmatprep.subr.mxu0 0.0
        %1591 = vmatpush2.msra.mxu0 0.0
        %1592 = vmatprep.subr.mxu0 0.0
        %1593 = vmatpush2.msra.mxu0 0.0
        %1594 = vmatprep.subr.mxu0 0.0
        %1595 = vmatpush2.msra.mxu0 0.0
        %1596 = vmatprep.subr.mxu0 0.0
        %1597 = vmatpush2.msra.mxu0 0.0
        %1598 = vmatprep.subr.mxu0 0.0
        %1599 = vmatpush2.msra.mxu0 0.0
        %1600 = vmatprep.subr.mxu0 0.0
        %1601 = vmatpush2.msra.mxu0 0.0
        %1602 = vmatprep.subr.mxu0 0.0
        %1603 = vmatpush2.msra.mxu0 0.0
        %1604 = vmatprep.subr.mxu0 0.0
        %1605 = vmatpush2.msra.mxu0 0.0
        %1606 = vmatprep.subr.mxu0 0.0
        %1607 = vmatpush2.msra.mxu0 0.0
        %1608 = vmatprep.subr.mxu0 0.0
        %1609 = vmatpush2.msra.mxu0 0.0
        %1610 = vmatprep.subr.mxu0 0.0
        %1611 = vmatpush2.msra.mxu0 0.0
        %1612 = vmatprep.mubr.f32.mxu0 0.0
        %1613 = vmatmul.mubr.f32.gmra.mxu0 %v1543
        %v1614 = vpop.f32.mrf.mxu0
        %v1615 = vadd.f32 %v760, %v1614
        %v1616 = vpop.f32.mrf.mxu0
        %1617 = vmatprep.mubr.f32.mxu0 0.0
        %1618 = vmatmul.mubr.f32.gmra.mxu0 %v1546
        %v1619 = vpop.f32.mrf.mxu0
        %v1620 = vadd.f32 %v760, %v1619
        %v1621 = vpop.f32.mrf.mxu0
        %1622 = vdwg.mxu0
        %v1624 = vsel %vm843, %v1615, 0
        %v1627 = vsel %vm843, %v1620, 0
        %1629 = vmatprep.subr.mxu0 0.0
        %1630 = vmatpush1.xpose.msra.mxu0 0.0
        %1631 = vmatprep.subr.mxu0 0.0
        %1632 = vmatpush1.xpose.msra.mxu0 0.0
        %1633 = vmatprep.subr.mxu0 0.0
        %1634 = vmatpush1.xpose.msra.mxu0 0.0
        %1635 = vmatprep.subr.mxu0 0.0
        %1636 = vmatpush1.xpose.msra.mxu0 0.0
        %1637 = vmatprep.subr.mxu0 0.0
        %1638 = vmatpush1.xpose.msra.mxu0 0.0
        %1639 = vmatprep.subr.mxu0 0.0
        %1640 = vmatpush1.xpose.msra.mxu0 0.0
        %1641 = vmatprep.subr.mxu0 0.0
        %1642 = vmatpush1.xpose.msra.mxu0 0.0
        %1643 = vmatprep.subr.mxu0 0.0
        %1644 = vmatpush1.xpose.msra.mxu0 0.0
        %1645 = vmatprep.subr.mxu0 0.0
        %1646 = vmatpush1.xpose.msra.mxu0 0.0
        %1647 = vmatprep.subr.mxu0 0.0
        %1648 = vmatpush1.xpose.msra.mxu0 0.0
        %1649 = vmatprep.subr.mxu0 0.0
        %1650 = vmatpush1.xpose.msra.mxu0 0.0
        %1651 = vmatprep.subr.mxu0 0.0
        %1652 = vmatpush1.xpose.msra.mxu0 0.0
        %1653 = vmatprep.subr.mxu0 0.0
        %1654 = vmatpush1.xpose.msra.mxu0 0.0
        %1655 = vmatprep.subr.mxu0 0.0
        %1656 = vmatpush1.xpose.msra.mxu0 0.0
        %1657 = vmatprep.subr.mxu0 0.0
        %1658 = vmatpush1.xpose.msra.mxu0 0.0
        %1659 = vmatprep.subr.mxu0 0.0
        %1660 = vmatpush1.xpose.msra.mxu0 %v851
        %1661 = vmatprep.subr.mxu0 0.0
        %1662 = vmatpush2.xpose.msra.mxu0 0.0
        %1663 = vmatprep.subr.mxu0 0.0
        %1664 = vmatpush2.xpose.msra.mxu0 0.0
        %1665 = vmatprep.subr.mxu0 0.0
        %1666 = vmatpush2.xpose.msra.mxu0 0.0
        %1667 = vmatprep.subr.mxu0 0.0
        %1668 = vmatpush2.xpose.msra.mxu0 0.0
        %1669 = vmatprep.subr.mxu0 0.0
        %1670 = vmatpush2.xpose.msra.mxu0 0.0
        %1671 = vmatprep.subr.mxu0 0.0
        %1672 = vmatpush2.xpose.msra.mxu0 0.0
        %1673 = vmatprep.subr.mxu0 0.0
        %1674 = vmatpush2.xpose.msra.mxu0 0.0
        %1675 = vmatprep.subr.mxu0 0.0
        %1676 = vmatpush2.xpose.msra.mxu0 0.0
        %1677 = vmatprep.subr.mxu0 0.0
        %1678 = vmatpush2.xpose.msra.mxu0 0.0
        %1679 = vmatprep.subr.mxu0 0.0
        %1680 = vmatpush2.xpose.msra.mxu0 0.0
        %1681 = vmatprep.subr.mxu0 0.0
        %1682 = vmatpush2.xpose.msra.mxu0 0.0
        %1683 = vmatprep.subr.mxu0 0.0
        %1684 = vmatpush2.xpose.msra.mxu0 0.0
        %1685 = vmatprep.subr.mxu0 0.0
        %1686 = vmatpush2.xpose.msra.mxu0 0.0
        %1687 = vmatprep.subr.mxu0 0.0
        %1688 = vmatpush2.xpose.msra.mxu0 0.0
        %1689 = vmatprep.subr.mxu0 0.0
        %1690 = vmatpush2.xpose.msra.mxu0 0.0
        %1691 = vmatprep.subr.mxu0 0.0
        %1692 = vmatpush2.xpose.msra.mxu0 0.0
        %1693 = vmatprep.mubr.f32.mxu0 0.0
        %1694 = vmatmul.mubr.f32.gmra.mxu0 %v1624
        %v1695 = vpop.f32.mrf.mxu0
        %v1696 = vadd.f32 0.0, %v1695
        %v1697 = vpop.f32.mrf.mxu0
        %1698 = vmatprep.mubr.f32.mxu0 0.0
        %1699 = vmatmul.mubr.f32.gmra.mxu0 %v1627
        %v1700 = vpop.f32.mrf.mxu0
        %v1701 = vadd.f32 0.0, %v1700
        %v1702 = vpop.f32.mrf.mxu0
        %1703 = vdwg.mxu0
        %v1704 = vmul.f32 %v1696, 0.25
        %v1705 = vmul.f32 %v1701, 0.25
        %1706 = vrot.lane.b32.xlu0 %v1615, 112
        %v1707 = vpop.permute.xlu0 %1706
        %1708 = vrot.lane.b32.xlu0 %v1620, 112
        %v1709 = vpop.permute.xlu0 %1708
        %v1710 = vsel %vm843, %v1707, 0
        %v1712 = vsel %vm843, %v1709, 0
        %1714 = vmatprep.subr.mxu0 0.0
        %1715 = vmatpush1.xpose.msra.mxu0 0.0
        %1716 = vmatprep.subr.mxu0 0.0
        %1717 = vmatpush1.xpose.msra.mxu0 0.0
        %1718 = vmatprep.subr.mxu0 0.0
        %1719 = vmatpush1.xpose.msra.mxu0 0.0
        %1720 = vmatprep.subr.mxu0 0.0
        %1721 = vmatpush1.xpose.msra.mxu0 0.0
        %1722 = vmatprep.subr.mxu0 0.0
        %1723 = vmatpush1.xpose.msra.mxu0 0.0
        %1724 = vmatprep.subr.mxu0 0.0
        %1725 = vmatpush1.xpose.msra.mxu0 0.0
        %1726 = vmatprep.subr.mxu0 0.0
        %1727 = vmatpush1.xpose.msra.mxu0 0.0
        %1728 = vmatprep.subr.mxu0 0.0
        %1729 = vmatpush1.xpose.msra.mxu0 0.0
        %1730 = vmatprep.subr.mxu0 0.0
        %1731 = vmatpush1.xpose.msra.mxu0 0.0
        %1732 = vmatprep.subr.mxu0 0.0
        %1733 = vmatpush1.xpose.msra.mxu0 0.0
        %1734 = vmatprep.subr.mxu0 0.0
        %1735 = vmatpush1.xpose.msra.mxu0 0.0
        %1736 = vmatprep.subr.mxu0 0.0
        %1737 = vmatpush1.xpose.msra.mxu0 0.0
        %1738 = vmatprep.subr.mxu0 0.0
        %1739 = vmatpush1.xpose.msra.mxu0 0.0
        %1740 = vmatprep.subr.mxu0 0.0
        %1741 = vmatpush1.xpose.msra.mxu0 0.0
        %1742 = vmatprep.subr.mxu0 0.0
        %1743 = vmatpush1.xpose.msra.mxu0 0.0
        %1744 = vmatprep.subr.mxu0 0.0
        %1745 = vmatpush1.xpose.msra.mxu0 %v940
        %1746 = vmatprep.subr.mxu0 0.0
        %1747 = vmatpush2.xpose.msra.mxu0 0.0
        %1748 = vmatprep.subr.mxu0 0.0
        %1749 = vmatpush2.xpose.msra.mxu0 0.0
        %1750 = vmatprep.subr.mxu0 0.0
        %1751 = vmatpush2.xpose.msra.mxu0 0.0
        %1752 = vmatprep.subr.mxu0 0.0
        %1753 = vmatpush2.xpose.msra.mxu0 0.0
        %1754 = vmatprep.subr.mxu0 0.0
        %1755 = vmatpush2.xpose.msra.mxu0 0.0
        %1756 = vmatprep.subr.mxu0 0.0
        %1757 = vmatpush2.xpose.msra.mxu0 0.0
        %1758 = vmatprep.subr.mxu0 0.0
        %1759 = vmatpush2.xpose.msra.mxu0 0.0
        %1760 = vmatprep.subr.mxu0 0.0
        %1761 = vmatpush2.xpose.msra.mxu0 0.0
        %1762 = vmatprep.subr.mxu0 0.0
        %1763 = vmatpush2.xpose.msra.mxu0 0.0
        %1764 = vmatprep.subr.mxu0 0.0
        %1765 = vmatpush2.xpose.msra.mxu0 0.0
        %1766 = vmatprep.subr.mxu0 0.0
        %1767 = vmatpush2.xpose.msra.mxu0 0.0
        %1768 = vmatprep.subr.mxu0 0.0
        %1769 = vmatpush2.xpose.msra.mxu0 0.0
        %1770 = vmatprep.subr.mxu0 0.0
        %1771 = vmatpush2.xpose.msra.mxu0 0.0
        %1772 = vmatprep.subr.mxu0 0.0
        %1773 = vmatpush2.xpose.msra.mxu0 0.0
        %1774 = vmatprep.subr.mxu0 0.0
        %1775 = vmatpush2.xpose.msra.mxu0 0.0
        %1776 = vmatprep.subr.mxu0 0.0
        %1777 = vmatpush2.xpose.msra.mxu0 0.0
        %1778 = vmatprep.mubr.f32.mxu0 0.0
        %1779 = vmatmul.mubr.f32.gmra.mxu0 %v1710
        %v1780 = vpop.f32.mrf.mxu0
        %v1781 = vadd.f32 0.0, %v1780
        %v1782 = vpop.f32.mrf.mxu0
        %1783 = vmatprep.mubr.f32.mxu0 0.0
        %1784 = vmatmul.mubr.f32.gmra.mxu0 %v1712
        %v1785 = vpop.f32.mrf.mxu0
        %v1786 = vadd.f32 0.0, %v1785
        %v1787 = vpop.f32.mrf.mxu0
        %1788 = vdwg.mxu0
        %v1789 = vmul.f32 %v1781, 0.25
        %v1790 = vmul.f32 %v1786, 0.25
        %v1791 = vmax.f32 %v1704, %v1789
        %v1792 = vmax.f32 %v1705, %v1790
        %v1793 = vsub.f32 %v1704, %v1791
        %v1794 = vsub.f32 %v1705, %v1792
        %v1795 = vmul.f32 %v1793, 1.442695
        %v1796 = vpow.pop %v1795
        %v1797 = vmul.f32 %v1794, 1.442695
        %v1798 = vpow.pop %v1797
        %v1799 = vsub.f32 %v1789, %v1791
        %v1800 = vsub.f32 %v1790, %v1792
        %v1801 = vmul.f32 %v1799, 1.442695
        %v1802 = vpow.pop %v1801
        %v1803 = vmul.f32 %v1800, 1.442695
        %v1804 = vpow.pop %v1803
        %v1805 = vadd.f32 %v1796, %v1802
        %v1806 = vadd.f32 %v1798, %v1804
        %v1807 = vrcp.pop %v1805
        %v1808 = vmul.f32 1.0, %v1807
        %v1809 = vrcp.pop %v1806
        %v1810 = vmul.f32 1.0, %v1809
        %v1811 = vmul.f32 %v1796, %v1808
        %v1812 = vmul.f32 %v1798, %v1810
        %v1814 = vsel %vm1041, %v1811, 0
        %v1817 = vsel %vm1041, %v1812, 0
        %1819 = vmatprep.subr.mxu0 0.0
        %1820 = vmatpush1.msra.mxu0 0.0
        %1821 = vmatprep.subr.mxu0 0.0
        %1822 = vmatpush1.msra.mxu0 0.0
        %1823 = vmatprep.subr.mxu0 0.0
        %1824 = vmatpush1.msra.mxu0 0.0
        %1825 = vmatprep.subr.mxu0 0.0
        %1826 = vmatpush1.msra.mxu0 0.0
        %1827 = vmatprep.subr.mxu0 0.0
        %1828 = vmatpush1.msra.mxu0 0.0
        %1829 = vmatprep.subr.mxu0 0.0
        %1830 = vmatpush1.msra.mxu0 0.0
        %1831 = vmatprep.subr.mxu0 0.0
        %1832 = vmatpush1.msra.mxu0 0.0
        %1833 = vmatprep.subr.mxu0 0.0
        %1834 = vmatpush1.msra.mxu0 0.0
        %1835 = vmatprep.subr.mxu0 0.0
        %1836 = vmatpush1.msra.mxu0 0.0
        %1837 = vmatprep.subr.mxu0 0.0
        %1838 = vmatpush1.msra.mxu0 0.0
        %1839 = vmatprep.subr.mxu0 0.0
        %1840 = vmatpush1.msra.mxu0 0.0
        %1841 = vmatprep.subr.mxu0 0.0
        %1842 = vmatpush1.msra.mxu0 0.0
        %1843 = vmatprep.subr.mxu0 0.0
        %1844 = vmatpush1.msra.mxu0 0.0
        %1845 = vmatprep.subr.mxu0 0.0
        %1846 = vmatpush1.msra.mxu0 0.0
        %1847 = vmatprep.subr.mxu0 0.0
        %1848 = vmatpush1.msra.mxu0 0.0
        %1849 = vmatprep.subr.mxu0 0.0
        %1850 = vmatpush1.msra.mxu0 %v703
        %1851 = vmatprep.subr.mxu0 0.0
        %1852 = vmatpush2.msra.mxu0 0.0
        %1853 = vmatprep.subr.mxu0 0.0
        %1854 = vmatpush2.msra.mxu0 0.0
        %1855 = vmatprep.subr.mxu0 0.0
        %1856 = vmatpush2.msra.mxu0 0.0
        %1857 = vmatprep.subr.mxu0 0.0
        %1858 = vmatpush2.msra.mxu0 0.0
        %1859 = vmatprep.subr.mxu0 0.0
        %1860 = vmatpush2.msra.mxu0 0.0
        %1861 = vmatprep.subr.mxu0 0.0
        %1862 = vmatpush2.msra.mxu0 0.0
        %1863 = vmatprep.subr.mxu0 0.0
        %1864 = vmatpush2.msra.mxu0 0.0
        %1865 = vmatprep.subr.mxu0 0.0
        %1866 = vmatpush2.msra.mxu0 0.0
        %1867 = vmatprep.subr.mxu0 0.0
        %1868 = vmatpush2.msra.mxu0 0.0
        %1869 = vmatprep.subr.mxu0 0.0
        %1870 = vmatpush2.msra.mxu0 0.0
        %1871 = vmatprep.subr.mxu0 0.0
        %1872 = vmatpush2.msra.mxu0 0.0
        %1873 = vmatprep.subr.mxu0 0.0
        %1874 = vmatpush2.msra.mxu0 0.0
        %1875 = vmatprep.subr.mxu0 0.0
        %1876 = vmatpush2.msra.mxu0 0.0
        %1877 = vmatprep.subr.mxu0 0.0
        %1878 = vmatpush2.msra.mxu0 0.0
        %1879 = vmatprep.subr.mxu0 0.0
        %1880 = vmatpush2.msra.mxu0 0.0
        %1881 = vmatprep.subr.mxu0 0.0
        %1882 = vmatpush2.msra.mxu0 0.0
        %1883 = vmatprep.mubr.f32.mxu0 0.0
        %1884 = vmatmul.mubr.f32.gmra.mxu0 %v1814
        %v1885 = vpop.f32.mrf.mxu0
        %v1886 = vadd.f32 0.0, %v1885
        %v1887 = vpop.f32.mrf.mxu0
        %1888 = vmatprep.mubr.f32.mxu0 0.0
        %1889 = vmatmul.mubr.f32.gmra.mxu0 %v1817
        %v1890 = vpop.f32.mrf.mxu0
        %v1891 = vadd.f32 0.0, %v1890
        %v1892 = vpop.f32.mrf.mxu0
        %1893 = vdwg.mxu0
        %v1894 = vmul.f32 %v1802, %v1808
        %v1895 = vmul.f32 %v1804, %v1810
        %v1897 = vsel %vm1041, %v1894, 0
        %v1900 = vsel %vm1041, %v1895, 0
        %1902 = vmatprep.subr.mxu0 0.0
        %1903 = vmatpush1.msra.mxu0 0.0
        %1904 = vmatprep.subr.mxu0 0.0
        %1905 = vmatpush1.msra.mxu0 0.0
        %1906 = vmatprep.subr.mxu0 0.0
        %1907 = vmatpush1.msra.mxu0 0.0
        %1908 = vmatprep.subr.mxu0 0.0
        %1909 = vmatpush1.msra.mxu0 0.0
        %1910 = vmatprep.subr.mxu0 0.0
        %1911 = vmatpush1.msra.mxu0 0.0
        %1912 = vmatprep.subr.mxu0 0.0
        %1913 = vmatpush1.msra.mxu0 0.0
        %1914 = vmatprep.subr.mxu0 0.0
        %1915 = vmatpush1.msra.mxu0 0.0
        %1916 = vmatprep.subr.mxu0 0.0
        %1917 = vmatpush1.msra.mxu0 0.0
        %1918 = vmatprep.subr.mxu0 0.0
        %1919 = vmatpush1.msra.mxu0 0.0
        %1920 = vmatprep.subr.mxu0 0.0
        %1921 = vmatpush1.msra.mxu0 0.0
        %1922 = vmatprep.subr.mxu0 0.0
        %1923 = vmatpush1.msra.mxu0 0.0
        %1924 = vmatprep.subr.mxu0 0.0
        %1925 = vmatpush1.msra.mxu0 0.0
        %1926 = vmatprep.subr.mxu0 0.0
        %1927 = vmatpush1.msra.mxu0 0.0
        %1928 = vmatprep.subr.mxu0 0.0
        %1929 = vmatpush1.msra.mxu0 0.0
        %1930 = vmatprep.subr.mxu0 0.0
        %1931 = vmatpush1.msra.mxu0 0.0
        %1932 = vmatprep.subr.mxu0 0.0
        %1933 = vmatpush1.msra.mxu0 %v1127
        %1934 = vmatprep.subr.mxu0 0.0
        %1935 = vmatpush2.msra.mxu0 0.0
        %1936 = vmatprep.subr.mxu0 0.0
        %1937 = vmatpush2.msra.mxu0 0.0
        %1938 = vmatprep.subr.mxu0 0.0
        %1939 = vmatpush2.msra.mxu0 0.0
        %1940 = vmatprep.subr.mxu0 0.0
        %1941 = vmatpush2.msra.mxu0 0.0
        %1942 = vmatprep.subr.mxu0 0.0
        %1943 = vmatpush2.msra.mxu0 0.0
        %1944 = vmatprep.subr.mxu0 0.0
        %1945 = vmatpush2.msra.mxu0 0.0
        %1946 = vmatprep.subr.mxu0 0.0
        %1947 = vmatpush2.msra.mxu0 0.0
        %1948 = vmatprep.subr.mxu0 0.0
        %1949 = vmatpush2.msra.mxu0 0.0
        %1950 = vmatprep.subr.mxu0 0.0
        %1951 = vmatpush2.msra.mxu0 0.0
        %1952 = vmatprep.subr.mxu0 0.0
        %1953 = vmatpush2.msra.mxu0 0.0
        %1954 = vmatprep.subr.mxu0 0.0
        %1955 = vmatpush2.msra.mxu0 0.0
        %1956 = vmatprep.subr.mxu0 0.0
        %1957 = vmatpush2.msra.mxu0 0.0
        %1958 = vmatprep.subr.mxu0 0.0
        %1959 = vmatpush2.msra.mxu0 0.0
        %1960 = vmatprep.subr.mxu0 0.0
        %1961 = vmatpush2.msra.mxu0 0.0
        %1962 = vmatprep.subr.mxu0 0.0
        %1963 = vmatpush2.msra.mxu0 0.0
        %1964 = vmatprep.subr.mxu0 0.0
        %1965 = vmatpush2.msra.mxu0 0.0
        %1966 = vmatprep.mubr.f32.mxu0 0.0
        %1967 = vmatmul.mubr.f32.gmra.mxu0 %v1897
        %v1968 = vpop.f32.mrf.mxu0
        %v1969 = vadd.f32 0.0, %v1968
        %v1970 = vpop.f32.mrf.mxu0
        %1971 = vmatprep.mubr.f32.mxu0 0.0
        %1972 = vmatmul.mubr.f32.gmra.mxu0 %v1900
        %v1973 = vpop.f32.mrf.mxu0
        %v1974 = vadd.f32 0.0, %v1973
        %v1975 = vpop.f32.mrf.mxu0
        %1976 = vdwg.mxu0
        %1979 = vrot.lane.b32.xlu0 %v1969, 16
        %v1980 = vpop.permute.xlu0 %1979
        %1981 = vrot.lane.b32.xlu0 %v1974, 16
        %v1982 = vpop.permute.xlu0 %1981
        %v1985 = vsel %vm843, %v1886, %v1980
        %v1986 = vsel %vm843, %v1891, %v1982
        %v1987 = vadd.f32 %v1510, %v1985
        %v1988 = vadd.f32 %v1511, %v1986
        %v1989 = vsel %vm551, %v1987, 0.0
        %1990 = vadd.xlane.f32.xlu0 %v1989
        %v1991 = vpop.xlane.xlu0 %1990
        %v1992 = vsel %vm551, %v1988, 0.0
        %1993 = vadd.xlane.f32.xlu0 %v1992
        %v1994 = vpop.xlane.xlu0 %1993
        %v1995 = vmul.f32 %v1991, %v714
        %v1996 = vmul.f32 %v1994, %v714
        %v1997 = vsub.f32 %v1987, %v1995
        %v1998 = vsub.f32 %v1988, %v1996
        %v1999 = vmul.f32 %v1997, %v1997
        %v2000 = vmul.f32 %v1998, %v1998
        %v2001 = vsel %vm551, %v1999, 0.0
        %2002 = vadd.xlane.f32.xlu0 %v2001
        %v2003 = vpop.xlane.xlu0 %2002
        %v2004 = vsel %vm551, %v2000, 0.0
        %2005 = vadd.xlane.f32.xlu0 %v2004
        %v2006 = vpop.xlane.xlu0 %2005
        %v2007 = vmul.f32 %v2003, %v714
        %v2008 = vmul.f32 %v2006, %v714
        %v2009 = vadd.f32 %v2007, 1e-05
        %v2010 = vadd.f32 %v2008, 1e-05
        %v2011 = vrsqrt.pop %v2009
        %v2012 = vrsqrt.pop %v2010
        %v2013 = vmul.f32 %v1997, %v2011
        %v2014 = vmul.f32 %v1998, %v2012
        %v2015 = vmul.f32 %v2013, %v1254
        %v2016 = vmul.f32 %v2014, %v1254
        %v2017 = vadd.f32 %v2015, %v1262
        %v2018 = vadd.f32 %v2016, %v1262
        %v2020 = vsel %vm551, %v2017, 0
        %v2023 = vsel %vm551, %v2018, 0
        %2025 = vmatprep.subr.mxu0 0.0
        %2026 = vmatpush1.msra.mxu0 0.0
        %2027 = vmatprep.subr.mxu0 0.0
        %2028 = vmatpush1.msra.mxu0 0.0
        %2029 = vmatprep.subr.mxu0 0.0
        %2030 = vmatpush1.msra.mxu0 0.0
        %2031 = vmatprep.subr.mxu0 0.0
        %2032 = vmatpush1.msra.mxu0 0.0
        %2033 = vmatprep.subr.mxu0 0.0
        %2034 = vmatpush1.msra.mxu0 0.0
        %2035 = vmatprep.subr.mxu0 0.0
        %2036 = vmatpush1.msra.mxu0 0.0
        %2037 = vmatprep.subr.mxu0 0.0
        %2038 = vmatpush1.msra.mxu0 0.0
        %2039 = vmatprep.subr.mxu0 0.0
        %2040 = vmatpush1.msra.mxu0 0.0
        %2041 = vmatprep.subr.mxu0 0.0
        %2042 = vmatpush1.msra.mxu0 0.0
        %2043 = vmatprep.subr.mxu0 0.0
        %2044 = vmatpush1.msra.mxu0 0.0
        %2045 = vmatprep.subr.mxu0 0.0
        %2046 = vmatpush1.msra.mxu0 0.0
        %2047 = vmatprep.subr.mxu0 0.0
        %2048 = vmatpush1.msra.mxu0 0.0
        %2049 = vmatprep.subr.mxu0 0.0
        %2050 = vmatpush1.msra.mxu0 %v1269
        %2051 = vmatprep.subr.mxu0 0.0
        %2052 = vmatpush1.msra.mxu0 %v1268
        %2053 = vmatprep.subr.mxu0 0.0
        %2054 = vmatpush1.msra.mxu0 %v1267
        %2055 = vmatprep.subr.mxu0 0.0
        %2056 = vmatpush1.msra.mxu0 %v1266
        %2057 = vmatprep.subr.mxu0 0.0
        %2058 = vmatpush2.msra.mxu0 0.0
        %2059 = vmatprep.subr.mxu0 0.0
        %2060 = vmatpush2.msra.mxu0 0.0
        %2061 = vmatprep.subr.mxu0 0.0
        %2062 = vmatpush2.msra.mxu0 0.0
        %2063 = vmatprep.subr.mxu0 0.0
        %2064 = vmatpush2.msra.mxu0 0.0
        %2065 = vmatprep.subr.mxu0 0.0
        %2066 = vmatpush2.msra.mxu0 0.0
        %2067 = vmatprep.subr.mxu0 0.0
        %2068 = vmatpush2.msra.mxu0 0.0
        %2069 = vmatprep.subr.mxu0 0.0
        %2070 = vmatpush2.msra.mxu0 0.0
        %2071 = vmatprep.subr.mxu0 0.0
        %2072 = vmatpush2.msra.mxu0 0.0
        %2073 = vmatprep.subr.mxu0 0.0
        %2074 = vmatpush2.msra.mxu0 0.0
        %2075 = vmatprep.subr.mxu0 0.0
        %2076 = vmatpush2.msra.mxu0 0.0
        %2077 = vmatprep.subr.mxu0 0.0
        %2078 = vmatpush2.msra.mxu0 0.0
        %2079 = vmatprep.subr.mxu0 0.0
        %2080 = vmatpush2.msra.mxu0 0.0
        %2081 = vmatprep.subr.mxu0 0.0
        %2082 = vmatpush2.msra.mxu0 0.0
        %2083 = vmatprep.subr.mxu0 0.0
        %2084 = vmatpush2.msra.mxu0 0.0
        %2085 = vmatprep.subr.mxu0 0.0
        %2086 = vmatpush2.msra.mxu0 0.0
        %2087 = vmatprep.subr.mxu0 0.0
        %2088 = vmatpush2.msra.mxu0 0.0
        %2089 = vmatprep.mubr.f32.mxu0 0.0
        %2090 = vmatmul.mubr.f32.gmra.mxu0 %v2020
        %v2091 = vpop.f32.mrf.mxu0
        %v2092 = vadd.f32 %v1275, %v2091
        %v2093 = vpop.f32.mrf.mxu0
        %2094 = vmatprep.mubr.f32.mxu0 0.0
        %2095 = vmatmul.mubr.f32.gmra.mxu0 %v2023
        %v2096 = vpop.f32.mrf.mxu0
        %v2097 = vadd.f32 %v1275, %v2096
        %v2098 = vpop.f32.mrf.mxu0
        %2099 = vdwg.mxu0
        %v2100 = vmul.f32 %v2092, 0.5
        %v2101 = vmul.f32 %v2097, 0.5
        %v2102 = vmul.f32 %v2092, 0.70710677
        %v2103 = vmul.f32 %v2097, 0.70710677
        %vm2104 = vcmp.ge.f32.partialorder %v2102, 0.0
        %vm2105 = vcmp.ge.f32.partialorder %v2103, 0.0
        %v2106 = vsel %vm2104, 1.0, -1.0
        %v2107 = vsel %vm2105, 1.0, -1.0
        %v2108 = vand.u32 2147483647, %v2102
        %v2109 = vand.u32 2147483647, %v2103
        %v2110 = vmul.f32 %v2108, 0.3275911
        %v2111 = vmul.f32 %v2109, 0.3275911
        %v2112 = vadd.f32 %v2110, 1.0
        %v2113 = vadd.f32 %v2111, 1.0
        %v2114 = vrcp.pop %v2112
        %v2115 = vmul.f32 1.0, %v2114
        %v2116 = vrcp.pop %v2113
        %v2117 = vmul.f32 1.0, %v2116
        %v2118 = vmul.f32 %v2115, 1.0614054
        %v2119 = vmul.f32 %v2117, 1.0614054
        %v2120 = vadd.f32 %v2118, -1.4531521
        %v2121 = vadd.f32 %v2119, -1.4531521
        %v2122 = vmul.f32 %v2120, %v2115
        %v2123 = vmul.f32 %v2121, %v2117
        %v2124 = vadd.f32 %v2122, 1.4214138
        %v2125 = vadd.f32 %v2123, 1.4214138
        %v2126 = vmul.f32 %v2124, %v2115
        %v2127 = vmul.f32 %v2125, %v2117
        %v2128 = vadd.f32 %v2126, -0.28449672
        %v2129 = vadd.f32 %v2127, -0.28449672
        %v2130 = vmul.f32 %v2128, %v2115
        %v2131 = vmul.f32 %v2129, %v2117
        %v2132 = vadd.f32 %v2130, 0.2548296
        %v2133 = vadd.f32 %v2131, 0.2548296
        %v2134 = vmul.f32 %v2132, %v2115
        %v2135 = vmul.f32 %v2133, %v2117
        %v2136 = vsub.f32 0.0, %v2108
        %v2137 = vsub.f32 0.0, %v2109
        %v2138 = vmul.f32 %v2136, %v2108
        %v2139 = vmul.f32 %v2137, %v2109
        %v2140 = vmul.f32 %v2138, 1.442695
        %v2141 = vpow.pop %v2140
        %v2142 = vmul.f32 %v2139, 1.442695
        %v2143 = vpow.pop %v2142
        %v2144 = vmul.f32 %v2134, %v2141
        %v2145 = vmul.f32 %v2135, %v2143
        %v2146 = vsub.f32 1.0, %v2144
        %v2147 = vsub.f32 1.0, %v2145
        %v2148 = vmul.f32 %v2106, %v2146
        %v2149 = vmul.f32 %v2107, %v2147
        %v2150 = vadd.f32 %v2148, 1.0
        %v2151 = vadd.f32 %v2149, 1.0
        %v2152 = vmul.f32 %v2100, %v2150
        %v2153 = vmul.f32 %v2101, %v2151
        %2154 = vmatprep.subr.mxu0 0.0
        %2155 = vmatpush1.msra.mxu0 %v1427
        %2156 = vmatprep.subr.mxu0 0.0
        %2157 = vmatpush1.msra.mxu0 %v1426
        %2158 = vmatprep.subr.mxu0 0.0
        %2159 = vmatpush1.msra.mxu0 %v1425
        %2160 = vmatprep.subr.mxu0 0.0
        %2161 = vmatpush1.msra.mxu0 %v1424
        %2162 = vmatprep.subr.mxu0 0.0
        %2163 = vmatpush1.msra.mxu0 %v1423
        %2164 = vmatprep.subr.mxu0 0.0
        %2165 = vmatpush1.msra.mxu0 %v1422
        %2166 = vmatprep.subr.mxu0 0.0
        %2167 = vmatpush1.msra.mxu0 %v1421
        %2168 = vmatprep.subr.mxu0 0.0
        %2169 = vmatpush1.msra.mxu0 %v1420
        %2170 = vmatprep.subr.mxu0 0.0
        %2171 = vmatpush1.msra.mxu0 %v1419
        %2172 = vmatprep.subr.mxu0 0.0
        %2173 = vmatpush1.msra.mxu0 %v1418
        %2174 = vmatprep.subr.mxu0 0.0
        %2175 = vmatpush1.msra.mxu0 %v1417
        %2176 = vmatprep.subr.mxu0 0.0
        %2177 = vmatpush1.msra.mxu0 %v1416
        %2178 = vmatprep.subr.mxu0 0.0
        %2179 = vmatpush1.msra.mxu0 %v1415
        %2180 = vmatprep.subr.mxu0 0.0
        %2181 = vmatpush1.msra.mxu0 %v1414
        %2182 = vmatprep.subr.mxu0 0.0
        %2183 = vmatpush1.msra.mxu0 %v1413
        %2184 = vmatprep.subr.mxu0 0.0
        %2185 = vmatpush1.msra.mxu0 %v1412
        %2186 = vmatprep.subr.mxu0 0.0
        %2187 = vmatpush2.msra.mxu0 0.0
        %2188 = vmatprep.subr.mxu0 0.0
        %2189 = vmatpush2.msra.mxu0 0.0
        %2190 = vmatprep.subr.mxu0 0.0
        %2191 = vmatpush2.msra.mxu0 0.0
        %2192 = vmatprep.subr.mxu0 0.0
        %2193 = vmatpush2.msra.mxu0 0.0
        %2194 = vmatprep.subr.mxu0 0.0
        %2195 = vmatpush2.msra.mxu0 0.0
        %2196 = vmatprep.subr.mxu0 0.0
        %2197 = vmatpush2.msra.mxu0 0.0
        %2198 = vmatprep.subr.mxu0 0.0
        %2199 = vmatpush2.msra.mxu0 0.0
        %2200 = vmatprep.subr.mxu0 0.0
        %2201 = vmatpush2.msra.mxu0 0.0
        %2202 = vmatprep.subr.mxu0 0.0
        %2203 = vmatpush2.msra.mxu0 0.0
        %2204 = vmatprep.subr.mxu0 0.0
        %2205 = vmatpush2.msra.mxu0 0.0
        %2206 = vmatprep.subr.mxu0 0.0
        %2207 = vmatpush2.msra.mxu0 0.0
        %2208 = vmatprep.subr.mxu0 0.0
        %2209 = vmatpush2.msra.mxu0 0.0
        %2210 = vmatprep.subr.mxu0 0.0
        %2211 = vmatpush2.msra.mxu0 0.0
        %2212 = vmatprep.subr.mxu0 0.0
        %2213 = vmatpush2.msra.mxu0 0.0
        %2214 = vmatprep.subr.mxu0 0.0
        %2215 = vmatpush2.msra.mxu0 0.0
        %2216 = vmatprep.subr.mxu0 0.0
        %2217 = vmatpush2.msra.mxu0 0.0
        %2218 = vmatprep.mubr.f32.mxu0 0.0
        %2219 = vmatmul.mubr.f32.gmra.mxu0 %v2152
        %v2220 = vpop.f32.mrf.mxu0
        %v2221 = vadd.f32 %v1433, %v2220
        %v2222 = vpop.f32.mrf.mxu0
        %2223 = vmatprep.mubr.f32.mxu0 0.0
        %2224 = vmatmul.mubr.f32.gmra.mxu0 %v2153
        %v2225 = vpop.f32.mrf.mxu0
        %v2226 = vadd.f32 %v1433, %v2225
        %v2227 = vpop.f32.mrf.mxu0
        %2228 = vdwg.mxu0
        %v2229 = vadd.f32 %v1987, %v2221
        %v2230 = vadd.f32 %v1988, %v2226
        %v2231 = vsel %vm551, %v2229, 0.0
        %2232 = vadd.xlane.f32.xlu0 %v2231
        %v2233 = vpop.xlane.xlu0 %2232
        %v2234 = vsel %vm551, %v2230, 0.0
        %2235 = vadd.xlane.f32.xlu0 %v2234
        %v2236 = vpop.xlane.xlu0 %2235
        %v2237 = vmul.f32 %v2233, %v714
        %v2238 = vmul.f32 %v2236, %v714
        %v2239 = vsub.f32 %v2229, %v2237
        %v2240 = vsub.f32 %v2230, %v2238
        %v2241 = vmul.f32 %v2239, %v2239
        %v2242 = vmul.f32 %v2240, %v2240
        %v2243 = vsel %vm551, %v2241, 0.0
        %2244 = vadd.xlane.f32.xlu0 %v2243
        %v2245 = vpop.xlane.xlu0 %2244
        %v2246 = vsel %vm551, %v2242, 0.0
        %2247 = vadd.xlane.f32.xlu0 %v2246
        %v2248 = vpop.xlane.xlu0 %2247
        %v2249 = vmul.f32 %v2245, %v714
        %v2250 = vmul.f32 %v2248, %v714
        %v2251 = vadd.f32 %v2249, 1e-05
        %v2252 = vadd.f32 %v2250, 1e-05
        %v2253 = vrsqrt.pop %v2251
        %v2254 = vrsqrt.pop %v2252
        %v2255 = vmul.f32 %v2239, %v2253
        %v2256 = vmul.f32 %v2240, %v2254
        %v2257 = vmul.f32 %v2255, %v739
        %v2258 = vmul.f32 %v2256, %v739
        %v2259 = vadd.f32 %v2257, %v747
        %v2260 = vadd.f32 %v2258, %v747
        %v2262 = vsel %vm551, %v2259, 0
        %v2265 = vsel %vm551, %v2260, 0
        %2267 = vmatprep.subr.mxu0 0.0
        %2268 = vmatpush1.msra.mxu0 0.0
        %2269 = vmatprep.subr.mxu0 0.0
        %2270 = vmatpush1.msra.mxu0 0.0
        %2271 = vmatprep.subr.mxu0 0.0
        %2272 = vmatpush1.msra.mxu0 0.0
        %2273 = vmatprep.subr.mxu0 0.0
        %2274 = vmatpush1.msra.mxu0 0.0
        %2275 = vmatprep.subr.mxu0 0.0
        %2276 = vmatpush1.msra.mxu0 0.0
        %2277 = vmatprep.subr.mxu0 0.0
        %2278 = vmatpush1.msra.mxu0 0.0
        %2279 = vmatprep.subr.mxu0 0.0
        %2280 = vmatpush1.msra.mxu0 0.0
        %2281 = vmatprep.subr.mxu0 0.0
        %2282 = vmatpush1.msra.mxu0 0.0
        %2283 = vmatprep.subr.mxu0 0.0
        %2284 = vmatpush1.msra.mxu0 0.0
        %2285 = vmatprep.subr.mxu0 0.0
        %2286 = vmatpush1.msra.mxu0 0.0
        %2287 = vmatprep.subr.mxu0 0.0
        %2288 = vmatpush1.msra.mxu0 0.0
        %2289 = vmatprep.subr.mxu0 0.0
        %2290 = vmatpush1.msra.mxu0 0.0
        %2291 = vmatprep.subr.mxu0 0.0
        %2292 = vmatpush1.msra.mxu0 %v754
        %2293 = vmatprep.subr.mxu0 0.0
        %2294 = vmatpush1.msra.mxu0 %v753
        %2295 = vmatprep.subr.mxu0 0.0
        %2296 = vmatpush1.msra.mxu0 %v752
        %2297 = vmatprep.subr.mxu0 0.0
        %2298 = vmatpush1.msra.mxu0 %v751
        %2299 = vmatprep.subr.mxu0 0.0
        %2300 = vmatpush2.msra.mxu0 0.0
        %2301 = vmatprep.subr.mxu0 0.0
        %2302 = vmatpush2.msra.mxu0 0.0
        %2303 = vmatprep.subr.mxu0 0.0
        %2304 = vmatpush2.msra.mxu0 0.0
        %2305 = vmatprep.subr.mxu0 0.0
        %2306 = vmatpush2.msra.mxu0 0.0
        %2307 = vmatprep.subr.mxu0 0.0
        %2308 = vmatpush2.msra.mxu0 0.0
        %2309 = vmatprep.subr.mxu0 0.0
        %2310 = vmatpush2.msra.mxu0 0.0
        %2311 = vmatprep.subr.mxu0 0.0
        %2312 = vmatpush2.msra.mxu0 0.0
        %2313 = vmatprep.subr.mxu0 0.0
        %2314 = vmatpush2.msra.mxu0 0.0
        %2315 = vmatprep.subr.mxu0 0.0
        %2316 = vmatpush2.msra.mxu0 0.0
        %2317 = vmatprep.subr.mxu0 0.0
        %2318 = vmatpush2.msra.mxu0 0.0
        %2319 = vmatprep.subr.mxu0 0.0
        %2320 = vmatpush2.msra.mxu0 0.0
        %2321 = vmatprep.subr.mxu0 0.0
        %2322 = vmatpush2.msra.mxu0 0.0
        %2323 = vmatprep.subr.mxu0 0.0
        %2324 = vmatpush2.msra.mxu0 0.0
        %2325 = vmatprep.subr.mxu0 0.0
        %2326 = vmatpush2.msra.mxu0 0.0
        %2327 = vmatprep.subr.mxu0 0.0
        %2328 = vmatpush2.msra.mxu0 0.0
        %2329 = vmatprep.subr.mxu0 0.0
        %2330 = vmatpush2.msra.mxu0 0.0
        %2331 = vmatprep.mubr.f32.mxu0 0.0
        %2332 = vmatmul.mubr.f32.gmra.mxu0 %v2262
        %v2333 = vpop.f32.mrf.mxu0
        %v2334 = vadd.f32 %v760, %v2333
        %v2335 = vpop.f32.mrf.mxu0
        %2336 = vmatprep.mubr.f32.mxu0 0.0
        %2337 = vmatmul.mubr.f32.gmra.mxu0 %v2265
        %v2338 = vpop.f32.mrf.mxu0
        %v2339 = vadd.f32 %v760, %v2338
        %v2340 = vpop.f32.mrf.mxu0
        %2341 = vdwg.mxu0
        %v2343 = vsel %vm843, %v2334, 0
        %v2346 = vsel %vm843, %v2339, 0
        %2348 = vmatprep.subr.mxu0 0.0
        %2349 = vmatpush1.xpose.msra.mxu0 0.0
        %2350 = vmatprep.subr.mxu0 0.0
        %2351 = vmatpush1.xpose.msra.mxu0 0.0
        %2352 = vmatprep.subr.mxu0 0.0
        %2353 = vmatpush1.xpose.msra.mxu0 0.0
        %2354 = vmatprep.subr.mxu0 0.0
        %2355 = vmatpush1.xpose.msra.mxu0 0.0
        %2356 = vmatprep.subr.mxu0 0.0
        %2357 = vmatpush1.xpose.msra.mxu0 0.0
        %2358 = vmatprep.subr.mxu0 0.0
        %2359 = vmatpush1.xpose.msra.mxu0 0.0
        %2360 = vmatprep.subr.mxu0 0.0
        %2361 = vmatpush1.xpose.msra.mxu0 0.0
        %2362 = vmatprep.subr.mxu0 0.0
        %2363 = vmatpush1.xpose.msra.mxu0 0.0
        %2364 = vmatprep.subr.mxu0 0.0
        %2365 = vmatpush1.xpose.msra.mxu0 0.0
        %2366 = vmatprep.subr.mxu0 0.0
        %2367 = vmatpush1.xpose.msra.mxu0 0.0
        %2368 = vmatprep.subr.mxu0 0.0
        %2369 = vmatpush1.xpose.msra.mxu0 0.0
        %2370 = vmatprep.subr.mxu0 0.0
        %2371 = vmatpush1.xpose.msra.mxu0 0.0
        %2372 = vmatprep.subr.mxu0 0.0
        %2373 = vmatpush1.xpose.msra.mxu0 0.0
        %2374 = vmatprep.subr.mxu0 0.0
        %2375 = vmatpush1.xpose.msra.mxu0 0.0
        %2376 = vmatprep.subr.mxu0 0.0
        %2377 = vmatpush1.xpose.msra.mxu0 0.0
        %2378 = vmatprep.subr.mxu0 0.0
        %2379 = vmatpush1.xpose.msra.mxu0 %v851
        %2380 = vmatprep.subr.mxu0 0.0
        %2381 = vmatpush2.xpose.msra.mxu0 0.0
        %2382 = vmatprep.subr.mxu0 0.0
        %2383 = vmatpush2.xpose.msra.mxu0 0.0
        %2384 = vmatprep.subr.mxu0 0.0
        %2385 = vmatpush2.xpose.msra.mxu0 0.0
        %2386 = vmatprep.subr.mxu0 0.0
        %2387 = vmatpush2.xpose.msra.mxu0 0.0
        %2388 = vmatprep.subr.mxu0 0.0
        %2389 = vmatpush2.xpose.msra.mxu0 0.0
        %2390 = vmatprep.subr.mxu0 0.0
        %2391 = vmatpush2.xpose.msra.mxu0 0.0
        %2392 = vmatprep.subr.mxu0 0.0
        %2393 = vmatpush2.xpose.msra.mxu0 0.0
        %2394 = vmatprep.subr.mxu0 0.0
        %2395 = vmatpush2.xpose.msra.mxu0 0.0
        %2396 = vmatprep.subr.mxu0 0.0
        %2397 = vmatpush2.xpose.msra.mxu0 0.0
        %2398 = vmatprep.subr.mxu0 0.0
        %2399 = vmatpush2.xpose.msra.mxu0 0.0
        %2400 = vmatprep.subr.mxu0 0.0
        %2401 = vmatpush2.xpose.msra.mxu0 0.0
        %2402 = vmatprep.subr.mxu0 0.0
        %2403 = vmatpush2.xpose.msra.mxu0 0.0
        %2404 = vmatprep.subr.mxu0 0.0
        %2405 = vmatpush2.xpose.msra.mxu0 0.0
        %2406 = vmatprep.subr.mxu0 0.0
        %2407 = vmatpush2.xpose.msra.mxu0 0.0
        %2408 = vmatprep.subr.mxu0 0.0
        %2409 = vmatpush2.xpose.msra.mxu0 0.0
        %2410 = vmatprep.subr.mxu0 0.0
        %2411 = vmatpush2.xpose.msra.mxu0 0.0
        %2412 = vmatprep.mubr.f32.mxu0 0.0
        %2413 = vmatmul.mubr.f32.gmra.mxu0 %v2343
        %v2414 = vpop.f32.mrf.mxu0
        %v2415 = vadd.f32 0.0, %v2414
        %v2416 = vpop.f32.mrf.mxu0
        %2417 = vmatprep.mubr.f32.mxu0 0.0
        %2418 = vmatmul.mubr.f32.gmra.mxu0 %v2346
        %v2419 = vpop.f32.mrf.mxu0
        %v2420 = vadd.f32 0.0, %v2419
        %v2421 = vpop.f32.mrf.mxu0
        %2422 = vdwg.mxu0
        %v2423 = vmul.f32 %v2415, 0.25
        %v2424 = vmul.f32 %v2420, 0.25
        %2425 = vrot.lane.b32.xlu0 %v2334, 112
        %v2426 = vpop.permute.xlu0 %2425
        %2427 = vrot.lane.b32.xlu0 %v2339, 112
        %v2428 = vpop.permute.xlu0 %2427
        %v2429 = vsel %vm843, %v2426, 0
        %v2431 = vsel %vm843, %v2428, 0
        %2433 = vmatprep.subr.mxu0 0.0
        %2434 = vmatpush1.xpose.msra.mxu0 0.0
        %2435 = vmatprep.subr.mxu0 0.0
        %2436 = vmatpush1.xpose.msra.mxu0 0.0
        %2437 = vmatprep.subr.mxu0 0.0
        %2438 = vmatpush1.xpose.msra.mxu0 0.0
        %2439 = vmatprep.subr.mxu0 0.0
        %2440 = vmatpush1.xpose.msra.mxu0 0.0
        %2441 = vmatprep.subr.mxu0 0.0
        %2442 = vmatpush1.xpose.msra.mxu0 0.0
        %2443 = vmatprep.subr.mxu0 0.0
        %2444 = vmatpush1.xpose.msra.mxu0 0.0
        %2445 = vmatprep.subr.mxu0 0.0
        %2446 = vmatpush1.xpose.msra.mxu0 0.0
        %2447 = vmatprep.subr.mxu0 0.0
        %2448 = vmatpush1.xpose.msra.mxu0 0.0
        %2449 = vmatprep.subr.mxu0 0.0
        %2450 = vmatpush1.xpose.msra.mxu0 0.0
        %2451 = vmatprep.subr.mxu0 0.0
        %2452 = vmatpush1.xpose.msra.mxu0 0.0
        %2453 = vmatprep.subr.mxu0 0.0
        %2454 = vmatpush1.xpose.msra.mxu0 0.0
        %2455 = vmatprep.subr.mxu0 0.0
        %2456 = vmatpush1.xpose.msra.mxu0 0.0
        %2457 = vmatprep.subr.mxu0 0.0
        %2458 = vmatpush1.xpose.msra.mxu0 0.0
        %2459 = vmatprep.subr.mxu0 0.0
        %2460 = vmatpush1.xpose.msra.mxu0 0.0
        %2461 = vmatprep.subr.mxu0 0.0
        %2462 = vmatpush1.xpose.msra.mxu0 0.0
        %2463 = vmatprep.subr.mxu0 0.0
        %2464 = vmatpush1.xpose.msra.mxu0 %v940
        %2465 = vmatprep.subr.mxu0 0.0
        %2466 = vmatpush2.xpose.msra.mxu0 0.0
        %2467 = vmatprep.subr.mxu0 0.0
        %2468 = vmatpush2.xpose.msra.mxu0 0.0
        %2469 = vmatprep.subr.mxu0 0.0
        %2470 = vmatpush2.xpose.msra.mxu0 0.0
        %2471 = vmatprep.subr.mxu0 0.0
        %2472 = vmatpush2.xpose.msra.mxu0 0.0
        %2473 = vmatprep.subr.mxu0 0.0
        %2474 = vmatpush2.xpose.msra.mxu0 0.0
        %2475 = vmatprep.subr.mxu0 0.0
        %2476 = vmatpush2.xpose.msra.mxu0 0.0
        %2477 = vmatprep.subr.mxu0 0.0
        %2478 = vmatpush2.xpose.msra.mxu0 0.0
        %2479 = vmatprep.subr.mxu0 0.0
        %2480 = vmatpush2.xpose.msra.mxu0 0.0
        %2481 = vmatprep.subr.mxu0 0.0
        %2482 = vmatpush2.xpose.msra.mxu0 0.0
        %2483 = vmatprep.subr.mxu0 0.0
        %2484 = vmatpush2.xpose.msra.mxu0 0.0
        %2485 = vmatprep.subr.mxu0 0.0
        %2486 = vmatpush2.xpose.msra.mxu0 0.0
        %2487 = vmatprep.subr.mxu0 0.0
        %2488 = vmatpush2.xpose.msra.mxu0 0.0
        %2489 = vmatprep.subr.mxu0 0.0
        %2490 = vmatpush2.xpose.msra.mxu0 0.0
        %2491 = vmatprep.subr.mxu0 0.0
        %2492 = vmatpush2.xpose.msra.mxu0 0.0
        %2493 = vmatprep.subr.mxu0 0.0
        %2494 = vmatpush2.xpose.msra.mxu0 0.0
        %2495 = vmatprep.subr.mxu0 0.0
        %2496 = vmatpush2.xpose.msra.mxu0 0.0
        %2497 = vmatprep.mubr.f32.mxu0 0.0
        %2498 = vmatmul.mubr.f32.gmra.mxu0 %v2429
        %v2499 = vpop.f32.mrf.mxu0
        %v2500 = vadd.f32 0.0, %v2499
        %v2501 = vpop.f32.mrf.mxu0
        %2502 = vmatprep.mubr.f32.mxu0 0.0
        %2503 = vmatmul.mubr.f32.gmra.mxu0 %v2431
        %v2504 = vpop.f32.mrf.mxu0
        %v2505 = vadd.f32 0.0, %v2504
        %v2506 = vpop.f32.mrf.mxu0
        %2507 = vdwg.mxu0
        %v2508 = vmul.f32 %v2500, 0.25
        %v2509 = vmul.f32 %v2505, 0.25
        %v2510 = vmax.f32 %v2423, %v2508
        %v2511 = vmax.f32 %v2424, %v2509
        %v2512 = vsub.f32 %v2423, %v2510
        %v2513 = vsub.f32 %v2424, %v2511
        %v2514 = vmul.f32 %v2512, 1.442695
        %v2515 = vpow.pop %v2514
        %v2516 = vmul.f32 %v2513, 1.442695
        %v2517 = vpow.pop %v2516
        %v2518 = vsub.f32 %v2508, %v2510
        %v2519 = vsub.f32 %v2509, %v2511
        %v2520 = vmul.f32 %v2518, 1.442695
        %v2521 = vpow.pop %v2520
        %v2522 = vmul.f32 %v2519, 1.442695
        %v2523 = vpow.pop %v2522
        %v2524 = vadd.f32 %v2515, %v2521
        %v2525 = vadd.f32 %v2517, %v2523
        %v2526 = vrcp.pop %v2524
        %v2527 = vmul.f32 1.0, %v2526
        %v2528 = vrcp.pop %v2525
        %v2529 = vmul.f32 1.0, %v2528
        %v2530 = vmul.f32 %v2515, %v2527
        %v2531 = vmul.f32 %v2517, %v2529
        %v2533 = vsel %vm1041, %v2530, 0
        %v2536 = vsel %vm1041, %v2531, 0
        %2538 = vmatprep.subr.mxu0 0.0
        %2539 = vmatpush1.msra.mxu0 0.0
        %2540 = vmatprep.subr.mxu0 0.0
        %2541 = vmatpush1.msra.mxu0 0.0
        %2542 = vmatprep.subr.mxu0 0.0
        %2543 = vmatpush1.msra.mxu0 0.0
        %2544 = vmatprep.subr.mxu0 0.0
        %2545 = vmatpush1.msra.mxu0 0.0
        %2546 = vmatprep.subr.mxu0 0.0
        %2547 = vmatpush1.msra.mxu0 0.0
        %2548 = vmatprep.subr.mxu0 0.0
        %2549 = vmatpush1.msra.mxu0 0.0
        %2550 = vmatprep.subr.mxu0 0.0
        %2551 = vmatpush1.msra.mxu0 0.0
        %2552 = vmatprep.subr.mxu0 0.0
        %2553 = vmatpush1.msra.mxu0 0.0
        %2554 = vmatprep.subr.mxu0 0.0
        %2555 = vmatpush1.msra.mxu0 0.0
        %2556 = vmatprep.subr.mxu0 0.0
        %2557 = vmatpush1.msra.mxu0 0.0
        %2558 = vmatprep.subr.mxu0 0.0
        %2559 = vmatpush1.msra.mxu0 0.0
        %2560 = vmatprep.subr.mxu0 0.0
        %2561 = vmatpush1.msra.mxu0 0.0
        %2562 = vmatprep.subr.mxu0 0.0
        %2563 = vmatpush1.msra.mxu0 0.0
        %2564 = vmatprep.subr.mxu0 0.0
        %2565 = vmatpush1.msra.mxu0 0.0
        %2566 = vmatprep.subr.mxu0 0.0
        %2567 = vmatpush1.msra.mxu0 0.0
        %2568 = vmatprep.subr.mxu0 0.0
        %2569 = vmatpush1.msra.mxu0 %v703
        %2570 = vmatprep.subr.mxu0 0.0
        %2571 = vmatpush2.msra.mxu0 0.0
        %2572 = vmatprep.subr.mxu0 0.0
        %2573 = vmatpush2.msra.mxu0 0.0
        %2574 = vmatprep.subr.mxu0 0.0
        %2575 = vmatpush2.msra.mxu0 0.0
        %2576 = vmatprep.subr.mxu0 0.0
        %2577 = vmatpush2.msra.mxu0 0.0
        %2578 = vmatprep.subr.mxu0 0.0
        %2579 = vmatpush2.msra.mxu0 0.0
        %2580 = vmatprep.subr.mxu0 0.0
        %2581 = vmatpush2.msra.mxu0 0.0
        %2582 = vmatprep.subr.mxu0 0.0
        %2583 = vmatpush2.msra.mxu0 0.0
        %2584 = vmatprep.subr.mxu0 0.0
        %2585 = vmatpush2.msra.mxu0 0.0
        %2586 = vmatprep.subr.mxu0 0.0
        %2587 = vmatpush2.msra.mxu0 0.0
        %2588 = vmatprep.subr.mxu0 0.0
        %2589 = vmatpush2.msra.mxu0 0.0
        %2590 = vmatprep.subr.mxu0 0.0
        %2591 = vmatpush2.msra.mxu0 0.0
        %2592 = vmatprep.subr.mxu0 0.0
        %2593 = vmatpush2.msra.mxu0 0.0
        %2594 = vmatprep.subr.mxu0 0.0
        %2595 = vmatpush2.msra.mxu0 0.0
        %2596 = vmatprep.subr.mxu0 0.0
        %2597 = vmatpush2.msra.mxu0 0.0
        %2598 = vmatprep.subr.mxu0 0.0
        %2599 = vmatpush2.msra.mxu0 0.0
        %2600 = vmatprep.subr.mxu0 0.0
        %2601 = vmatpush2.msra.mxu0 0.0
        %2602 = vmatprep.mubr.f32.mxu0 0.0
        %2603 = vmatmul.mubr.f32.gmra.mxu0 %v2533
        %v2604 = vpop.f32.mrf.mxu0
        %v2605 = vadd.f32 0.0, %v2604
        %v2606 = vpop.f32.mrf.mxu0
        %2607 = vmatprep.mubr.f32.mxu0 0.0
        %2608 = vmatmul.mubr.f32.gmra.mxu0 %v2536
        %v2609 = vpop.f32.mrf.mxu0
        %v2610 = vadd.f32 0.0, %v2609
        %v2611 = vpop.f32.mrf.mxu0
        %2612 = vdwg.mxu0
        %v2613 = vmul.f32 %v2521, %v2527
        %v2614 = vmul.f32 %v2523, %v2529
        %v2616 = vsel %vm1041, %v2613, 0
        %v2619 = vsel %vm1041, %v2614, 0
        %2621 = vmatprep.subr.mxu0 0.0
        %2622 = vmatpush1.msra.mxu0 0.0
        %2623 = vmatprep.subr.mxu0 0.0
        %2624 = vmatpush1.msra.mxu0 0.0
        %2625 = vmatprep.subr.mxu0 0.0
        %2626 = vmatpush1.msra.mxu0 0.0
        %2627 = vmatprep.subr.mxu0 0.0
        %2628 = vmatpush1.msra.mxu0 0.0
        %2629 = vmatprep.subr.mxu0 0.0
        %2630 = vmatpush1.msra.mxu0 0.0
        %2631 = vmatprep.subr.mxu0 0.0
        %2632 = vmatpush1.msra.mxu0 0.0
        %2633 = vmatprep.subr.mxu0 0.0
        %2634 = vmatpush1.msra.mxu0 0.0
        %2635 = vmatprep.subr.mxu0 0.0
        %2636 = vmatpush1.msra.mxu0 0.0
        %2637 = vmatprep.subr.mxu0 0.0
        %2638 = vmatpush1.msra.mxu0 0.0
        %2639 = vmatprep.subr.mxu0 0.0
        %2640 = vmatpush1.msra.mxu0 0.0
        %2641 = vmatprep.subr.mxu0 0.0
        %2642 = vmatpush1.msra.mxu0 0.0
        %2643 = vmatprep.subr.mxu0 0.0
        %2644 = vmatpush1.msra.mxu0 0.0
        %2645 = vmatprep.subr.mxu0 0.0
        %2646 = vmatpush1.msra.mxu0 0.0
        %2647 = vmatprep.subr.mxu0 0.0
        %2648 = vmatpush1.msra.mxu0 0.0
        %2649 = vmatprep.subr.mxu0 0.0
        %2650 = vmatpush1.msra.mxu0 0.0
        %2651 = vmatprep.subr.mxu0 0.0
        %2652 = vmatpush1.msra.mxu0 %v1127
        %2653 = vmatprep.subr.mxu0 0.0
        %2654 = vmatpush2.msra.mxu0 0.0
        %2655 = vmatprep.subr.mxu0 0.0
        %2656 = vmatpush2.msra.mxu0 0.0
        %2657 = vmatprep.subr.mxu0 0.0
        %2658 = vmatpush2.msra.mxu0 0.0
        %2659 = vmatprep.subr.mxu0 0.0
        %2660 = vmatpush2.msra.mxu0 0.0
        %2661 = vmatprep.subr.mxu0 0.0
        %2662 = vmatpush2.msra.mxu0 0.0
        %2663 = vmatprep.subr.mxu0 0.0
        %2664 = vmatpush2.msra.mxu0 0.0
        %2665 = vmatprep.subr.mxu0 0.0
        %2666 = vmatpush2.msra.mxu0 0.0
        %2667 = vmatprep.subr.mxu0 0.0
        %2668 = vmatpush2.msra.mxu0 0.0
        %2669 = vmatprep.subr.mxu0 0.0
        %2670 = vmatpush2.msra.mxu0 0.0
        %2671 = vmatprep.subr.mxu0 0.0
        %2672 = vmatpush2.msra.mxu0 0.0
        %2673 = vmatprep.subr.mxu0 0.0
        %2674 = vmatpush2.msra.mxu0 0.0
        %2675 = vmatprep.subr.mxu0 0.0
        %2676 = vmatpush2.msra.mxu0 0.0
        %2677 = vmatprep.subr.mxu0 0.0
        %2678 = vmatpush2.msra.mxu0 0.0
        %2679 = vmatprep.subr.mxu0 0.0
        %2680 = vmatpush2.msra.mxu0 0.0
        %2681 = vmatprep.subr.mxu0 0.0
        %2682 = vmatpush2.msra.mxu0 0.0
        %2683 = vmatprep.subr.mxu0 0.0
        %2684 = vmatpush2.msra.mxu0 0.0
        %2685 = vmatprep.mubr.f32.mxu0 0.0
        %2686 = vmatmul.mubr.f32.gmra.mxu0 %v2616
        %v2687 = vpop.f32.mrf.mxu0
        %v2688 = vadd.f32 0.0, %v2687
        %v2689 = vpop.f32.mrf.mxu0
        %2690 = vmatprep.mubr.f32.mxu0 0.0
        %2691 = vmatmul.mubr.f32.gmra.mxu0 %v2619
        %v2692 = vpop.f32.mrf.mxu0
        %v2693 = vadd.f32 0.0, %v2692
        %v2694 = vpop.f32.mrf.mxu0
        %2695 = vdwg.mxu0
        %2698 = vrot.lane.b32.xlu0 %v2688, 16
        %v2699 = vpop.permute.xlu0 %2698
        %2700 = vrot.lane.b32.xlu0 %v2693, 16
        %v2701 = vpop.permute.xlu0 %2700
        %v2704 = vsel %vm843, %v2605, %v2699
        %v2705 = vsel %vm843, %v2610, %v2701
        %v2706 = vadd.f32 %v2229, %v2704
        %v2707 = vadd.f32 %v2230, %v2705
        %v2708 = vsel %vm551, %v2706, 0.0
        %2709 = vadd.xlane.f32.xlu0 %v2708
        %v2710 = vpop.xlane.xlu0 %2709
        %v2711 = vsel %vm551, %v2707, 0.0
        %2712 = vadd.xlane.f32.xlu0 %v2711
        %v2713 = vpop.xlane.xlu0 %2712
        %v2714 = vmul.f32 %v2710, %v714
        %v2715 = vmul.f32 %v2713, %v714
        %v2716 = vsub.f32 %v2706, %v2714
        %v2717 = vsub.f32 %v2707, %v2715
        %v2718 = vmul.f32 %v2716, %v2716
        %v2719 = vmul.f32 %v2717, %v2717
        %v2720 = vsel %vm551, %v2718, 0.0
        %2721 = vadd.xlane.f32.xlu0 %v2720
        %v2722 = vpop.xlane.xlu0 %2721
        %v2723 = vsel %vm551, %v2719, 0.0
        %2724 = vadd.xlane.f32.xlu0 %v2723
        %v2725 = vpop.xlane.xlu0 %2724
        %v2726 = vmul.f32 %v2722, %v714
        %v2727 = vmul.f32 %v2725, %v714
        %v2728 = vadd.f32 %v2726, 1e-05
        %v2729 = vadd.f32 %v2727, 1e-05
        %v2730 = vrsqrt.pop %v2728
        %v2731 = vrsqrt.pop %v2729
        %v2732 = vmul.f32 %v2716, %v2730
        %v2733 = vmul.f32 %v2717, %v2731
        %v2734 = vmul.f32 %v2732, %v1254
        %v2735 = vmul.f32 %v2733, %v1254
        %v2736 = vadd.f32 %v2734, %v1262
        %v2737 = vadd.f32 %v2735, %v1262
        %v2739 = vsel %vm551, %v2736, 0
        %v2742 = vsel %vm551, %v2737, 0
        %2744 = vmatprep.subr.mxu0 0.0
        %2745 = vmatpush1.msra.mxu0 0.0
        %2746 = vmatprep.subr.mxu0 0.0
        %2747 = vmatpush1.msra.mxu0 0.0
        %2748 = vmatprep.subr.mxu0 0.0
        %2749 = vmatpush1.msra.mxu0 0.0
        %2750 = vmatprep.subr.mxu0 0.0
        %2751 = vmatpush1.msra.mxu0 0.0
        %2752 = vmatprep.subr.mxu0 0.0
        %2753 = vmatpush1.msra.mxu0 0.0
        %2754 = vmatprep.subr.mxu0 0.0
        %2755 = vmatpush1.msra.mxu0 0.0
        %2756 = vmatprep.subr.mxu0 0.0
        %2757 = vmatpush1.msra.mxu0 0.0
        %2758 = vmatprep.subr.mxu0 0.0
        %2759 = vmatpush1.msra.mxu0 0.0
        %2760 = vmatprep.subr.mxu0 0.0
        %2761 = vmatpush1.msra.mxu0 0.0
        %2762 = vmatprep.subr.mxu0 0.0
        %2763 = vmatpush1.msra.mxu0 0.0
        %2764 = vmatprep.subr.mxu0 0.0
        %2765 = vmatpush1.msra.mxu0 0.0
        %2766 = vmatprep.subr.mxu0 0.0
        %2767 = vmatpush1.msra.mxu0 0.0
        %2768 = vmatprep.subr.mxu0 0.0
        %2769 = vmatpush1.msra.mxu0 %v1269
        %2770 = vmatprep.subr.mxu0 0.0
        %2771 = vmatpush1.msra.mxu0 %v1268
        %2772 = vmatprep.subr.mxu0 0.0
        %2773 = vmatpush1.msra.mxu0 %v1267
        %2774 = vmatprep.subr.mxu0 0.0
        %2775 = vmatpush1.msra.mxu0 %v1266
        %2776 = vmatprep.subr.mxu0 0.0
        %2777 = vmatpush2.msra.mxu0 0.0
        %2778 = vmatprep.subr.mxu0 0.0
        %2779 = vmatpush2.msra.mxu0 0.0
        %2780 = vmatprep.subr.mxu0 0.0
        %2781 = vmatpush2.msra.mxu0 0.0
        %2782 = vmatprep.subr.mxu0 0.0
        %2783 = vmatpush2.msra.mxu0 0.0
        %2784 = vmatprep.subr.mxu0 0.0
        %2785 = vmatpush2.msra.mxu0 0.0
        %2786 = vmatprep.subr.mxu0 0.0
        %2787 = vmatpush2.msra.mxu0 0.0
        %2788 = vmatprep.subr.mxu0 0.0
        %2789 = vmatpush2.msra.mxu0 0.0
        %2790 = vmatprep.subr.mxu0 0.0
        %2791 = vmatpush2.msra.mxu0 0.0
        %2792 = vmatprep.subr.mxu0 0.0
        %2793 = vmatpush2.msra.mxu0 0.0
        %2794 = vmatprep.subr.mxu0 0.0
        %2795 = vmatpush2.msra.mxu0 0.0
        %2796 = vmatprep.subr.mxu0 0.0
        %2797 = vmatpush2.msra.mxu0 0.0
        %2798 = vmatprep.subr.mxu0 0.0
        %2799 = vmatpush2.msra.mxu0 0.0
        %2800 = vmatprep.subr.mxu0 0.0
        %2801 = vmatpush2.msra.mxu0 0.0
        %2802 = vmatprep.subr.mxu0 0.0
        %2803 = vmatpush2.msra.mxu0 0.0
        %2804 = vmatprep.subr.mxu0 0.0
        %2805 = vmatpush2.msra.mxu0 0.0
        %2806 = vmatprep.subr.mxu0 0.0
        %2807 = vmatpush2.msra.mxu0 0.0
        %2808 = vmatprep.mubr.f32.mxu0 0.0
        %2809 = vmatmul.mubr.f32.gmra.mxu0 %v2739
        %v2810 = vpop.f32.mrf.mxu0
        %v2811 = vadd.f32 %v1275, %v2810
        %v2812 = vpop.f32.mrf.mxu0
        %2813 = vmatprep.mubr.f32.mxu0 0.0
        %2814 = vmatmul.mubr.f32.gmra.mxu0 %v2742
        %v2815 = vpop.f32.mrf.mxu0
        %v2816 = vadd.f32 %v1275, %v2815
        %v2817 = vpop.f32.mrf.mxu0
        %2818 = vdwg.mxu0
        %v2819 = vmul.f32 %v2811, 0.5
        %v2820 = vmul.f32 %v2816, 0.5
        %v2821 = vmul.f32 %v2811, 0.70710677
        %v2822 = vmul.f32 %v2816, 0.70710677
        %vm2823 = vcmp.ge.f32.partialorder %v2821, 0.0
        %vm2824 = vcmp.ge.f32.partialorder %v2822, 0.0
        %v2825 = vsel %vm2823, 1.0, -1.0
        %v2826 = vsel %vm2824, 1.0, -1.0
        %v2827 = vand.u32 2147483647, %v2821
        %v2828 = vand.u32 2147483647, %v2822
        %v2829 = vmul.f32 %v2827, 0.3275911
        %v2830 = vmul.f32 %v2828, 0.3275911
        %v2831 = vadd.f32 %v2829, 1.0
        %v2832 = vadd.f32 %v2830, 1.0
        %v2833 = vrcp.pop %v2831
        %v2834 = vmul.f32 1.0, %v2833
        %v2835 = vrcp.pop %v2832
        %v2836 = vmul.f32 1.0, %v2835
        %v2837 = vmul.f32 %v2834, 1.0614054
        %v2838 = vmul.f32 %v2836, 1.0614054
        %v2839 = vadd.f32 %v2837, -1.4531521
        %v2840 = vadd.f32 %v2838, -1.4531521
        %v2841 = vmul.f32 %v2839, %v2834
        %v2842 = vmul.f32 %v2840, %v2836
        %v2843 = vadd.f32 %v2841, 1.4214138
        %v2844 = vadd.f32 %v2842, 1.4214138
        %v2845 = vmul.f32 %v2843, %v2834
        %v2846 = vmul.f32 %v2844, %v2836
        %v2847 = vadd.f32 %v2845, -0.28449672
        %v2848 = vadd.f32 %v2846, -0.28449672
        %v2849 = vmul.f32 %v2847, %v2834
        %v2850 = vmul.f32 %v2848, %v2836
        %v2851 = vadd.f32 %v2849, 0.2548296
        %v2852 = vadd.f32 %v2850, 0.2548296
        %v2853 = vmul.f32 %v2851, %v2834
        %v2854 = vmul.f32 %v2852, %v2836
        %v2855 = vsub.f32 0.0, %v2827
        %v2856 = vsub.f32 0.0, %v2828
        %v2857 = vmul.f32 %v2855, %v2827
        %v2858 = vmul.f32 %v2856, %v2828
        %v2859 = vmul.f32 %v2857, 1.442695
        %v2860 = vpow.pop %v2859
        %v2861 = vmul.f32 %v2858, 1.442695
        %v2862 = vpow.pop %v2861
        %v2863 = vmul.f32 %v2853, %v2860
        %v2864 = vmul.f32 %v2854, %v2862
        %v2865 = vsub.f32 1.0, %v2863
        %v2866 = vsub.f32 1.0, %v2864
        %v2867 = vmul.f32 %v2825, %v2865
        %v2868 = vmul.f32 %v2826, %v2866
        %v2869 = vadd.f32 %v2867, 1.0
        %v2870 = vadd.f32 %v2868, 1.0
        %v2871 = vmul.f32 %v2819, %v2869
        %v2872 = vmul.f32 %v2820, %v2870
        %2873 = vmatprep.subr.mxu0 0.0
        %2874 = vmatpush1.msra.mxu0 %v1427
        %2875 = vmatprep.subr.mxu0 0.0
        %2876 = vmatpush1.msra.mxu0 %v1426
        %2877 = vmatprep.subr.mxu0 0.0
        %2878 = vmatpush1.msra.mxu0 %v1425
        %2879 = vmatprep.subr.mxu0 0.0
        %2880 = vmatpush1.msra.mxu0 %v1424
        %2881 = vmatprep.subr.mxu0 0.0
        %2882 = vmatpush1.msra.mxu0 %v1423
        %2883 = vmatprep.subr.mxu0 0.0
        %2884 = vmatpush1.msra.mxu0 %v1422
        %2885 = vmatprep.subr.mxu0 0.0
        %2886 = vmatpush1.msra.mxu0 %v1421
        %2887 = vmatprep.subr.mxu0 0.0
        %2888 = vmatpush1.msra.mxu0 %v1420
        %2889 = vmatprep.subr.mxu0 0.0
        %2890 = vmatpush1.msra.mxu0 %v1419
        %2891 = vmatprep.subr.mxu0 0.0
        %2892 = vmatpush1.msra.mxu0 %v1418
        %2893 = vmatprep.subr.mxu0 0.0
        %2894 = vmatpush1.msra.mxu0 %v1417
        %2895 = vmatprep.subr.mxu0 0.0
        %2896 = vmatpush1.msra.mxu0 %v1416
        %2897 = vmatprep.subr.mxu0 0.0
        %2898 = vmatpush1.msra.mxu0 %v1415
        %2899 = vmatprep.subr.mxu0 0.0
        %2900 = vmatpush1.msra.mxu0 %v1414
        %2901 = vmatprep.subr.mxu0 0.0
        %2902 = vmatpush1.msra.mxu0 %v1413
        %2903 = vmatprep.subr.mxu0 0.0
        %2904 = vmatpush1.msra.mxu0 %v1412
        %2905 = vmatprep.subr.mxu0 0.0
        %2906 = vmatpush2.msra.mxu0 0.0
        %2907 = vmatprep.subr.mxu0 0.0
        %2908 = vmatpush2.msra.mxu0 0.0
        %2909 = vmatprep.subr.mxu0 0.0
        %2910 = vmatpush2.msra.mxu0 0.0
        %2911 = vmatprep.subr.mxu0 0.0
        %2912 = vmatpush2.msra.mxu0 0.0
        %2913 = vmatprep.subr.mxu0 0.0
        %2914 = vmatpush2.msra.mxu0 0.0
        %2915 = vmatprep.subr.mxu0 0.0
        %2916 = vmatpush2.msra.mxu0 0.0
        %2917 = vmatprep.subr.mxu0 0.0
        %2918 = vmatpush2.msra.mxu0 0.0
        %2919 = vmatprep.subr.mxu0 0.0
        %2920 = vmatpush2.msra.mxu0 0.0
        %2921 = vmatprep.subr.mxu0 0.0
        %2922 = vmatpush2.msra.mxu0 0.0
        %2923 = vmatprep.subr.mxu0 0.0
        %2924 = vmatpush2.msra.mxu0 0.0
        %2925 = vmatprep.subr.mxu0 0.0
        %2926 = vmatpush2.msra.mxu0 0.0
        %2927 = vmatprep.subr.mxu0 0.0
        %2928 = vmatpush2.msra.mxu0 0.0
        %2929 = vmatprep.subr.mxu0 0.0
        %2930 = vmatpush2.msra.mxu0 0.0
        %2931 = vmatprep.subr.mxu0 0.0
        %2932 = vmatpush2.msra.mxu0 0.0
        %2933 = vmatprep.subr.mxu0 0.0
        %2934 = vmatpush2.msra.mxu0 0.0
        %2935 = vmatprep.subr.mxu0 0.0
        %2936 = vmatpush2.msra.mxu0 0.0
        %2937 = vmatprep.mubr.f32.mxu0 0.0
        %2938 = vmatmul.mubr.f32.gmra.mxu0 %v2871
        %v2939 = vpop.f32.mrf.mxu0
        %v2940 = vadd.f32 %v1433, %v2939
        %v2941 = vpop.f32.mrf.mxu0
        %2942 = vmatprep.mubr.f32.mxu0 0.0
        %2943 = vmatmul.mubr.f32.gmra.mxu0 %v2872
        %v2944 = vpop.f32.mrf.mxu0
        %v2945 = vadd.f32 %v1433, %v2944
        %v2946 = vpop.f32.mrf.mxu0
        %2947 = vdwg.mxu0
        %v2948 = vadd.f32 %v2706, %v2940
        %v2949 = vadd.f32 %v2707, %v2945
        %v2950 = vsel %vm551, %v2948, 0.0
        %2951 = vadd.xlane.f32.xlu0 %v2950
        %v2952 = vpop.xlane.xlu0 %2951
        %v2953 = vsel %vm551, %v2949, 0.0
        %2954 = vadd.xlane.f32.xlu0 %v2953
        %v2955 = vpop.xlane.xlu0 %2954
        %v2956 = vmul.f32 %v2952, %v714
        %v2957 = vmul.f32 %v2955, %v714
        %v2958 = vsub.f32 %v2948, %v2956
        %v2959 = vsub.f32 %v2949, %v2957
        %v2960 = vmul.f32 %v2958, %v2958
        %v2961 = vmul.f32 %v2959, %v2959
        %v2962 = vsel %vm551, %v2960, 0.0
        %2963 = vadd.xlane.f32.xlu0 %v2962
        %v2964 = vpop.xlane.xlu0 %2963
        %v2965 = vsel %vm551, %v2961, 0.0
        %2966 = vadd.xlane.f32.xlu0 %v2965
        %v2967 = vpop.xlane.xlu0 %2966
        %v2968 = vmul.f32 %v2964, %v714
        %v2969 = vmul.f32 %v2967, %v714
        %v2970 = vadd.f32 %v2968, 1e-05
        %v2971 = vadd.f32 %v2969, 1e-05
        %v2972 = vrsqrt.pop %v2970
        %v2973 = vrsqrt.pop %v2971
        %v2974 = vmul.f32 %v2958, %v2972
        %v2975 = vmul.f32 %v2959, %v2973
        %v2976 = vmul.f32 %v2974, %v739
        %v2977 = vmul.f32 %v2975, %v739
        %v2978 = vadd.f32 %v2976, %v747
        %v2979 = vadd.f32 %v2977, %v747
        %v2981 = vsel %vm551, %v2978, 0
        %v2984 = vsel %vm551, %v2979, 0
        %2986 = vmatprep.subr.mxu0 0.0
        %2987 = vmatpush1.msra.mxu0 0.0
        %2988 = vmatprep.subr.mxu0 0.0
        %2989 = vmatpush1.msra.mxu0 0.0
        %2990 = vmatprep.subr.mxu0 0.0
        %2991 = vmatpush1.msra.mxu0 0.0
        %2992 = vmatprep.subr.mxu0 0.0
        %2993 = vmatpush1.msra.mxu0 0.0
        %2994 = vmatprep.subr.mxu0 0.0
        %2995 = vmatpush1.msra.mxu0 0.0
        %2996 = vmatprep.subr.mxu0 0.0
        %2997 = vmatpush1.msra.mxu0 0.0
        %2998 = vmatprep.subr.mxu0 0.0
        %2999 = vmatpush1.msra.mxu0 0.0
        %3000 = vmatprep.subr.mxu0 0.0
        %3001 = vmatpush1.msra.mxu0 0.0
        %3002 = vmatprep.subr.mxu0 0.0
        %3003 = vmatpush1.msra.mxu0 0.0
        %3004 = vmatprep.subr.mxu0 0.0
        %3005 = vmatpush1.msra.mxu0 0.0
        %3006 = vmatprep.subr.mxu0 0.0
        %3007 = vmatpush1.msra.mxu0 0.0
        %3008 = vmatprep.subr.mxu0 0.0
        %3009 = vmatpush1.msra.mxu0 0.0
        %3010 = vmatprep.subr.mxu0 0.0
        %3011 = vmatpush1.msra.mxu0 %v754
        %3012 = vmatprep.subr.mxu0 0.0
        %3013 = vmatpush1.msra.mxu0 %v753
        %3014 = vmatprep.subr.mxu0 0.0
        %3015 = vmatpush1.msra.mxu0 %v752
        %3016 = vmatprep.subr.mxu0 0.0
        %3017 = vmatpush1.msra.mxu0 %v751
        %3018 = vmatprep.subr.mxu0 0.0
        %3019 = vmatpush2.msra.mxu0 0.0
        %3020 = vmatprep.subr.mxu0 0.0
        %3021 = vmatpush2.msra.mxu0 0.0
        %3022 = vmatprep.subr.mxu0 0.0
        %3023 = vmatpush2.msra.mxu0 0.0
        %3024 = vmatprep.subr.mxu0 0.0
        %3025 = vmatpush2.msra.mxu0 0.0
        %3026 = vmatprep.subr.mxu0 0.0
        %3027 = vmatpush2.msra.mxu0 0.0
        %3028 = vmatprep.subr.mxu0 0.0
        %3029 = vmatpush2.msra.mxu0 0.0
        %3030 = vmatprep.subr.mxu0 0.0
        %3031 = vmatpush2.msra.mxu0 0.0
        %3032 = vmatprep.subr.mxu0 0.0
        %3033 = vmatpush2.msra.mxu0 0.0
        %3034 = vmatprep.subr.mxu0 0.0
        %3035 = vmatpush2.msra.mxu0 0.0
        %3036 = vmatprep.subr.mxu0 0.0
        %3037 = vmatpush2.msra.mxu0 0.0
        %3038 = vmatprep.subr.mxu0 0.0
        %3039 = vmatpush2.msra.mxu0 0.0
        %3040 = vmatprep.subr.mxu0 0.0
        %3041 = vmatpush2.msra.mxu0 0.0
        %3042 = vmatprep.subr.mxu0 0.0
        %3043 = vmatpush2.msra.mxu0 0.0
        %3044 = vmatprep.subr.mxu0 0.0
        %3045 = vmatpush2.msra.mxu0 0.0
        %3046 = vmatprep.subr.mxu0 0.0
        %3047 = vmatpush2.msra.mxu0 0.0
        %3048 = vmatprep.subr.mxu0 0.0
        %3049 = vmatpush2.msra.mxu0 0.0
        %3050 = vmatprep.mubr.f32.mxu0 0.0
        %3051 = vmatmul.mubr.f32.gmra.mxu0 %v2981
        %v3052 = vpop.f32.mrf.mxu0
        %v3053 = vadd.f32 %v760, %v3052
        %v3054 = vpop.f32.mrf.mxu0
        %3055 = vmatprep.mubr.f32.mxu0 0.0
        %3056 = vmatmul.mubr.f32.gmra.mxu0 %v2984
        %v3057 = vpop.f32.mrf.mxu0
        %v3058 = vadd.f32 %v760, %v3057
        %v3059 = vpop.f32.mrf.mxu0
        %3060 = vdwg.mxu0
        %v3062 = vsel %vm843, %v3053, 0
        %v3065 = vsel %vm843, %v3058, 0
        %3067 = vmatprep.subr.mxu0 0.0
        %3068 = vmatpush1.xpose.msra.mxu0 0.0
        %3069 = vmatprep.subr.mxu0 0.0
        %3070 = vmatpush1.xpose.msra.mxu0 0.0
        %3071 = vmatprep.subr.mxu0 0.0
        %3072 = vmatpush1.xpose.msra.mxu0 0.0
        %3073 = vmatprep.subr.mxu0 0.0
        %3074 = vmatpush1.xpose.msra.mxu0 0.0
        %3075 = vmatprep.subr.mxu0 0.0
        %3076 = vmatpush1.xpose.msra.mxu0 0.0
        %3077 = vmatprep.subr.mxu0 0.0
        %3078 = vmatpush1.xpose.msra.mxu0 0.0
        %3079 = vmatprep.subr.mxu0 0.0
        %3080 = vmatpush1.xpose.msra.mxu0 0.0
        %3081 = vmatprep.subr.mxu0 0.0
        %3082 = vmatpush1.xpose.msra.mxu0 0.0
        %3083 = vmatprep.subr.mxu0 0.0
        %3084 = vmatpush1.xpose.msra.mxu0 0.0
        %3085 = vmatprep.subr.mxu0 0.0
        %3086 = vmatpush1.xpose.msra.mxu0 0.0
        %3087 = vmatprep.subr.mxu0 0.0
        %3088 = vmatpush1.xpose.msra.mxu0 0.0
        %3089 = vmatprep.subr.mxu0 0.0
        %3090 = vmatpush1.xpose.msra.mxu0 0.0
        %3091 = vmatprep.subr.mxu0 0.0
        %3092 = vmatpush1.xpose.msra.mxu0 0.0
        %3093 = vmatprep.subr.mxu0 0.0
        %3094 = vmatpush1.xpose.msra.mxu0 0.0
        %3095 = vmatprep.subr.mxu0 0.0
        %3096 = vmatpush1.xpose.msra.mxu0 0.0
        %3097 = vmatprep.subr.mxu0 0.0
        %3098 = vmatpush1.xpose.msra.mxu0 %v851
        %3099 = vmatprep.subr.mxu0 0.0
        %3100 = vmatpush2.xpose.msra.mxu0 0.0
        %3101 = vmatprep.subr.mxu0 0.0
        %3102 = vmatpush2.xpose.msra.mxu0 0.0
        %3103 = vmatprep.subr.mxu0 0.0
        %3104 = vmatpush2.xpose.msra.mxu0 0.0
        %3105 = vmatprep.subr.mxu0 0.0
        %3106 = vmatpush2.xpose.msra.mxu0 0.0
        %3107 = vmatprep.subr.mxu0 0.0
        %3108 = vmatpush2.xpose.msra.mxu0 0.0
        %3109 = vmatprep.subr.mxu0 0.0
        %3110 = vmatpush2.xpose.msra.mxu0 0.0
        %3111 = vmatprep.subr.mxu0 0.0
        %3112 = vmatpush2.xpose.msra.mxu0 0.0
        %3113 = vmatprep.subr.mxu0 0.0
        %3114 = vmatpush2.xpose.msra.mxu0 0.0
        %3115 = vmatprep.subr.mxu0 0.0
        %3116 = vmatpush2.xpose.msra.mxu0 0.0
        %3117 = vmatprep.subr.mxu0 0.0
        %3118 = vmatpush2.xpose.msra.mxu0 0.0
        %3119 = vmatprep.subr.mxu0 0.0
        %3120 = vmatpush2.xpose.msra.mxu0 0.0
        %3121 = vmatprep.subr.mxu0 0.0
        %3122 = vmatpush2.xpose.msra.mxu0 0.0
        %3123 = vmatprep.subr.mxu0 0.0
        %3124 = vmatpush2.xpose.msra.mxu0 0.0
        %3125 = vmatprep.subr.mxu0 0.0
        %3126 = vmatpush2.xpose.msra.mxu0 0.0
        %3127 = vmatprep.subr.mxu0 0.0
        %3128 = vmatpush2.xpose.msra.mxu0 0.0
        %3129 = vmatprep.subr.mxu0 0.0
        %3130 = vmatpush2.xpose.msra.mxu0 0.0
        %3131 = vmatprep.mubr.f32.mxu0 0.0
        %3132 = vmatmul.mubr.f32.gmra.mxu0 %v3062
        %v3133 = vpop.f32.mrf.mxu0
        %v3134 = vadd.f32 0.0, %v3133
        %v3135 = vpop.f32.mrf.mxu0
        %3136 = vmatprep.mubr.f32.mxu0 0.0
        %3137 = vmatmul.mubr.f32.gmra.mxu0 %v3065
        %v3138 = vpop.f32.mrf.mxu0
        %v3139 = vadd.f32 0.0, %v3138
        %v3140 = vpop.f32.mrf.mxu0
        %3141 = vdwg.mxu0
        %v3142 = vmul.f32 %v3134, 0.25
        %v3143 = vmul.f32 %v3139, 0.25
        %3144 = vrot.lane.b32.xlu0 %v3053, 112
        %v3145 = vpop.permute.xlu0 %3144
        %3146 = vrot.lane.b32.xlu0 %v3058, 112
        %v3147 = vpop.permute.xlu0 %3146
        %v3148 = vsel %vm843, %v3145, 0
        %v3150 = vsel %vm843, %v3147, 0
        %3152 = vmatprep.subr.mxu0 0.0
        %3153 = vmatpush1.xpose.msra.mxu0 0.0
        %3154 = vmatprep.subr.mxu0 0.0
        %3155 = vmatpush1.xpose.msra.mxu0 0.0
        %3156 = vmatprep.subr.mxu0 0.0
        %3157 = vmatpush1.xpose.msra.mxu0 0.0
        %3158 = vmatprep.subr.mxu0 0.0
        %3159 = vmatpush1.xpose.msra.mxu0 0.0
        %3160 = vmatprep.subr.mxu0 0.0
        %3161 = vmatpush1.xpose.msra.mxu0 0.0
        %3162 = vmatprep.subr.mxu0 0.0
        %3163 = vmatpush1.xpose.msra.mxu0 0.0
        %3164 = vmatprep.subr.mxu0 0.0
        %3165 = vmatpush1.xpose.msra.mxu0 0.0
        %3166 = vmatprep.subr.mxu0 0.0
        %3167 = vmatpush1.xpose.msra.mxu0 0.0
        %3168 = vmatprep.subr.mxu0 0.0
        %3169 = vmatpush1.xpose.msra.mxu0 0.0
        %3170 = vmatprep.subr.mxu0 0.0
        %3171 = vmatpush1.xpose.msra.mxu0 0.0
        %3172 = vmatprep.subr.mxu0 0.0
        %3173 = vmatpush1.xpose.msra.mxu0 0.0
        %3174 = vmatprep.subr.mxu0 0.0
        %3175 = vmatpush1.xpose.msra.mxu0 0.0
        %3176 = vmatprep.subr.mxu0 0.0
        %3177 = vmatpush1.xpose.msra.mxu0 0.0
        %3178 = vmatprep.subr.mxu0 0.0
        %3179 = vmatpush1.xpose.msra.mxu0 0.0
        %3180 = vmatprep.subr.mxu0 0.0
        %3181 = vmatpush1.xpose.msra.mxu0 0.0
        %3182 = vmatprep.subr.mxu0 0.0
        %3183 = vmatpush1.xpose.msra.mxu0 %v940
        %3184 = vmatprep.subr.mxu0 0.0
        %3185 = vmatpush2.xpose.msra.mxu0 0.0
        %3186 = vmatprep.subr.mxu0 0.0
        %3187 = vmatpush2.xpose.msra.mxu0 0.0
        %3188 = vmatprep.subr.mxu0 0.0
        %3189 = vmatpush2.xpose.msra.mxu0 0.0
        %3190 = vmatprep.subr.mxu0 0.0
        %3191 = vmatpush2.xpose.msra.mxu0 0.0
        %3192 = vmatprep.subr.mxu0 0.0
        %3193 = vmatpush2.xpose.msra.mxu0 0.0
        %3194 = vmatprep.subr.mxu0 0.0
        %3195 = vmatpush2.xpose.msra.mxu0 0.0
        %3196 = vmatprep.subr.mxu0 0.0
        %3197 = vmatpush2.xpose.msra.mxu0 0.0
        %3198 = vmatprep.subr.mxu0 0.0
        %3199 = vmatpush2.xpose.msra.mxu0 0.0
        %3200 = vmatprep.subr.mxu0 0.0
        %3201 = vmatpush2.xpose.msra.mxu0 0.0
        %3202 = vmatprep.subr.mxu0 0.0
        %3203 = vmatpush2.xpose.msra.mxu0 0.0
        %3204 = vmatprep.subr.mxu0 0.0
        %3205 = vmatpush2.xpose.msra.mxu0 0.0
        %3206 = vmatprep.subr.mxu0 0.0
        %3207 = vmatpush2.xpose.msra.mxu0 0.0
        %3208 = vmatprep.subr.mxu0 0.0
        %3209 = vmatpush2.xpose.msra.mxu0 0.0
        %3210 = vmatprep.subr.mxu0 0.0
        %3211 = vmatpush2.xpose.msra.mxu0 0.0
        %3212 = vmatprep.subr.mxu0 0.0
        %3213 = vmatpush2.xpose.msra.mxu0 0.0
        %3214 = vmatprep.subr.mxu0 0.0
        %3215 = vmatpush2.xpose.msra.mxu0 0.0
        %3216 = vmatprep.mubr.f32.mxu0 0.0
        %3217 = vmatmul.mubr.f32.gmra.mxu0 %v3148
        %v3218 = vpop.f32.mrf.mxu0
        %v3219 = vadd.f32 0.0, %v3218
        %v3220 = vpop.f32.mrf.mxu0
        %3221 = vmatprep.mubr.f32.mxu0 0.0
        %3222 = vmatmul.mubr.f32.gmra.mxu0 %v3150
        %v3223 = vpop.f32.mrf.mxu0
        %v3224 = vadd.f32 0.0, %v3223
        %v3225 = vpop.f32.mrf.mxu0
        %3226 = vdwg.mxu0
        %v3227 = vmul.f32 %v3219, 0.25
        %v3228 = vmul.f32 %v3224, 0.25
        %v3229 = vmax.f32 %v3142, %v3227
        %v3230 = vmax.f32 %v3143, %v3228
        %v3231 = vsub.f32 %v3142, %v3229
        %v3232 = vsub.f32 %v3143, %v3230
        %v3233 = vmul.f32 %v3231, 1.442695
        %v3234 = vpow.pop %v3233
        %v3235 = vmul.f32 %v3232, 1.442695
        %v3236 = vpow.pop %v3235
        %v3237 = vsub.f32 %v3227, %v3229
        %v3238 = vsub.f32 %v3228, %v3230
        %v3239 = vmul.f32 %v3237, 1.442695
        %v3240 = vpow.pop %v3239
        %v3241 = vmul.f32 %v3238, 1.442695
        %v3242 = vpow.pop %v3241
        %v3243 = vadd.f32 %v3234, %v3240
        %v3244 = vadd.f32 %v3236, %v3242
        %v3245 = vrcp.pop %v3243
        %v3246 = vmul.f32 1.0, %v3245
        %v3247 = vrcp.pop %v3244
        %v3248 = vmul.f32 1.0, %v3247
        %v3249 = vmul.f32 %v3234, %v3246
        %v3250 = vmul.f32 %v3236, %v3248
        %v3252 = vsel %vm1041, %v3249, 0
        %v3255 = vsel %vm1041, %v3250, 0
        %3257 = vmatprep.subr.mxu0 0.0
        %3258 = vmatpush1.msra.mxu0 0.0
        %3259 = vmatprep.subr.mxu0 0.0
        %3260 = vmatpush1.msra.mxu0 0.0
        %3261 = vmatprep.subr.mxu0 0.0
        %3262 = vmatpush1.msra.mxu0 0.0
        %3263 = vmatprep.subr.mxu0 0.0
        %3264 = vmatpush1.msra.mxu0 0.0
        %3265 = vmatprep.subr.mxu0 0.0
        %3266 = vmatpush1.msra.mxu0 0.0
        %3267 = vmatprep.subr.mxu0 0.0
        %3268 = vmatpush1.msra.mxu0 0.0
        %3269 = vmatprep.subr.mxu0 0.0
        %3270 = vmatpush1.msra.mxu0 0.0
        %3271 = vmatprep.subr.mxu0 0.0
        %3272 = vmatpush1.msra.mxu0 0.0
        %3273 = vmatprep.subr.mxu0 0.0
        %3274 = vmatpush1.msra.mxu0 0.0
        %3275 = vmatprep.subr.mxu0 0.0
        %3276 = vmatpush1.msra.mxu0 0.0
        %3277 = vmatprep.subr.mxu0 0.0
        %3278 = vmatpush1.msra.mxu0 0.0
        %3279 = vmatprep.subr.mxu0 0.0
        %3280 = vmatpush1.msra.mxu0 0.0
        %3281 = vmatprep.subr.mxu0 0.0
        %3282 = vmatpush1.msra.mxu0 0.0
        %3283 = vmatprep.subr.mxu0 0.0
        %3284 = vmatpush1.msra.mxu0 0.0
        %3285 = vmatprep.subr.mxu0 0.0
        %3286 = vmatpush1.msra.mxu0 0.0
        %3287 = vmatprep.subr.mxu0 0.0
        %3288 = vmatpush1.msra.mxu0 %v703
        %3289 = vmatprep.subr.mxu0 0.0
        %3290 = vmatpush2.msra.mxu0 0.0
        %3291 = vmatprep.subr.mxu0 0.0
        %3292 = vmatpush2.msra.mxu0 0.0
        %3293 = vmatprep.subr.mxu0 0.0
        %3294 = vmatpush2.msra.mxu0 0.0
        %3295 = vmatprep.subr.mxu0 0.0
        %3296 = vmatpush2.msra.mxu0 0.0
        %3297 = vmatprep.subr.mxu0 0.0
        %3298 = vmatpush2.msra.mxu0 0.0
        %3299 = vmatprep.subr.mxu0 0.0
        %3300 = vmatpush2.msra.mxu0 0.0
        %3301 = vmatprep.subr.mxu0 0.0
        %3302 = vmatpush2.msra.mxu0 0.0
        %3303 = vmatprep.subr.mxu0 0.0
        %3304 = vmatpush2.msra.mxu0 0.0
        %3305 = vmatprep.subr.mxu0 0.0
        %3306 = vmatpush2.msra.mxu0 0.0
        %3307 = vmatprep.subr.mxu0 0.0
        %3308 = vmatpush2.msra.mxu0 0.0
        %3309 = vmatprep.subr.mxu0 0.0
        %3310 = vmatpush2.msra.mxu0 0.0
        %3311 = vmatprep.subr.mxu0 0.0
        %3312 = vmatpush2.msra.mxu0 0.0
        %3313 = vmatprep.subr.mxu0 0.0
        %3314 = vmatpush2.msra.mxu0 0.0
        %3315 = vmatprep.subr.mxu0 0.0
        %3316 = vmatpush2.msra.mxu0 0.0
        %3317 = vmatprep.subr.mxu0 0.0
        %3318 = vmatpush2.msra.mxu0 0.0
        %3319 = vmatprep.subr.mxu0 0.0
        %3320 = vmatpush2.msra.mxu0 0.0
        %3321 = vmatprep.mubr.f32.mxu0 0.0
        %3322 = vmatmul.mubr.f32.gmra.mxu0 %v3252
        %v3323 = vpop.f32.mrf.mxu0
        %v3324 = vadd.f32 0.0, %v3323
        %v3325 = vpop.f32.mrf.mxu0
        %3326 = vmatprep.mubr.f32.mxu0 0.0
        %3327 = vmatmul.mubr.f32.gmra.mxu0 %v3255
        %v3328 = vpop.f32.mrf.mxu0
        %v3329 = vadd.f32 0.0, %v3328
        %v3330 = vpop.f32.mrf.mxu0
        %3331 = vdwg.mxu0
        %v3332 = vmul.f32 %v3240, %v3246
        %v3333 = vmul.f32 %v3242, %v3248
        %v3335 = vsel %vm1041, %v3332, 0
        %v3338 = vsel %vm1041, %v3333, 0
        %3340 = vmatprep.subr.mxu0 0.0
        %3341 = vmatpush1.msra.mxu0 0.0
        %3342 = vmatprep.subr.mxu0 0.0
        %3343 = vmatpush1.msra.mxu0 0.0
        %3344 = vmatprep.subr.mxu0 0.0
        %3345 = vmatpush1.msra.mxu0 0.0
        %3346 = vmatprep.subr.mxu0 0.0
        %3347 = vmatpush1.msra.mxu0 0.0
        %3348 = vmatprep.subr.mxu0 0.0
        %3349 = vmatpush1.msra.mxu0 0.0
        %3350 = vmatprep.subr.mxu0 0.0
        %3351 = vmatpush1.msra.mxu0 0.0
        %3352 = vmatprep.subr.mxu0 0.0
        %3353 = vmatpush1.msra.mxu0 0.0
        %3354 = vmatprep.subr.mxu0 0.0
        %3355 = vmatpush1.msra.mxu0 0.0
        %3356 = vmatprep.subr.mxu0 0.0
        %3357 = vmatpush1.msra.mxu0 0.0
        %3358 = vmatprep.subr.mxu0 0.0
        %3359 = vmatpush1.msra.mxu0 0.0
        %3360 = vmatprep.subr.mxu0 0.0
        %3361 = vmatpush1.msra.mxu0 0.0
        %3362 = vmatprep.subr.mxu0 0.0
        %3363 = vmatpush1.msra.mxu0 0.0
        %3364 = vmatprep.subr.mxu0 0.0
        %3365 = vmatpush1.msra.mxu0 0.0
        %3366 = vmatprep.subr.mxu0 0.0
        %3367 = vmatpush1.msra.mxu0 0.0
        %3368 = vmatprep.subr.mxu0 0.0
        %3369 = vmatpush1.msra.mxu0 0.0
        %3370 = vmatprep.subr.mxu0 0.0
        %3371 = vmatpush1.msra.mxu0 %v1127
        %3372 = vmatprep.subr.mxu0 0.0
        %3373 = vmatpush2.msra.mxu0 0.0
        %3374 = vmatprep.subr.mxu0 0.0
        %3375 = vmatpush2.msra.mxu0 0.0
        %3376 = vmatprep.subr.mxu0 0.0
        %3377 = vmatpush2.msra.mxu0 0.0
        %3378 = vmatprep.subr.mxu0 0.0
        %3379 = vmatpush2.msra.mxu0 0.0
        %3380 = vmatprep.subr.mxu0 0.0
        %3381 = vmatpush2.msra.mxu0 0.0
        %3382 = vmatprep.subr.mxu0 0.0
        %3383 = vmatpush2.msra.mxu0 0.0
        %3384 = vmatprep.subr.mxu0 0.0
        %3385 = vmatpush2.msra.mxu0 0.0
        %3386 = vmatprep.subr.mxu0 0.0
        %3387 = vmatpush2.msra.mxu0 0.0
        %3388 = vmatprep.subr.mxu0 0.0
        %3389 = vmatpush2.msra.mxu0 0.0
        %3390 = vmatprep.subr.mxu0 0.0
        %3391 = vmatpush2.msra.mxu0 0.0
        %3392 = vmatprep.subr.mxu0 0.0
        %3393 = vmatpush2.msra.mxu0 0.0
        %3394 = vmatprep.subr.mxu0 0.0
        %3395 = vmatpush2.msra.mxu0 0.0
        %3396 = vmatprep.subr.mxu0 0.0
        %3397 = vmatpush2.msra.mxu0 0.0
        %3398 = vmatprep.subr.mxu0 0.0
        %3399 = vmatpush2.msra.mxu0 0.0
        %3400 = vmatprep.subr.mxu0 0.0
        %3401 = vmatpush2.msra.mxu0 0.0
        %3402 = vmatprep.subr.mxu0 0.0
        %3403 = vmatpush2.msra.mxu0 0.0
        %3404 = vmatprep.mubr.f32.mxu0 0.0
        %3405 = vmatmul.mubr.f32.gmra.mxu0 %v3335
        %v3406 = vpop.f32.mrf.mxu0
        %v3407 = vadd.f32 0.0, %v3406
        %v3408 = vpop.f32.mrf.mxu0
        %3409 = vmatprep.mubr.f32.mxu0 0.0
        %3410 = vmatmul.mubr.f32.gmra.mxu0 %v3338
        %v3411 = vpop.f32.mrf.mxu0
        %v3412 = vadd.f32 0.0, %v3411
        %v3413 = vpop.f32.mrf.mxu0
        %3414 = vdwg.mxu0
        %3417 = vrot.lane.b32.xlu0 %v3407, 16
        %v3418 = vpop.permute.xlu0 %3417
        %3419 = vrot.lane.b32.xlu0 %v3412, 16
        %v3420 = vpop.permute.xlu0 %3419
        %v3423 = vsel %vm843, %v3324, %v3418
        %v3424 = vsel %vm843, %v3329, %v3420
        %v3425 = vadd.f32 %v2948, %v3423
        %v3426 = vadd.f32 %v2949, %v3424
        %v3427 = vsel %vm551, %v3425, 0.0
        %3428 = vadd.xlane.f32.xlu0 %v3427
        %v3429 = vpop.xlane.xlu0 %3428
        %v3430 = vsel %vm551, %v3426, 0.0
        %3431 = vadd.xlane.f32.xlu0 %v3430
        %v3432 = vpop.xlane.xlu0 %3431
        %v3433 = vmul.f32 %v3429, %v714
        %v3434 = vmul.f32 %v3432, %v714
        %v3435 = vsub.f32 %v3425, %v3433
        %v3436 = vsub.f32 %v3426, %v3434
        %v3437 = vmul.f32 %v3435, %v3435
        %v3438 = vmul.f32 %v3436, %v3436
        %v3439 = vsel %vm551, %v3437, 0.0
        %3440 = vadd.xlane.f32.xlu0 %v3439
        %v3441 = vpop.xlane.xlu0 %3440
        %v3442 = vsel %vm551, %v3438, 0.0
        %3443 = vadd.xlane.f32.xlu0 %v3442
        %v3444 = vpop.xlane.xlu0 %3443
        %v3445 = vmul.f32 %v3441, %v714
        %v3446 = vmul.f32 %v3444, %v714
        %v3447 = vadd.f32 %v3445, 1e-05
        %v3448 = vadd.f32 %v3446, 1e-05
        %v3449 = vrsqrt.pop %v3447
        %v3450 = vrsqrt.pop %v3448
        %v3451 = vmul.f32 %v3435, %v3449
        %v3452 = vmul.f32 %v3436, %v3450
        %v3453 = vmul.f32 %v3451, %v1254
        %v3454 = vmul.f32 %v3452, %v1254
        %v3455 = vadd.f32 %v3453, %v1262
        %v3456 = vadd.f32 %v3454, %v1262
        %v3458 = vsel %vm551, %v3455, 0
        %v3461 = vsel %vm551, %v3456, 0
        %3463 = vmatprep.subr.mxu0 0.0
        %3464 = vmatpush1.msra.mxu0 0.0
        %3465 = vmatprep.subr.mxu0 0.0
        %3466 = vmatpush1.msra.mxu0 0.0
        %3467 = vmatprep.subr.mxu0 0.0
        %3468 = vmatpush1.msra.mxu0 0.0
        %3469 = vmatprep.subr.mxu0 0.0
        %3470 = vmatpush1.msra.mxu0 0.0
        %3471 = vmatprep.subr.mxu0 0.0
        %3472 = vmatpush1.msra.mxu0 0.0
        %3473 = vmatprep.subr.mxu0 0.0
        %3474 = vmatpush1.msra.mxu0 0.0
        %3475 = vmatprep.subr.mxu0 0.0
        %3476 = vmatpush1.msra.mxu0 0.0
        %3477 = vmatprep.subr.mxu0 0.0
        %3478 = vmatpush1.msra.mxu0 0.0
        %3479 = vmatprep.subr.mxu0 0.0
        %3480 = vmatpush1.msra.mxu0 0.0
        %3481 = vmatprep.subr.mxu0 0.0
        %3482 = vmatpush1.msra.mxu0 0.0
        %3483 = vmatprep.subr.mxu0 0.0
        %3484 = vmatpush1.msra.mxu0 0.0
        %3485 = vmatprep.subr.mxu0 0.0
        %3486 = vmatpush1.msra.mxu0 0.0
        %3487 = vmatprep.subr.mxu0 0.0
        %3488 = vmatpush1.msra.mxu0 %v1269
        %3489 = vmatprep.subr.mxu0 0.0
        %3490 = vmatpush1.msra.mxu0 %v1268
        %3491 = vmatprep.subr.mxu0 0.0
        %3492 = vmatpush1.msra.mxu0 %v1267
        %3493 = vmatprep.subr.mxu0 0.0
        %3494 = vmatpush1.msra.mxu0 %v1266
        %3495 = vmatprep.subr.mxu0 0.0
        %3496 = vmatpush2.msra.mxu0 0.0
        %3497 = vmatprep.subr.mxu0 0.0
        %3498 = vmatpush2.msra.mxu0 0.0
        %3499 = vmatprep.subr.mxu0 0.0
        %3500 = vmatpush2.msra.mxu0 0.0
        %3501 = vmatprep.subr.mxu0 0.0
        %3502 = vmatpush2.msra.mxu0 0.0
        %3503 = vmatprep.subr.mxu0 0.0
        %3504 = vmatpush2.msra.mxu0 0.0
        %3505 = vmatprep.subr.mxu0 0.0
        %3506 = vmatpush2.msra.mxu0 0.0
        %3507 = vmatprep.subr.mxu0 0.0
        %3508 = vmatpush2.msra.mxu0 0.0
        %3509 = vmatprep.subr.mxu0 0.0
        %3510 = vmatpush2.msra.mxu0 0.0
        %3511 = vmatprep.subr.mxu0 0.0
        %3512 = vmatpush2.msra.mxu0 0.0
        %3513 = vmatprep.subr.mxu0 0.0
        %3514 = vmatpush2.msra.mxu0 0.0
        %3515 = vmatprep.subr.mxu0 0.0
        %3516 = vmatpush2.msra.mxu0 0.0
        %3517 = vmatprep.subr.mxu0 0.0
        %3518 = vmatpush2.msra.mxu0 0.0
        %3519 = vmatprep.subr.mxu0 0.0
        %3520 = vmatpush2.msra.mxu0 0.0
        %3521 = vmatprep.subr.mxu0 0.0
        %3522 = vmatpush2.msra.mxu0 0.0
        %3523 = vmatprep.subr.mxu0 0.0
        %3524 = vmatpush2.msra.mxu0 0.0
        %3525 = vmatprep.subr.mxu0 0.0
        %3526 = vmatpush2.msra.mxu0 0.0
        %3527 = vmatprep.mubr.f32.mxu0 0.0
        %3528 = vmatmul.mubr.f32.gmra.mxu0 %v3458
        %v3529 = vpop.f32.mrf.mxu0
        %v3530 = vadd.f32 %v1275, %v3529
        %v3531 = vpop.f32.mrf.mxu0
        %3532 = vmatprep.mubr.f32.mxu0 0.0
        %3533 = vmatmul.mubr.f32.gmra.mxu0 %v3461
        %v3534 = vpop.f32.mrf.mxu0
        %v3535 = vadd.f32 %v1275, %v3534
        %v3536 = vpop.f32.mrf.mxu0
        %3537 = vdwg.mxu0
        %v3538 = vmul.f32 %v3530, 0.5
        %v3539 = vmul.f32 %v3535, 0.5
        %v3540 = vmul.f32 %v3530, 0.70710677
        %v3541 = vmul.f32 %v3535, 0.70710677
        %vm3542 = vcmp.ge.f32.partialorder %v3540, 0.0
        %vm3543 = vcmp.ge.f32.partialorder %v3541, 0.0
        %v3544 = vsel %vm3542, 1.0, -1.0
        %v3545 = vsel %vm3543, 1.0, -1.0
        %v3546 = vand.u32 2147483647, %v3540
        %v3547 = vand.u32 2147483647, %v3541
        %v3548 = vmul.f32 %v3546, 0.3275911
        %v3549 = vmul.f32 %v3547, 0.3275911
        %v3550 = vadd.f32 %v3548, 1.0
        %v3551 = vadd.f32 %v3549, 1.0
        %v3552 = vrcp.pop %v3550
        %v3553 = vmul.f32 1.0, %v3552
        %v3554 = vrcp.pop %v3551
        %v3555 = vmul.f32 1.0, %v3554
        %v3556 = vmul.f32 %v3553, 1.0614054
        %v3557 = vmul.f32 %v3555, 1.0614054
        %v3558 = vadd.f32 %v3556, -1.4531521
        %v3559 = vadd.f32 %v3557, -1.4531521
        %v3560 = vmul.f32 %v3558, %v3553
        %v3561 = vmul.f32 %v3559, %v3555
        %v3562 = vadd.f32 %v3560, 1.4214138
        %v3563 = vadd.f32 %v3561, 1.4214138
        %v3564 = vmul.f32 %v3562, %v3553
        %v3565 = vmul.f32 %v3563, %v3555
        %v3566 = vadd.f32 %v3564, -0.28449672
        %v3567 = vadd.f32 %v3565, -0.28449672
        %v3568 = vmul.f32 %v3566, %v3553
        %v3569 = vmul.f32 %v3567, %v3555
        %v3570 = vadd.f32 %v3568, 0.2548296
        %v3571 = vadd.f32 %v3569, 0.2548296
        %v3572 = vmul.f32 %v3570, %v3553
        %v3573 = vmul.f32 %v3571, %v3555
        %v3574 = vsub.f32 0.0, %v3546
        %v3575 = vsub.f32 0.0, %v3547
        %v3576 = vmul.f32 %v3574, %v3546
        %v3577 = vmul.f32 %v3575, %v3547
        %v3578 = vmul.f32 %v3576, 1.442695
        %v3579 = vpow.pop %v3578
        %v3580 = vmul.f32 %v3577, 1.442695
        %v3581 = vpow.pop %v3580
        %v3582 = vmul.f32 %v3572, %v3579
        %v3583 = vmul.f32 %v3573, %v3581
        %v3584 = vsub.f32 1.0, %v3582
        %v3585 = vsub.f32 1.0, %v3583
        %v3586 = vmul.f32 %v3544, %v3584
        %v3587 = vmul.f32 %v3545, %v3585
        %v3588 = vadd.f32 %v3586, 1.0
        %v3589 = vadd.f32 %v3587, 1.0
        %v3590 = vmul.f32 %v3538, %v3588
        %v3591 = vmul.f32 %v3539, %v3589
        %3592 = vmatprep.subr.mxu0 0.0
        %3593 = vmatpush1.msra.mxu0 %v1427
        %3594 = vmatprep.subr.mxu0 0.0
        %3595 = vmatpush1.msra.mxu0 %v1426
        %3596 = vmatprep.subr.mxu0 0.0
        %3597 = vmatpush1.msra.mxu0 %v1425
        %3598 = vmatprep.subr.mxu0 0.0
        %3599 = vmatpush1.msra.mxu0 %v1424
        %3600 = vmatprep.subr.mxu0 0.0
        %3601 = vmatpush1.msra.mxu0 %v1423
        %3602 = vmatprep.subr.mxu0 0.0
        %3603 = vmatpush1.msra.mxu0 %v1422
        %3604 = vmatprep.subr.mxu0 0.0
        %3605 = vmatpush1.msra.mxu0 %v1421
        %3606 = vmatprep.subr.mxu0 0.0
        %3607 = vmatpush1.msra.mxu0 %v1420
        %3608 = vmatprep.subr.mxu0 0.0
        %3609 = vmatpush1.msra.mxu0 %v1419
        %3610 = vmatprep.subr.mxu0 0.0
        %3611 = vmatpush1.msra.mxu0 %v1418
        %3612 = vmatprep.subr.mxu0 0.0
        %3613 = vmatpush1.msra.mxu0 %v1417
        %3614 = vmatprep.subr.mxu0 0.0
        %3615 = vmatpush1.msra.mxu0 %v1416
        %3616 = vmatprep.subr.mxu0 0.0
        %3617 = vmatpush1.msra.mxu0 %v1415
        %3618 = vmatprep.subr.mxu0 0.0
        %3619 = vmatpush1.msra.mxu0 %v1414
        %3620 = vmatprep.subr.mxu0 0.0
        %3621 = vmatpush1.msra.mxu0 %v1413
        %3622 = vmatprep.subr.mxu0 0.0
        %3623 = vmatpush1.msra.mxu0 %v1412
        %3624 = vmatprep.subr.mxu0 0.0
        %3625 = vmatpush2.msra.mxu0 0.0
        %3626 = vmatprep.subr.mxu0 0.0
        %3627 = vmatpush2.msra.mxu0 0.0
        %3628 = vmatprep.subr.mxu0 0.0
        %3629 = vmatpush2.msra.mxu0 0.0
        %3630 = vmatprep.subr.mxu0 0.0
        %3631 = vmatpush2.msra.mxu0 0.0
        %3632 = vmatprep.subr.mxu0 0.0
        %3633 = vmatpush2.msra.mxu0 0.0
        %3634 = vmatprep.subr.mxu0 0.0
        %3635 = vmatpush2.msra.mxu0 0.0
        %3636 = vmatprep.subr.mxu0 0.0
        %3637 = vmatpush2.msra.mxu0 0.0
        %3638 = vmatprep.subr.mxu0 0.0
        %3639 = vmatpush2.msra.mxu0 0.0
        %3640 = vmatprep.subr.mxu0 0.0
        %3641 = vmatpush2.msra.mxu0 0.0
        %3642 = vmatprep.subr.mxu0 0.0
        %3643 = vmatpush2.msra.mxu0 0.0
        %3644 = vmatprep.subr.mxu0 0.0
        %3645 = vmatpush2.msra.mxu0 0.0
        %3646 = vmatprep.subr.mxu0 0.0
        %3647 = vmatpush2.msra.mxu0 0.0
        %3648 = vmatprep.subr.mxu0 0.0
        %3649 = vmatpush2.msra.mxu0 0.0
        %3650 = vmatprep.subr.mxu0 0.0
        %3651 = vmatpush2.msra.mxu0 0.0
        %3652 = vmatprep.subr.mxu0 0.0
        %3653 = vmatpush2.msra.mxu0 0.0
        %3654 = vmatprep.subr.mxu0 0.0
        %3655 = vmatpush2.msra.mxu0 0.0
        %3656 = vmatprep.mubr.f32.mxu0 0.0
        %3657 = vmatmul.mubr.f32.gmra.mxu0 %v3590
        %v3658 = vpop.f32.mrf.mxu0
        %v3659 = vadd.f32 %v1433, %v3658
        %v3660 = vpop.f32.mrf.mxu0
        %3661 = vmatprep.mubr.f32.mxu0 0.0
        %3662 = vmatmul.mubr.f32.gmra.mxu0 %v3591
        %v3663 = vpop.f32.mrf.mxu0
        %v3664 = vadd.f32 %v1433, %v3663
        %v3665 = vpop.f32.mrf.mxu0
        %3666 = vdwg.mxu0
        %v3667 = vadd.f32 %v3425, %v3659
        %v3668 = vadd.f32 %v3426, %v3664
        %v3669 = vsel %vm551, %v3667, 0.0
        %3670 = vadd.xlane.f32.xlu0 %v3669
        %v3671 = vpop.xlane.xlu0 %3670
        %v3672 = vsel %vm551, %v3668, 0.0
        %3673 = vadd.xlane.f32.xlu0 %v3672
        %v3674 = vpop.xlane.xlu0 %3673
        %v3675 = vmul.f32 %v3671, %v714
        %v3676 = vmul.f32 %v3674, %v714
        %v3677 = vsub.f32 %v3667, %v3675
        %v3678 = vsub.f32 %v3668, %v3676
        %v3679 = vmul.f32 %v3677, %v3677
        %v3680 = vmul.f32 %v3678, %v3678
        %v3681 = vsel %vm551, %v3679, 0.0
        %3682 = vadd.xlane.f32.xlu0 %v3681
        %v3683 = vpop.xlane.xlu0 %3682
        %v3684 = vsel %vm551, %v3680, 0.0
        %3685 = vadd.xlane.f32.xlu0 %v3684
        %v3686 = vpop.xlane.xlu0 %3685
        %v3687 = vmul.f32 %v3683, %v714
        %v3688 = vmul.f32 %v3686, %v714
        %v3689 = vadd.f32 %v3687, 1e-05
        %v3690 = vadd.f32 %v3688, 1e-05
        %v3691 = vrsqrt.pop %v3689
        %v3692 = vrsqrt.pop %v3690
        %v3693 = vmul.f32 %v3677, %v3691
        %v3694 = vmul.f32 %v3678, %v3692
        %v3695 = vmul.f32 %v3693, %v739
        %v3696 = vmul.f32 %v3694, %v739
        %v3697 = vadd.f32 %v3695, %v747
        %v3698 = vadd.f32 %v3696, %v747
        %v3700 = vsel %vm551, %v3697, 0
        %v3703 = vsel %vm551, %v3698, 0
        %3705 = vmatprep.subr.mxu0 0.0
        %3706 = vmatpush1.msra.mxu0 0.0
        %3707 = vmatprep.subr.mxu0 0.0
        %3708 = vmatpush1.msra.mxu0 0.0
        %3709 = vmatprep.subr.mxu0 0.0
        %3710 = vmatpush1.msra.mxu0 0.0
        %3711 = vmatprep.subr.mxu0 0.0
        %3712 = vmatpush1.msra.mxu0 0.0
        %3713 = vmatprep.subr.mxu0 0.0
        %3714 = vmatpush1.msra.mxu0 0.0
        %3715 = vmatprep.subr.mxu0 0.0
        %3716 = vmatpush1.msra.mxu0 0.0
        %3717 = vmatprep.subr.mxu0 0.0
        %3718 = vmatpush1.msra.mxu0 0.0
        %3719 = vmatprep.subr.mxu0 0.0
        %3720 = vmatpush1.msra.mxu0 0.0
        %3721 = vmatprep.subr.mxu0 0.0
        %3722 = vmatpush1.msra.mxu0 0.0
        %3723 = vmatprep.subr.mxu0 0.0
        %3724 = vmatpush1.msra.mxu0 0.0
        %3725 = vmatprep.subr.mxu0 0.0
        %3726 = vmatpush1.msra.mxu0 0.0
        %3727 = vmatprep.subr.mxu0 0.0
        %3728 = vmatpush1.msra.mxu0 0.0
        %3729 = vmatprep.subr.mxu0 0.0
        %3730 = vmatpush1.msra.mxu0 %v754
        %3731 = vmatprep.subr.mxu0 0.0
        %3732 = vmatpush1.msra.mxu0 %v753
        %3733 = vmatprep.subr.mxu0 0.0
        %3734 = vmatpush1.msra.mxu0 %v752
        %3735 = vmatprep.subr.mxu0 0.0
        %3736 = vmatpush1.msra.mxu0 %v751
        %3737 = vmatprep.subr.mxu0 0.0
        %3738 = vmatpush2.msra.mxu0 0.0
        %3739 = vmatprep.subr.mxu0 0.0
        %3740 = vmatpush2.msra.mxu0 0.0
        %3741 = vmatprep.subr.mxu0 0.0
        %3742 = vmatpush2.msra.mxu0 0.0
        %3743 = vmatprep.subr.mxu0 0.0
        %3744 = vmatpush2.msra.mxu0 0.0
        %3745 = vmatprep.subr.mxu0 0.0
        %3746 = vmatpush2.msra.mxu0 0.0
        %3747 = vmatprep.subr.mxu0 0.0
        %3748 = vmatpush2.msra.mxu0 0.0
        %3749 = vmatprep.subr.mxu0 0.0
        %3750 = vmatpush2.msra.mxu0 0.0
        %3751 = vmatprep.subr.mxu0 0.0
        %3752 = vmatpush2.msra.mxu0 0.0
        %3753 = vmatprep.subr.mxu0 0.0
        %3754 = vmatpush2.msra.mxu0 0.0
        %3755 = vmatprep.subr.mxu0 0.0
        %3756 = vmatpush2.msra.mxu0 0.0
        %3757 = vmatprep.subr.mxu0 0.0
        %3758 = vmatpush2.msra.mxu0 0.0
        %3759 = vmatprep.subr.mxu0 0.0
        %3760 = vmatpush2.msra.mxu0 0.0
        %3761 = vmatprep.subr.mxu0 0.0
        %3762 = vmatpush2.msra.mxu0 0.0
        %3763 = vmatprep.subr.mxu0 0.0
        %3764 = vmatpush2.msra.mxu0 0.0
        %3765 = vmatprep.subr.mxu0 0.0
        %3766 = vmatpush2.msra.mxu0 0.0
        %3767 = vmatprep.subr.mxu0 0.0
        %3768 = vmatpush2.msra.mxu0 0.0
        %3769 = vmatprep.mubr.f32.mxu0 0.0
        %3770 = vmatmul.mubr.f32.gmra.mxu0 %v3700
        %v3771 = vpop.f32.mrf.mxu0
        %v3772 = vadd.f32 %v760, %v3771
        %v3773 = vpop.f32.mrf.mxu0
        %3774 = vmatprep.mubr.f32.mxu0 0.0
        %3775 = vmatmul.mubr.f32.gmra.mxu0 %v3703
        %v3776 = vpop.f32.mrf.mxu0
        %v3777 = vadd.f32 %v760, %v3776
        %v3778 = vpop.f32.mrf.mxu0
        %3779 = vdwg.mxu0
        %v3781 = vsel %vm843, %v3772, 0
        %v3784 = vsel %vm843, %v3777, 0
        %3786 = vmatprep.subr.mxu0 0.0
        %3787 = vmatpush1.xpose.msra.mxu0 0.0
        %3788 = vmatprep.subr.mxu0 0.0
        %3789 = vmatpush1.xpose.msra.mxu0 0.0
        %3790 = vmatprep.subr.mxu0 0.0
        %3791 = vmatpush1.xpose.msra.mxu0 0.0
        %3792 = vmatprep.subr.mxu0 0.0
        %3793 = vmatpush1.xpose.msra.mxu0 0.0
        %3794 = vmatprep.subr.mxu0 0.0
        %3795 = vmatpush1.xpose.msra.mxu0 0.0
        %3796 = vmatprep.subr.mxu0 0.0
        %3797 = vmatpush1.xpose.msra.mxu0 0.0
        %3798 = vmatprep.subr.mxu0 0.0
        %3799 = vmatpush1.xpose.msra.mxu0 0.0
        %3800 = vmatprep.subr.mxu0 0.0
        %3801 = vmatpush1.xpose.msra.mxu0 0.0
        %3802 = vmatprep.subr.mxu0 0.0
        %3803 = vmatpush1.xpose.msra.mxu0 0.0
        %3804 = vmatprep.subr.mxu0 0.0
        %3805 = vmatpush1.xpose.msra.mxu0 0.0
        %3806 = vmatprep.subr.mxu0 0.0
        %3807 = vmatpush1.xpose.msra.mxu0 0.0
        %3808 = vmatprep.subr.mxu0 0.0
        %3809 = vmatpush1.xpose.msra.mxu0 0.0
        %3810 = vmatprep.subr.mxu0 0.0
        %3811 = vmatpush1.xpose.msra.mxu0 0.0
        %3812 = vmatprep.subr.mxu0 0.0
        %3813 = vmatpush1.xpose.msra.mxu0 0.0
        %3814 = vmatprep.subr.mxu0 0.0
        %3815 = vmatpush1.xpose.msra.mxu0 0.0
        %3816 = vmatprep.subr.mxu0 0.0
        %3817 = vmatpush1.xpose.msra.mxu0 %v851
        %3818 = vmatprep.subr.mxu0 0.0
        %3819 = vmatpush2.xpose.msra.mxu0 0.0
        %3820 = vmatprep.subr.mxu0 0.0
        %3821 = vmatpush2.xpose.msra.mxu0 0.0
        %3822 = vmatprep.subr.mxu0 0.0
        %3823 = vmatpush2.xpose.msra.mxu0 0.0
        %3824 = vmatprep.subr.mxu0 0.0
        %3825 = vmatpush2.xpose.msra.mxu0 0.0
        %3826 = vmatprep.subr.mxu0 0.0
        %3827 = vmatpush2.xpose.msra.mxu0 0.0
        %3828 = vmatprep.subr.mxu0 0.0
        %3829 = vmatpush2.xpose.msra.mxu0 0.0
        %3830 = vmatprep.subr.mxu0 0.0
        %3831 = vmatpush2.xpose.msra.mxu0 0.0
        %3832 = vmatprep.subr.mxu0 0.0
        %3833 = vmatpush2.xpose.msra.mxu0 0.0
        %3834 = vmatprep.subr.mxu0 0.0
        %3835 = vmatpush2.xpose.msra.mxu0 0.0
        %3836 = vmatprep.subr.mxu0 0.0
        %3837 = vmatpush2.xpose.msra.mxu0 0.0
        %3838 = vmatprep.subr.mxu0 0.0
        %3839 = vmatpush2.xpose.msra.mxu0 0.0
        %3840 = vmatprep.subr.mxu0 0.0
        %3841 = vmatpush2.xpose.msra.mxu0 0.0
        %3842 = vmatprep.subr.mxu0 0.0
        %3843 = vmatpush2.xpose.msra.mxu0 0.0
        %3844 = vmatprep.subr.mxu0 0.0
        %3845 = vmatpush2.xpose.msra.mxu0 0.0
        %3846 = vmatprep.subr.mxu0 0.0
        %3847 = vmatpush2.xpose.msra.mxu0 0.0
        %3848 = vmatprep.subr.mxu0 0.0
        %3849 = vmatpush2.xpose.msra.mxu0 0.0
        %3850 = vmatprep.mubr.f32.mxu0 0.0
        %3851 = vmatmul.mubr.f32.gmra.mxu0 %v3781
        %v3852 = vpop.f32.mrf.mxu0
        %v3853 = vadd.f32 0.0, %v3852
        %v3854 = vpop.f32.mrf.mxu0
        %3855 = vmatprep.mubr.f32.mxu0 0.0
        %3856 = vmatmul.mubr.f32.gmra.mxu0 %v3784
        %v3857 = vpop.f32.mrf.mxu0
        %v3858 = vadd.f32 0.0, %v3857
        %v3859 = vpop.f32.mrf.mxu0
        %3860 = vdwg.mxu0
        %v3861 = vmul.f32 %v3853, 0.25
        %v3862 = vmul.f32 %v3858, 0.25
        %3863 = vrot.lane.b32.xlu0 %v3772, 112
        %v3864 = vpop.permute.xlu0 %3863
        %3865 = vrot.lane.b32.xlu0 %v3777, 112
        %v3866 = vpop.permute.xlu0 %3865
        %v3867 = vsel %vm843, %v3864, 0
        %v3869 = vsel %vm843, %v3866, 0
        %3871 = vmatprep.subr.mxu0 0.0
        %3872 = vmatpush1.xpose.msra.mxu0 0.0
        %3873 = vmatprep.subr.mxu0 0.0
        %3874 = vmatpush1.xpose.msra.mxu0 0.0
        %3875 = vmatprep.subr.mxu0 0.0
        %3876 = vmatpush1.xpose.msra.mxu0 0.0
        %3877 = vmatprep.subr.mxu0 0.0
        %3878 = vmatpush1.xpose.msra.mxu0 0.0
        %3879 = vmatprep.subr.mxu0 0.0
        %3880 = vmatpush1.xpose.msra.mxu0 0.0
        %3881 = vmatprep.subr.mxu0 0.0
        %3882 = vmatpush1.xpose.msra.mxu0 0.0
        %3883 = vmatprep.subr.mxu0 0.0
        %3884 = vmatpush1.xpose.msra.mxu0 0.0
        %3885 = vmatprep.subr.mxu0 0.0
        %3886 = vmatpush1.xpose.msra.mxu0 0.0
        %3887 = vmatprep.subr.mxu0 0.0
        %3888 = vmatpush1.xpose.msra.mxu0 0.0
        %3889 = vmatprep.subr.mxu0 0.0
        %3890 = vmatpush1.xpose.msra.mxu0 0.0
        %3891 = vmatprep.subr.mxu0 0.0
        %3892 = vmatpush1.xpose.msra.mxu0 0.0
        %3893 = vmatprep.subr.mxu0 0.0
        %3894 = vmatpush1.xpose.msra.mxu0 0.0
        %3895 = vmatprep.subr.mxu0 0.0
        %3896 = vmatpush1.xpose.msra.mxu0 0.0
        %3897 = vmatprep.subr.mxu0 0.0
        %3898 = vmatpush1.xpose.msra.mxu0 0.0
        %3899 = vmatprep.subr.mxu0 0.0
        %3900 = vmatpush1.xpose.msra.mxu0 0.0
        %3901 = vmatprep.subr.mxu0 0.0
        %3902 = vmatpush1.xpose.msra.mxu0 %v940
        %3903 = vmatprep.subr.mxu0 0.0
        %3904 = vmatpush2.xpose.msra.mxu0 0.0
        %3905 = vmatprep.subr.mxu0 0.0
        %3906 = vmatpush2.xpose.msra.mxu0 0.0
        %3907 = vmatprep.subr.mxu0 0.0
        %3908 = vmatpush2.xpose.msra.mxu0 0.0
        %3909 = vmatprep.subr.mxu0 0.0
        %3910 = vmatpush2.xpose.msra.mxu0 0.0
        %3911 = vmatprep.subr.mxu0 0.0
        %3912 = vmatpush2.xpose.msra.mxu0 0.0
        %3913 = vmatprep.subr.mxu0 0.0
        %3914 = vmatpush2.xpose.msra.mxu0 0.0
        %3915 = vmatprep.subr.mxu0 0.0
        %3916 = vmatpush2.xpose.msra.mxu0 0.0
        %3917 = vmatprep.subr.mxu0 0.0
        %3918 = vmatpush2.xpose.msra.mxu0 0.0
        %3919 = vmatprep.subr.mxu0 0.0
        %3920 = vmatpush2.xpose.msra.mxu0 0.0
        %3921 = vmatprep.subr.mxu0 0.0
        %3922 = vmatpush2.xpose.msra.mxu0 0.0
        %3923 = vmatprep.subr.mxu0 0.0
        %3924 = vmatpush2.xpose.msra.mxu0 0.0
        %3925 = vmatprep.subr.mxu0 0.0
        %3926 = vmatpush2.xpose.msra.mxu0 0.0
        %3927 = vmatprep.subr.mxu0 0.0
        %3928 = vmatpush2.xpose.msra.mxu0 0.0
        %3929 = vmatprep.subr.mxu0 0.0
        %3930 = vmatpush2.xpose.msra.mxu0 0.0
        %3931 = vmatprep.subr.mxu0 0.0
        %3932 = vmatpush2.xpose.msra.mxu0 0.0
        %3933 = vmatprep.subr.mxu0 0.0
        %3934 = vmatpush2.xpose.msra.mxu0 0.0
        %3935 = vmatprep.mubr.f32.mxu0 0.0
        %3936 = vmatmul.mubr.f32.gmra.mxu0 %v3867
        %v3937 = vpop.f32.mrf.mxu0
        %v3938 = vadd.f32 0.0, %v3937
        %v3939 = vpop.f32.mrf.mxu0
        %3940 = vmatprep.mubr.f32.mxu0 0.0
        %3941 = vmatmul.mubr.f32.gmra.mxu0 %v3869
        %v3942 = vpop.f32.mrf.mxu0
        %v3943 = vadd.f32 0.0, %v3942
        %v3944 = vpop.f32.mrf.mxu0
        %3945 = vdwg.mxu0
        %v3946 = vmul.f32 %v3938, 0.25
        %v3947 = vmul.f32 %v3943, 0.25
        %v3948 = vmax.f32 %v3861, %v3946
        %v3949 = vmax.f32 %v3862, %v3947
        %v3950 = vsub.f32 %v3861, %v3948
        %v3951 = vsub.f32 %v3862, %v3949
        %v3952 = vmul.f32 %v3950, 1.442695
        %v3953 = vpow.pop %v3952
        %v3954 = vmul.f32 %v3951, 1.442695
        %v3955 = vpow.pop %v3954
        %v3956 = vsub.f32 %v3946, %v3948
        %v3957 = vsub.f32 %v3947, %v3949
        %v3958 = vmul.f32 %v3956, 1.442695
        %v3959 = vpow.pop %v3958
        %v3960 = vmul.f32 %v3957, 1.442695
        %v3961 = vpow.pop %v3960
        %v3962 = vadd.f32 %v3953, %v3959
        %v3963 = vadd.f32 %v3955, %v3961
        %v3964 = vrcp.pop %v3962
        %v3965 = vmul.f32 1.0, %v3964
        %v3966 = vrcp.pop %v3963
        %v3967 = vmul.f32 1.0, %v3966
        %v3968 = vmul.f32 %v3953, %v3965
        %v3969 = vmul.f32 %v3955, %v3967
        %v3971 = vsel %vm1041, %v3968, 0
        %v3974 = vsel %vm1041, %v3969, 0
        %3976 = vmatprep.subr.mxu0 0.0
        %3977 = vmatpush1.msra.mxu0 0.0
        %3978 = vmatprep.subr.mxu0 0.0
        %3979 = vmatpush1.msra.mxu0 0.0
        %3980 = vmatprep.subr.mxu0 0.0
        %3981 = vmatpush1.msra.mxu0 0.0
        %3982 = vmatprep.subr.mxu0 0.0
        %3983 = vmatpush1.msra.mxu0 0.0
        %3984 = vmatprep.subr.mxu0 0.0
        %3985 = vmatpush1.msra.mxu0 0.0
        %3986 = vmatprep.subr.mxu0 0.0
        %3987 = vmatpush1.msra.mxu0 0.0
        %3988 = vmatprep.subr.mxu0 0.0
        %3989 = vmatpush1.msra.mxu0 0.0
        %3990 = vmatprep.subr.mxu0 0.0
        %3991 = vmatpush1.msra.mxu0 0.0
        %3992 = vmatprep.subr.mxu0 0.0
        %3993 = vmatpush1.msra.mxu0 0.0
        %3994 = vmatprep.subr.mxu0 0.0
        %3995 = vmatpush1.msra.mxu0 0.0
        %3996 = vmatprep.subr.mxu0 0.0
        %3997 = vmatpush1.msra.mxu0 0.0
        %3998 = vmatprep.subr.mxu0 0.0
        %3999 = vmatpush1.msra.mxu0 0.0
        %4000 = vmatprep.subr.mxu0 0.0
        %4001 = vmatpush1.msra.mxu0 0.0
        %4002 = vmatprep.subr.mxu0 0.0
        %4003 = vmatpush1.msra.mxu0 0.0
        %4004 = vmatprep.subr.mxu0 0.0
        %4005 = vmatpush1.msra.mxu0 0.0
        %4006 = vmatprep.subr.mxu0 0.0
        %4007 = vmatpush1.msra.mxu0 %v703
        %4008 = vmatprep.subr.mxu0 0.0
        %4009 = vmatpush2.msra.mxu0 0.0
        %4010 = vmatprep.subr.mxu0 0.0
        %4011 = vmatpush2.msra.mxu0 0.0
        %4012 = vmatprep.subr.mxu0 0.0
        %4013 = vmatpush2.msra.mxu0 0.0
        %4014 = vmatprep.subr.mxu0 0.0
        %4015 = vmatpush2.msra.mxu0 0.0
        %4016 = vmatprep.subr.mxu0 0.0
        %4017 = vmatpush2.msra.mxu0 0.0
        %4018 = vmatprep.subr.mxu0 0.0
        %4019 = vmatpush2.msra.mxu0 0.0
        %4020 = vmatprep.subr.mxu0 0.0
        %4021 = vmatpush2.msra.mxu0 0.0
        %4022 = vmatprep.subr.mxu0 0.0
        %4023 = vmatpush2.msra.mxu0 0.0
        %4024 = vmatprep.subr.mxu0 0.0
        %4025 = vmatpush2.msra.mxu0 0.0
        %4026 = vmatprep.subr.mxu0 0.0
        %4027 = vmatpush2.msra.mxu0 0.0
        %4028 = vmatprep.subr.mxu0 0.0
        %4029 = vmatpush2.msra.mxu0 0.0
        %4030 = vmatprep.subr.mxu0 0.0
        %4031 = vmatpush2.msra.mxu0 0.0
        %4032 = vmatprep.subr.mxu0 0.0
        %4033 = vmatpush2.msra.mxu0 0.0
        %4034 = vmatprep.subr.mxu0 0.0
        %4035 = vmatpush2.msra.mxu0 0.0
        %4036 = vmatprep.subr.mxu0 0.0
        %4037 = vmatpush2.msra.mxu0 0.0
        %4038 = vmatprep.subr.mxu0 0.0
        %4039 = vmatpush2.msra.mxu0 0.0
        %4040 = vmatprep.mubr.f32.mxu0 0.0
        %4041 = vmatmul.mubr.f32.gmra.mxu0 %v3971
        %v4042 = vpop.f32.mrf.mxu0
        %v4043 = vadd.f32 0.0, %v4042
        %v4044 = vpop.f32.mrf.mxu0
        %4045 = vmatprep.mubr.f32.mxu0 0.0
        %4046 = vmatmul.mubr.f32.gmra.mxu0 %v3974
        %v4047 = vpop.f32.mrf.mxu0
        %v4048 = vadd.f32 0.0, %v4047
        %v4049 = vpop.f32.mrf.mxu0
        %4050 = vdwg.mxu0
        %v4051 = vmul.f32 %v3959, %v3965
        %v4052 = vmul.f32 %v3961, %v3967
        %v4054 = vsel %vm1041, %v4051, 0
        %v4057 = vsel %vm1041, %v4052, 0
        %4059 = vmatprep.subr.mxu0 0.0
        %4060 = vmatpush1.msra.mxu0 0.0
        %4061 = vmatprep.subr.mxu0 0.0
        %4062 = vmatpush1.msra.mxu0 0.0
        %4063 = vmatprep.subr.mxu0 0.0
        %4064 = vmatpush1.msra.mxu0 0.0
        %4065 = vmatprep.subr.mxu0 0.0
        %4066 = vmatpush1.msra.mxu0 0.0
        %4067 = vmatprep.subr.mxu0 0.0
        %4068 = vmatpush1.msra.mxu0 0.0
        %4069 = vmatprep.subr.mxu0 0.0
        %4070 = vmatpush1.msra.mxu0 0.0
        %4071 = vmatprep.subr.mxu0 0.0
        %4072 = vmatpush1.msra.mxu0 0.0
        %4073 = vmatprep.subr.mxu0 0.0
        %4074 = vmatpush1.msra.mxu0 0.0
        %4075 = vmatprep.subr.mxu0 0.0
        %4076 = vmatpush1.msra.mxu0 0.0
        %4077 = vmatprep.subr.mxu0 0.0
        %4078 = vmatpush1.msra.mxu0 0.0
        %4079 = vmatprep.subr.mxu0 0.0
        %4080 = vmatpush1.msra.mxu0 0.0
        %4081 = vmatprep.subr.mxu0 0.0
        %4082 = vmatpush1.msra.mxu0 0.0
        %4083 = vmatprep.subr.mxu0 0.0
        %4084 = vmatpush1.msra.mxu0 0.0
        %4085 = vmatprep.subr.mxu0 0.0
        %4086 = vmatpush1.msra.mxu0 0.0
        %4087 = vmatprep.subr.mxu0 0.0
        %4088 = vmatpush1.msra.mxu0 0.0
        %4089 = vmatprep.subr.mxu0 0.0
        %4090 = vmatpush1.msra.mxu0 %v1127
        %4091 = vmatprep.subr.mxu0 0.0
        %4092 = vmatpush2.msra.mxu0 0.0
        %4093 = vmatprep.subr.mxu0 0.0
        %4094 = vmatpush2.msra.mxu0 0.0
        %4095 = vmatprep.subr.mxu0 0.0
        %4096 = vmatpush2.msra.mxu0 0.0
        %4097 = vmatprep.subr.mxu0 0.0
        %4098 = vmatpush2.msra.mxu0 0.0
        %4099 = vmatprep.subr.mxu0 0.0
        %4100 = vmatpush2.msra.mxu0 0.0
        %4101 = vmatprep.subr.mxu0 0.0
        %4102 = vmatpush2.msra.mxu0 0.0
        %4103 = vmatprep.subr.mxu0 0.0
        %4104 = vmatpush2.msra.mxu0 0.0
        %4105 = vmatprep.subr.mxu0 0.0
        %4106 = vmatpush2.msra.mxu0 0.0
        %4107 = vmatprep.subr.mxu0 0.0
        %4108 = vmatpush2.msra.mxu0 0.0
        %4109 = vmatprep.subr.mxu0 0.0
        %4110 = vmatpush2.msra.mxu0 0.0
        %4111 = vmatprep.subr.mxu0 0.0
        %4112 = vmatpush2.msra.mxu0 0.0
        %4113 = vmatprep.subr.mxu0 0.0
        %4114 = vmatpush2.msra.mxu0 0.0
        %4115 = vmatprep.subr.mxu0 0.0
        %4116 = vmatpush2.msra.mxu0 0.0
        %4117 = vmatprep.subr.mxu0 0.0
        %4118 = vmatpush2.msra.mxu0 0.0
        %4119 = vmatprep.subr.mxu0 0.0
        %4120 = vmatpush2.msra.mxu0 0.0
        %4121 = vmatprep.subr.mxu0 0.0
        %4122 = vmatpush2.msra.mxu0 0.0
        %4123 = vmatprep.mubr.f32.mxu0 0.0
        %4124 = vmatmul.mubr.f32.gmra.mxu0 %v4054
        %v4125 = vpop.f32.mrf.mxu0
        %v4126 = vadd.f32 0.0, %v4125
        %v4127 = vpop.f32.mrf.mxu0
        %4128 = vmatprep.mubr.f32.mxu0 0.0
        %4129 = vmatmul.mubr.f32.gmra.mxu0 %v4057
        %v4130 = vpop.f32.mrf.mxu0
        %v4131 = vadd.f32 0.0, %v4130
        %v4132 = vpop.f32.mrf.mxu0
        %4133 = vdwg.mxu0
        %4136 = vrot.lane.b32.xlu0 %v4126, 16
        %v4137 = vpop.permute.xlu0 %4136
        %4138 = vrot.lane.b32.xlu0 %v4131, 16
        %v4139 = vpop.permute.xlu0 %4138
        %v4142 = vsel %vm843, %v4043, %v4137
        %v4143 = vsel %vm843, %v4048, %v4139
        %v4144 = vadd.f32 %v3667, %v4142
        %v4145 = vadd.f32 %v3668, %v4143
        %v4146 = vsel %vm551, %v4144, 0.0
        %4147 = vadd.xlane.f32.xlu0 %v4146
        %v4148 = vpop.xlane.xlu0 %4147
        %v4149 = vsel %vm551, %v4145, 0.0
        %4150 = vadd.xlane.f32.xlu0 %v4149
        %v4151 = vpop.xlane.xlu0 %4150
        %v4152 = vmul.f32 %v4148, %v714
        %v4153 = vmul.f32 %v4151, %v714
        %v4154 = vsub.f32 %v4144, %v4152
        %v4155 = vsub.f32 %v4145, %v4153
        %v4156 = vmul.f32 %v4154, %v4154
        %v4157 = vmul.f32 %v4155, %v4155
        %v4158 = vsel %vm551, %v4156, 0.0
        %4159 = vadd.xlane.f32.xlu0 %v4158
        %v4160 = vpop.xlane.xlu0 %4159
        %v4161 = vsel %vm551, %v4157, 0.0
        %4162 = vadd.xlane.f32.xlu0 %v4161
        %v4163 = vpop.xlane.xlu0 %4162
        %v4164 = vmul.f32 %v4160, %v714
        %v4165 = vmul.f32 %v4163, %v714
        %v4166 = vadd.f32 %v4164, 1e-05
        %v4167 = vadd.f32 %v4165, 1e-05
        %v4168 = vrsqrt.pop %v4166
        %v4169 = vrsqrt.pop %v4167
        %v4170 = vmul.f32 %v4154, %v4168
        %v4171 = vmul.f32 %v4155, %v4169
        %v4172 = vmul.f32 %v4170, %v1254
        %v4173 = vmul.f32 %v4171, %v1254
        %v4174 = vadd.f32 %v4172, %v1262
        %v4175 = vadd.f32 %v4173, %v1262
        %v4177 = vsel %vm551, %v4174, 0
        %v4180 = vsel %vm551, %v4175, 0
        %4182 = vmatprep.subr.mxu0 0.0
        %4183 = vmatpush1.msra.mxu0 0.0
        %4184 = vmatprep.subr.mxu0 0.0
        %4185 = vmatpush1.msra.mxu0 0.0
        %4186 = vmatprep.subr.mxu0 0.0
        %4187 = vmatpush1.msra.mxu0 0.0
        %4188 = vmatprep.subr.mxu0 0.0
        %4189 = vmatpush1.msra.mxu0 0.0
        %4190 = vmatprep.subr.mxu0 0.0
        %4191 = vmatpush1.msra.mxu0 0.0
        %4192 = vmatprep.subr.mxu0 0.0
        %4193 = vmatpush1.msra.mxu0 0.0
        %4194 = vmatprep.subr.mxu0 0.0
        %4195 = vmatpush1.msra.mxu0 0.0
        %4196 = vmatprep.subr.mxu0 0.0
        %4197 = vmatpush1.msra.mxu0 0.0
        %4198 = vmatprep.subr.mxu0 0.0
        %4199 = vmatpush1.msra.mxu0 0.0
        %4200 = vmatprep.subr.mxu0 0.0
        %4201 = vmatpush1.msra.mxu0 0.0
        %4202 = vmatprep.subr.mxu0 0.0
        %4203 = vmatpush1.msra.mxu0 0.0
        %4204 = vmatprep.subr.mxu0 0.0
        %4205 = vmatpush1.msra.mxu0 0.0
        %4206 = vmatprep.subr.mxu0 0.0
        %4207 = vmatpush1.msra.mxu0 %v1269
        %4208 = vmatprep.subr.mxu0 0.0
        %4209 = vmatpush1.msra.mxu0 %v1268
        %4210 = vmatprep.subr.mxu0 0.0
        %4211 = vmatpush1.msra.mxu0 %v1267
        %4212 = vmatprep.subr.mxu0 0.0
        %4213 = vmatpush1.msra.mxu0 %v1266
        %4214 = vmatprep.subr.mxu0 0.0
        %4215 = vmatpush2.msra.mxu0 0.0
        %4216 = vmatprep.subr.mxu0 0.0
        %4217 = vmatpush2.msra.mxu0 0.0
        %4218 = vmatprep.subr.mxu0 0.0
        %4219 = vmatpush2.msra.mxu0 0.0
        %4220 = vmatprep.subr.mxu0 0.0
        %4221 = vmatpush2.msra.mxu0 0.0
        %4222 = vmatprep.subr.mxu0 0.0
        %4223 = vmatpush2.msra.mxu0 0.0
        %4224 = vmatprep.subr.mxu0 0.0
        %4225 = vmatpush2.msra.mxu0 0.0
        %4226 = vmatprep.subr.mxu0 0.0
        %4227 = vmatpush2.msra.mxu0 0.0
        %4228 = vmatprep.subr.mxu0 0.0
        %4229 = vmatpush2.msra.mxu0 0.0
        %4230 = vmatprep.subr.mxu0 0.0
        %4231 = vmatpush2.msra.mxu0 0.0
        %4232 = vmatprep.subr.mxu0 0.0
        %4233 = vmatpush2.msra.mxu0 0.0
        %4234 = vmatprep.subr.mxu0 0.0
        %4235 = vmatpush2.msra.mxu0 0.0
        %4236 = vmatprep.subr.mxu0 0.0
        %4237 = vmatpush2.msra.mxu0 0.0
        %4238 = vmatprep.subr.mxu0 0.0
        %4239 = vmatpush2.msra.mxu0 0.0
        %4240 = vmatprep.subr.mxu0 0.0
        %4241 = vmatpush2.msra.mxu0 0.0
        %4242 = vmatprep.subr.mxu0 0.0
        %4243 = vmatpush2.msra.mxu0 0.0
        %4244 = vmatprep.subr.mxu0 0.0
        %4245 = vmatpush2.msra.mxu0 0.0
        %4246 = vmatprep.mubr.f32.mxu0 0.0
        %4247 = vmatmul.mubr.f32.gmra.mxu0 %v4177
        %v4248 = vpop.f32.mrf.mxu0
        %v4249 = vadd.f32 %v1275, %v4248
        %v4250 = vpop.f32.mrf.mxu0
        %4251 = vmatprep.mubr.f32.mxu0 0.0
        %4252 = vmatmul.mubr.f32.gmra.mxu0 %v4180
        %v4253 = vpop.f32.mrf.mxu0
        %v4254 = vadd.f32 %v1275, %v4253
        %v4255 = vpop.f32.mrf.mxu0
        %4256 = vdwg.mxu0
        %v4257 = vmul.f32 %v4249, 0.5
        %v4258 = vmul.f32 %v4254, 0.5
        %v4259 = vmul.f32 %v4249, 0.70710677
        %v4260 = vmul.f32 %v4254, 0.70710677
        %vm4261 = vcmp.ge.f32.partialorder %v4259, 0.0
        %vm4262 = vcmp.ge.f32.partialorder %v4260, 0.0
        %v4263 = vsel %vm4261, 1.0, -1.0
        %v4264 = vsel %vm4262, 1.0, -1.0
        %v4265 = vand.u32 2147483647, %v4259
        %v4266 = vand.u32 2147483647, %v4260
        %v4267 = vmul.f32 %v4265, 0.3275911
        %v4268 = vmul.f32 %v4266, 0.3275911
        %v4269 = vadd.f32 %v4267, 1.0
        %v4270 = vadd.f32 %v4268, 1.0
        %v4271 = vrcp.pop %v4269
        %v4272 = vmul.f32 1.0, %v4271
        %v4273 = vrcp.pop %v4270
        %v4274 = vmul.f32 1.0, %v4273
        %v4275 = vmul.f32 %v4272, 1.0614054
        %v4276 = vmul.f32 %v4274, 1.0614054
        %v4277 = vadd.f32 %v4275, -1.4531521
        %v4278 = vadd.f32 %v4276, -1.4531521
        %v4279 = vmul.f32 %v4277, %v4272
        %v4280 = vmul.f32 %v4278, %v4274
        %v4281 = vadd.f32 %v4279, 1.4214138
        %v4282 = vadd.f32 %v4280, 1.4214138
        %v4283 = vmul.f32 %v4281, %v4272
        %v4284 = vmul.f32 %v4282, %v4274
        %v4285 = vadd.f32 %v4283, -0.28449672
        %v4286 = vadd.f32 %v4284, -0.28449672
        %v4287 = vmul.f32 %v4285, %v4272
        %v4288 = vmul.f32 %v4286, %v4274
        %v4289 = vadd.f32 %v4287, 0.2548296
        %v4290 = vadd.f32 %v4288, 0.2548296
        %v4291 = vmul.f32 %v4289, %v4272
        %v4292 = vmul.f32 %v4290, %v4274
        %v4293 = vsub.f32 0.0, %v4265
        %v4294 = vsub.f32 0.0, %v4266
        %v4295 = vmul.f32 %v4293, %v4265
        %v4296 = vmul.f32 %v4294, %v4266
        %v4297 = vmul.f32 %v4295, 1.442695
        %v4298 = vpow.pop %v4297
        %v4299 = vmul.f32 %v4296, 1.442695
        %v4300 = vpow.pop %v4299
        %v4301 = vmul.f32 %v4291, %v4298
        %v4302 = vmul.f32 %v4292, %v4300
        %v4303 = vsub.f32 1.0, %v4301
        %v4304 = vsub.f32 1.0, %v4302
        %v4305 = vmul.f32 %v4263, %v4303
        %v4306 = vmul.f32 %v4264, %v4304
        %v4307 = vadd.f32 %v4305, 1.0
        %v4308 = vadd.f32 %v4306, 1.0
        %v4309 = vmul.f32 %v4257, %v4307
        %v4310 = vmul.f32 %v4258, %v4308
        %4311 = vmatprep.subr.mxu0 0.0
        %4312 = vmatpush1.msra.mxu0 %v1427
        %4313 = vmatprep.subr.mxu0 0.0
        %4314 = vmatpush1.msra.mxu0 %v1426
        %4315 = vmatprep.subr.mxu0 0.0
        %4316 = vmatpush1.msra.mxu0 %v1425
        %4317 = vmatprep.subr.mxu0 0.0
        %4318 = vmatpush1.msra.mxu0 %v1424
        %4319 = vmatprep.subr.mxu0 0.0
        %4320 = vmatpush1.msra.mxu0 %v1423
        %4321 = vmatprep.subr.mxu0 0.0
        %4322 = vmatpush1.msra.mxu0 %v1422
        %4323 = vmatprep.subr.mxu0 0.0
        %4324 = vmatpush1.msra.mxu0 %v1421
        %4325 = vmatprep.subr.mxu0 0.0
        %4326 = vmatpush1.msra.mxu0 %v1420
        %4327 = vmatprep.subr.mxu0 0.0
        %4328 = vmatpush1.msra.mxu0 %v1419
        %4329 = vmatprep.subr.mxu0 0.0
        %4330 = vmatpush1.msra.mxu0 %v1418
        %4331 = vmatprep.subr.mxu0 0.0
        %4332 = vmatpush1.msra.mxu0 %v1417
        %4333 = vmatprep.subr.mxu0 0.0
        %4334 = vmatpush1.msra.mxu0 %v1416
        %4335 = vmatprep.subr.mxu0 0.0
        %4336 = vmatpush1.msra.mxu0 %v1415
        %4337 = vmatprep.subr.mxu0 0.0
        %4338 = vmatpush1.msra.mxu0 %v1414
        %4339 = vmatprep.subr.mxu0 0.0
        %4340 = vmatpush1.msra.mxu0 %v1413
        %4341 = vmatprep.subr.mxu0 0.0
        %4342 = vmatpush1.msra.mxu0 %v1412
        %4343 = vmatprep.subr.mxu0 0.0
        %4344 = vmatpush2.msra.mxu0 0.0
        %4345 = vmatprep.subr.mxu0 0.0
        %4346 = vmatpush2.msra.mxu0 0.0
        %4347 = vmatprep.subr.mxu0 0.0
        %4348 = vmatpush2.msra.mxu0 0.0
        %4349 = vmatprep.subr.mxu0 0.0
        %4350 = vmatpush2.msra.mxu0 0.0
        %4351 = vmatprep.subr.mxu0 0.0
        %4352 = vmatpush2.msra.mxu0 0.0
        %4353 = vmatprep.subr.mxu0 0.0
        %4354 = vmatpush2.msra.mxu0 0.0
        %4355 = vmatprep.subr.mxu0 0.0
        %4356 = vmatpush2.msra.mxu0 0.0
        %4357 = vmatprep.subr.mxu0 0.0
        %4358 = vmatpush2.msra.mxu0 0.0
        %4359 = vmatprep.subr.mxu0 0.0
        %4360 = vmatpush2.msra.mxu0 0.0
        %4361 = vmatprep.subr.mxu0 0.0
        %4362 = vmatpush2.msra.mxu0 0.0
        %4363 = vmatprep.subr.mxu0 0.0
        %4364 = vmatpush2.msra.mxu0 0.0
        %4365 = vmatprep.subr.mxu0 0.0
        %4366 = vmatpush2.msra.mxu0 0.0
        %4367 = vmatprep.subr.mxu0 0.0
        %4368 = vmatpush2.msra.mxu0 0.0
        %4369 = vmatprep.subr.mxu0 0.0
        %4370 = vmatpush2.msra.mxu0 0.0
        %4371 = vmatprep.subr.mxu0 0.0
        %4372 = vmatpush2.msra.mxu0 0.0
        %4373 = vmatprep.subr.mxu0 0.0
        %4374 = vmatpush2.msra.mxu0 0.0
        %4375 = vmatprep.mubr.f32.mxu0 0.0
        %4376 = vmatmul.mubr.f32.gmra.mxu0 %v4309
        %v4377 = vpop.f32.mrf.mxu0
        %v4378 = vadd.f32 %v1433, %v4377
        %v4379 = vpop.f32.mrf.mxu0
        %4380 = vmatprep.mubr.f32.mxu0 0.0
        %4381 = vmatmul.mubr.f32.gmra.mxu0 %v4310
        %v4382 = vpop.f32.mrf.mxu0
        %v4383 = vadd.f32 %v1433, %v4382
        %v4384 = vpop.f32.mrf.mxu0
        %4385 = vdwg.mxu0
        %v4386 = vadd.f32 %v4144, %v4378
        %v4387 = vadd.f32 %v4145, %v4383
        %v4388 = vsel %vm551, %v4386, 0.0
        %4389 = vadd.xlane.f32.xlu0 %v4388
        %v4390 = vpop.xlane.xlu0 %4389
        %v4391 = vsel %vm551, %v4387, 0.0
        %4392 = vadd.xlane.f32.xlu0 %v4391
        %v4393 = vpop.xlane.xlu0 %4392
        %v4394 = vmul.f32 %v4390, %v714
        %v4395 = vmul.f32 %v4393, %v714
        %v4396 = vsub.f32 %v4386, %v4394
        %v4397 = vsub.f32 %v4387, %v4395
        %v4398 = vmul.f32 %v4396, %v4396
        %v4399 = vmul.f32 %v4397, %v4397
        %v4400 = vsel %vm551, %v4398, 0.0
        %4401 = vadd.xlane.f32.xlu0 %v4400
        %v4402 = vpop.xlane.xlu0 %4401
        %v4403 = vsel %vm551, %v4399, 0.0
        %4404 = vadd.xlane.f32.xlu0 %v4403
        %v4405 = vpop.xlane.xlu0 %4404
        %v4406 = vmul.f32 %v4402, %v714
        %v4407 = vmul.f32 %v4405, %v714
        %v4408 = vadd.f32 %v4406, 1e-05
        %v4409 = vadd.f32 %v4407, 1e-05
        %v4410 = vrsqrt.pop %v4408
        %v4411 = vrsqrt.pop %v4409
        %v4412 = vmul.f32 %v4396, %v4410
        %v4413 = vmul.f32 %v4397, %v4411
        %v4414 = vmul.f32 %v4412, %v739
        %v4415 = vmul.f32 %v4413, %v739
        %v4416 = vadd.f32 %v4414, %v747
        %v4417 = vadd.f32 %v4415, %v747
        %v4419 = vsel %vm551, %v4416, 0
        %v4422 = vsel %vm551, %v4417, 0
        %4424 = vmatprep.subr.mxu0 0.0
        %4425 = vmatpush1.msra.mxu0 0.0
        %4426 = vmatprep.subr.mxu0 0.0
        %4427 = vmatpush1.msra.mxu0 0.0
        %4428 = vmatprep.subr.mxu0 0.0
        %4429 = vmatpush1.msra.mxu0 0.0
        %4430 = vmatprep.subr.mxu0 0.0
        %4431 = vmatpush1.msra.mxu0 0.0
        %4432 = vmatprep.subr.mxu0 0.0
        %4433 = vmatpush1.msra.mxu0 0.0
        %4434 = vmatprep.subr.mxu0 0.0
        %4435 = vmatpush1.msra.mxu0 0.0
        %4436 = vmatprep.subr.mxu0 0.0
        %4437 = vmatpush1.msra.mxu0 0.0
        %4438 = vmatprep.subr.mxu0 0.0
        %4439 = vmatpush1.msra.mxu0 0.0
        %4440 = vmatprep.subr.mxu0 0.0
        %4441 = vmatpush1.msra.mxu0 0.0
        %4442 = vmatprep.subr.mxu0 0.0
        %4443 = vmatpush1.msra.mxu0 0.0
        %4444 = vmatprep.subr.mxu0 0.0
        %4445 = vmatpush1.msra.mxu0 0.0
        %4446 = vmatprep.subr.mxu0 0.0
        %4447 = vmatpush1.msra.mxu0 0.0
        %4448 = vmatprep.subr.mxu0 0.0
        %4449 = vmatpush1.msra.mxu0 %v754
        %4450 = vmatprep.subr.mxu0 0.0
        %4451 = vmatpush1.msra.mxu0 %v753
        %4452 = vmatprep.subr.mxu0 0.0
        %4453 = vmatpush1.msra.mxu0 %v752
        %4454 = vmatprep.subr.mxu0 0.0
        %4455 = vmatpush1.msra.mxu0 %v751
        %4456 = vmatprep.subr.mxu0 0.0
        %4457 = vmatpush2.msra.mxu0 0.0
        %4458 = vmatprep.subr.mxu0 0.0
        %4459 = vmatpush2.msra.mxu0 0.0
        %4460 = vmatprep.subr.mxu0 0.0
        %4461 = vmatpush2.msra.mxu0 0.0
        %4462 = vmatprep.subr.mxu0 0.0
        %4463 = vmatpush2.msra.mxu0 0.0
        %4464 = vmatprep.subr.mxu0 0.0
        %4465 = vmatpush2.msra.mxu0 0.0
        %4466 = vmatprep.subr.mxu0 0.0
        %4467 = vmatpush2.msra.mxu0 0.0
        %4468 = vmatprep.subr.mxu0 0.0
        %4469 = vmatpush2.msra.mxu0 0.0
        %4470 = vmatprep.subr.mxu0 0.0
        %4471 = vmatpush2.msra.mxu0 0.0
        %4472 = vmatprep.subr.mxu0 0.0
        %4473 = vmatpush2.msra.mxu0 0.0
        %4474 = vmatprep.subr.mxu0 0.0
        %4475 = vmatpush2.msra.mxu0 0.0
        %4476 = vmatprep.subr.mxu0 0.0
        %4477 = vmatpush2.msra.mxu0 0.0
        %4478 = vmatprep.subr.mxu0 0.0
        %4479 = vmatpush2.msra.mxu0 0.0
        %4480 = vmatprep.subr.mxu0 0.0
        %4481 = vmatpush2.msra.mxu0 0.0
        %4482 = vmatprep.subr.mxu0 0.0
        %4483 = vmatpush2.msra.mxu0 0.0
        %4484 = vmatprep.subr.mxu0 0.0
        %4485 = vmatpush2.msra.mxu0 0.0
        %4486 = vmatprep.subr.mxu0 0.0
        %4487 = vmatpush2.msra.mxu0 0.0
        %4488 = vmatprep.mubr.f32.mxu0 0.0
        %4489 = vmatmul.mubr.f32.gmra.mxu0 %v4419
        %v4490 = vpop.f32.mrf.mxu0
        %v4491 = vadd.f32 %v760, %v4490
        %v4492 = vpop.f32.mrf.mxu0
        %4493 = vmatprep.mubr.f32.mxu0 0.0
        %4494 = vmatmul.mubr.f32.gmra.mxu0 %v4422
        %v4495 = vpop.f32.mrf.mxu0
        %v4496 = vadd.f32 %v760, %v4495
        %v4497 = vpop.f32.mrf.mxu0
        %4498 = vdwg.mxu0
        %v4500 = vsel %vm843, %v4491, 0
        %v4503 = vsel %vm843, %v4496, 0
        %4505 = vmatprep.subr.mxu0 0.0
        %4506 = vmatpush1.xpose.msra.mxu0 0.0
        %4507 = vmatprep.subr.mxu0 0.0
        %4508 = vmatpush1.xpose.msra.mxu0 0.0
        %4509 = vmatprep.subr.mxu0 0.0
        %4510 = vmatpush1.xpose.msra.mxu0 0.0
        %4511 = vmatprep.subr.mxu0 0.0
        %4512 = vmatpush1.xpose.msra.mxu0 0.0
        %4513 = vmatprep.subr.mxu0 0.0
        %4514 = vmatpush1.xpose.msra.mxu0 0.0
        %4515 = vmatprep.subr.mxu0 0.0
        %4516 = vmatpush1.xpose.msra.mxu0 0.0
        %4517 = vmatprep.subr.mxu0 0.0
        %4518 = vmatpush1.xpose.msra.mxu0 0.0
        %4519 = vmatprep.subr.mxu0 0.0
        %4520 = vmatpush1.xpose.msra.mxu0 0.0
        %4521 = vmatprep.subr.mxu0 0.0
        %4522 = vmatpush1.xpose.msra.mxu0 0.0
        %4523 = vmatprep.subr.mxu0 0.0
        %4524 = vmatpush1.xpose.msra.mxu0 0.0
        %4525 = vmatprep.subr.mxu0 0.0
        %4526 = vmatpush1.xpose.msra.mxu0 0.0
        %4527 = vmatprep.subr.mxu0 0.0
        %4528 = vmatpush1.xpose.msra.mxu0 0.0
        %4529 = vmatprep.subr.mxu0 0.0
        %4530 = vmatpush1.xpose.msra.mxu0 0.0
        %4531 = vmatprep.subr.mxu0 0.0
        %4532 = vmatpush1.xpose.msra.mxu0 0.0
        %4533 = vmatprep.subr.mxu0 0.0
        %4534 = vmatpush1.xpose.msra.mxu0 0.0
        %4535 = vmatprep.subr.mxu0 0.0
        %4536 = vmatpush1.xpose.msra.mxu0 %v851
        %4537 = vmatprep.subr.mxu0 0.0
        %4538 = vmatpush2.xpose.msra.mxu0 0.0
        %4539 = vmatprep.subr.mxu0 0.0
        %4540 = vmatpush2.xpose.msra.mxu0 0.0
        %4541 = vmatprep.subr.mxu0 0.0
        %4542 = vmatpush2.xpose.msra.mxu0 0.0
        %4543 = vmatprep.subr.mxu0 0.0
        %4544 = vmatpush2.xpose.msra.mxu0 0.0
        %4545 = vmatprep.subr.mxu0 0.0
        %4546 = vmatpush2.xpose.msra.mxu0 0.0
        %4547 = vmatprep.subr.mxu0 0.0
        %4548 = vmatpush2.xpose.msra.mxu0 0.0
        %4549 = vmatprep.subr.mxu0 0.0
        %4550 = vmatpush2.xpose.msra.mxu0 0.0
        %4551 = vmatprep.subr.mxu0 0.0
        %4552 = vmatpush2.xpose.msra.mxu0 0.0
        %4553 = vmatprep.subr.mxu0 0.0
        %4554 = vmatpush2.xpose.msra.mxu0 0.0
        %4555 = vmatprep.subr.mxu0 0.0
        %4556 = vmatpush2.xpose.msra.mxu0 0.0
        %4557 = vmatprep.subr.mxu0 0.0
        %4558 = vmatpush2.xpose.msra.mxu0 0.0
        %4559 = vmatprep.subr.mxu0 0.0
        %4560 = vmatpush2.xpose.msra.mxu0 0.0
        %4561 = vmatprep.subr.mxu0 0.0
        %4562 = vmatpush2.xpose.msra.mxu0 0.0
        %4563 = vmatprep.subr.mxu0 0.0
        %4564 = vmatpush2.xpose.msra.mxu0 0.0
        %4565 = vmatprep.subr.mxu0 0.0
        %4566 = vmatpush2.xpose.msra.mxu0 0.0
        %4567 = vmatprep.subr.mxu0 0.0
        %4568 = vmatpush2.xpose.msra.mxu0 0.0
        %4569 = vmatprep.mubr.f32.mxu0 0.0
        %4570 = vmatmul.mubr.f32.gmra.mxu0 %v4500
        %v4571 = vpop.f32.mrf.mxu0
        %v4572 = vadd.f32 0.0, %v4571
        %v4573 = vpop.f32.mrf.mxu0
        %4574 = vmatprep.mubr.f32.mxu0 0.0
        %4575 = vmatmul.mubr.f32.gmra.mxu0 %v4503
        %v4576 = vpop.f32.mrf.mxu0
        %v4577 = vadd.f32 0.0, %v4576
        %v4578 = vpop.f32.mrf.mxu0
        %4579 = vdwg.mxu0
        %v4580 = vmul.f32 %v4572, 0.25
        %v4581 = vmul.f32 %v4577, 0.25
        %4582 = vrot.lane.b32.xlu0 %v4491, 112
        %v4583 = vpop.permute.xlu0 %4582
        %4584 = vrot.lane.b32.xlu0 %v4496, 112
        %v4585 = vpop.permute.xlu0 %4584
        %v4586 = vsel %vm843, %v4583, 0
        %v4588 = vsel %vm843, %v4585, 0
        %4590 = vmatprep.subr.mxu0 0.0
        %4591 = vmatpush1.xpose.msra.mxu0 0.0
        %4592 = vmatprep.subr.mxu0 0.0
        %4593 = vmatpush1.xpose.msra.mxu0 0.0
        %4594 = vmatprep.subr.mxu0 0.0
        %4595 = vmatpush1.xpose.msra.mxu0 0.0
        %4596 = vmatprep.subr.mxu0 0.0
        %4597 = vmatpush1.xpose.msra.mxu0 0.0
        %4598 = vmatprep.subr.mxu0 0.0
        %4599 = vmatpush1.xpose.msra.mxu0 0.0
        %4600 = vmatprep.subr.mxu0 0.0
        %4601 = vmatpush1.xpose.msra.mxu0 0.0
        %4602 = vmatprep.subr.mxu0 0.0
        %4603 = vmatpush1.xpose.msra.mxu0 0.0
        %4604 = vmatprep.subr.mxu0 0.0
        %4605 = vmatpush1.xpose.msra.mxu0 0.0
        %4606 = vmatprep.subr.mxu0 0.0
        %4607 = vmatpush1.xpose.msra.mxu0 0.0
        %4608 = vmatprep.subr.mxu0 0.0
        %4609 = vmatpush1.xpose.msra.mxu0 0.0
        %4610 = vmatprep.subr.mxu0 0.0
        %4611 = vmatpush1.xpose.msra.mxu0 0.0
        %4612 = vmatprep.subr.mxu0 0.0
        %4613 = vmatpush1.xpose.msra.mxu0 0.0
        %4614 = vmatprep.subr.mxu0 0.0
        %4615 = vmatpush1.xpose.msra.mxu0 0.0
        %4616 = vmatprep.subr.mxu0 0.0
        %4617 = vmatpush1.xpose.msra.mxu0 0.0
        %4618 = vmatprep.subr.mxu0 0.0
        %4619 = vmatpush1.xpose.msra.mxu0 0.0
        %4620 = vmatprep.subr.mxu0 0.0
        %4621 = vmatpush1.xpose.msra.mxu0 %v940
        %4622 = vmatprep.subr.mxu0 0.0
        %4623 = vmatpush2.xpose.msra.mxu0 0.0
        %4624 = vmatprep.subr.mxu0 0.0
        %4625 = vmatpush2.xpose.msra.mxu0 0.0
        %4626 = vmatprep.subr.mxu0 0.0
        %4627 = vmatpush2.xpose.msra.mxu0 0.0
        %4628 = vmatprep.subr.mxu0 0.0
        %4629 = vmatpush2.xpose.msra.mxu0 0.0
        %4630 = vmatprep.subr.mxu0 0.0
        %4631 = vmatpush2.xpose.msra.mxu0 0.0
        %4632 = vmatprep.subr.mxu0 0.0
        %4633 = vmatpush2.xpose.msra.mxu0 0.0
        %4634 = vmatprep.subr.mxu0 0.0
        %4635 = vmatpush2.xpose.msra.mxu0 0.0
        %4636 = vmatprep.subr.mxu0 0.0
        %4637 = vmatpush2.xpose.msra.mxu0 0.0
        %4638 = vmatprep.subr.mxu0 0.0
        %4639 = vmatpush2.xpose.msra.mxu0 0.0
        %4640 = vmatprep.subr.mxu0 0.0
        %4641 = vmatpush2.xpose.msra.mxu0 0.0
        %4642 = vmatprep.subr.mxu0 0.0
        %4643 = vmatpush2.xpose.msra.mxu0 0.0
        %4644 = vmatprep.subr.mxu0 0.0
        %4645 = vmatpush2.xpose.msra.mxu0 0.0
        %4646 = vmatprep.subr.mxu0 0.0
        %4647 = vmatpush2.xpose.msra.mxu0 0.0
        %4648 = vmatprep.subr.mxu0 0.0
        %4649 = vmatpush2.xpose.msra.mxu0 0.0
        %4650 = vmatprep.subr.mxu0 0.0
        %4651 = vmatpush2.xpose.msra.mxu0 0.0
        %4652 = vmatprep.subr.mxu0 0.0
        %4653 = vmatpush2.xpose.msra.mxu0 0.0
        %4654 = vmatprep.mubr.f32.mxu0 0.0
        %4655 = vmatmul.mubr.f32.gmra.mxu0 %v4586
        %v4656 = vpop.f32.mrf.mxu0
        %v4657 = vadd.f32 0.0, %v4656
        %v4658 = vpop.f32.mrf.mxu0
        %4659 = vmatprep.mubr.f32.mxu0 0.0
        %4660 = vmatmul.mubr.f32.gmra.mxu0 %v4588
        %v4661 = vpop.f32.mrf.mxu0
        %v4662 = vadd.f32 0.0, %v4661
        %v4663 = vpop.f32.mrf.mxu0
        %4664 = vdwg.mxu0
        %v4665 = vmul.f32 %v4657, 0.25
        %v4666 = vmul.f32 %v4662, 0.25
        %v4667 = vmax.f32 %v4580, %v4665
        %v4668 = vmax.f32 %v4581, %v4666
        %v4669 = vsub.f32 %v4580, %v4667
        %v4670 = vsub.f32 %v4581, %v4668
        %v4671 = vmul.f32 %v4669, 1.442695
        %v4672 = vpow.pop %v4671
        %v4673 = vmul.f32 %v4670, 1.442695
        %v4674 = vpow.pop %v4673
        %v4675 = vsub.f32 %v4665, %v4667
        %v4676 = vsub.f32 %v4666, %v4668
        %v4677 = vmul.f32 %v4675, 1.442695
        %v4678 = vpow.pop %v4677
        %v4679 = vmul.f32 %v4676, 1.442695
        %v4680 = vpow.pop %v4679
        %v4681 = vadd.f32 %v4672, %v4678
        %v4682 = vadd.f32 %v4674, %v4680
        %v4683 = vrcp.pop %v4681
        %v4684 = vmul.f32 1.0, %v4683
        %v4685 = vrcp.pop %v4682
        %v4686 = vmul.f32 1.0, %v4685
        %v4687 = vmul.f32 %v4672, %v4684
        %v4688 = vmul.f32 %v4674, %v4686
        %v4690 = vsel %vm1041, %v4687, 0
        %v4693 = vsel %vm1041, %v4688, 0
        %4695 = vmatprep.subr.mxu0 0.0
        %4696 = vmatpush1.msra.mxu0 0.0
        %4697 = vmatprep.subr.mxu0 0.0
        %4698 = vmatpush1.msra.mxu0 0.0
        %4699 = vmatprep.subr.mxu0 0.0
        %4700 = vmatpush1.msra.mxu0 0.0
        %4701 = vmatprep.subr.mxu0 0.0
        %4702 = vmatpush1.msra.mxu0 0.0
        %4703 = vmatprep.subr.mxu0 0.0
        %4704 = vmatpush1.msra.mxu0 0.0
        %4705 = vmatprep.subr.mxu0 0.0
        %4706 = vmatpush1.msra.mxu0 0.0
        %4707 = vmatprep.subr.mxu0 0.0
        %4708 = vmatpush1.msra.mxu0 0.0
        %4709 = vmatprep.subr.mxu0 0.0
        %4710 = vmatpush1.msra.mxu0 0.0
        %4711 = vmatprep.subr.mxu0 0.0
        %4712 = vmatpush1.msra.mxu0 0.0
        %4713 = vmatprep.subr.mxu0 0.0
        %4714 = vmatpush1.msra.mxu0 0.0
        %4715 = vmatprep.subr.mxu0 0.0
        %4716 = vmatpush1.msra.mxu0 0.0
        %4717 = vmatprep.subr.mxu0 0.0
        %4718 = vmatpush1.msra.mxu0 0.0
        %4719 = vmatprep.subr.mxu0 0.0
        %4720 = vmatpush1.msra.mxu0 0.0
        %4721 = vmatprep.subr.mxu0 0.0
        %4722 = vmatpush1.msra.mxu0 0.0
        %4723 = vmatprep.subr.mxu0 0.0
        %4724 = vmatpush1.msra.mxu0 0.0
        %4725 = vmatprep.subr.mxu0 0.0
        %4726 = vmatpush1.msra.mxu0 %v703
        %4727 = vmatprep.subr.mxu0 0.0
        %4728 = vmatpush2.msra.mxu0 0.0
        %4729 = vmatprep.subr.mxu0 0.0
        %4730 = vmatpush2.msra.mxu0 0.0
        %4731 = vmatprep.subr.mxu0 0.0
        %4732 = vmatpush2.msra.mxu0 0.0
        %4733 = vmatprep.subr.mxu0 0.0
        %4734 = vmatpush2.msra.mxu0 0.0
        %4735 = vmatprep.subr.mxu0 0.0
        %4736 = vmatpush2.msra.mxu0 0.0
        %4737 = vmatprep.subr.mxu0 0.0
        %4738 = vmatpush2.msra.mxu0 0.0
        %4739 = vmatprep.subr.mxu0 0.0
        %4740 = vmatpush2.msra.mxu0 0.0
        %4741 = vmatprep.subr.mxu0 0.0
        %4742 = vmatpush2.msra.mxu0 0.0
        %4743 = vmatprep.subr.mxu0 0.0
        %4744 = vmatpush2.msra.mxu0 0.0
        %4745 = vmatprep.subr.mxu0 0.0
        %4746 = vmatpush2.msra.mxu0 0.0
        %4747 = vmatprep.subr.mxu0 0.0
        %4748 = vmatpush2.msra.mxu0 0.0
        %4749 = vmatprep.subr.mxu0 0.0
        %4750 = vmatpush2.msra.mxu0 0.0
        %4751 = vmatprep.subr.mxu0 0.0
        %4752 = vmatpush2.msra.mxu0 0.0
        %4753 = vmatprep.subr.mxu0 0.0
        %4754 = vmatpush2.msra.mxu0 0.0
        %4755 = vmatprep.subr.mxu0 0.0
        %4756 = vmatpush2.msra.mxu0 0.0
        %4757 = vmatprep.subr.mxu0 0.0
        %4758 = vmatpush2.msra.mxu0 0.0
        %4759 = vmatprep.mubr.f32.mxu0 0.0
        %4760 = vmatmul.mubr.f32.gmra.mxu0 %v4690
        %v4761 = vpop.f32.mrf.mxu0
        %v4762 = vadd.f32 0.0, %v4761
        %v4763 = vpop.f32.mrf.mxu0
        %4764 = vmatprep.mubr.f32.mxu0 0.0
        %4765 = vmatmul.mubr.f32.gmra.mxu0 %v4693
        %v4766 = vpop.f32.mrf.mxu0
        %v4767 = vadd.f32 0.0, %v4766
        %v4768 = vpop.f32.mrf.mxu0
        %4769 = vdwg.mxu0
        %v4770 = vmul.f32 %v4678, %v4684
        %v4771 = vmul.f32 %v4680, %v4686
        %v4773 = vsel %vm1041, %v4770, 0
        %v4776 = vsel %vm1041, %v4771, 0
        %4778 = vmatprep.subr.mxu0 0.0
        %4779 = vmatpush1.msra.mxu0 0.0
        %4780 = vmatprep.subr.mxu0 0.0
        %4781 = vmatpush1.msra.mxu0 0.0
        %4782 = vmatprep.subr.mxu0 0.0
        %4783 = vmatpush1.msra.mxu0 0.0
        %4784 = vmatprep.subr.mxu0 0.0
        %4785 = vmatpush1.msra.mxu0 0.0
        %4786 = vmatprep.subr.mxu0 0.0
        %4787 = vmatpush1.msra.mxu0 0.0
        %4788 = vmatprep.subr.mxu0 0.0
        %4789 = vmatpush1.msra.mxu0 0.0
        %4790 = vmatprep.subr.mxu0 0.0
        %4791 = vmatpush1.msra.mxu0 0.0
        %4792 = vmatprep.subr.mxu0 0.0
        %4793 = vmatpush1.msra.mxu0 0.0
        %4794 = vmatprep.subr.mxu0 0.0
        %4795 = vmatpush1.msra.mxu0 0.0
        %4796 = vmatprep.subr.mxu0 0.0
        %4797 = vmatpush1.msra.mxu0 0.0
        %4798 = vmatprep.subr.mxu0 0.0
        %4799 = vmatpush1.msra.mxu0 0.0
        %4800 = vmatprep.subr.mxu0 0.0
        %4801 = vmatpush1.msra.mxu0 0.0
        %4802 = vmatprep.subr.mxu0 0.0
        %4803 = vmatpush1.msra.mxu0 0.0
        %4804 = vmatprep.subr.mxu0 0.0
        %4805 = vmatpush1.msra.mxu0 0.0
        %4806 = vmatprep.subr.mxu0 0.0
        %4807 = vmatpush1.msra.mxu0 0.0
        %4808 = vmatprep.subr.mxu0 0.0
        %4809 = vmatpush1.msra.mxu0 %v1127
        %4810 = vmatprep.subr.mxu0 0.0
        %4811 = vmatpush2.msra.mxu0 0.0
        %4812 = vmatprep.subr.mxu0 0.0
        %4813 = vmatpush2.msra.mxu0 0.0
        %4814 = vmatprep.subr.mxu0 0.0
        %4815 = vmatpush2.msra.mxu0 0.0
        %4816 = vmatprep.subr.mxu0 0.0
        %4817 = vmatpush2.msra.mxu0 0.0
        %4818 = vmatprep.subr.mxu0 0.0
        %4819 = vmatpush2.msra.mxu0 0.0
        %4820 = vmatprep.subr.mxu0 0.0
        %4821 = vmatpush2.msra.mxu0 0.0
        %4822 = vmatprep.subr.mxu0 0.0
        %4823 = vmatpush2.msra.mxu0 0.0
        %4824 = vmatprep.subr.mxu0 0.0
        %4825 = vmatpush2.msra.mxu0 0.0
        %4826 = vmatprep.subr.mxu0 0.0
        %4827 = vmatpush2.msra.mxu0 0.0
        %4828 = vmatprep.subr.mxu0 0.0
        %4829 = vmatpush2.msra.mxu0 0.0
        %4830 = vmatprep.subr.mxu0 0.0
        %4831 = vmatpush2.msra.mxu0 0.0
        %4832 = vmatprep.subr.mxu0 0.0
        %4833 = vmatpush2.msra.mxu0 0.0
        %4834 = vmatprep.subr.mxu0 0.0
        %4835 = vmatpush2.msra.mxu0 0.0
        %4836 = vmatprep.subr.mxu0 0.0
        %4837 = vmatpush2.msra.mxu0 0.0
        %4838 = vmatprep.subr.mxu0 0.0
        %4839 = vmatpush2.msra.mxu0 0.0
        %4840 = vmatprep.subr.mxu0 0.0
        %4841 = vmatpush2.msra.mxu0 0.0
        %4842 = vmatprep.mubr.f32.mxu0 0.0
        %4843 = vmatmul.mubr.f32.gmra.mxu0 %v4773
        %v4844 = vpop.f32.mrf.mxu0
        %v4845 = vadd.f32 0.0, %v4844
        %v4846 = vpop.f32.mrf.mxu0
        %4847 = vmatprep.mubr.f32.mxu0 0.0
        %4848 = vmatmul.mubr.f32.gmra.mxu0 %v4776
        %v4849 = vpop.f32.mrf.mxu0
        %v4850 = vadd.f32 0.0, %v4849
        %v4851 = vpop.f32.mrf.mxu0
        %4852 = vdwg.mxu0
        %4855 = vrot.lane.b32.xlu0 %v4845, 16
        %v4856 = vpop.permute.xlu0 %4855
        %4857 = vrot.lane.b32.xlu0 %v4850, 16
        %v4858 = vpop.permute.xlu0 %4857
        %v4861 = vsel %vm843, %v4762, %v4856
        %v4862 = vsel %vm843, %v4767, %v4858
        %v4863 = vadd.f32 %v4386, %v4861
        %v4864 = vadd.f32 %v4387, %v4862
        %v4865 = vsel %vm551, %v4863, 0.0
        %4866 = vadd.xlane.f32.xlu0 %v4865
        %v4867 = vpop.xlane.xlu0 %4866
        %v4868 = vsel %vm551, %v4864, 0.0
        %4869 = vadd.xlane.f32.xlu0 %v4868
        %v4870 = vpop.xlane.xlu0 %4869
        %v4871 = vmul.f32 %v4867, %v714
        %v4872 = vmul.f32 %v4870, %v714
        %v4873 = vsub.f32 %v4863, %v4871
        %v4874 = vsub.f32 %v4864, %v4872
        %v4875 = vmul.f32 %v4873, %v4873
        %v4876 = vmul.f32 %v4874, %v4874
        %v4877 = vsel %vm551, %v4875, 0.0
        %4878 = vadd.xlane.f32.xlu0 %v4877
        %v4879 = vpop.xlane.xlu0 %4878
        %v4880 = vsel %vm551, %v4876, 0.0
        %4881 = vadd.xlane.f32.xlu0 %v4880
        %v4882 = vpop.xlane.xlu0 %4881
        %v4883 = vmul.f32 %v4879, %v714
        %v4884 = vmul.f32 %v4882, %v714
        %v4885 = vadd.f32 %v4883, 1e-05
        %v4886 = vadd.f32 %v4884, 1e-05
        %v4887 = vrsqrt.pop %v4885
        %v4888 = vrsqrt.pop %v4886
        %v4889 = vmul.f32 %v4873, %v4887
        %v4890 = vmul.f32 %v4874, %v4888
        %v4891 = vmul.f32 %v4889, %v1254
        %v4892 = vmul.f32 %v4890, %v1254
        %v4893 = vadd.f32 %v4891, %v1262
        %v4894 = vadd.f32 %v4892, %v1262
        %v4896 = vsel %vm551, %v4893, 0
        %v4899 = vsel %vm551, %v4894, 0
        %4901 = vmatprep.subr.mxu0 0.0
        %4902 = vmatpush1.msra.mxu0 0.0
        %4903 = vmatprep.subr.mxu0 0.0
        %4904 = vmatpush1.msra.mxu0 0.0
        %4905 = vmatprep.subr.mxu0 0.0
        %4906 = vmatpush1.msra.mxu0 0.0
        %4907 = vmatprep.subr.mxu0 0.0
        %4908 = vmatpush1.msra.mxu0 0.0
        %4909 = vmatprep.subr.mxu0 0.0
        %4910 = vmatpush1.msra.mxu0 0.0
        %4911 = vmatprep.subr.mxu0 0.0
        %4912 = vmatpush1.msra.mxu0 0.0
        %4913 = vmatprep.subr.mxu0 0.0
        %4914 = vmatpush1.msra.mxu0 0.0
        %4915 = vmatprep.subr.mxu0 0.0
        %4916 = vmatpush1.msra.mxu0 0.0
        %4917 = vmatprep.subr.mxu0 0.0
        %4918 = vmatpush1.msra.mxu0 0.0
        %4919 = vmatprep.subr.mxu0 0.0
        %4920 = vmatpush1.msra.mxu0 0.0
        %4921 = vmatprep.subr.mxu0 0.0
        %4922 = vmatpush1.msra.mxu0 0.0
        %4923 = vmatprep.subr.mxu0 0.0
        %4924 = vmatpush1.msra.mxu0 0.0
        %4925 = vmatprep.subr.mxu0 0.0
        %4926 = vmatpush1.msra.mxu0 %v1269
        %4927 = vmatprep.subr.mxu0 0.0
        %4928 = vmatpush1.msra.mxu0 %v1268
        %4929 = vmatprep.subr.mxu0 0.0
        %4930 = vmatpush1.msra.mxu0 %v1267
        %4931 = vmatprep.subr.mxu0 0.0
        %4932 = vmatpush1.msra.mxu0 %v1266
        %4933 = vmatprep.subr.mxu0 0.0
        %4934 = vmatpush2.msra.mxu0 0.0
        %4935 = vmatprep.subr.mxu0 0.0
        %4936 = vmatpush2.msra.mxu0 0.0
        %4937 = vmatprep.subr.mxu0 0.0
        %4938 = vmatpush2.msra.mxu0 0.0
        %4939 = vmatprep.subr.mxu0 0.0
        %4940 = vmatpush2.msra.mxu0 0.0
        %4941 = vmatprep.subr.mxu0 0.0
        %4942 = vmatpush2.msra.mxu0 0.0
        %4943 = vmatprep.subr.mxu0 0.0
        %4944 = vmatpush2.msra.mxu0 0.0
        %4945 = vmatprep.subr.mxu0 0.0
        %4946 = vmatpush2.msra.mxu0 0.0
        %4947 = vmatprep.subr.mxu0 0.0
        %4948 = vmatpush2.msra.mxu0 0.0
        %4949 = vmatprep.subr.mxu0 0.0
        %4950 = vmatpush2.msra.mxu0 0.0
        %4951 = vmatprep.subr.mxu0 0.0
        %4952 = vmatpush2.msra.mxu0 0.0
        %4953 = vmatprep.subr.mxu0 0.0
        %4954 = vmatpush2.msra.mxu0 0.0
        %4955 = vmatprep.subr.mxu0 0.0
        %4956 = vmatpush2.msra.mxu0 0.0
        %4957 = vmatprep.subr.mxu0 0.0
        %4958 = vmatpush2.msra.mxu0 0.0
        %4959 = vmatprep.subr.mxu0 0.0
        %4960 = vmatpush2.msra.mxu0 0.0
        %4961 = vmatprep.subr.mxu0 0.0
        %4962 = vmatpush2.msra.mxu0 0.0
        %4963 = vmatprep.subr.mxu0 0.0
        %4964 = vmatpush2.msra.mxu0 0.0
        %4965 = vmatprep.mubr.f32.mxu0 0.0
        %4966 = vmatmul.mubr.f32.gmra.mxu0 %v4896
        %v4967 = vpop.f32.mrf.mxu0
        %v4968 = vadd.f32 %v1275, %v4967
        %v4969 = vpop.f32.mrf.mxu0
        %4970 = vmatprep.mubr.f32.mxu0 0.0
        %4971 = vmatmul.mubr.f32.gmra.mxu0 %v4899
        %v4972 = vpop.f32.mrf.mxu0
        %v4973 = vadd.f32 %v1275, %v4972
        %v4974 = vpop.f32.mrf.mxu0
        %4975 = vdwg.mxu0
        %v4976 = vmul.f32 %v4968, 0.5
        %v4977 = vmul.f32 %v4973, 0.5
        %v4978 = vmul.f32 %v4968, 0.70710677
        %v4979 = vmul.f32 %v4973, 0.70710677
        %vm4980 = vcmp.ge.f32.partialorder %v4978, 0.0
        %vm4981 = vcmp.ge.f32.partialorder %v4979, 0.0
        %v4982 = vsel %vm4980, 1.0, -1.0
        %v4983 = vsel %vm4981, 1.0, -1.0
        %v4984 = vand.u32 2147483647, %v4978
        %v4985 = vand.u32 2147483647, %v4979
        %v4986 = vmul.f32 %v4984, 0.3275911
        %v4987 = vmul.f32 %v4985, 0.3275911
        %v4988 = vadd.f32 %v4986, 1.0
        %v4989 = vadd.f32 %v4987, 1.0
        %v4990 = vrcp.pop %v4988
        %v4991 = vmul.f32 1.0, %v4990
        %v4992 = vrcp.pop %v4989
        %v4993 = vmul.f32 1.0, %v4992
        %v4994 = vmul.f32 %v4991, 1.0614054
        %v4995 = vmul.f32 %v4993, 1.0614054
        %v4996 = vadd.f32 %v4994, -1.4531521
        %v4997 = vadd.f32 %v4995, -1.4531521
        %v4998 = vmul.f32 %v4996, %v4991
        %v4999 = vmul.f32 %v4997, %v4993
        %v5000 = vadd.f32 %v4998, 1.4214138
        %v5001 = vadd.f32 %v4999, 1.4214138
        %v5002 = vmul.f32 %v5000, %v4991
        %v5003 = vmul.f32 %v5001, %v4993
        %v5004 = vadd.f32 %v5002, -0.28449672
        %v5005 = vadd.f32 %v5003, -0.28449672
        %v5006 = vmul.f32 %v5004, %v4991
        %v5007 = vmul.f32 %v5005, %v4993
        %v5008 = vadd.f32 %v5006, 0.2548296
        %v5009 = vadd.f32 %v5007, 0.2548296
        %v5010 = vmul.f32 %v5008, %v4991
        %v5011 = vmul.f32 %v5009, %v4993
        %v5012 = vsub.f32 0.0, %v4984
        %v5013 = vsub.f32 0.0, %v4985
        %v5014 = vmul.f32 %v5012, %v4984
        %v5015 = vmul.f32 %v5013, %v4985
        %v5016 = vmul.f32 %v5014, 1.442695
        %v5017 = vpow.pop %v5016
        %v5018 = vmul.f32 %v5015, 1.442695
        %v5019 = vpow.pop %v5018
        %v5020 = vmul.f32 %v5010, %v5017
        %v5021 = vmul.f32 %v5011, %v5019
        %v5022 = vsub.f32 1.0, %v5020
        %v5023 = vsub.f32 1.0, %v5021
        %v5024 = vmul.f32 %v4982, %v5022
        %v5025 = vmul.f32 %v4983, %v5023
        %v5026 = vadd.f32 %v5024, 1.0
        %v5027 = vadd.f32 %v5025, 1.0
        %v5028 = vmul.f32 %v4976, %v5026
        %v5029 = vmul.f32 %v4977, %v5027
        %5030 = vmatprep.subr.mxu0 0.0
        %5031 = vmatpush1.msra.mxu0 %v1427
        %5032 = vmatprep.subr.mxu0 0.0
        %5033 = vmatpush1.msra.mxu0 %v1426
        %5034 = vmatprep.subr.mxu0 0.0
        %5035 = vmatpush1.msra.mxu0 %v1425
        %5036 = vmatprep.subr.mxu0 0.0
        %5037 = vmatpush1.msra.mxu0 %v1424
        %5038 = vmatprep.subr.mxu0 0.0
        %5039 = vmatpush1.msra.mxu0 %v1423
        %5040 = vmatprep.subr.mxu0 0.0
        %5041 = vmatpush1.msra.mxu0 %v1422
        %5042 = vmatprep.subr.mxu0 0.0
        %5043 = vmatpush1.msra.mxu0 %v1421
        %5044 = vmatprep.subr.mxu0 0.0
        %5045 = vmatpush1.msra.mxu0 %v1420
        %5046 = vmatprep.subr.mxu0 0.0
        %5047 = vmatpush1.msra.mxu0 %v1419
        %5048 = vmatprep.subr.mxu0 0.0
        %5049 = vmatpush1.msra.mxu0 %v1418
        %5050 = vmatprep.subr.mxu0 0.0
        %5051 = vmatpush1.msra.mxu0 %v1417
        %5052 = vmatprep.subr.mxu0 0.0
        %5053 = vmatpush1.msra.mxu0 %v1416
        %5054 = vmatprep.subr.mxu0 0.0
        %5055 = vmatpush1.msra.mxu0 %v1415
        %5056 = vmatprep.subr.mxu0 0.0
        %5057 = vmatpush1.msra.mxu0 %v1414
        %5058 = vmatprep.subr.mxu0 0.0
        %5059 = vmatpush1.msra.mxu0 %v1413
        %5060 = vmatprep.subr.mxu0 0.0
        %5061 = vmatpush1.msra.mxu0 %v1412
        %5062 = vmatprep.subr.mxu0 0.0
        %5063 = vmatpush2.msra.mxu0 0.0
        %5064 = vmatprep.subr.mxu0 0.0
        %5065 = vmatpush2.msra.mxu0 0.0
        %5066 = vmatprep.subr.mxu0 0.0
        %5067 = vmatpush2.msra.mxu0 0.0
        %5068 = vmatprep.subr.mxu0 0.0
        %5069 = vmatpush2.msra.mxu0 0.0
        %5070 = vmatprep.subr.mxu0 0.0
        %5071 = vmatpush2.msra.mxu0 0.0
        %5072 = vmatprep.subr.mxu0 0.0
        %5073 = vmatpush2.msra.mxu0 0.0
        %5074 = vmatprep.subr.mxu0 0.0
        %5075 = vmatpush2.msra.mxu0 0.0
        %5076 = vmatprep.subr.mxu0 0.0
        %5077 = vmatpush2.msra.mxu0 0.0
        %5078 = vmatprep.subr.mxu0 0.0
        %5079 = vmatpush2.msra.mxu0 0.0
        %5080 = vmatprep.subr.mxu0 0.0
        %5081 = vmatpush2.msra.mxu0 0.0
        %5082 = vmatprep.subr.mxu0 0.0
        %5083 = vmatpush2.msra.mxu0 0.0
        %5084 = vmatprep.subr.mxu0 0.0
        %5085 = vmatpush2.msra.mxu0 0.0
        %5086 = vmatprep.subr.mxu0 0.0
        %5087 = vmatpush2.msra.mxu0 0.0
        %5088 = vmatprep.subr.mxu0 0.0
        %5089 = vmatpush2.msra.mxu0 0.0
        %5090 = vmatprep.subr.mxu0 0.0
        %5091 = vmatpush2.msra.mxu0 0.0
        %5092 = vmatprep.subr.mxu0 0.0
        %5093 = vmatpush2.msra.mxu0 0.0
        %5094 = vmatprep.mubr.f32.mxu0 0.0
        %5095 = vmatmul.mubr.f32.gmra.mxu0 %v5028
        %v5096 = vpop.f32.mrf.mxu0
        %v5097 = vadd.f32 %v1433, %v5096
        %v5098 = vpop.f32.mrf.mxu0
        %5099 = vmatprep.mubr.f32.mxu0 0.0
        %5100 = vmatmul.mubr.f32.gmra.mxu0 %v5029
        %v5101 = vpop.f32.mrf.mxu0
        %v5102 = vadd.f32 %v1433, %v5101
        %v5103 = vpop.f32.mrf.mxu0
        %5104 = vdwg.mxu0
        %v5105 = vadd.f32 %v4863, %v5097
        %v5106 = vadd.f32 %v4864, %v5102
        %v5107 = vsel %vm551, %v5105, 0.0
        %5108 = vadd.xlane.f32.xlu0 %v5107
        %v5109 = vpop.xlane.xlu0 %5108
        %v5110 = vsel %vm551, %v5106, 0.0
        %5111 = vadd.xlane.f32.xlu0 %v5110
        %v5112 = vpop.xlane.xlu0 %5111
        %v5113 = vmul.f32 %v5109, %v714
        %v5114 = vmul.f32 %v5112, %v714
        %v5115 = vsub.f32 %v5105, %v5113
        %v5116 = vsub.f32 %v5106, %v5114
        %v5117 = vmul.f32 %v5115, %v5115
        %v5118 = vmul.f32 %v5116, %v5116
        %v5119 = vsel %vm551, %v5117, 0.0
        %5120 = vadd.xlane.f32.xlu0 %v5119
        %v5121 = vpop.xlane.xlu0 %5120
        %v5122 = vsel %vm551, %v5118, 0.0
        %5123 = vadd.xlane.f32.xlu0 %v5122
        %v5124 = vpop.xlane.xlu0 %5123
        %v5125 = vmul.f32 %v5121, %v714
        %v5126 = vmul.f32 %v5124, %v714
        %v5127 = vadd.f32 %v5125, 1e-05
        %v5128 = vadd.f32 %v5126, 1e-05
        %v5129 = vrsqrt.pop %v5127
        %v5130 = vrsqrt.pop %v5128
        %v5131 = vmul.f32 %v5115, %v5129
        %v5132 = vmul.f32 %v5116, %v5130
        %v5133 = vmul.f32 %v5131, %v739
        %v5134 = vmul.f32 %v5132, %v739
        %v5135 = vadd.f32 %v5133, %v747
        %v5136 = vadd.f32 %v5134, %v747
        %v5138 = vsel %vm551, %v5135, 0
        %v5141 = vsel %vm551, %v5136, 0
        %5143 = vmatprep.subr.mxu0 0.0
        %5144 = vmatpush1.msra.mxu0 0.0
        %5145 = vmatprep.subr.mxu0 0.0
        %5146 = vmatpush1.msra.mxu0 0.0
        %5147 = vmatprep.subr.mxu0 0.0
        %5148 = vmatpush1.msra.mxu0 0.0
        %5149 = vmatprep.subr.mxu0 0.0
        %5150 = vmatpush1.msra.mxu0 0.0
        %5151 = vmatprep.subr.mxu0 0.0
        %5152 = vmatpush1.msra.mxu0 0.0
        %5153 = vmatprep.subr.mxu0 0.0
        %5154 = vmatpush1.msra.mxu0 0.0
        %5155 = vmatprep.subr.mxu0 0.0
        %5156 = vmatpush1.msra.mxu0 0.0
        %5157 = vmatprep.subr.mxu0 0.0
        %5158 = vmatpush1.msra.mxu0 0.0
        %5159 = vmatprep.subr.mxu0 0.0
        %5160 = vmatpush1.msra.mxu0 0.0
        %5161 = vmatprep.subr.mxu0 0.0
        %5162 = vmatpush1.msra.mxu0 0.0
        %5163 = vmatprep.subr.mxu0 0.0
        %5164 = vmatpush1.msra.mxu0 0.0
        %5165 = vmatprep.subr.mxu0 0.0
        %5166 = vmatpush1.msra.mxu0 0.0
        %5167 = vmatprep.subr.mxu0 0.0
        %5168 = vmatpush1.msra.mxu0 %v754
        %5169 = vmatprep.subr.mxu0 0.0
        %5170 = vmatpush1.msra.mxu0 %v753
        %5171 = vmatprep.subr.mxu0 0.0
        %5172 = vmatpush1.msra.mxu0 %v752
        %5173 = vmatprep.subr.mxu0 0.0
        %5174 = vmatpush1.msra.mxu0 %v751
        %5175 = vmatprep.subr.mxu0 0.0
        %5176 = vmatpush2.msra.mxu0 0.0
        %5177 = vmatprep.subr.mxu0 0.0
        %5178 = vmatpush2.msra.mxu0 0.0
        %5179 = vmatprep.subr.mxu0 0.0
        %5180 = vmatpush2.msra.mxu0 0.0
        %5181 = vmatprep.subr.mxu0 0.0
        %5182 = vmatpush2.msra.mxu0 0.0
        %5183 = vmatprep.subr.mxu0 0.0
        %5184 = vmatpush2.msra.mxu0 0.0
        %5185 = vmatprep.subr.mxu0 0.0
        %5186 = vmatpush2.msra.mxu0 0.0
        %5187 = vmatprep.subr.mxu0 0.0
        %5188 = vmatpush2.msra.mxu0 0.0
        %5189 = vmatprep.subr.mxu0 0.0
        %5190 = vmatpush2.msra.mxu0 0.0
        %5191 = vmatprep.subr.mxu0 0.0
        %5192 = vmatpush2.msra.mxu0 0.0
        %5193 = vmatprep.subr.mxu0 0.0
        %5194 = vmatpush2.msra.mxu0 0.0
        %5195 = vmatprep.subr.mxu0 0.0
        %5196 = vmatpush2.msra.mxu0 0.0
        %5197 = vmatprep.subr.mxu0 0.0
        %5198 = vmatpush2.msra.mxu0 0.0
        %5199 = vmatprep.subr.mxu0 0.0
        %5200 = vmatpush2.msra.mxu0 0.0
        %5201 = vmatprep.subr.mxu0 0.0
        %5202 = vmatpush2.msra.mxu0 0.0
        %5203 = vmatprep.subr.mxu0 0.0
        %5204 = vmatpush2.msra.mxu0 0.0
        %5205 = vmatprep.subr.mxu0 0.0
        %5206 = vmatpush2.msra.mxu0 0.0
        %5207 = vmatprep.mubr.f32.mxu0 0.0
        %5208 = vmatmul.mubr.f32.gmra.mxu0 %v5138
        %v5209 = vpop.f32.mrf.mxu0
        %v5210 = vadd.f32 %v760, %v5209
        %v5211 = vpop.f32.mrf.mxu0
        %5212 = vmatprep.mubr.f32.mxu0 0.0
        %5213 = vmatmul.mubr.f32.gmra.mxu0 %v5141
        %v5214 = vpop.f32.mrf.mxu0
        %v5215 = vadd.f32 %v760, %v5214
        %v5216 = vpop.f32.mrf.mxu0
        %5217 = vdwg.mxu0
        %v5219 = vsel %vm843, %v5210, 0
        %v5222 = vsel %vm843, %v5215, 0
        %5224 = vmatprep.subr.mxu0 0.0
        %5225 = vmatpush1.xpose.msra.mxu0 0.0
        %5226 = vmatprep.subr.mxu0 0.0
        %5227 = vmatpush1.xpose.msra.mxu0 0.0
        %5228 = vmatprep.subr.mxu0 0.0
        %5229 = vmatpush1.xpose.msra.mxu0 0.0
        %5230 = vmatprep.subr.mxu0 0.0
        %5231 = vmatpush1.xpose.msra.mxu0 0.0
        %5232 = vmatprep.subr.mxu0 0.0
        %5233 = vmatpush1.xpose.msra.mxu0 0.0
        %5234 = vmatprep.subr.mxu0 0.0
        %5235 = vmatpush1.xpose.msra.mxu0 0.0
        %5236 = vmatprep.subr.mxu0 0.0
        %5237 = vmatpush1.xpose.msra.mxu0 0.0
        %5238 = vmatprep.subr.mxu0 0.0
        %5239 = vmatpush1.xpose.msra.mxu0 0.0
        %5240 = vmatprep.subr.mxu0 0.0
        %5241 = vmatpush1.xpose.msra.mxu0 0.0
        %5242 = vmatprep.subr.mxu0 0.0
        %5243 = vmatpush1.xpose.msra.mxu0 0.0
        %5244 = vmatprep.subr.mxu0 0.0
        %5245 = vmatpush1.xpose.msra.mxu0 0.0
        %5246 = vmatprep.subr.mxu0 0.0
        %5247 = vmatpush1.xpose.msra.mxu0 0.0
        %5248 = vmatprep.subr.mxu0 0.0
        %5249 = vmatpush1.xpose.msra.mxu0 0.0
        %5250 = vmatprep.subr.mxu0 0.0
        %5251 = vmatpush1.xpose.msra.mxu0 0.0
        %5252 = vmatprep.subr.mxu0 0.0
        %5253 = vmatpush1.xpose.msra.mxu0 0.0
        %5254 = vmatprep.subr.mxu0 0.0
        %5255 = vmatpush1.xpose.msra.mxu0 %v851
        %5256 = vmatprep.subr.mxu0 0.0
        %5257 = vmatpush2.xpose.msra.mxu0 0.0
        %5258 = vmatprep.subr.mxu0 0.0
        %5259 = vmatpush2.xpose.msra.mxu0 0.0
        %5260 = vmatprep.subr.mxu0 0.0
        %5261 = vmatpush2.xpose.msra.mxu0 0.0
        %5262 = vmatprep.subr.mxu0 0.0
        %5263 = vmatpush2.xpose.msra.mxu0 0.0
        %5264 = vmatprep.subr.mxu0 0.0
        %5265 = vmatpush2.xpose.msra.mxu0 0.0
        %5266 = vmatprep.subr.mxu0 0.0
        %5267 = vmatpush2.xpose.msra.mxu0 0.0
        %5268 = vmatprep.subr.mxu0 0.0
        %5269 = vmatpush2.xpose.msra.mxu0 0.0
        %5270 = vmatprep.subr.mxu0 0.0
        %5271 = vmatpush2.xpose.msra.mxu0 0.0
        %5272 = vmatprep.subr.mxu0 0.0
        %5273 = vmatpush2.xpose.msra.mxu0 0.0
        %5274 = vmatprep.subr.mxu0 0.0
        %5275 = vmatpush2.xpose.msra.mxu0 0.0
        %5276 = vmatprep.subr.mxu0 0.0
        %5277 = vmatpush2.xpose.msra.mxu0 0.0
        %5278 = vmatprep.subr.mxu0 0.0
        %5279 = vmatpush2.xpose.msra.mxu0 0.0
        %5280 = vmatprep.subr.mxu0 0.0
        %5281 = vmatpush2.xpose.msra.mxu0 0.0
        %5282 = vmatprep.subr.mxu0 0.0
        %5283 = vmatpush2.xpose.msra.mxu0 0.0
        %5284 = vmatprep.subr.mxu0 0.0
        %5285 = vmatpush2.xpose.msra.mxu0 0.0
        %5286 = vmatprep.subr.mxu0 0.0
        %5287 = vmatpush2.xpose.msra.mxu0 0.0
        %5288 = vmatprep.mubr.f32.mxu0 0.0
        %5289 = vmatmul.mubr.f32.gmra.mxu0 %v5219
        %v5290 = vpop.f32.mrf.mxu0
        %v5291 = vadd.f32 0.0, %v5290
        %v5292 = vpop.f32.mrf.mxu0
        %5293 = vmatprep.mubr.f32.mxu0 0.0
        %5294 = vmatmul.mubr.f32.gmra.mxu0 %v5222
        %v5295 = vpop.f32.mrf.mxu0
        %v5296 = vadd.f32 0.0, %v5295
        %v5297 = vpop.f32.mrf.mxu0
        %5298 = vdwg.mxu0
        %v5299 = vmul.f32 %v5291, 0.25
        %v5300 = vmul.f32 %v5296, 0.25
        %5301 = vrot.lane.b32.xlu0 %v5210, 112
        %v5302 = vpop.permute.xlu0 %5301
        %5303 = vrot.lane.b32.xlu0 %v5215, 112
        %v5304 = vpop.permute.xlu0 %5303
        %v5305 = vsel %vm843, %v5302, 0
        %v5307 = vsel %vm843, %v5304, 0
        %5309 = vmatprep.subr.mxu0 0.0
        %5310 = vmatpush1.xpose.msra.mxu0 0.0
        %5311 = vmatprep.subr.mxu0 0.0
        %5312 = vmatpush1.xpose.msra.mxu0 0.0
        %5313 = vmatprep.subr.mxu0 0.0
        %5314 = vmatpush1.xpose.msra.mxu0 0.0
        %5315 = vmatprep.subr.mxu0 0.0
        %5316 = vmatpush1.xpose.msra.mxu0 0.0
        %5317 = vmatprep.subr.mxu0 0.0
        %5318 = vmatpush1.xpose.msra.mxu0 0.0
        %5319 = vmatprep.subr.mxu0 0.0
        %5320 = vmatpush1.xpose.msra.mxu0 0.0
        %5321 = vmatprep.subr.mxu0 0.0
        %5322 = vmatpush1.xpose.msra.mxu0 0.0
        %5323 = vmatprep.subr.mxu0 0.0
        %5324 = vmatpush1.xpose.msra.mxu0 0.0
        %5325 = vmatprep.subr.mxu0 0.0
        %5326 = vmatpush1.xpose.msra.mxu0 0.0
        %5327 = vmatprep.subr.mxu0 0.0
        %5328 = vmatpush1.xpose.msra.mxu0 0.0
        %5329 = vmatprep.subr.mxu0 0.0
        %5330 = vmatpush1.xpose.msra.mxu0 0.0
        %5331 = vmatprep.subr.mxu0 0.0
        %5332 = vmatpush1.xpose.msra.mxu0 0.0
        %5333 = vmatprep.subr.mxu0 0.0
        %5334 = vmatpush1.xpose.msra.mxu0 0.0
        %5335 = vmatprep.subr.mxu0 0.0
        %5336 = vmatpush1.xpose.msra.mxu0 0.0
        %5337 = vmatprep.subr.mxu0 0.0
        %5338 = vmatpush1.xpose.msra.mxu0 0.0
        %5339 = vmatprep.subr.mxu0 0.0
        %5340 = vmatpush1.xpose.msra.mxu0 %v940
        %5341 = vmatprep.subr.mxu0 0.0
        %5342 = vmatpush2.xpose.msra.mxu0 0.0
        %5343 = vmatprep.subr.mxu0 0.0
        %5344 = vmatpush2.xpose.msra.mxu0 0.0
        %5345 = vmatprep.subr.mxu0 0.0
        %5346 = vmatpush2.xpose.msra.mxu0 0.0
        %5347 = vmatprep.subr.mxu0 0.0
        %5348 = vmatpush2.xpose.msra.mxu0 0.0
        %5349 = vmatprep.subr.mxu0 0.0
        %5350 = vmatpush2.xpose.msra.mxu0 0.0
        %5351 = vmatprep.subr.mxu0 0.0
        %5352 = vmatpush2.xpose.msra.mxu0 0.0
        %5353 = vmatprep.subr.mxu0 0.0
        %5354 = vmatpush2.xpose.msra.mxu0 0.0
        %5355 = vmatprep.subr.mxu0 0.0
        %5356 = vmatpush2.xpose.msra.mxu0 0.0
        %5357 = vmatprep.subr.mxu0 0.0
        %5358 = vmatpush2.xpose.msra.mxu0 0.0
        %5359 = vmatprep.subr.mxu0 0.0
        %5360 = vmatpush2.xpose.msra.mxu0 0.0
        %5361 = vmatprep.subr.mxu0 0.0
        %5362 = vmatpush2.xpose.msra.mxu0 0.0
        %5363 = vmatprep.subr.mxu0 0.0
        %5364 = vmatpush2.xpose.msra.mxu0 0.0
        %5365 = vmatprep.subr.mxu0 0.0
        %5366 = vmatpush2.xpose.msra.mxu0 0.0
        %5367 = vmatprep.subr.mxu0 0.0
        %5368 = vmatpush2.xpose.msra.mxu0 0.0
        %5369 = vmatprep.subr.mxu0 0.0
        %5370 = vmatpush2.xpose.msra.mxu0 0.0
        %5371 = vmatprep.subr.mxu0 0.0
        %5372 = vmatpush2.xpose.msra.mxu0 0.0
        %5373 = vmatprep.mubr.f32.mxu0 0.0
        %5374 = vmatmul.mubr.f32.gmra.mxu0 %v5305
        %v5375 = vpop.f32.mrf.mxu0
        %v5376 = vadd.f32 0.0, %v5375
        %v5377 = vpop.f32.mrf.mxu0
        %5378 = vmatprep.mubr.f32.mxu0 0.0
        %5379 = vmatmul.mubr.f32.gmra.mxu0 %v5307
        %v5380 = vpop.f32.mrf.mxu0
        %v5381 = vadd.f32 0.0, %v5380
        %v5382 = vpop.f32.mrf.mxu0
        %5383 = vdwg.mxu0
        %v5384 = vmul.f32 %v5376, 0.25
        %v5385 = vmul.f32 %v5381, 0.25
        %v5386 = vmax.f32 %v5299, %v5384
        %v5387 = vmax.f32 %v5300, %v5385
        %v5388 = vsub.f32 %v5299, %v5386
        %v5389 = vsub.f32 %v5300, %v5387
        %v5390 = vmul.f32 %v5388, 1.442695
        %v5391 = vpow.pop %v5390
        %v5392 = vmul.f32 %v5389, 1.442695
        %v5393 = vpow.pop %v5392
        %v5394 = vsub.f32 %v5384, %v5386
        %v5395 = vsub.f32 %v5385, %v5387
        %v5396 = vmul.f32 %v5394, 1.442695
        %v5397 = vpow.pop %v5396
        %v5398 = vmul.f32 %v5395, 1.442695
        %v5399 = vpow.pop %v5398
        %v5400 = vadd.f32 %v5391, %v5397
        %v5401 = vadd.f32 %v5393, %v5399
        %v5402 = vrcp.pop %v5400
        %v5403 = vmul.f32 1.0, %v5402
        %v5404 = vrcp.pop %v5401
        %v5405 = vmul.f32 1.0, %v5404
        %v5406 = vmul.f32 %v5391, %v5403
        %v5407 = vmul.f32 %v5393, %v5405
        %v5409 = vsel %vm1041, %v5406, 0
        %v5412 = vsel %vm1041, %v5407, 0
        %5414 = vmatprep.subr.mxu0 0.0
        %5415 = vmatpush1.msra.mxu0 0.0
        %5416 = vmatprep.subr.mxu0 0.0
        %5417 = vmatpush1.msra.mxu0 0.0
        %5418 = vmatprep.subr.mxu0 0.0
        %5419 = vmatpush1.msra.mxu0 0.0
        %5420 = vmatprep.subr.mxu0 0.0
        %5421 = vmatpush1.msra.mxu0 0.0
        %5422 = vmatprep.subr.mxu0 0.0
        %5423 = vmatpush1.msra.mxu0 0.0
        %5424 = vmatprep.subr.mxu0 0.0
        %5425 = vmatpush1.msra.mxu0 0.0
        %5426 = vmatprep.subr.mxu0 0.0
        %5427 = vmatpush1.msra.mxu0 0.0
        %5428 = vmatprep.subr.mxu0 0.0
        %5429 = vmatpush1.msra.mxu0 0.0
        %5430 = vmatprep.subr.mxu0 0.0
        %5431 = vmatpush1.msra.mxu0 0.0
        %5432 = vmatprep.subr.mxu0 0.0
        %5433 = vmatpush1.msra.mxu0 0.0
        %5434 = vmatprep.subr.mxu0 0.0
        %5435 = vmatpush1.msra.mxu0 0.0
        %5436 = vmatprep.subr.mxu0 0.0
        %5437 = vmatpush1.msra.mxu0 0.0
        %5438 = vmatprep.subr.mxu0 0.0
        %5439 = vmatpush1.msra.mxu0 0.0
        %5440 = vmatprep.subr.mxu0 0.0
        %5441 = vmatpush1.msra.mxu0 0.0
        %5442 = vmatprep.subr.mxu0 0.0
        %5443 = vmatpush1.msra.mxu0 0.0
        %5444 = vmatprep.subr.mxu0 0.0
        %5445 = vmatpush1.msra.mxu0 %v703
        %5446 = vmatprep.subr.mxu0 0.0
        %5447 = vmatpush2.msra.mxu0 0.0
        %5448 = vmatprep.subr.mxu0 0.0
        %5449 = vmatpush2.msra.mxu0 0.0
        %5450 = vmatprep.subr.mxu0 0.0
        %5451 = vmatpush2.msra.mxu0 0.0
        %5452 = vmatprep.subr.mxu0 0.0
        %5453 = vmatpush2.msra.mxu0 0.0
        %5454 = vmatprep.subr.mxu0 0.0
        %5455 = vmatpush2.msra.mxu0 0.0
        %5456 = vmatprep.subr.mxu0 0.0
        %5457 = vmatpush2.msra.mxu0 0.0
        %5458 = vmatprep.subr.mxu0 0.0
        %5459 = vmatpush2.msra.mxu0 0.0
        %5460 = vmatprep.subr.mxu0 0.0
        %5461 = vmatpush2.msra.mxu0 0.0
        %5462 = vmatprep.subr.mxu0 0.0
        %5463 = vmatpush2.msra.mxu0 0.0
        %5464 = vmatprep.subr.mxu0 0.0
        %5465 = vmatpush2.msra.mxu0 0.0
        %5466 = vmatprep.subr.mxu0 0.0
        %5467 = vmatpush2.msra.mxu0 0.0
        %5468 = vmatprep.subr.mxu0 0.0
        %5469 = vmatpush2.msra.mxu0 0.0
        %5470 = vmatprep.subr.mxu0 0.0
        %5471 = vmatpush2.msra.mxu0 0.0
        %5472 = vmatprep.subr.mxu0 0.0
        %5473 = vmatpush2.msra.mxu0 0.0
        %5474 = vmatprep.subr.mxu0 0.0
        %5475 = vmatpush2.msra.mxu0 0.0
        %5476 = vmatprep.subr.mxu0 0.0
        %5477 = vmatpush2.msra.mxu0 0.0
        %5478 = vmatprep.mubr.f32.mxu0 0.0
        %5479 = vmatmul.mubr.f32.gmra.mxu0 %v5409
        %v5480 = vpop.f32.mrf.mxu0
        %v5481 = vadd.f32 0.0, %v5480
        %v5482 = vpop.f32.mrf.mxu0
        %5483 = vmatprep.mubr.f32.mxu0 0.0
        %5484 = vmatmul.mubr.f32.gmra.mxu0 %v5412
        %v5485 = vpop.f32.mrf.mxu0
        %v5486 = vadd.f32 0.0, %v5485
        %v5487 = vpop.f32.mrf.mxu0
        %5488 = vdwg.mxu0
        %v5489 = vmul.f32 %v5397, %v5403
        %v5490 = vmul.f32 %v5399, %v5405
        %v5492 = vsel %vm1041, %v5489, 0
        %v5495 = vsel %vm1041, %v5490, 0
        %5497 = vmatprep.subr.mxu0 0.0
        %5498 = vmatpush1.msra.mxu0 0.0
        %5499 = vmatprep.subr.mxu0 0.0
        %5500 = vmatpush1.msra.mxu0 0.0
        %5501 = vmatprep.subr.mxu0 0.0
        %5502 = vmatpush1.msra.mxu0 0.0
        %5503 = vmatprep.subr.mxu0 0.0
        %5504 = vmatpush1.msra.mxu0 0.0
        %5505 = vmatprep.subr.mxu0 0.0
        %5506 = vmatpush1.msra.mxu0 0.0
        %5507 = vmatprep.subr.mxu0 0.0
        %5508 = vmatpush1.msra.mxu0 0.0
        %5509 = vmatprep.subr.mxu0 0.0
        %5510 = vmatpush1.msra.mxu0 0.0
        %5511 = vmatprep.subr.mxu0 0.0
        %5512 = vmatpush1.msra.mxu0 0.0
        %5513 = vmatprep.subr.mxu0 0.0
        %5514 = vmatpush1.msra.mxu0 0.0
        %5515 = vmatprep.subr.mxu0 0.0
        %5516 = vmatpush1.msra.mxu0 0.0
        %5517 = vmatprep.subr.mxu0 0.0
        %5518 = vmatpush1.msra.mxu0 0.0
        %5519 = vmatprep.subr.mxu0 0.0
        %5520 = vmatpush1.msra.mxu0 0.0
        %5521 = vmatprep.subr.mxu0 0.0
        %5522 = vmatpush1.msra.mxu0 0.0
        %5523 = vmatprep.subr.mxu0 0.0
        %5524 = vmatpush1.msra.mxu0 0.0
        %5525 = vmatprep.subr.mxu0 0.0
        %5526 = vmatpush1.msra.mxu0 0.0
        %5527 = vmatprep.subr.mxu0 0.0
        %5528 = vmatpush1.msra.mxu0 %v1127
        %5529 = vmatprep.subr.mxu0 0.0
        %5530 = vmatpush2.msra.mxu0 0.0
        %5531 = vmatprep.subr.mxu0 0.0
        %5532 = vmatpush2.msra.mxu0 0.0
        %5533 = vmatprep.subr.mxu0 0.0
        %5534 = vmatpush2.msra.mxu0 0.0
        %5535 = vmatprep.subr.mxu0 0.0
        %5536 = vmatpush2.msra.mxu0 0.0
        %5537 = vmatprep.subr.mxu0 0.0
        %5538 = vmatpush2.msra.mxu0 0.0
        %5539 = vmatprep.subr.mxu0 0.0
        %5540 = vmatpush2.msra.mxu0 0.0
        %5541 = vmatprep.subr.mxu0 0.0
        %5542 = vmatpush2.msra.mxu0 0.0
        %5543 = vmatprep.subr.mxu0 0.0
        %5544 = vmatpush2.msra.mxu0 0.0
        %5545 = vmatprep.subr.mxu0 0.0
        %5546 = vmatpush2.msra.mxu0 0.0
        %5547 = vmatprep.subr.mxu0 0.0
        %5548 = vmatpush2.msra.mxu0 0.0
        %5549 = vmatprep.subr.mxu0 0.0
        %5550 = vmatpush2.msra.mxu0 0.0
        %5551 = vmatprep.subr.mxu0 0.0
        %5552 = vmatpush2.msra.mxu0 0.0
        %5553 = vmatprep.subr.mxu0 0.0
        %5554 = vmatpush2.msra.mxu0 0.0
        %5555 = vmatprep.subr.mxu0 0.0
        %5556 = vmatpush2.msra.mxu0 0.0
        %5557 = vmatprep.subr.mxu0 0.0
        %5558 = vmatpush2.msra.mxu0 0.0
        %5559 = vmatprep.subr.mxu0 0.0
        %5560 = vmatpush2.msra.mxu0 0.0
        %5561 = vmatprep.mubr.f32.mxu0 0.0
        %5562 = vmatmul.mubr.f32.gmra.mxu0 %v5492
        %v5563 = vpop.f32.mrf.mxu0
        %v5564 = vadd.f32 0.0, %v5563
        %v5565 = vpop.f32.mrf.mxu0
        %5566 = vmatprep.mubr.f32.mxu0 0.0
        %5567 = vmatmul.mubr.f32.gmra.mxu0 %v5495
        %v5568 = vpop.f32.mrf.mxu0
        %v5569 = vadd.f32 0.0, %v5568
        %v5570 = vpop.f32.mrf.mxu0
        %5571 = vdwg.mxu0
        %5574 = vrot.lane.b32.xlu0 %v5564, 16
        %v5575 = vpop.permute.xlu0 %5574
        %5576 = vrot.lane.b32.xlu0 %v5569, 16
        %v5577 = vpop.permute.xlu0 %5576
        %v5580 = vsel %vm843, %v5481, %v5575
        %v5581 = vsel %vm843, %v5486, %v5577
        %v5582 = vadd.f32 %v5105, %v5580
        %v5583 = vadd.f32 %v5106, %v5581
        %v5584 = vsel %vm551, %v5582, 0.0
        %5585 = vadd.xlane.f32.xlu0 %v5584
        %v5586 = vpop.xlane.xlu0 %5585
        %v5587 = vsel %vm551, %v5583, 0.0
        %5588 = vadd.xlane.f32.xlu0 %v5587
        %v5589 = vpop.xlane.xlu0 %5588
        %v5590 = vmul.f32 %v5586, %v714
        %v5591 = vmul.f32 %v5589, %v714
        %v5592 = vsub.f32 %v5582, %v5590
        %v5593 = vsub.f32 %v5583, %v5591
        %v5594 = vmul.f32 %v5592, %v5592
        %v5595 = vmul.f32 %v5593, %v5593
        %v5596 = vsel %vm551, %v5594, 0.0
        %5597 = vadd.xlane.f32.xlu0 %v5596
        %v5598 = vpop.xlane.xlu0 %5597
        %v5599 = vsel %vm551, %v5595, 0.0
        %5600 = vadd.xlane.f32.xlu0 %v5599
        %v5601 = vpop.xlane.xlu0 %5600
        %v5602 = vmul.f32 %v5598, %v714
        %v5603 = vmul.f32 %v5601, %v714
        %v5604 = vadd.f32 %v5602, 1e-05
        %v5605 = vadd.f32 %v5603, 1e-05
        %v5606 = vrsqrt.pop %v5604
        %v5607 = vrsqrt.pop %v5605
        %v5608 = vmul.f32 %v5592, %v5606
        %v5609 = vmul.f32 %v5593, %v5607
        %v5610 = vmul.f32 %v5608, %v1254
        %v5611 = vmul.f32 %v5609, %v1254
        %v5612 = vadd.f32 %v5610, %v1262
        %v5613 = vadd.f32 %v5611, %v1262
        %v5615 = vsel %vm551, %v5612, 0
        %v5618 = vsel %vm551, %v5613, 0
        %5620 = vmatprep.subr.mxu0 0.0
        %5621 = vmatpush1.msra.mxu0 0.0
        %5622 = vmatprep.subr.mxu0 0.0
        %5623 = vmatpush1.msra.mxu0 0.0
        %5624 = vmatprep.subr.mxu0 0.0
        %5625 = vmatpush1.msra.mxu0 0.0
        %5626 = vmatprep.subr.mxu0 0.0
        %5627 = vmatpush1.msra.mxu0 0.0
        %5628 = vmatprep.subr.mxu0 0.0
        %5629 = vmatpush1.msra.mxu0 0.0
        %5630 = vmatprep.subr.mxu0 0.0
        %5631 = vmatpush1.msra.mxu0 0.0
        %5632 = vmatprep.subr.mxu0 0.0
        %5633 = vmatpush1.msra.mxu0 0.0
        %5634 = vmatprep.subr.mxu0 0.0
        %5635 = vmatpush1.msra.mxu0 0.0
        %5636 = vmatprep.subr.mxu0 0.0
        %5637 = vmatpush1.msra.mxu0 0.0
        %5638 = vmatprep.subr.mxu0 0.0
        %5639 = vmatpush1.msra.mxu0 0.0
        %5640 = vmatprep.subr.mxu0 0.0
        %5641 = vmatpush1.msra.mxu0 0.0
        %5642 = vmatprep.subr.mxu0 0.0
        %5643 = vmatpush1.msra.mxu0 0.0
        %5644 = vmatprep.subr.mxu0 0.0
        %5645 = vmatpush1.msra.mxu0 %v1269
        %5646 = vmatprep.subr.mxu0 0.0
        %5647 = vmatpush1.msra.mxu0 %v1268
        %5648 = vmatprep.subr.mxu0 0.0
        %5649 = vmatpush1.msra.mxu0 %v1267
        %5650 = vmatprep.subr.mxu0 0.0
        %5651 = vmatpush1.msra.mxu0 %v1266
        %5652 = vmatprep.subr.mxu0 0.0
        %5653 = vmatpush2.msra.mxu0 0.0
        %5654 = vmatprep.subr.mxu0 0.0
        %5655 = vmatpush2.msra.mxu0 0.0
        %5656 = vmatprep.subr.mxu0 0.0
        %5657 = vmatpush2.msra.mxu0 0.0
        %5658 = vmatprep.subr.mxu0 0.0
        %5659 = vmatpush2.msra.mxu0 0.0
        %5660 = vmatprep.subr.mxu0 0.0
        %5661 = vmatpush2.msra.mxu0 0.0
        %5662 = vmatprep.subr.mxu0 0.0
        %5663 = vmatpush2.msra.mxu0 0.0
        %5664 = vmatprep.subr.mxu0 0.0
        %5665 = vmatpush2.msra.mxu0 0.0
        %5666 = vmatprep.subr.mxu0 0.0
        %5667 = vmatpush2.msra.mxu0 0.0
        %5668 = vmatprep.subr.mxu0 0.0
        %5669 = vmatpush2.msra.mxu0 0.0
        %5670 = vmatprep.subr.mxu0 0.0
        %5671 = vmatpush2.msra.mxu0 0.0
        %5672 = vmatprep.subr.mxu0 0.0
        %5673 = vmatpush2.msra.mxu0 0.0
        %5674 = vmatprep.subr.mxu0 0.0
        %5675 = vmatpush2.msra.mxu0 0.0
        %5676 = vmatprep.subr.mxu0 0.0
        %5677 = vmatpush2.msra.mxu0 0.0
        %5678 = vmatprep.subr.mxu0 0.0
        %5679 = vmatpush2.msra.mxu0 0.0
        %5680 = vmatprep.subr.mxu0 0.0
        %5681 = vmatpush2.msra.mxu0 0.0
        %5682 = vmatprep.subr.mxu0 0.0
        %5683 = vmatpush2.msra.mxu0 0.0
        %5684 = vmatprep.mubr.f32.mxu0 0.0
        %5685 = vmatmul.mubr.f32.gmra.mxu0 %v5615
        %v5686 = vpop.f32.mrf.mxu0
        %v5687 = vadd.f32 %v1275, %v5686
        %v5688 = vpop.f32.mrf.mxu0
        %5689 = vmatprep.mubr.f32.mxu0 0.0
        %5690 = vmatmul.mubr.f32.gmra.mxu0 %v5618
        %v5691 = vpop.f32.mrf.mxu0
        %v5692 = vadd.f32 %v1275, %v5691
        %v5693 = vpop.f32.mrf.mxu0
        %5694 = vdwg.mxu0
        %v5695 = vmul.f32 %v5687, 0.5
        %v5696 = vmul.f32 %v5692, 0.5
        %v5697 = vmul.f32 %v5687, 0.70710677
        %v5698 = vmul.f32 %v5692, 0.70710677
        %vm5699 = vcmp.ge.f32.partialorder %v5697, 0.0
        %vm5700 = vcmp.ge.f32.partialorder %v5698, 0.0
        %v5701 = vsel %vm5699, 1.0, -1.0
        %v5702 = vsel %vm5700, 1.0, -1.0
        %v5703 = vand.u32 2147483647, %v5697
        %v5704 = vand.u32 2147483647, %v5698
        %v5705 = vmul.f32 %v5703, 0.3275911
        %v5706 = vmul.f32 %v5704, 0.3275911
        %v5707 = vadd.f32 %v5705, 1.0
        %v5708 = vadd.f32 %v5706, 1.0
        %v5709 = vrcp.pop %v5707
        %v5710 = vmul.f32 1.0, %v5709
        %v5711 = vrcp.pop %v5708
        %v5712 = vmul.f32 1.0, %v5711
        %v5713 = vmul.f32 %v5710, 1.0614054
        %v5714 = vmul.f32 %v5712, 1.0614054
        %v5715 = vadd.f32 %v5713, -1.4531521
        %v5716 = vadd.f32 %v5714, -1.4531521
        %v5717 = vmul.f32 %v5715, %v5710
        %v5718 = vmul.f32 %v5716, %v5712
        %v5719 = vadd.f32 %v5717, 1.4214138
        %v5720 = vadd.f32 %v5718, 1.4214138
        %v5721 = vmul.f32 %v5719, %v5710
        %v5722 = vmul.f32 %v5720, %v5712
        %v5723 = vadd.f32 %v5721, -0.28449672
        %v5724 = vadd.f32 %v5722, -0.28449672
        %v5725 = vmul.f32 %v5723, %v5710
        %v5726 = vmul.f32 %v5724, %v5712
        %v5727 = vadd.f32 %v5725, 0.2548296
        %v5728 = vadd.f32 %v5726, 0.2548296
        %v5729 = vmul.f32 %v5727, %v5710
        %v5730 = vmul.f32 %v5728, %v5712
        %v5731 = vsub.f32 0.0, %v5703
        %v5732 = vsub.f32 0.0, %v5704
        %v5733 = vmul.f32 %v5731, %v5703
        %v5734 = vmul.f32 %v5732, %v5704
        %v5735 = vmul.f32 %v5733, 1.442695
        %v5736 = vpow.pop %v5735
        %v5737 = vmul.f32 %v5734, 1.442695
        %v5738 = vpow.pop %v5737
        %v5739 = vmul.f32 %v5729, %v5736
        %v5740 = vmul.f32 %v5730, %v5738
        %v5741 = vsub.f32 1.0, %v5739
        %v5742 = vsub.f32 1.0, %v5740
        %v5743 = vmul.f32 %v5701, %v5741
        %v5744 = vmul.f32 %v5702, %v5742
        %v5745 = vadd.f32 %v5743, 1.0
        %v5746 = vadd.f32 %v5744, 1.0
        %v5747 = vmul.f32 %v5695, %v5745
        %v5748 = vmul.f32 %v5696, %v5746
        %5749 = vmatprep.subr.mxu0 0.0
        %5750 = vmatpush1.msra.mxu0 %v1427
        %5751 = vmatprep.subr.mxu0 0.0
        %5752 = vmatpush1.msra.mxu0 %v1426
        %5753 = vmatprep.subr.mxu0 0.0
        %5754 = vmatpush1.msra.mxu0 %v1425
        %5755 = vmatprep.subr.mxu0 0.0
        %5756 = vmatpush1.msra.mxu0 %v1424
        %5757 = vmatprep.subr.mxu0 0.0
        %5758 = vmatpush1.msra.mxu0 %v1423
        %5759 = vmatprep.subr.mxu0 0.0
        %5760 = vmatpush1.msra.mxu0 %v1422
        %5761 = vmatprep.subr.mxu0 0.0
        %5762 = vmatpush1.msra.mxu0 %v1421
        %5763 = vmatprep.subr.mxu0 0.0
        %5764 = vmatpush1.msra.mxu0 %v1420
        %5765 = vmatprep.subr.mxu0 0.0
        %5766 = vmatpush1.msra.mxu0 %v1419
        %5767 = vmatprep.subr.mxu0 0.0
        %5768 = vmatpush1.msra.mxu0 %v1418
        %5769 = vmatprep.subr.mxu0 0.0
        %5770 = vmatpush1.msra.mxu0 %v1417
        %5771 = vmatprep.subr.mxu0 0.0
        %5772 = vmatpush1.msra.mxu0 %v1416
        %5773 = vmatprep.subr.mxu0 0.0
        %5774 = vmatpush1.msra.mxu0 %v1415
        %5775 = vmatprep.subr.mxu0 0.0
        %5776 = vmatpush1.msra.mxu0 %v1414
        %5777 = vmatprep.subr.mxu0 0.0
        %5778 = vmatpush1.msra.mxu0 %v1413
        %5779 = vmatprep.subr.mxu0 0.0
        %5780 = vmatpush1.msra.mxu0 %v1412
        %5781 = vmatprep.subr.mxu0 0.0
        %5782 = vmatpush2.msra.mxu0 0.0
        %5783 = vmatprep.subr.mxu0 0.0
        %5784 = vmatpush2.msra.mxu0 0.0
        %5785 = vmatprep.subr.mxu0 0.0
        %5786 = vmatpush2.msra.mxu0 0.0
        %5787 = vmatprep.subr.mxu0 0.0
        %5788 = vmatpush2.msra.mxu0 0.0
        %5789 = vmatprep.subr.mxu0 0.0
        %5790 = vmatpush2.msra.mxu0 0.0
        %5791 = vmatprep.subr.mxu0 0.0
        %5792 = vmatpush2.msra.mxu0 0.0
        %5793 = vmatprep.subr.mxu0 0.0
        %5794 = vmatpush2.msra.mxu0 0.0
        %5795 = vmatprep.subr.mxu0 0.0
        %5796 = vmatpush2.msra.mxu0 0.0
        %5797 = vmatprep.subr.mxu0 0.0
        %5798 = vmatpush2.msra.mxu0 0.0
        %5799 = vmatprep.subr.mxu0 0.0
        %5800 = vmatpush2.msra.mxu0 0.0
        %5801 = vmatprep.subr.mxu0 0.0
        %5802 = vmatpush2.msra.mxu0 0.0
        %5803 = vmatprep.subr.mxu0 0.0
        %5804 = vmatpush2.msra.mxu0 0.0
        %5805 = vmatprep.subr.mxu0 0.0
        %5806 = vmatpush2.msra.mxu0 0.0
        %5807 = vmatprep.subr.mxu0 0.0
        %5808 = vmatpush2.msra.mxu0 0.0
        %5809 = vmatprep.subr.mxu0 0.0
        %5810 = vmatpush2.msra.mxu0 0.0
        %5811 = vmatprep.subr.mxu0 0.0
        %5812 = vmatpush2.msra.mxu0 0.0
        %5813 = vmatprep.mubr.f32.mxu0 0.0
        %5814 = vmatmul.mubr.f32.gmra.mxu0 %v5747
        %v5815 = vpop.f32.mrf.mxu0
        %v5816 = vadd.f32 %v1433, %v5815
        %v5817 = vpop.f32.mrf.mxu0
        %5818 = vmatprep.mubr.f32.mxu0 0.0
        %5819 = vmatmul.mubr.f32.gmra.mxu0 %v5748
        %v5820 = vpop.f32.mrf.mxu0
        %v5821 = vadd.f32 %v1433, %v5820
        %v5822 = vpop.f32.mrf.mxu0
        %5823 = vdwg.mxu0
        %v5824 = vadd.f32 %v5582, %v5816
        %v5825 = vadd.f32 %v5583, %v5821
        %v5826 = vsel %vm551, %v5824, 0.0
        %5827 = vadd.xlane.f32.xlu0 %v5826
        %v5828 = vpop.xlane.xlu0 %5827
        %v5829 = vsel %vm551, %v5825, 0.0
        %5830 = vadd.xlane.f32.xlu0 %v5829
        %v5831 = vpop.xlane.xlu0 %5830
        %v5832 = vmul.f32 %v5828, %v714
        %v5833 = vmul.f32 %v5831, %v714
        %v5834 = vsub.f32 %v5824, %v5832
        %v5835 = vsub.f32 %v5825, %v5833
        %v5836 = vmul.f32 %v5834, %v5834
        %v5837 = vmul.f32 %v5835, %v5835
        %v5838 = vsel %vm551, %v5836, 0.0
        %5839 = vadd.xlane.f32.xlu0 %v5838
        %v5840 = vpop.xlane.xlu0 %5839
        %v5841 = vsel %vm551, %v5837, 0.0
        %5842 = vadd.xlane.f32.xlu0 %v5841
        %v5843 = vpop.xlane.xlu0 %5842
        %v5844 = vmul.f32 %v5840, %v714
        %v5845 = vmul.f32 %v5843, %v714
        %v5846 = vadd.f32 %v5844, 1e-05
        %v5847 = vadd.f32 %v5845, 1e-05
        %v5848 = vrsqrt.pop %v5846
        %v5849 = vrsqrt.pop %v5847
        %v5850 = vmul.f32 %v5834, %v5848
        %v5851 = vmul.f32 %v5835, %v5849
        %v5852 = vmul.f32 %v5850, %v739
        %v5853 = vmul.f32 %v5851, %v739
        %v5854 = vadd.f32 %v5852, %v747
        %v5855 = vadd.f32 %v5853, %v747
        %v5857 = vsel %vm551, %v5854, 0
        %v5860 = vsel %vm551, %v5855, 0
        %5862 = vmatprep.subr.mxu0 0.0
        %5863 = vmatpush1.msra.mxu0 0.0
        %5864 = vmatprep.subr.mxu0 0.0
        %5865 = vmatpush1.msra.mxu0 0.0
        %5866 = vmatprep.subr.mxu0 0.0
        %5867 = vmatpush1.msra.mxu0 0.0
        %5868 = vmatprep.subr.mxu0 0.0
        %5869 = vmatpush1.msra.mxu0 0.0
        %5870 = vmatprep.subr.mxu0 0.0
        %5871 = vmatpush1.msra.mxu0 0.0
        %5872 = vmatprep.subr.mxu0 0.0
        %5873 = vmatpush1.msra.mxu0 0.0
        %5874 = vmatprep.subr.mxu0 0.0
        %5875 = vmatpush1.msra.mxu0 0.0
        %5876 = vmatprep.subr.mxu0 0.0
        %5877 = vmatpush1.msra.mxu0 0.0
        %5878 = vmatprep.subr.mxu0 0.0
        %5879 = vmatpush1.msra.mxu0 0.0
        %5880 = vmatprep.subr.mxu0 0.0
        %5881 = vmatpush1.msra.mxu0 0.0
        %5882 = vmatprep.subr.mxu0 0.0
        %5883 = vmatpush1.msra.mxu0 0.0
        %5884 = vmatprep.subr.mxu0 0.0
        %5885 = vmatpush1.msra.mxu0 0.0
        %5886 = vmatprep.subr.mxu0 0.0
        %5887 = vmatpush1.msra.mxu0 %v754
        %5888 = vmatprep.subr.mxu0 0.0
        %5889 = vmatpush1.msra.mxu0 %v753
        %5890 = vmatprep.subr.mxu0 0.0
        %5891 = vmatpush1.msra.mxu0 %v752
        %5892 = vmatprep.subr.mxu0 0.0
        %5893 = vmatpush1.msra.mxu0 %v751
        %5894 = vmatprep.subr.mxu0 0.0
        %5895 = vmatpush2.msra.mxu0 0.0
        %5896 = vmatprep.subr.mxu0 0.0
        %5897 = vmatpush2.msra.mxu0 0.0
        %5898 = vmatprep.subr.mxu0 0.0
        %5899 = vmatpush2.msra.mxu0 0.0
        %5900 = vmatprep.subr.mxu0 0.0
        %5901 = vmatpush2.msra.mxu0 0.0
        %5902 = vmatprep.subr.mxu0 0.0
        %5903 = vmatpush2.msra.mxu0 0.0
        %5904 = vmatprep.subr.mxu0 0.0
        %5905 = vmatpush2.msra.mxu0 0.0
        %5906 = vmatprep.subr.mxu0 0.0
        %5907 = vmatpush2.msra.mxu0 0.0
        %5908 = vmatprep.subr.mxu0 0.0
        %5909 = vmatpush2.msra.mxu0 0.0
        %5910 = vmatprep.subr.mxu0 0.0
        %5911 = vmatpush2.msra.mxu0 0.0
        %5912 = vmatprep.subr.mxu0 0.0
        %5913 = vmatpush2.msra.mxu0 0.0
        %5914 = vmatprep.subr.mxu0 0.0
        %5915 = vmatpush2.msra.mxu0 0.0
        %5916 = vmatprep.subr.mxu0 0.0
        %5917 = vmatpush2.msra.mxu0 0.0
        %5918 = vmatprep.subr.mxu0 0.0
        %5919 = vmatpush2.msra.mxu0 0.0
        %5920 = vmatprep.subr.mxu0 0.0
        %5921 = vmatpush2.msra.mxu0 0.0
        %5922 = vmatprep.subr.mxu0 0.0
        %5923 = vmatpush2.msra.mxu0 0.0
        %5924 = vmatprep.subr.mxu0 0.0
        %5925 = vmatpush2.msra.mxu0 0.0
        %5926 = vmatprep.mubr.f32.mxu0 0.0
        %5927 = vmatmul.mubr.f32.gmra.mxu0 %v5857
        %v5928 = vpop.f32.mrf.mxu0
        %v5929 = vadd.f32 %v760, %v5928
        %v5930 = vpop.f32.mrf.mxu0
        %5931 = vmatprep.mubr.f32.mxu0 0.0
        %5932 = vmatmul.mubr.f32.gmra.mxu0 %v5860
        %v5933 = vpop.f32.mrf.mxu0
        %v5934 = vadd.f32 %v760, %v5933
        %v5935 = vpop.f32.mrf.mxu0
        %5936 = vdwg.mxu0
        %v5938 = vsel %vm843, %v5929, 0
        %v5941 = vsel %vm843, %v5934, 0
        %5943 = vmatprep.subr.mxu0 0.0
        %5944 = vmatpush1.xpose.msra.mxu0 0.0
        %5945 = vmatprep.subr.mxu0 0.0
        %5946 = vmatpush1.xpose.msra.mxu0 0.0
        %5947 = vmatprep.subr.mxu0 0.0
        %5948 = vmatpush1.xpose.msra.mxu0 0.0
        %5949 = vmatprep.subr.mxu0 0.0
        %5950 = vmatpush1.xpose.msra.mxu0 0.0
        %5951 = vmatprep.subr.mxu0 0.0
        %5952 = vmatpush1.xpose.msra.mxu0 0.0
        %5953 = vmatprep.subr.mxu0 0.0
        %5954 = vmatpush1.xpose.msra.mxu0 0.0
        %5955 = vmatprep.subr.mxu0 0.0
        %5956 = vmatpush1.xpose.msra.mxu0 0.0
        %5957 = vmatprep.subr.mxu0 0.0
        %5958 = vmatpush1.xpose.msra.mxu0 0.0
        %5959 = vmatprep.subr.mxu0 0.0
        %5960 = vmatpush1.xpose.msra.mxu0 0.0
        %5961 = vmatprep.subr.mxu0 0.0
        %5962 = vmatpush1.xpose.msra.mxu0 0.0
        %5963 = vmatprep.subr.mxu0 0.0
        %5964 = vmatpush1.xpose.msra.mxu0 0.0
        %5965 = vmatprep.subr.mxu0 0.0
        %5966 = vmatpush1.xpose.msra.mxu0 0.0
        %5967 = vmatprep.subr.mxu0 0.0
        %5968 = vmatpush1.xpose.msra.mxu0 0.0
        %5969 = vmatprep.subr.mxu0 0.0
        %5970 = vmatpush1.xpose.msra.mxu0 0.0
        %5971 = vmatprep.subr.mxu0 0.0
        %5972 = vmatpush1.xpose.msra.mxu0 0.0
        %5973 = vmatprep.subr.mxu0 0.0
        %5974 = vmatpush1.xpose.msra.mxu0 %v851
        %5975 = vmatprep.subr.mxu0 0.0
        %5976 = vmatpush2.xpose.msra.mxu0 0.0
        %5977 = vmatprep.subr.mxu0 0.0
        %5978 = vmatpush2.xpose.msra.mxu0 0.0
        %5979 = vmatprep.subr.mxu0 0.0
        %5980 = vmatpush2.xpose.msra.mxu0 0.0
        %5981 = vmatprep.subr.mxu0 0.0
        %5982 = vmatpush2.xpose.msra.mxu0 0.0
        %5983 = vmatprep.subr.mxu0 0.0
        %5984 = vmatpush2.xpose.msra.mxu0 0.0
        %5985 = vmatprep.subr.mxu0 0.0
        %5986 = vmatpush2.xpose.msra.mxu0 0.0
        %5987 = vmatprep.subr.mxu0 0.0
        %5988 = vmatpush2.xpose.msra.mxu0 0.0
        %5989 = vmatprep.subr.mxu0 0.0
        %5990 = vmatpush2.xpose.msra.mxu0 0.0
        %5991 = vmatprep.subr.mxu0 0.0
        %5992 = vmatpush2.xpose.msra.mxu0 0.0
        %5993 = vmatprep.subr.mxu0 0.0
        %5994 = vmatpush2.xpose.msra.mxu0 0.0
        %5995 = vmatprep.subr.mxu0 0.0
        %5996 = vmatpush2.xpose.msra.mxu0 0.0
        %5997 = vmatprep.subr.mxu0 0.0
        %5998 = vmatpush2.xpose.msra.mxu0 0.0
        %5999 = vmatprep.subr.mxu0 0.0
        %6000 = vmatpush2.xpose.msra.mxu0 0.0
        %6001 = vmatprep.subr.mxu0 0.0
        %6002 = vmatpush2.xpose.msra.mxu0 0.0
        %6003 = vmatprep.subr.mxu0 0.0
        %6004 = vmatpush2.xpose.msra.mxu0 0.0
        %6005 = vmatprep.subr.mxu0 0.0
        %6006 = vmatpush2.xpose.msra.mxu0 0.0
        %6007 = vmatprep.mubr.f32.mxu0 0.0
        %6008 = vmatmul.mubr.f32.gmra.mxu0 %v5938
        %v6009 = vpop.f32.mrf.mxu0
        %v6010 = vadd.f32 0.0, %v6009
        %v6011 = vpop.f32.mrf.mxu0
        %6012 = vmatprep.mubr.f32.mxu0 0.0
        %6013 = vmatmul.mubr.f32.gmra.mxu0 %v5941
        %v6014 = vpop.f32.mrf.mxu0
        %v6015 = vadd.f32 0.0, %v6014
        %v6016 = vpop.f32.mrf.mxu0
        %6017 = vdwg.mxu0
        %v6018 = vmul.f32 %v6010, 0.25
        %v6019 = vmul.f32 %v6015, 0.25
        %6020 = vrot.lane.b32.xlu0 %v5929, 112
        %v6021 = vpop.permute.xlu0 %6020
        %6022 = vrot.lane.b32.xlu0 %v5934, 112
        %v6023 = vpop.permute.xlu0 %6022
        %v6024 = vsel %vm843, %v6021, 0
        %v6026 = vsel %vm843, %v6023, 0
        %6028 = vmatprep.subr.mxu0 0.0
        %6029 = vmatpush1.xpose.msra.mxu0 0.0
        %6030 = vmatprep.subr.mxu0 0.0
        %6031 = vmatpush1.xpose.msra.mxu0 0.0
        %6032 = vmatprep.subr.mxu0 0.0
        %6033 = vmatpush1.xpose.msra.mxu0 0.0
        %6034 = vmatprep.subr.mxu0 0.0
        %6035 = vmatpush1.xpose.msra.mxu0 0.0
        %6036 = vmatprep.subr.mxu0 0.0
        %6037 = vmatpush1.xpose.msra.mxu0 0.0
        %6038 = vmatprep.subr.mxu0 0.0
        %6039 = vmatpush1.xpose.msra.mxu0 0.0
        %6040 = vmatprep.subr.mxu0 0.0
        %6041 = vmatpush1.xpose.msra.mxu0 0.0
        %6042 = vmatprep.subr.mxu0 0.0
        %6043 = vmatpush1.xpose.msra.mxu0 0.0
        %6044 = vmatprep.subr.mxu0 0.0
        %6045 = vmatpush1.xpose.msra.mxu0 0.0
        %6046 = vmatprep.subr.mxu0 0.0
        %6047 = vmatpush1.xpose.msra.mxu0 0.0
        %6048 = vmatprep.subr.mxu0 0.0
        %6049 = vmatpush1.xpose.msra.mxu0 0.0
        %6050 = vmatprep.subr.mxu0 0.0
        %6051 = vmatpush1.xpose.msra.mxu0 0.0
        %6052 = vmatprep.subr.mxu0 0.0
        %6053 = vmatpush1.xpose.msra.mxu0 0.0
        %6054 = vmatprep.subr.mxu0 0.0
        %6055 = vmatpush1.xpose.msra.mxu0 0.0
        %6056 = vmatprep.subr.mxu0 0.0
        %6057 = vmatpush1.xpose.msra.mxu0 0.0
        %6058 = vmatprep.subr.mxu0 0.0
        %6059 = vmatpush1.xpose.msra.mxu0 %v940
        %6060 = vmatprep.subr.mxu0 0.0
        %6061 = vmatpush2.xpose.msra.mxu0 0.0
        %6062 = vmatprep.subr.mxu0 0.0
        %6063 = vmatpush2.xpose.msra.mxu0 0.0
        %6064 = vmatprep.subr.mxu0 0.0
        %6065 = vmatpush2.xpose.msra.mxu0 0.0
        %6066 = vmatprep.subr.mxu0 0.0
        %6067 = vmatpush2.xpose.msra.mxu0 0.0
        %6068 = vmatprep.subr.mxu0 0.0
        %6069 = vmatpush2.xpose.msra.mxu0 0.0
        %6070 = vmatprep.subr.mxu0 0.0
        %6071 = vmatpush2.xpose.msra.mxu0 0.0
        %6072 = vmatprep.subr.mxu0 0.0
        %6073 = vmatpush2.xpose.msra.mxu0 0.0
        %6074 = vmatprep.subr.mxu0 0.0
        %6075 = vmatpush2.xpose.msra.mxu0 0.0
        %6076 = vmatprep.subr.mxu0 0.0
        %6077 = vmatpush2.xpose.msra.mxu0 0.0
        %6078 = vmatprep.subr.mxu0 0.0
        %6079 = vmatpush2.xpose.msra.mxu0 0.0
        %6080 = vmatprep.subr.mxu0 0.0
        %6081 = vmatpush2.xpose.msra.mxu0 0.0
        %6082 = vmatprep.subr.mxu0 0.0
        %6083 = vmatpush2.xpose.msra.mxu0 0.0
        %6084 = vmatprep.subr.mxu0 0.0
        %6085 = vmatpush2.xpose.msra.mxu0 0.0
        %6086 = vmatprep.subr.mxu0 0.0
        %6087 = vmatpush2.xpose.msra.mxu0 0.0
        %6088 = vmatprep.subr.mxu0 0.0
        %6089 = vmatpush2.xpose.msra.mxu0 0.0
        %6090 = vmatprep.subr.mxu0 0.0
        %6091 = vmatpush2.xpose.msra.mxu0 0.0
        %6092 = vmatprep.mubr.f32.mxu0 0.0
        %6093 = vmatmul.mubr.f32.gmra.mxu0 %v6024
        %v6094 = vpop.f32.mrf.mxu0
        %v6095 = vadd.f32 0.0, %v6094
        %v6096 = vpop.f32.mrf.mxu0
        %6097 = vmatprep.mubr.f32.mxu0 0.0
        %6098 = vmatmul.mubr.f32.gmra.mxu0 %v6026
        %v6099 = vpop.f32.mrf.mxu0
        %v6100 = vadd.f32 0.0, %v6099
        %v6101 = vpop.f32.mrf.mxu0
        %6102 = vdwg.mxu0
        %v6103 = vmul.f32 %v6095, 0.25
        %v6104 = vmul.f32 %v6100, 0.25
        %v6105 = vmax.f32 %v6018, %v6103
        %v6106 = vmax.f32 %v6019, %v6104
        %v6107 = vsub.f32 %v6018, %v6105
        %v6108 = vsub.f32 %v6019, %v6106
        %v6109 = vmul.f32 %v6107, 1.442695
        %v6110 = vpow.pop %v6109
        %v6111 = vmul.f32 %v6108, 1.442695
        %v6112 = vpow.pop %v6111
        %v6113 = vsub.f32 %v6103, %v6105
        %v6114 = vsub.f32 %v6104, %v6106
        %v6115 = vmul.f32 %v6113, 1.442695
        %v6116 = vpow.pop %v6115
        %v6117 = vmul.f32 %v6114, 1.442695
        %v6118 = vpow.pop %v6117
        %v6119 = vadd.f32 %v6110, %v6116
        %v6120 = vadd.f32 %v6112, %v6118
        %v6121 = vrcp.pop %v6119
        %v6122 = vmul.f32 1.0, %v6121
        %v6123 = vrcp.pop %v6120
        %v6124 = vmul.f32 1.0, %v6123
        %v6125 = vmul.f32 %v6110, %v6122
        %v6126 = vmul.f32 %v6112, %v6124
        %v6128 = vsel %vm1041, %v6125, 0
        %v6131 = vsel %vm1041, %v6126, 0
        %6133 = vmatprep.subr.mxu0 0.0
        %6134 = vmatpush1.msra.mxu0 0.0
        %6135 = vmatprep.subr.mxu0 0.0
        %6136 = vmatpush1.msra.mxu0 0.0
        %6137 = vmatprep.subr.mxu0 0.0
        %6138 = vmatpush1.msra.mxu0 0.0
        %6139 = vmatprep.subr.mxu0 0.0
        %6140 = vmatpush1.msra.mxu0 0.0
        %6141 = vmatprep.subr.mxu0 0.0
        %6142 = vmatpush1.msra.mxu0 0.0
        %6143 = vmatprep.subr.mxu0 0.0
        %6144 = vmatpush1.msra.mxu0 0.0
        %6145 = vmatprep.subr.mxu0 0.0
        %6146 = vmatpush1.msra.mxu0 0.0
        %6147 = vmatprep.subr.mxu0 0.0
        %6148 = vmatpush1.msra.mxu0 0.0
        %6149 = vmatprep.subr.mxu0 0.0
        %6150 = vmatpush1.msra.mxu0 0.0
        %6151 = vmatprep.subr.mxu0 0.0
        %6152 = vmatpush1.msra.mxu0 0.0
        %6153 = vmatprep.subr.mxu0 0.0
        %6154 = vmatpush1.msra.mxu0 0.0
        %6155 = vmatprep.subr.mxu0 0.0
        %6156 = vmatpush1.msra.mxu0 0.0
        %6157 = vmatprep.subr.mxu0 0.0
        %6158 = vmatpush1.msra.mxu0 0.0
        %6159 = vmatprep.subr.mxu0 0.0
        %6160 = vmatpush1.msra.mxu0 0.0
        %6161 = vmatprep.subr.mxu0 0.0
        %6162 = vmatpush1.msra.mxu0 0.0
        %6163 = vmatprep.subr.mxu0 0.0
        %6164 = vmatpush1.msra.mxu0 %v703
        %6165 = vmatprep.subr.mxu0 0.0
        %6166 = vmatpush2.msra.mxu0 0.0
        %6167 = vmatprep.subr.mxu0 0.0
        %6168 = vmatpush2.msra.mxu0 0.0
        %6169 = vmatprep.subr.mxu0 0.0
        %6170 = vmatpush2.msra.mxu0 0.0
        %6171 = vmatprep.subr.mxu0 0.0
        %6172 = vmatpush2.msra.mxu0 0.0
        %6173 = vmatprep.subr.mxu0 0.0
        %6174 = vmatpush2.msra.mxu0 0.0
        %6175 = vmatprep.subr.mxu0 0.0
        %6176 = vmatpush2.msra.mxu0 0.0
        %6177 = vmatprep.subr.mxu0 0.0
        %6178 = vmatpush2.msra.mxu0 0.0
        %6179 = vmatprep.subr.mxu0 0.0
        %6180 = vmatpush2.msra.mxu0 0.0
        %6181 = vmatprep.subr.mxu0 0.0
        %6182 = vmatpush2.msra.mxu0 0.0
        %6183 = vmatprep.subr.mxu0 0.0
        %6184 = vmatpush2.msra.mxu0 0.0
        %6185 = vmatprep.subr.mxu0 0.0
        %6186 = vmatpush2.msra.mxu0 0.0
        %6187 = vmatprep.subr.mxu0 0.0
        %6188 = vmatpush2.msra.mxu0 0.0
        %6189 = vmatprep.subr.mxu0 0.0
        %6190 = vmatpush2.msra.mxu0 0.0
        %6191 = vmatprep.subr.mxu0 0.0
        %6192 = vmatpush2.msra.mxu0 0.0
        %6193 = vmatprep.subr.mxu0 0.0
        %6194 = vmatpush2.msra.mxu0 0.0
        %6195 = vmatprep.subr.mxu0 0.0
        %6196 = vmatpush2.msra.mxu0 0.0
        %6197 = vmatprep.mubr.f32.mxu0 0.0
        %6198 = vmatmul.mubr.f32.gmra.mxu0 %v6128
        %v6199 = vpop.f32.mrf.mxu0
        %v6200 = vadd.f32 0.0, %v6199
        %v6201 = vpop.f32.mrf.mxu0
        %6202 = vmatprep.mubr.f32.mxu0 0.0
        %6203 = vmatmul.mubr.f32.gmra.mxu0 %v6131
        %v6204 = vpop.f32.mrf.mxu0
        %v6205 = vadd.f32 0.0, %v6204
        %v6206 = vpop.f32.mrf.mxu0
        %6207 = vdwg.mxu0
        %v6208 = vmul.f32 %v6116, %v6122
        %v6209 = vmul.f32 %v6118, %v6124
        %v6211 = vsel %vm1041, %v6208, 0
        %v6214 = vsel %vm1041, %v6209, 0
        %6216 = vmatprep.subr.mxu0 0.0
        %6217 = vmatpush1.msra.mxu0 0.0
        %6218 = vmatprep.subr.mxu0 0.0
        %6219 = vmatpush1.msra.mxu0 0.0
        %6220 = vmatprep.subr.mxu0 0.0
        %6221 = vmatpush1.msra.mxu0 0.0
        %6222 = vmatprep.subr.mxu0 0.0
        %6223 = vmatpush1.msra.mxu0 0.0
        %6224 = vmatprep.subr.mxu0 0.0
        %6225 = vmatpush1.msra.mxu0 0.0
        %6226 = vmatprep.subr.mxu0 0.0
        %6227 = vmatpush1.msra.mxu0 0.0
        %6228 = vmatprep.subr.mxu0 0.0
        %6229 = vmatpush1.msra.mxu0 0.0
        %6230 = vmatprep.subr.mxu0 0.0
        %6231 = vmatpush1.msra.mxu0 0.0
        %6232 = vmatprep.subr.mxu0 0.0
        %6233 = vmatpush1.msra.mxu0 0.0
        %6234 = vmatprep.subr.mxu0 0.0
        %6235 = vmatpush1.msra.mxu0 0.0
        %6236 = vmatprep.subr.mxu0 0.0
        %6237 = vmatpush1.msra.mxu0 0.0
        %6238 = vmatprep.subr.mxu0 0.0
        %6239 = vmatpush1.msra.mxu0 0.0
        %6240 = vmatprep.subr.mxu0 0.0
        %6241 = vmatpush1.msra.mxu0 0.0
        %6242 = vmatprep.subr.mxu0 0.0
        %6243 = vmatpush1.msra.mxu0 0.0
        %6244 = vmatprep.subr.mxu0 0.0
        %6245 = vmatpush1.msra.mxu0 0.0
        %6246 = vmatprep.subr.mxu0 0.0
        %6247 = vmatpush1.msra.mxu0 %v1127
        %6248 = vmatprep.subr.mxu0 0.0
        %6249 = vmatpush2.msra.mxu0 0.0
        %6250 = vmatprep.subr.mxu0 0.0
        %6251 = vmatpush2.msra.mxu0 0.0
        %6252 = vmatprep.subr.mxu0 0.0
        %6253 = vmatpush2.msra.mxu0 0.0
        %6254 = vmatprep.subr.mxu0 0.0
        %6255 = vmatpush2.msra.mxu0 0.0
        %6256 = vmatprep.subr.mxu0 0.0
        %6257 = vmatpush2.msra.mxu0 0.0
        %6258 = vmatprep.subr.mxu0 0.0
        %6259 = vmatpush2.msra.mxu0 0.0
        %6260 = vmatprep.subr.mxu0 0.0
        %6261 = vmatpush2.msra.mxu0 0.0
        %6262 = vmatprep.subr.mxu0 0.0
        %6263 = vmatpush2.msra.mxu0 0.0
        %6264 = vmatprep.subr.mxu0 0.0
        %6265 = vmatpush2.msra.mxu0 0.0
        %6266 = vmatprep.subr.mxu0 0.0
        %6267 = vmatpush2.msra.mxu0 0.0
        %6268 = vmatprep.subr.mxu0 0.0
        %6269 = vmatpush2.msra.mxu0 0.0
        %6270 = vmatprep.subr.mxu0 0.0
        %6271 = vmatpush2.msra.mxu0 0.0
        %6272 = vmatprep.subr.mxu0 0.0
        %6273 = vmatpush2.msra.mxu0 0.0
        %6274 = vmatprep.subr.mxu0 0.0
        %6275 = vmatpush2.msra.mxu0 0.0
        %6276 = vmatprep.subr.mxu0 0.0
        %6277 = vmatpush2.msra.mxu0 0.0
        %6278 = vmatprep.subr.mxu0 0.0
        %6279 = vmatpush2.msra.mxu0 0.0
        %6280 = vmatprep.mubr.f32.mxu0 0.0
        %6281 = vmatmul.mubr.f32.gmra.mxu0 %v6211
        %v6282 = vpop.f32.mrf.mxu0
        %v6283 = vadd.f32 0.0, %v6282
        %v6284 = vpop.f32.mrf.mxu0
        %6285 = vmatprep.mubr.f32.mxu0 0.0
        %6286 = vmatmul.mubr.f32.gmra.mxu0 %v6214
        %v6287 = vpop.f32.mrf.mxu0
        %v6288 = vadd.f32 0.0, %v6287
        %v6289 = vpop.f32.mrf.mxu0
        %6290 = vdwg.mxu0
        %6293 = vrot.lane.b32.xlu0 %v6283, 16
        %v6294 = vpop.permute.xlu0 %6293
        %6295 = vrot.lane.b32.xlu0 %v6288, 16
        %v6296 = vpop.permute.xlu0 %6295
        %v6299 = vsel %vm843, %v6200, %v6294
        %v6300 = vsel %vm843, %v6205, %v6296
        %v6301 = vadd.f32 %v5824, %v6299
        %v6302 = vadd.f32 %v5825, %v6300
        %v6303 = vsel %vm551, %v6301, 0.0
        %6304 = vadd.xlane.f32.xlu0 %v6303
        %v6305 = vpop.xlane.xlu0 %6304
        %v6306 = vsel %vm551, %v6302, 0.0
        %6307 = vadd.xlane.f32.xlu0 %v6306
        %v6308 = vpop.xlane.xlu0 %6307
        %v6309 = vmul.f32 %v6305, %v714
        %v6310 = vmul.f32 %v6308, %v714
        %v6311 = vsub.f32 %v6301, %v6309
        %v6312 = vsub.f32 %v6302, %v6310
        %v6313 = vmul.f32 %v6311, %v6311
        %v6314 = vmul.f32 %v6312, %v6312
        %v6315 = vsel %vm551, %v6313, 0.0
        %6316 = vadd.xlane.f32.xlu0 %v6315
        %v6317 = vpop.xlane.xlu0 %6316
        %v6318 = vsel %vm551, %v6314, 0.0
        %6319 = vadd.xlane.f32.xlu0 %v6318
        %v6320 = vpop.xlane.xlu0 %6319
        %v6321 = vmul.f32 %v6317, %v714
        %v6322 = vmul.f32 %v6320, %v714
        %v6323 = vadd.f32 %v6321, 1e-05
        %v6324 = vadd.f32 %v6322, 1e-05
        %v6325 = vrsqrt.pop %v6323
        %v6326 = vrsqrt.pop %v6324
        %v6327 = vmul.f32 %v6311, %v6325
        %v6328 = vmul.f32 %v6312, %v6326
        %v6329 = vmul.f32 %v6327, %v1254
        %v6330 = vmul.f32 %v6328, %v1254
        %v6331 = vadd.f32 %v6329, %v1262
        %v6332 = vadd.f32 %v6330, %v1262
        %v6334 = vsel %vm551, %v6331, 0
        %v6337 = vsel %vm551, %v6332, 0
        %6339 = vmatprep.subr.mxu0 0.0
        %6340 = vmatpush1.msra.mxu0 0.0
        %6341 = vmatprep.subr.mxu0 0.0
        %6342 = vmatpush1.msra.mxu0 0.0
        %6343 = vmatprep.subr.mxu0 0.0
        %6344 = vmatpush1.msra.mxu0 0.0
        %6345 = vmatprep.subr.mxu0 0.0
        %6346 = vmatpush1.msra.mxu0 0.0
        %6347 = vmatprep.subr.mxu0 0.0
        %6348 = vmatpush1.msra.mxu0 0.0
        %6349 = vmatprep.subr.mxu0 0.0
        %6350 = vmatpush1.msra.mxu0 0.0
        %6351 = vmatprep.subr.mxu0 0.0
        %6352 = vmatpush1.msra.mxu0 0.0
        %6353 = vmatprep.subr.mxu0 0.0
        %6354 = vmatpush1.msra.mxu0 0.0
        %6355 = vmatprep.subr.mxu0 0.0
        %6356 = vmatpush1.msra.mxu0 0.0
        %6357 = vmatprep.subr.mxu0 0.0
        %6358 = vmatpush1.msra.mxu0 0.0
        %6359 = vmatprep.subr.mxu0 0.0
        %6360 = vmatpush1.msra.mxu0 0.0
        %6361 = vmatprep.subr.mxu0 0.0
        %6362 = vmatpush1.msra.mxu0 0.0
        %6363 = vmatprep.subr.mxu0 0.0
        %6364 = vmatpush1.msra.mxu0 %v1269
        %6365 = vmatprep.subr.mxu0 0.0
        %6366 = vmatpush1.msra.mxu0 %v1268
        %6367 = vmatprep.subr.mxu0 0.0
        %6368 = vmatpush1.msra.mxu0 %v1267
        %6369 = vmatprep.subr.mxu0 0.0
        %6370 = vmatpush1.msra.mxu0 %v1266
        %6371 = vmatprep.subr.mxu0 0.0
        %6372 = vmatpush2.msra.mxu0 0.0
        %6373 = vmatprep.subr.mxu0 0.0
        %6374 = vmatpush2.msra.mxu0 0.0
        %6375 = vmatprep.subr.mxu0 0.0
        %6376 = vmatpush2.msra.mxu0 0.0
        %6377 = vmatprep.subr.mxu0 0.0
        %6378 = vmatpush2.msra.mxu0 0.0
        %6379 = vmatprep.subr.mxu0 0.0
        %6380 = vmatpush2.msra.mxu0 0.0
        %6381 = vmatprep.subr.mxu0 0.0
        %6382 = vmatpush2.msra.mxu0 0.0
        %6383 = vmatprep.subr.mxu0 0.0
        %6384 = vmatpush2.msra.mxu0 0.0
        %6385 = vmatprep.subr.mxu0 0.0
        %6386 = vmatpush2.msra.mxu0 0.0
        %6387 = vmatprep.subr.mxu0 0.0
        %6388 = vmatpush2.msra.mxu0 0.0
        %6389 = vmatprep.subr.mxu0 0.0
        %6390 = vmatpush2.msra.mxu0 0.0
        %6391 = vmatprep.subr.mxu0 0.0
        %6392 = vmatpush2.msra.mxu0 0.0
        %6393 = vmatprep.subr.mxu0 0.0
        %6394 = vmatpush2.msra.mxu0 0.0
        %6395 = vmatprep.subr.mxu0 0.0
        %6396 = vmatpush2.msra.mxu0 0.0
        %6397 = vmatprep.subr.mxu0 0.0
        %6398 = vmatpush2.msra.mxu0 0.0
        %6399 = vmatprep.subr.mxu0 0.0
        %6400 = vmatpush2.msra.mxu0 0.0
        %6401 = vmatprep.subr.mxu0 0.0
        %6402 = vmatpush2.msra.mxu0 0.0
        %6403 = vmatprep.mubr.f32.mxu0 0.0
        %6404 = vmatmul.mubr.f32.gmra.mxu0 %v6334
        %v6405 = vpop.f32.mrf.mxu0
        %v6406 = vadd.f32 %v1275, %v6405
        %v6407 = vpop.f32.mrf.mxu0
        %6408 = vmatprep.mubr.f32.mxu0 0.0
        %6409 = vmatmul.mubr.f32.gmra.mxu0 %v6337
        %v6410 = vpop.f32.mrf.mxu0
        %v6411 = vadd.f32 %v1275, %v6410
        %v6412 = vpop.f32.mrf.mxu0
        %6413 = vdwg.mxu0
        %v6414 = vmul.f32 %v6406, 0.5
        %v6415 = vmul.f32 %v6411, 0.5
        %v6416 = vmul.f32 %v6406, 0.70710677
        %v6417 = vmul.f32 %v6411, 0.70710677
        %vm6418 = vcmp.ge.f32.partialorder %v6416, 0.0
        %vm6419 = vcmp.ge.f32.partialorder %v6417, 0.0
        %v6420 = vsel %vm6418, 1.0, -1.0
        %v6421 = vsel %vm6419, 1.0, -1.0
        %v6422 = vand.u32 2147483647, %v6416
        %v6423 = vand.u32 2147483647, %v6417
        %v6424 = vmul.f32 %v6422, 0.3275911
        %v6425 = vmul.f32 %v6423, 0.3275911
        %v6426 = vadd.f32 %v6424, 1.0
        %v6427 = vadd.f32 %v6425, 1.0
        %v6428 = vrcp.pop %v6426
        %v6429 = vmul.f32 1.0, %v6428
        %v6430 = vrcp.pop %v6427
        %v6431 = vmul.f32 1.0, %v6430
        %v6432 = vmul.f32 %v6429, 1.0614054
        %v6433 = vmul.f32 %v6431, 1.0614054
        %v6434 = vadd.f32 %v6432, -1.4531521
        %v6435 = vadd.f32 %v6433, -1.4531521
        %v6436 = vmul.f32 %v6434, %v6429
        %v6437 = vmul.f32 %v6435, %v6431
        %v6438 = vadd.f32 %v6436, 1.4214138
        %v6439 = vadd.f32 %v6437, 1.4214138
        %v6440 = vmul.f32 %v6438, %v6429
        %v6441 = vmul.f32 %v6439, %v6431
        %v6442 = vadd.f32 %v6440, -0.28449672
        %v6443 = vadd.f32 %v6441, -0.28449672
        %v6444 = vmul.f32 %v6442, %v6429
        %v6445 = vmul.f32 %v6443, %v6431
        %v6446 = vadd.f32 %v6444, 0.2548296
        %v6447 = vadd.f32 %v6445, 0.2548296
        %v6448 = vmul.f32 %v6446, %v6429
        %v6449 = vmul.f32 %v6447, %v6431
        %v6450 = vsub.f32 0.0, %v6422
        %v6451 = vsub.f32 0.0, %v6423
        %v6452 = vmul.f32 %v6450, %v6422
        %v6453 = vmul.f32 %v6451, %v6423
        %v6454 = vmul.f32 %v6452, 1.442695
        %v6455 = vpow.pop %v6454
        %v6456 = vmul.f32 %v6453, 1.442695
        %v6457 = vpow.pop %v6456
        %v6458 = vmul.f32 %v6448, %v6455
        %v6459 = vmul.f32 %v6449, %v6457
        %v6460 = vsub.f32 1.0, %v6458
        %v6461 = vsub.f32 1.0, %v6459
        %v6462 = vmul.f32 %v6420, %v6460
        %v6463 = vmul.f32 %v6421, %v6461
        %v6464 = vadd.f32 %v6462, 1.0
        %v6465 = vadd.f32 %v6463, 1.0
        %v6466 = vmul.f32 %v6414, %v6464
        %v6467 = vmul.f32 %v6415, %v6465
        %6468 = vmatprep.subr.mxu0 0.0
        %6469 = vmatpush1.msra.mxu0 %v1427
        %6470 = vmatprep.subr.mxu0 0.0
        %6471 = vmatpush1.msra.mxu0 %v1426
        %6472 = vmatprep.subr.mxu0 0.0
        %6473 = vmatpush1.msra.mxu0 %v1425
        %6474 = vmatprep.subr.mxu0 0.0
        %6475 = vmatpush1.msra.mxu0 %v1424
        %6476 = vmatprep.subr.mxu0 0.0
        %6477 = vmatpush1.msra.mxu0 %v1423
        %6478 = vmatprep.subr.mxu0 0.0
        %6479 = vmatpush1.msra.mxu0 %v1422
        %6480 = vmatprep.subr.mxu0 0.0
        %6481 = vmatpush1.msra.mxu0 %v1421
        %6482 = vmatprep.subr.mxu0 0.0
        %6483 = vmatpush1.msra.mxu0 %v1420
        %6484 = vmatprep.subr.mxu0 0.0
        %6485 = vmatpush1.msra.mxu0 %v1419
        %6486 = vmatprep.subr.mxu0 0.0
        %6487 = vmatpush1.msra.mxu0 %v1418
        %6488 = vmatprep.subr.mxu0 0.0
        %6489 = vmatpush1.msra.mxu0 %v1417
        %6490 = vmatprep.subr.mxu0 0.0
        %6491 = vmatpush1.msra.mxu0 %v1416
        %6492 = vmatprep.subr.mxu0 0.0
        %6493 = vmatpush1.msra.mxu0 %v1415
        %6494 = vmatprep.subr.mxu0 0.0
        %6495 = vmatpush1.msra.mxu0 %v1414
        %6496 = vmatprep.subr.mxu0 0.0
        %6497 = vmatpush1.msra.mxu0 %v1413
        %6498 = vmatprep.subr.mxu0 0.0
        %6499 = vmatpush1.msra.mxu0 %v1412
        %6500 = vmatprep.subr.mxu0 0.0
        %6501 = vmatpush2.msra.mxu0 0.0
        %6502 = vmatprep.subr.mxu0 0.0
        %6503 = vmatpush2.msra.mxu0 0.0
        %6504 = vmatprep.subr.mxu0 0.0
        %6505 = vmatpush2.msra.mxu0 0.0
        %6506 = vmatprep.subr.mxu0 0.0
        %6507 = vmatpush2.msra.mxu0 0.0
        %6508 = vmatprep.subr.mxu0 0.0
        %6509 = vmatpush2.msra.mxu0 0.0
        %6510 = vmatprep.subr.mxu0 0.0
        %6511 = vmatpush2.msra.mxu0 0.0
        %6512 = vmatprep.subr.mxu0 0.0
        %6513 = vmatpush2.msra.mxu0 0.0
        %6514 = vmatprep.subr.mxu0 0.0
        %6515 = vmatpush2.msra.mxu0 0.0
        %6516 = vmatprep.subr.mxu0 0.0
        %6517 = vmatpush2.msra.mxu0 0.0
        %6518 = vmatprep.subr.mxu0 0.0
        %6519 = vmatpush2.msra.mxu0 0.0
        %6520 = vmatprep.subr.mxu0 0.0
        %6521 = vmatpush2.msra.mxu0 0.0
        %6522 = vmatprep.subr.mxu0 0.0
        %6523 = vmatpush2.msra.mxu0 0.0
        %6524 = vmatprep.subr.mxu0 0.0
        %6525 = vmatpush2.msra.mxu0 0.0
        %6526 = vmatprep.subr.mxu0 0.0
        %6527 = vmatpush2.msra.mxu0 0.0
        %6528 = vmatprep.subr.mxu0 0.0
        %6529 = vmatpush2.msra.mxu0 0.0
        %6530 = vmatprep.subr.mxu0 0.0
        %6531 = vmatpush2.msra.mxu0 0.0
        %6532 = vmatprep.mubr.f32.mxu0 0.0
        %6533 = vmatmul.mubr.f32.gmra.mxu0 %v6466
        %v6534 = vpop.f32.mrf.mxu0
        %v6535 = vadd.f32 %v1433, %v6534
        %v6536 = vpop.f32.mrf.mxu0
        %6537 = vmatprep.mubr.f32.mxu0 0.0
        %6538 = vmatmul.mubr.f32.gmra.mxu0 %v6467
        %v6539 = vpop.f32.mrf.mxu0
        %v6540 = vadd.f32 %v1433, %v6539
        %v6541 = vpop.f32.mrf.mxu0
        %6542 = vdwg.mxu0
        %v6543 = vadd.f32 %v6301, %v6535
        %v6544 = vadd.f32 %v6302, %v6540
        %6545 = vst.msk [vmem:[%s527] sm:$0xff] %vm551, %v6543
        %6546 = vst.msk [vmem:[%s527 + $0x8] sm:$0xff] %vm551, %v6544
        %s6547 = sand.u32 %s384, 1
        %s6548 = scalar_lea.sflag [#allocation3], %s6547
        %s6549 = sand.u32 %s384, 1
        %s6550 = smul.addr %s6549, 16
        %s6551 = scalar_lea.vmem [#allocation2], %s6550
        // Predicated region
        $region85: #{decoder_forward.1} parent=83 // pred_check
          %p6552 = pneg %p394
        $region86: #{decoder_forward.1} parent=83 // pred_check_branch
          %6554 = sbr.rel (%p6552) target = $region88
        $region87: #{decoder_forward.1} parent=83 // pred_region
          %s6556 = ssub.s32 256, 256
          %6557 = vsyncadd %s6548, %s6556
          %s6558 = smul.addr %s30, 2
          %s6559 = smul.addr %s6558, 128
          %s6560 = scalar_lea.hbm %s16, %s6559
          %s6561 = sshll.u32 %s6551, 4
          %s6562 = int_to_ptr.vmem [resolvable:$true] %s6561
          %6567 = dma.vmem_to_hbm [thread:$0]  %s6562, 256, %s6560, %s6548, 128, 128, 8
        $region88: #{decoder_forward.1} parent=83 // pred_fallthru
          _
      $region84: #{decoder_forward.1} parent=5 // pred_fallthru
        _
      %p6568 = scmp.le.s32.totalorder 2, %s25
      // Predicated region
      $region89: #{decoder_forward.1} parent=5 // pred_check
        %p6569 = pneg %p6568
      $region90: #{decoder_forward.1} parent=5 // pred_check_branch
        %6571 = sbr.rel (%p6569) target = $region92
      $region91: #{decoder_forward.1} parent=5 // pred_region
        %s6572 = ssub.s32 %s25, 2
        // Predicated region
        $region93: #{decoder_forward.1} parent=91 // pred_check
          %p6573 = pneg %p400
        $region94: #{decoder_forward.1} parent=91 // pred_check_branch
          %6575 = sbr.rel (%p6573) target = $region96
        $region95: #{decoder_forward.1} parent=91 // pred_region
          %s6576 = sand.u32 %s385, 1
          %s6577 = scalar_lea.sflag [#allocation3], %s6576
          %s6578 = sand.u32 %s385, 1
          %s6579 = smul.addr %s6578, 16
          %s6580 = scalar_lea.vmem [#allocation2], %s6579
          %6581 = dma.done %s6577, 256
        $region96: #{decoder_forward.1} parent=91 // pred_fallthru
          _
      $region92: #{decoder_forward.1} parent=5 // pred_fallthru
        _
    $region6: #{decoder_forward.1} parent=1 // loop_footer
      %s29 = sadd.s32 1, %s25
    $region7: #{decoder_forward.1} parent=1 // loop_footer_branch
      %24 = sbr.rel target = $region3
    $region8: #{decoder_forward.1} parent=1 // loop_exit
      _
    %6582 = vsyncpa [#allocation3], 1
    %s6583 = scalar_lea.sflag [#allocation3], 1
    %6584 = vsyncpa %s6583, 1

</llo_original>
